<compile_context>
chip_gen: v5e
topology: v5e:2x2
jax: 0.10.0
libtpu: 0.0.40
codegen_flags: <defaults>
</compile_context>

<pallas_src>
import functools

import jax
import jax.numpy as jnp
from jax import lax
from jax.experimental import pallas as pl
from jax.experimental.pallas import tpu as pltpu

LEAKY_SLOPE = 0.2
BN_EPS = 1e-5  # PyTorch BatchNorm2d default


def _round_up(x, m):
    return (x + m - 1) // m * m


def _choose_tm(m, k):
    """K-aware M tile: target ~4 MiB bf16 A tile, clamp to [256, 2048] and to
    the (16-aligned, for bf16 sublane packing) problem size."""
    tm = (4 * 1024 * 1024) // (2 * max(k, 1))
    tm = max(256, min(2048, (tm // 256) * 256))
    return min(tm, _round_up(m, 16))


# ---------------------------------------------------------------------------
# Pallas kernels
# ---------------------------------------------------------------------------
def _gemm_act_kernel(a_ref, b_ref, o_ref, *, activation):
    """(tm, K) x (K, Np) GEMM block with a fused activation."""
    y = jnp.dot(a_ref[...], b_ref[...], preferred_element_type=jnp.float32)
    if activation == "leaky":
        y = jnp.where(y > 0, y, LEAKY_SLOPE * y)
    elif activation == "sigmoid":
        y = jax.nn.sigmoid(y)
    o_ref[...] = y.astype(o_ref.dtype)


def _gemm_stats_kernel(a_ref, b_ref, o_ref, stats_ref):
    """Two-pass BatchNorm, pass 1: GEMM block + per-tile column sum/sum-sq
    taken from the f32 accumulator (zero-padded M rows contribute zero)."""
    y = jnp.dot(a_ref[...], b_ref[...], preferred_element_type=jnp.float32)
    stats_ref[0, 0:1, :] = jnp.sum(y, axis=0, keepdims=True)
    stats_ref[0, 1:2, :] = jnp.sum(y * y, axis=0, keepdims=True)
    o_ref[...] = y.astype(o_ref.dtype)


def _bn_lrelu_kernel(y_ref, scale_ref, shift_ref, o_ref):
    """Two-pass BatchNorm, pass 2: y*scale + shift then LeakyReLU(0.2)."""
    y = y_ref[...].astype(jnp.float32)
    y = y * scale_ref[...] + shift_ref[...]
    o_ref[...] = jnp.where(y > 0, y, LEAKY_SLOPE * y).astype(o_ref.dtype)


# ---------------------------------------------------------------------------
# Pallas wrappers
# ---------------------------------------------------------------------------
def pallas_gemm(a, b, *, tm, activation="none", with_stats=False,
                out_dtype=jnp.bfloat16):
    """act(a @ b) (or raw a@b plus per-tile BN stats), tiled over M."""
    m, k = a.shape
    k2, n_p = b.shape
    assert k == k2 and n_p % 128 == 0

    m_p = _round_up(m, tm)
    if m_p != m:
        a = jnp.pad(a, ((0, m_p - m), (0, 0)))  # zero rows: inert for GEMM/BN
    n_tiles = m_p // tm

    vmem_bytes = 2 * (tm * k * 2 + k * n_p * 2 + tm * n_p * 4 + 2 * n_p * 4)
    params = pltpu.CompilerParams(
        dimension_semantics=("parallel",),
        vmem_limit_bytes=int(min(max(vmem_bytes + (4 << 20), 32 << 20),
                                 48 << 20)))

    in_specs = [pl.BlockSpec((tm, k), lambda i: (i, 0)),
                pl.BlockSpec((k, n_p), lambda i: (0, 0))]

    if with_stats:
        out_shape = (jax.ShapeDtypeStruct((m_p, n_p), out_dtype),
                     jax.ShapeDtypeStruct((n_tiles, 2, n_p), jnp.float32))
        out_specs = (pl.BlockSpec((tm, n_p), lambda i: (i, 0)),
                     pl.BlockSpec((1, 2, n_p), lambda i: (i, 0, 0)))
        kernel = _gemm_stats_kernel
    else:
        out_shape = jax.ShapeDtypeStruct((m_p, n_p), out_dtype)
        out_specs = pl.BlockSpec((tm, n_p), lambda i: (i, 0))
        kernel = functools.partial(_gemm_act_kernel, activation=activation)

    return pl.pallas_call(
        kernel,
        out_shape=out_shape,
        grid=(n_tiles,),
        in_specs=in_specs,
        out_specs=out_specs,
        compiler_params=params,
    )(a, b)


def pallas_bn_lrelu(y, scale, shift, *, tm):
    m_p, n_p = y.shape
    return pl.pallas_call(
        _bn_lrelu_kernel,
        out_shape=jax.ShapeDtypeStruct((m_p, n_p), y.dtype),
        grid=(m_p // tm,),
        in_specs=[pl.BlockSpec((tm, n_p), lambda i: (i, 0)),
                  pl.BlockSpec((1, n_p), lambda i: (0, 0)),
                  pl.BlockSpec((1, n_p), lambda i: (0, 0))],
        out_specs=pl.BlockSpec((tm, n_p), lambda i: (i, 0)),
        compiler_params=pltpu.CompilerParams(
            dimension_semantics=("parallel",)),
    )(y, scale, shift)


# ---------------------------------------------------------------------------
# Conv layer = im2col glue + Pallas GEMM (+ two-pass BN)
# ---------------------------------------------------------------------------
def _im2col(x_nhwc, k, stride):
    """(N,H,W,C) -> (N*Ho*Wo, k*k*C); columns ordered (kh, kw, cin)."""
    n, h, w, c = x_nhwc.shape
    ho = (h - k) // stride + 1
    wo = (w - k) // stride + 1
    cols = []
    for kh in range(k):
        for kw in range(k):
            cols.append(x_nhwc[:, kh:kh + (ho - 1) * stride + 1:stride,
                               kw:kw + (wo - 1) * stride + 1:stride, :])
    patches = jnp.stack(cols, axis=3)              # (N, Ho, Wo, k*k, C)
    return patches.reshape(n * ho * wo, k * k * c), ho, wo


# TODO(synk): fuse the im2col patch construction into the GEMM kernel (manual
# make_async_copy from a pl.ANY NHWC ref) to remove the k*k read amplification
# on the A-side HBM traffic of the early layers.
def conv_block(x_nhwc, w_oihw, stride, padding, *, activation, use_bn,
               out_dtype=jnp.bfloat16):
    cout, cin, k, _ = w_oihw.shape
    w = w_oihw.astype(jnp.bfloat16)

    # Pad Cin -> multiple of 8 so K = k*k*Cin is lane aligned (k=4 -> K%128==0).
    # This pad is on the cheap pre-im2col tensor, not the 16x-expanded matrix.
    cin_p = _round_up(cin, 8)
    if cin_p != cin:
        x_nhwc = jnp.pad(x_nhwc, ((0, 0), (0, 0), (0, 0), (0, cin_p - cin)))
        w = jnp.pad(w, ((0, 0), (0, cin_p - cin), (0, 0), (0, 0)))
    if padding:
        x_nhwc = jnp.pad(
            x_nhwc, ((0, 0), (padding, padding), (padding, padding), (0, 0)))

    a, ho, wo = _im2col(x_nhwc, k, stride)
    m, kk = a.shape

    # weight (Cout,Cin,kh,kw) -> (kh,kw,Cin,Cout) -> (K, Cout); pad Cout (tiny)
    # to a lane-dense multiple of 128 so output stores stay unmasked.
    n_p = _round_up(cout, 128)
    b = jnp.transpose(w, (2, 3, 1, 0)).reshape(kk, cout)
    b = jnp.pad(b, ((0, 0), (0, n_p - cout)))

    tm = _choose_tm(m, kk)
    if use_bn:
        # BatchNorm2d in train mode: batch stats over (N,H,W) == GEMM rows,
        # biased variance, gamma=1 / beta=0 (PyTorch default affine init).
        y_raw, stats = pallas_gemm(a, b, tm=tm, with_stats=True,
                                   out_dtype=jnp.bfloat16)
        s = jnp.sum(stats, axis=0)                        # (2, Np) f32
        mean = s[0] / m
        var = jnp.maximum(s[1] / m - mean * mean, 0.0)    # clamp f32 rounding
        scale = lax.rsqrt(var + BN_EPS)
        shift = -mean * scale
        y = pallas_bn_lrelu(y_raw, scale[None, :], shift[None, :], tm=tm)
    else:
        y = pallas_gemm(a, b, tm=tm, activation=activation,
                        out_dtype=out_dtype)

    y = y[:m, :cout]
    return y.reshape(x_nhwc.shape[0], ho, wo, cout)


# ---------------------------------------------------------------------------
# Model
# ---------------------------------------------------------------------------
def init_params(key, channels=3):
    ks = jax.random.split(key, 5)
    shapes = [(32, channels, 4, 4), (64, 32, 4, 4), (128, 64, 4, 4),
              (256, 128, 4, 4), (1, 256, 4, 4)]
    return {f"w{i+1}": (0.05 * jax.random.normal(ks[i], s, jnp.float32))
            for i, s in enumerate(shapes)}


@jax.jit
def discriminator_forward(imgs_nchw, params):
    x = jnp.transpose(imgs_nchw, (0, 2, 3, 1)).astype(jnp.bfloat16)  # NCHW->NHWC
    x = conv_block(x, params["w1"], 2, 1, activation="leaky", use_bn=False)
    x = conv_block(x, params["w2"], 2, 1, activation="leaky", use_bn=False)
    x = conv_block(x, params["w3"], 2, 1, activation="leaky", use_bn=True)
    x = conv_block(x, params["w4"], 2, 1, activation="leaky", use_bn=True)
    x = conv_block(x, params["w5"], 1, 0, activation="sigmoid", use_bn=False,
                   out_dtype=jnp.float32)
    return x.reshape(-1, 1).astype(jnp.float32)      # == torch out.view(-1, 1)


def reference_forward(imgs, params):
    """Pure-JAX f32 reference (lax.conv) for correctness checking."""
    def conv(x, w, stride, pad):
        return lax.conv_general_dilated(
            x, w, (stride, stride), [(pad, pad), (pad, pad)],
            dimension_numbers=("NCHW", "OIHW", "NCHW"))

    def bn(x):
        mean = jnp.mean(x, axis=(0, 2, 3), keepdims=True)
        var = jnp.mean(x * x, axis=(0, 2, 3), keepdims=True) - mean * mean
        return (x - mean) * lax.rsqrt(var + BN_EPS)

    def lrelu(x):
        return jnp.where(x > 0, x, LEAKY_SLOPE * x)

    x = imgs.astype(jnp.float32)
    x = lrelu(conv(x, params["w1"], 2, 1))
    x = lrelu(conv(x, params["w2"], 2, 1))
    x = lrelu(bn(conv(x, params["w3"], 2, 1)))
    x = lrelu(bn(conv(x, params["w4"], 2, 1)))
    x = jax.nn.sigmoid(conv(x, params["w5"], 1, 0))
    return x.reshape(-1, 1)


if __name__ == "__main__":
    key = jax.random.PRNGKey(0)
    k_img, k_par = jax.random.split(key)
    # Small batch; 64x64 spatial is required by the architecture (four stride-2
    # convs followed by a 4x4 valid conv -> 1x1 map).
    imgs = jax.random.normal(k_img, (2, 3, 64, 64), jnp.float32)
    params = init_params(k_par, channels=3)

    out = discriminator_forward(imgs, params)
    out = jax.block_until_ready(out)
    assert out.shape == (2, 1), out.shape

    ref = reference_forward(imgs, params)
    # bf16 operands / bf16 intermediates vs f32 reference -> looser tolerance.
    assert jnp.allclose(out, ref, atol=5e-2), (out, ref)

    print("KERNEL_OK")
</pallas_src>

<mosaic_0001>
module attributes {stable_mosaic.version = 11 : i64} {
  func.func @_gemm_act_kernel(%arg0: i32, %arg1: memref<2048x128xbf16, #tpu.memory_space<vmem>>, %arg2: memref<128x128xbf16, #tpu.memory_space<vmem>>, %arg3: memref<2048x128xbf16, #tpu.memory_space<vmem>>) attributes {dimension_semantics = [#tpu.dimension_semantics<parallel>], iteration_bounds = array<i64: 1>, scalar_prefetch = 0 : i64, scratch_operands = 0 : i64, tpu.core_type = #tpu.core_type<tc>, window_params = [{transform_indices = @transform_0, window_bounds = array<i64: 2048, 128>}, {pipeline_mode = #tpu.pipeline_mode<synchronous>, transform_indices = @transform_1, window_bounds = array<i64: 128, 128>}, {transform_indices = @transform_2, window_bounds = array<i64: 2048, 128>}]} {
    %c0 = arith.constant 0 : index
    %c0_0 = arith.constant 0 : index
    %0 = vector.load %arg1[%c0, %c0_0] : memref<2048x128xbf16, #tpu.memory_space<vmem>>, vector<2048x128xbf16>
    %c0_1 = arith.constant 0 : index
    %c0_2 = arith.constant 0 : index
    %1 = vector.load %arg2[%c0_1, %c0_2] : memref<128x128xbf16, #tpu.memory_space<vmem>>, vector<128x128xbf16>
    %cst = arith.constant dense<0.000000e+00> : vector<2048x128xf32>
    %2 = tpu.matmul %0, %1, %cst {dimension_numbers = #tpu.dot_dimension_numbers<[1], [0], [0], [1], [0, 0, 1, 1], [], []>} : vector<2048x128xbf16>, vector<128x128xbf16>, vector<2048x128xf32> -> vector<2048x128xf32>
    %cst_3 = arith.constant 0.000000e+00 : f32
    %3 = vector.broadcast %cst_3 : f32 to vector<2048x128xf32>
    %4 = arith.cmpf ogt, %2, %3 : vector<2048x128xf32>
    %cst_4 = arith.constant 2.000000e-01 : f32
    %5 = vector.broadcast %cst_4 : f32 to vector<2048x128xf32>
    %6 = arith.mulf %5, %2 : vector<2048x128xf32>
    %7 = arith.select %4, %2, %6 : vector<2048x128xi1>, vector<2048x128xf32>
    %8 = arith.truncf %7 : vector<2048x128xf32> to vector<2048x128xbf16>
    %c0_5 = arith.constant 0 : index
    %c0_6 = arith.constant 0 : index
    %9 = vector.load %arg3[%c0_5, %c0_6] : memref<2048x128xbf16, #tpu.memory_space<vmem>>, vector<2048x128xbf16>
    tpu.vector_store %arg3[%c0_5, %c0_6], %8 {strides = array<i32>} : memref<2048x128xbf16, #tpu.memory_space<vmem>>, vector<2048x128xbf16>,
    return
  }
  func.func @transform_0(%arg0: i32) -> (i32, i32) {
    %c0_i32 = arith.constant 0 : i32
    %c0_i32_0 = arith.constant 0 : i32
    return %arg0, %c0_i32 : i32, i32
  }
  func.func @transform_1(%arg0: i32) -> (i32, i32) {
    %c0_i32 = arith.constant 0 : i32
    %c0_i32_0 = arith.constant 0 : i32
    %c0_i32_1 = arith.constant 0 : i32
    return %c0_i32, %c0_i32_0 : i32, i32
  }
  func.func @transform_2(%arg0: i32) -> (i32, i32) {
    %c0_i32 = arith.constant 0 : i32
    %c0_i32_0 = arith.constant 0 : i32
    return %arg0, %c0_i32 : i32, i32
  }
}

module attributes {stable_mosaic.version = 11 : i64} {
  func.func @_gemm_act_kernel(%arg0: i32, %arg1: memref<512x512xbf16, #tpu.memory_space<vmem>>, %arg2: memref<512x128xbf16, #tpu.memory_space<vmem>>, %arg3: memref<512x128xbf16, #tpu.memory_space<vmem>>) attributes {dimension_semantics = [#tpu.dimension_semantics<parallel>], iteration_bounds = array<i64: 1>, scalar_prefetch = 0 : i64, scratch_operands = 0 : i64, tpu.core_type = #tpu.core_type<tc>, window_params = [{transform_indices = @transform_0, window_bounds = array<i64: 512, 512>}, {pipeline_mode = #tpu.pipeline_mode<synchronous>, transform_indices = @transform_1, window_bounds = array<i64: 512, 128>}, {transform_indices = @transform_2, window_bounds = array<i64: 512, 128>}]} {
    %c0 = arith.constant 0 : index
    %c0_0 = arith.constant 0 : index
    %0 = vector.load %arg1[%c0, %c0_0] : memref<512x512xbf16, #tpu.memory_space<vmem>>, vector<512x512xbf16>
    %c0_1 = arith.constant 0 : index
    %c0_2 = arith.constant 0 : index
    %1 = vector.load %arg2[%c0_1, %c0_2] : memref<512x128xbf16, #tpu.memory_space<vmem>>, vector<512x128xbf16>
    %cst = arith.constant dense<0.000000e+00> : vector<512x128xf32>
    %2 = tpu.matmul %0, %1, %cst {dimension_numbers = #tpu.dot_dimension_numbers<[1], [0], [0], [1], [0, 0, 1, 1], [], []>} : vector<512x512xbf16>, vector<512x128xbf16>, vector<512x128xf32> -> vector<512x128xf32>
    %cst_3 = arith.constant 0.000000e+00 : f32
    %3 = vector.broadcast %cst_3 : f32 to vector<512x128xf32>
    %4 = arith.cmpf ogt, %2, %3 : vector<512x128xf32>
    %cst_4 = arith.constant 2.000000e-01 : f32
    %5 = vector.broadcast %cst_4 : f32 to vector<512x128xf32>
    %6 = arith.mulf %5, %2 : vector<512x128xf32>
    %7 = arith.select %4, %2, %6 : vector<512x128xi1>, vector<512x128xf32>
    %8 = arith.truncf %7 : vector<512x128xf32> to vector<512x128xbf16>
    %c0_5 = arith.constant 0 : index
    %c0_6 = arith.constant 0 : index
    %9 = vector.load %arg3[%c0_5, %c0_6] : memref<512x128xbf16, #tpu.memory_space<vmem>>, vector<512x128xbf16>
    tpu.vector_store %arg3[%c0_5, %c0_6], %8 {strides = array<i32>} : memref<512x128xbf16, #tpu.memory_space<vmem>>, vector<512x128xbf16>,
    return
  }
  func.func @transform_0(%arg0: i32) -> (i32, i32) {
    %c0_i32 = arith.constant 0 : i32
    %c0_i32_0 = arith.constant 0 : i32
    return %arg0, %c0_i32 : i32, i32
  }
  func.func @transform_1(%arg0: i32) -> (i32, i32) {
    %c0_i32 = arith.constant 0 : i32
    %c0_i32_0 = arith.constant 0 : i32
    %c0_i32_1 = arith.constant 0 : i32
    return %c0_i32, %c0_i32_0 : i32, i32
  }
  func.func @transform_2(%arg0: i32) -> (i32, i32) {
    %c0_i32 = arith.constant 0 : i32
    %c0_i32_0 = arith.constant 0 : i32
    return %arg0, %c0_i32 : i32, i32
  }
}

module attributes {stable_mosaic.version = 11 : i64} {
  func.func @_gemm_stats_kernel(%arg0: i32, %arg1: memref<128x1024xbf16, #tpu.memory_space<vmem>>, %arg2: memref<1024x128xbf16, #tpu.memory_space<vmem>>, %arg3: memref<128x128xbf16, #tpu.memory_space<vmem>>, %arg4: memref<1x2x128xf32, #tpu.memory_space<vmem>>) attributes {dimension_semantics = [#tpu.dimension_semantics<parallel>], iteration_bounds = array<i64: 1>, scalar_prefetch = 0 : i64, scratch_operands = 0 : i64, tpu.core_type = #tpu.core_type<tc>, window_params = [{transform_indices = @transform_0, window_bounds = array<i64: 128, 1024>}, {pipeline_mode = #tpu.pipeline_mode<synchronous>, transform_indices = @transform_1, window_bounds = array<i64: 1024, 128>}, {transform_indices = @transform_2, window_bounds = array<i64: 128, 128>}, {transform_indices = @transform_3, window_bounds = array<i64: 1, 2, 128>}]} {
    %c0 = arith.constant 0 : index
    %c0_0 = arith.constant 0 : index
    %0 = vector.load %arg1[%c0, %c0_0] : memref<128x1024xbf16, #tpu.memory_space<vmem>>, vector<128x1024xbf16>
    %c0_1 = arith.constant 0 : index
    %c0_2 = arith.constant 0 : index
    %1 = vector.load %arg2[%c0_1, %c0_2] : memref<1024x128xbf16, #tpu.memory_space<vmem>>, vector<1024x128xbf16>
    %cst = arith.constant dense<0.000000e+00> : vector<128x128xf32>
    %2 = tpu.matmul %0, %1, %cst {dimension_numbers = #tpu.dot_dimension_numbers<[1], [0], [0], [1], [0, 0, 1, 1], [], []>} : vector<128x1024xbf16>, vector<1024x128xbf16>, vector<128x128xf32> -> vector<128x128xf32>
    %cst_3 = arith.constant dense<0.000000e+00> : vector<128xf32>
    %3 = vector.multi_reduction <add>, %2, %cst_3 [0] : vector<128x128xf32> to vector<128xf32>
    %4 = vector.shape_cast %3 : vector<128xf32> to vector<1x128xf32>
    %c0_4 = arith.constant 0 : index
    %c0_5 = arith.constant 0 : index
    %c0_6 = arith.constant 0 : index
    %5 = vector.load %arg4[%c0_4, %c0_5, %c0_6] : memref<1x2x128xf32, #tpu.memory_space<vmem>>, vector<1x1x128xf32>
    %6 = vector.shape_cast %5 : vector<1x1x128xf32> to vector<1x128xf32>
    %7 = vector.shape_cast %4 : vector<1x128xf32> to vector<1x1x128xf32>
    tpu.vector_store %arg4[%c0_4, %c0_5, %c0_6], %7 {strides = array<i32>} : memref<1x2x128xf32, #tpu.memory_space<vmem>>, vector<1x1x128xf32>,
    %8 = arith.mulf %2, %2 : vector<128x128xf32>
    %cst_7 = arith.constant dense<0.000000e+00> : vector<128xf32>
    %9 = vector.multi_reduction <add>, %8, %cst_7 [0] : vector<128x128xf32> to vector<128xf32>
    %10 = vector.shape_cast %9 : vector<128xf32> to vector<1x128xf32>
    %c0_8 = arith.constant 0 : index
    %c1 = arith.constant 1 : index
    %c0_9 = arith.constant 0 : index
    %11 = vector.load %arg4[%c0_8, %c1, %c0_9] : memref<1x2x128xf32, #tpu.memory_space<vmem>>, vector<1x1x128xf32>
    %12 = vector.shape_cast %11 : vector<1x1x128xf32> to vector<1x128xf32>
    %13 = vector.shape_cast %10 : vector<1x128xf32> to vector<1x1x128xf32>
    tpu.vector_store %arg4[%c0_8, %c1, %c0_9], %13 {strides = array<i32>} : memref<1x2x128xf32, #tpu.memory_space<vmem>>, vector<1x1x128xf32>,
    %14 = arith.truncf %2 : vector<128x128xf32> to vector<128x128xbf16>
    %c0_10 = arith.constant 0 : index
    %c0_11 = arith.constant 0 : index
    %15 = vector.load %arg3[%c0_10, %c0_11] : memref<128x128xbf16, #tpu.memory_space<vmem>>, vector<128x128xbf16>
    tpu.vector_store %arg3[%c0_10, %c0_11], %14 {strides = array<i32>} : memref<128x128xbf16, #tpu.memory_space<vmem>>, vector<128x128xbf16>,
    return
  }
  func.func @transform_0(%arg0: i32) -> (i32, i32) {
    %c0_i32 = arith.constant 0 : i32
    %c0_i32_0 = arith.constant 0 : i32
    return %arg0, %c0_i32 : i32, i32
  }
  func.func @transform_1(%arg0: i32) -> (i32, i32) {
    %c0_i32 = arith.constant 0 : i32
    %c0_i32_0 = arith.constant 0 : i32
    %c0_i32_1 = arith.constant 0 : i32
    return %c0_i32, %c0_i32_0 : i32, i32
  }
  func.func @transform_2(%arg0: i32) -> (i32, i32) {
    %c0_i32 = arith.constant 0 : i32
    %c0_i32_0 = arith.constant 0 : i32
    return %arg0, %c0_i32 : i32, i32
  }
  func.func @transform_3(%arg0: i32) -> (i32, i32, i32) {
    %c0_i32 = arith.constant 0 : i32
    %c0_i32_0 = arith.constant 0 : i32
    %c0_i32_1 = arith.constant 0 : i32
    return %arg0, %c0_i32, %c0_i32_0 : i32, i32, i32
  }
}

module attributes {stable_mosaic.version = 11 : i64} {
  func.func @_bn_lrelu_kernel(%arg0: i32, %arg1: memref<128x128xbf16, #tpu.memory_space<vmem>>, %arg2: memref<1x128xf32, #tpu.memory_space<vmem>>, %arg3: memref<1x128xf32, #tpu.memory_space<vmem>>, %arg4: memref<128x128xbf16, #tpu.memory_space<vmem>>) attributes {dimension_semantics = [#tpu.dimension_semantics<parallel>], iteration_bounds = array<i64: 1>, scalar_prefetch = 0 : i64, scratch_operands = 0 : i64, tpu.core_type = #tpu.core_type<tc>, window_params = [{transform_indices = @transform_0, window_bounds = array<i64: 128, 128>}, {pipeline_mode = #tpu.pipeline_mode<synchronous>, transform_indices = @transform_1, window_bounds = array<i64: 1, 128>}, {pipeline_mode = #tpu.pipeline_mode<synchronous>, transform_indices = @transform_2, window_bounds = array<i64: 1, 128>}, {transform_indices = @transform_3, window_bounds = array<i64: 128, 128>}]} {
    %c0 = arith.constant 0 : index
    %c0_0 = arith.constant 0 : index
    %0 = vector.load %arg1[%c0, %c0_0] : memref<128x128xbf16, #tpu.memory_space<vmem>>, vector<128x128xbf16>
    %1 = arith.extf %0 : vector<128x128xbf16> to vector<128x128xf32>
    %c0_1 = arith.constant 0 : index
    %c0_2 = arith.constant 0 : index
    %2 = vector.load %arg2[%c0_1, %c0_2] : memref<1x128xf32, #tpu.memory_space<vmem>>, vector<1x128xf32>
    %3 = vector.broadcast %2 : vector<1x128xf32> to vector<128x128xf32>
    %4 = arith.mulf %1, %3 : vector<128x128xf32>
    %c0_3 = arith.constant 0 : index
    %c0_4 = arith.constant 0 : index
    %5 = vector.load %arg3[%c0_3, %c0_4] : memref<1x128xf32, #tpu.memory_space<vmem>>, vector<1x128xf32>
    %6 = vector.broadcast %5 : vector<1x128xf32> to vector<128x128xf32>
    %7 = arith.addf %4, %6 : vector<128x128xf32>
    %cst = arith.constant 0.000000e+00 : f32
    %8 = vector.broadcast %cst : f32 to vector<128x128xf32>
    %9 = arith.cmpf ogt, %7, %8 : vector<128x128xf32>
    %cst_5 = arith.constant 2.000000e-01 : f32
    %10 = vector.broadcast %cst_5 : f32 to vector<128x128xf32>
    %11 = arith.mulf %10, %7 : vector<128x128xf32>
    %12 = arith.select %9, %7, %11 : vector<128x128xi1>, vector<128x128xf32>
    %13 = arith.truncf %12 : vector<128x128xf32> to vector<128x128xbf16>
    %c0_6 = arith.constant 0 : index
    %c0_7 = arith.constant 0 : index
    %14 = vector.load %arg4[%c0_6, %c0_7] : memref<128x128xbf16, #tpu.memory_space<vmem>>, vector<128x128xbf16>
    tpu.vector_store %arg4[%c0_6, %c0_7], %13 {strides = array<i32>} : memref<128x128xbf16, #tpu.memory_space<vmem>>, vector<128x128xbf16>,
    return
  }
  func.func @transform_0(%arg0: i32) -> (i32, i32) {
    %c0_i32 = arith.constant 0 : i32
    %c0_i32_0 = arith.constant 0 : i32
    return %arg0, %c0_i32 : i32, i32
  }
  func.func @transform_1(%arg0: i32) -> (i32, i32) {
    %c0_i32 = arith.constant 0 : i32
    %c0_i32_0 = arith.constant 0 : i32
    %c0_i32_1 = arith.constant 0 : i32
    return %c0_i32, %c0_i32_0 : i32, i32
  }
  func.func @transform_2(%arg0: i32) -> (i32, i32) {
    %c0_i32 = arith.constant 0 : i32
    %c0_i32_0 = arith.constant 0 : i32
    %c0_i32_1 = arith.constant 0 : i32
    return %c0_i32, %c0_i32_0 : i32, i32
  }
  func.func @transform_3(%arg0: i32) -> (i32, i32) {
    %c0_i32 = arith.constant 0 : i32
    %c0_i32_0 = arith.constant 0 : i32
    return %arg0, %c0_i32 : i32, i32
  }
}

module attributes {stable_mosaic.version = 11 : i64} {
  func.func @_gemm_stats_kernel(%arg0: i32, %arg1: memref<32x2048xbf16, #tpu.memory_space<vmem>>, %arg2: memref<2048x256xbf16, #tpu.memory_space<vmem>>, %arg3: memref<32x256xbf16, #tpu.memory_space<vmem>>, %arg4: memref<1x2x256xf32, #tpu.memory_space<vmem>>) attributes {dimension_semantics = [#tpu.dimension_semantics<parallel>], iteration_bounds = array<i64: 1>, scalar_prefetch = 0 : i64, scratch_operands = 0 : i64, tpu.core_type = #tpu.core_type<tc>, window_params = [{transform_indices = @transform_0, window_bounds = array<i64: 32, 2048>}, {pipeline_mode = #tpu.pipeline_mode<synchronous>, transform_indices = @transform_1, window_bounds = array<i64: 2048, 256>}, {transform_indices = @transform_2, window_bounds = array<i64: 32, 256>}, {transform_indices = @transform_3, window_bounds = array<i64: 1, 2, 256>}]} {
    %c0 = arith.constant 0 : index
    %c0_0 = arith.constant 0 : index
    %0 = vector.load %arg1[%c0, %c0_0] : memref<32x2048xbf16, #tpu.memory_space<vmem>>, vector<32x2048xbf16>
    %c0_1 = arith.constant 0 : index
    %c0_2 = arith.constant 0 : index
    %1 = vector.load %arg2[%c0_1, %c0_2] : memref<2048x256xbf16, #tpu.memory_space<vmem>>, vector<2048x256xbf16>
    %cst = arith.constant dense<0.000000e+00> : vector<32x256xf32>
    %2 = tpu.matmul %0, %1, %cst {dimension_numbers = #tpu.dot_dimension_numbers<[1], [0], [0], [1], [0, 0, 1, 1], [], []>} : vector<32x2048xbf16>, vector<2048x256xbf16>, vector<32x256xf32> -> vector<32x256xf32>
    %cst_3 = arith.constant dense<0.000000e+00> : vector<256xf32>
    %3 = vector.multi_reduction <add>, %2, %cst_3 [0] : vector<32x256xf32> to vector<256xf32>
    %4 = vector.shape_cast %3 : vector<256xf32> to vector<1x256xf32>
    %c0_4 = arith.constant 0 : index
    %c0_5 = arith.constant 0 : index
    %c0_6 = arith.constant 0 : index
    %5 = vector.load %arg4[%c0_4, %c0_5, %c0_6] : memref<1x2x256xf32, #tpu.memory_space<vmem>>, vector<1x1x256xf32>
    %6 = vector.shape_cast %5 : vector<1x1x256xf32> to vector<1x256xf32>
    %7 = vector.shape_cast %4 : vector<1x256xf32> to vector<1x1x256xf32>
    tpu.vector_store %arg4[%c0_4, %c0_5, %c0_6], %7 {strides = array<i32>} : memref<1x2x256xf32, #tpu.memory_space<vmem>>, vector<1x1x256xf32>,
    %8 = arith.mulf %2, %2 : vector<32x256xf32>
    %cst_7 = arith.constant dense<0.000000e+00> : vector<256xf32>
    %9 = vector.multi_reduction <add>, %8, %cst_7 [0] : vector<32x256xf32> to vector<256xf32>
    %10 = vector.shape_cast %9 : vector<256xf32> to vector<1x256xf32>
    %c0_8 = arith.constant 0 : index
    %c1 = arith.constant 1 : index
    %c0_9 = arith.constant 0 : index
    %11 = vector.load %arg4[%c0_8, %c1, %c0_9] : memref<1x2x256xf32, #tpu.memory_space<vmem>>, vector<1x1x256xf32>
    %12 = vector.shape_cast %11 : vector<1x1x256xf32> to vector<1x256xf32>
    %13 = vector.shape_cast %10 : vector<1x256xf32> to vector<1x1x256xf32>
    tpu.vector_store %arg4[%c0_8, %c1, %c0_9], %13 {strides = array<i32>} : memref<1x2x256xf32, #tpu.memory_space<vmem>>, vector<1x1x256xf32>,
    %14 = arith.truncf %2 : vector<32x256xf32> to vector<32x256xbf16>
    %c0_10 = arith.constant 0 : index
    %c0_11 = arith.constant 0 : index
    %15 = vector.load %arg3[%c0_10, %c0_11] : memref<32x256xbf16, #tpu.memory_space<vmem>>, vector<32x256xbf16>
    tpu.vector_store %arg3[%c0_10, %c0_11], %14 {strides = array<i32>} : memref<32x256xbf16, #tpu.memory_space<vmem>>, vector<32x256xbf16>,
    return
  }
  func.func @transform_0(%arg0: i32) -> (i32, i32) {
    %c0_i32 = arith.constant 0 : i32
    %c0_i32_0 = arith.constant 0 : i32
    return %arg0, %c0_i32 : i32, i32
  }
  func.func @transform_1(%arg0: i32) -> (i32, i32) {
    %c0_i32 = arith.constant 0 : i32
    %c0_i32_0 = arith.constant 0 : i32
    %c0_i32_1 = arith.constant 0 : i32
    return %c0_i32, %c0_i32_0 : i32, i32
  }
  func.func @transform_2(%arg0: i32) -> (i32, i32) {
    %c0_i32 = arith.constant 0 : i32
    %c0_i32_0 = arith.constant 0 : i32
    return %arg0, %c0_i32 : i32, i32
  }
  func.func @transform_3(%arg0: i32) -> (i32, i32, i32) {
    %c0_i32 = arith.constant 0 : i32
    %c0_i32_0 = arith.constant 0 : i32
    %c0_i32_1 = arith.constant 0 : i32
    return %arg0, %c0_i32, %c0_i32_0 : i32, i32, i32
  }
}

module attributes {stable_mosaic.version = 11 : i64} {
  func.func @_bn_lrelu_kernel(%arg0: i32, %arg1: memref<32x256xbf16, #tpu.memory_space<vmem>>, %arg2: memref<1x256xf32, #tpu.memory_space<vmem>>, %arg3: memref<1x256xf32, #tpu.memory_space<vmem>>, %arg4: memref<32x256xbf16, #tpu.memory_space<vmem>>) attributes {dimension_semantics = [#tpu.dimension_semantics<parallel>], iteration_bounds = array<i64: 1>, scalar_prefetch = 0 : i64, scratch_operands = 0 : i64, tpu.core_type = #tpu.core_type<tc>, window_params = [{transform_indices = @transform_0, window_bounds = array<i64: 32, 256>}, {pipeline_mode = #tpu.pipeline_mode<synchronous>, transform_indices = @transform_1, window_bounds = array<i64: 1, 256>}, {pipeline_mode = #tpu.pipeline_mode<synchronous>, transform_indices = @transform_2, window_bounds = array<i64: 1, 256>}, {transform_indices = @transform_3, window_bounds = array<i64: 32, 256>}]} {
    %c0 = arith.constant 0 : index
    %c0_0 = arith.constant 0 : index
    %0 = vector.load %arg1[%c0, %c0_0] : memref<32x256xbf16, #tpu.memory_space<vmem>>, vector<32x256xbf16>
    %1 = arith.extf %0 : vector<32x256xbf16> to vector<32x256xf32>
    %c0_1 = arith.constant 0 : index
    %c0_2 = arith.constant 0 : index
    %2 = vector.load %arg2[%c0_1, %c0_2] : memref<1x256xf32, #tpu.memory_space<vmem>>, vector<1x256xf32>
    %3 = vector.broadcast %2 : vector<1x256xf32> to vector<32x256xf32>
    %4 = arith.mulf %1, %3 : vector<32x256xf32>
    %c0_3 = arith.constant 0 : index
    %c0_4 = arith.constant 0 : index
    %5 = vector.load %arg3[%c0_3, %c0_4] : memref<1x256xf32, #tpu.memory_space<vmem>>, vector<1x256xf32>
    %6 = vector.broadcast %5 : vector<1x256xf32> to vector<32x256xf32>
    %7 = arith.addf %4, %6 : vector<32x256xf32>
    %cst = arith.constant 0.000000e+00 : f32
    %8 = vector.broadcast %cst : f32 to vector<32x256xf32>
    %9 = arith.cmpf ogt, %7, %8 : vector<32x256xf32>
    %cst_5 = arith.constant 2.000000e-01 : f32
    %10 = vector.broadcast %cst_5 : f32 to vector<32x256xf32>
    %11 = arith.mulf %10, %7 : vector<32x256xf32>
    %12 = arith.select %9, %7, %11 : vector<32x256xi1>, vector<32x256xf32>
    %13 = arith.truncf %12 : vector<32x256xf32> to vector<32x256xbf16>
    %c0_6 = arith.constant 0 : index
    %c0_7 = arith.constant 0 : index
    %14 = vector.load %arg4[%c0_6, %c0_7] : memref<32x256xbf16, #tpu.memory_space<vmem>>, vector<32x256xbf16>
    tpu.vector_store %arg4[%c0_6, %c0_7], %13 {strides = array<i32>} : memref<32x256xbf16, #tpu.memory_space<vmem>>, vector<32x256xbf16>,
    return
  }
  func.func @transform_0(%arg0: i32) -> (i32, i32) {
    %c0_i32 = arith.constant 0 : i32
    %c0_i32_0 = arith.constant 0 : i32
    return %arg0, %c0_i32 : i32, i32
  }
  func.func @transform_1(%arg0: i32) -> (i32, i32) {
    %c0_i32 = arith.constant 0 : i32
    %c0_i32_0 = arith.constant 0 : i32
    %c0_i32_1 = arith.constant 0 : i32
    return %c0_i32, %c0_i32_0 : i32, i32
  }
  func.func @transform_2(%arg0: i32) -> (i32, i32) {
    %c0_i32 = arith.constant 0 : i32
    %c0_i32_0 = arith.constant 0 : i32
    %c0_i32_1 = arith.constant 0 : i32
    return %c0_i32, %c0_i32_0 : i32, i32
  }
  func.func @transform_3(%arg0: i32) -> (i32, i32) {
    %c0_i32 = arith.constant 0 : i32
    %c0_i32_0 = arith.constant 0 : i32
    return %arg0, %c0_i32 : i32, i32
  }
}

module attributes {stable_mosaic.version = 11 : i64} {
  func.func @_gemm_act_kernel(%arg0: i32, %arg1: memref<16x4096xbf16, #tpu.memory_space<vmem>>, %arg2: memref<4096x128xbf16, #tpu.memory_space<vmem>>, %arg3: memref<16x128xf32, #tpu.memory_space<vmem>>) attributes {dimension_semantics = [#tpu.dimension_semantics<parallel>], iteration_bounds = array<i64: 1>, scalar_prefetch = 0 : i64, scratch_operands = 0 : i64, tpu.core_type = #tpu.core_type<tc>, window_params = [{transform_indices = @transform_0, window_bounds = array<i64: 16, 4096>}, {pipeline_mode = #tpu.pipeline_mode<synchronous>, transform_indices = @transform_1, window_bounds = array<i64: 4096, 128>}, {transform_indices = @transform_2, window_bounds = array<i64: 16, 128>}]} {
    %c0 = arith.constant 0 : index
    %c0_0 = arith.constant 0 : index
    %0 = vector.load %arg1[%c0, %c0_0] : memref<16x4096xbf16, #tpu.memory_space<vmem>>, vector<16x4096xbf16>
    %c0_1 = arith.constant 0 : index
    %c0_2 = arith.constant 0 : index
    %1 = vector.load %arg2[%c0_1, %c0_2] : memref<4096x128xbf16, #tpu.memory_space<vmem>>, vector<4096x128xbf16>
    %cst = arith.constant dense<0.000000e+00> : vector<16x128xf32>
    %2 = tpu.matmul %0, %1, %cst {dimension_numbers = #tpu.dot_dimension_numbers<[1], [0], [0], [1], [0, 0, 1, 1], [], []>} : vector<16x4096xbf16>, vector<4096x128xbf16>, vector<16x128xf32> -> vector<16x128xf32>
    %3 = arith.negf %2 : vector<16x128xf32>
    %4 = math.exp %3 : vector<16x128xf32>
    %cst_3 = arith.constant 1.000000e+00 : f32
    %5 = vector.broadcast %cst_3 : f32 to vector<16x128xf32>
    %6 = arith.addf %5, %4 : vector<16x128xf32>
    %7 = arith.divf %5, %6 : vector<16x128xf32>
    %c0_4 = arith.constant 0 : index
    %c0_5 = arith.constant 0 : index
    %8 = vector.load %arg3[%c0_4, %c0_5] : memref<16x128xf32, #tpu.memory_space<vmem>>, vector<16x128xf32>
    tpu.vector_store %arg3[%c0_4, %c0_5], %7 {strides = array<i32>} : memref<16x128xf32, #tpu.memory_space<vmem>>, vector<16x128xf32>,
    return
  }
  func.func @transform_0(%arg0: i32) -> (i32, i32) {
    %c0_i32 = arith.constant 0 : i32
    %c0_i32_0 = arith.constant 0 : i32
    return %arg0, %c0_i32 : i32, i32
  }
  func.func @transform_1(%arg0: i32) -> (i32, i32) {
    %c0_i32 = arith.constant 0 : i32
    %c0_i32_0 = arith.constant 0 : i32
    %c0_i32_1 = arith.constant 0 : i32
    return %c0_i32, %c0_i32_0 : i32, i32
  }
  func.func @transform_2(%arg0: i32) -> (i32, i32) {
    %c0_i32 = arith.constant 0 : i32
    %c0_i32_0 = arith.constant 0 : i32
    return %arg0, %c0_i32 : i32, i32
  }
}

</mosaic_0001>

<llo_original>
// kernel: discriminator_forward.7
$region0: #{discriminator_forward.7}
  #allocation0 [shape = 'u32[]', space=smem, size = 0x4, offset = 0x4, fixed_abs, tag = 'smem constant byte address 0x4 - core index']
  #allocation1 [shape = 'u32[72,128]{1,0:T(1,128)}', space=vmem, size = 0x9000, scoped, tag = 'internal scratch']
  %s0 = inlined_call_operand.vmem [shape: bf16[2048,128], index: 0, kind: input, shape index: {}]
  %s1 = inlined_call_operand.vmem [shape: bf16[128,128], index: 1, kind: input, shape index: {}]
  %s2 = inlined_call_operand.vmem [shape: bf16[2048,128], index: 2, kind: output, shape index: {}]
  %s3 = sld [smem:[#allocation0]]
  $region18: #{discriminator_forward.7} parent=0
    _
  %s5 = ssub.s32 1, %s3
  %s6 = scalar_select 0, %s5, %s3
  // Predicated region
  $region2: #{discriminator_forward.7} parent=0 // pred_check
    _
  $region3: #{discriminator_forward.7} parent=0 // pred_check_branch
    %8 = sbr.rel (0) target = $region5
  $region4: #{discriminator_forward.7} parent=0 // pred_region
    _
  $region5: #{discriminator_forward.7} parent=0 // pred_fallthru
    _
  // Predicated region
  $region6: #{discriminator_forward.7} parent=0 // pred_check
    _
  $region7: #{discriminator_forward.7} parent=0 // pred_check_branch
    %10 = sbr.rel (0) target = $region9
  $region8: #{discriminator_forward.7} parent=0 // pred_region
    _
  $region9: #{discriminator_forward.7} parent=0 // pred_fallthru
    _
  %v11 = vld [vmem:[%s0] sm:$0xf]
  %v12 = vld [vmem:[%s0 + $0x4] sm:$0xf]
  %v13 = vld [vmem:[%s0 + $0x8] sm:$0xf]
  %v14 = vld [vmem:[%s0 + $0xc] sm:$0xf]
  %v15 = vld [vmem:[%s0 + $0x10] sm:$0xf]
  %v16 = vld [vmem:[%s0 + $0x14] sm:$0xf]
  %v17 = vld [vmem:[%s0 + $0x18] sm:$0xf]
  %v18 = vld [vmem:[%s0 + $0x1c] sm:$0xf]
  %v19 = vld [vmem:[%s0 + $0x20] sm:$0xf]
  %v20 = vld [vmem:[%s0 + $0x24] sm:$0xf]
  %v21 = vld [vmem:[%s0 + $0x28] sm:$0xf]
  %v22 = vld [vmem:[%s0 + $0x2c] sm:$0xf]
  %v23 = vld [vmem:[%s0 + $0x30] sm:$0xf]
  %v24 = vld [vmem:[%s0 + $0x34] sm:$0xf]
  %v25 = vld [vmem:[%s0 + $0x38] sm:$0xf]
  %v26 = vld [vmem:[%s0 + $0x3c] sm:$0xf]
  %v27 = vld [vmem:[%s0 + $0x40] sm:$0xf]
  %v28 = vld [vmem:[%s0 + $0x44] sm:$0xf]
  %v29 = vld [vmem:[%s0 + $0x48] sm:$0xf]
  %v30 = vld [vmem:[%s0 + $0x4c] sm:$0xf]
  %v31 = vld [vmem:[%s0 + $0x50] sm:$0xf]
  %v32 = vld [vmem:[%s0 + $0x54] sm:$0xf]
  %v33 = vld [vmem:[%s0 + $0x58] sm:$0xf]
  %v34 = vld [vmem:[%s0 + $0x5c] sm:$0xf]
  %v35 = vld [vmem:[%s0 + $0x60] sm:$0xf]
  %v36 = vld [vmem:[%s0 + $0x64] sm:$0xf]
  %v37 = vld [vmem:[%s0 + $0x68] sm:$0xf]
  %v38 = vld [vmem:[%s0 + $0x6c] sm:$0xf]
  %v39 = vld [vmem:[%s0 + $0x70] sm:$0xf]
  %v40 = vld [vmem:[%s0 + $0x74] sm:$0xf]
  %v41 = vld [vmem:[%s0 + $0x78] sm:$0xf]
  %v42 = vld [vmem:[%s0 + $0x7c] sm:$0xf]
  %v43 = vld [vmem:[%s0 + $0x80] sm:$0xf]
  %v44 = vld [vmem:[%s0 + $0x84] sm:$0xf]
  %v45 = vld [vmem:[%s0 + $0x88] sm:$0xf]
  %v46 = vld [vmem:[%s0 + $0x8c] sm:$0xf]
  %v47 = vld [vmem:[%s0 + $0x90] sm:$0xf]
  %v48 = vld [vmem:[%s0 + $0x94] sm:$0xf]
  %v49 = vld [vmem:[%s0 + $0x98] sm:$0xf]
  %v50 = vld [vmem:[%s0 + $0x9c] sm:$0xf]
  %v51 = vld [vmem:[%s0 + $0xa0] sm:$0xf]
  %v52 = vld [vmem:[%s0 + $0xa4] sm:$0xf]
  %v53 = vld [vmem:[%s0 + $0xa8] sm:$0xf]
  %v54 = vld [vmem:[%s0 + $0xac] sm:$0xf]
  %v55 = vld [vmem:[%s0 + $0xb0] sm:$0xf]
  %v56 = vld [vmem:[%s0 + $0xb4] sm:$0xf]
  %v57 = vld [vmem:[%s0 + $0xb8] sm:$0xf]
  %v58 = vld [vmem:[%s0 + $0xbc] sm:$0xf]
  %v59 = vld [vmem:[%s0 + $0xc0] sm:$0xf]
  %v60 = vld [vmem:[%s0 + $0xc4] sm:$0xf]
  %v61 = vld [vmem:[%s0 + $0xc8] sm:$0xf]
  %v62 = vld [vmem:[%s0 + $0xcc] sm:$0xf]
  %v63 = vld [vmem:[%s0 + $0xd0] sm:$0xf]
  %v64 = vld [vmem:[%s0 + $0xd4] sm:$0xf]
  %v65 = vld [vmem:[%s0 + $0xd8] sm:$0xf]
  %v66 = vld [vmem:[%s0 + $0xdc] sm:$0xf]
  %v67 = vld [vmem:[%s0 + $0xe0] sm:$0xf]
  %v68 = vld [vmem:[%s0 + $0xe4] sm:$0xf]
  %v69 = vld [vmem:[%s0 + $0xe8] sm:$0xf]
  %v70 = vld [vmem:[%s0 + $0xec] sm:$0xf]
  %v71 = vld [vmem:[%s0 + $0xf0] sm:$0xf]
  %v72 = vld [vmem:[%s0 + $0xf4] sm:$0xf]
  %v73 = vld [vmem:[%s0 + $0xf8] sm:$0xf]
  %v74 = vld [vmem:[%s0 + $0xfc] sm:$0xf]
  %v75 = vld [vmem:[%s0 + $0x100] sm:$0xf]
  %v76 = vld [vmem:[%s0 + $0x104] sm:$0xf]
  %v77 = vld [vmem:[%s0 + $0x108] sm:$0xf]
  %v78 = vld [vmem:[%s0 + $0x10c] sm:$0xf]
  %v79 = vld [vmem:[%s0 + $0x110] sm:$0xf]
  %v80 = vld [vmem:[%s0 + $0x114] sm:$0xf]
  %v81 = vld [vmem:[%s0 + $0x118] sm:$0xf]
  %v82 = vld [vmem:[%s0 + $0x11c] sm:$0xf]
  %v83 = vld [vmem:[%s0 + $0x120] sm:$0xf]
  %v84 = vld [vmem:[%s0 + $0x124] sm:$0xf]
  %v85 = vld [vmem:[%s0 + $0x128] sm:$0xf]
  %v86 = vld [vmem:[%s0 + $0x12c] sm:$0xf]
  %v87 = vld [vmem:[%s0 + $0x130] sm:$0xf]
  %v88 = vld [vmem:[%s0 + $0x134] sm:$0xf]
  %v89 = vld [vmem:[%s0 + $0x138] sm:$0xf]
  %v90 = vld [vmem:[%s0 + $0x13c] sm:$0xf]
  %v91 = vld [vmem:[%s0 + $0x140] sm:$0xf]
  %v92 = vld [vmem:[%s0 + $0x144] sm:$0xf]
  %v93 = vld [vmem:[%s0 + $0x148] sm:$0xf]
  %v94 = vld [vmem:[%s0 + $0x14c] sm:$0xf]
  %v95 = vld [vmem:[%s0 + $0x150] sm:$0xf]
  %v96 = vld [vmem:[%s0 + $0x154] sm:$0xf]
  %v97 = vld [vmem:[%s0 + $0x158] sm:$0xf]
  %v98 = vld [vmem:[%s0 + $0x15c] sm:$0xf]
  %v99 = vld [vmem:[%s0 + $0x160] sm:$0xf]
  %v100 = vld [vmem:[%s0 + $0x164] sm:$0xf]
  %v101 = vld [vmem:[%s0 + $0x168] sm:$0xf]
  %v102 = vld [vmem:[%s0 + $0x16c] sm:$0xf]
  %v103 = vld [vmem:[%s0 + $0x170] sm:$0xf]
  %v104 = vld [vmem:[%s0 + $0x174] sm:$0xf]
  %v105 = vld [vmem:[%s0 + $0x178] sm:$0xf]
  %v106 = vld [vmem:[%s0 + $0x17c] sm:$0xf]
  %v107 = vld [vmem:[%s0 + $0x180] sm:$0xf]
  %v108 = vld [vmem:[%s0 + $0x184] sm:$0xf]
  %v109 = vld [vmem:[%s0 + $0x188] sm:$0xf]
  %v110 = vld [vmem:[%s0 + $0x18c] sm:$0xf]
  %v111 = vld [vmem:[%s0 + $0x190] sm:$0xf]
  %v112 = vld [vmem:[%s0 + $0x194] sm:$0xf]
  %v113 = vld [vmem:[%s0 + $0x198] sm:$0xf]
  %v114 = vld [vmem:[%s0 + $0x19c] sm:$0xf]
  %v115 = vld [vmem:[%s0 + $0x1a0] sm:$0xf]
  %v116 = vld [vmem:[%s0 + $0x1a4] sm:$0xf]
  %v117 = vld [vmem:[%s0 + $0x1a8] sm:$0xf]
  %v118 = vld [vmem:[%s0 + $0x1ac] sm:$0xf]
  %v119 = vld [vmem:[%s0 + $0x1b0] sm:$0xf]
  %v120 = vld [vmem:[%s0 + $0x1b4] sm:$0xf]
  %v121 = vld [vmem:[%s0 + $0x1b8] sm:$0xf]
  %v122 = vld [vmem:[%s0 + $0x1bc] sm:$0xf]
  %v123 = vld [vmem:[%s0 + $0x1c0] sm:$0xf]
  %v124 = vld [vmem:[%s0 + $0x1c4] sm:$0xf]
  %v125 = vld [vmem:[%s0 + $0x1c8] sm:$0xf]
  %v126 = vld [vmem:[%s0 + $0x1cc] sm:$0xf]
  %v127 = vld [vmem:[%s0 + $0x1d0] sm:$0xf]
  %v128 = vld [vmem:[%s0 + $0x1d4] sm:$0xf]
  %v129 = vld [vmem:[%s0 + $0x1d8] sm:$0xf]
  %v130 = vld [vmem:[%s0 + $0x1dc] sm:$0xf]
  %v131 = vld [vmem:[%s0 + $0x1e0] sm:$0xf]
  %v132 = vld [vmem:[%s0 + $0x1e4] sm:$0xf]
  %v133 = vld [vmem:[%s0 + $0x1e8] sm:$0xf]
  %v134 = vld [vmem:[%s0 + $0x1ec] sm:$0xf]
  %v135 = vld [vmem:[%s0 + $0x1f0] sm:$0xf]
  %v136 = vld [vmem:[%s0 + $0x1f4] sm:$0xf]
  %v137 = vld [vmem:[%s0 + $0x1f8] sm:$0xf]
  %v138 = vld [vmem:[%s0 + $0x1fc] sm:$0xf]
  %v139 = vld [vmem:[%s0 + $0x200] sm:$0xf]
  %v140 = vld [vmem:[%s0 + $0x204] sm:$0xf]
  %v141 = vld [vmem:[%s0 + $0x208] sm:$0xf]
  %v142 = vld [vmem:[%s0 + $0x20c] sm:$0xf]
  %v143 = vld [vmem:[%s0 + $0x210] sm:$0xf]
  %v144 = vld [vmem:[%s0 + $0x214] sm:$0xf]
  %v145 = vld [vmem:[%s0 + $0x218] sm:$0xf]
  %v146 = vld [vmem:[%s0 + $0x21c] sm:$0xf]
  %v147 = vld [vmem:[%s0 + $0x220] sm:$0xf]
  %v148 = vld [vmem:[%s0 + $0x224] sm:$0xf]
  %v149 = vld [vmem:[%s0 + $0x228] sm:$0xf]
  %v150 = vld [vmem:[%s0 + $0x22c] sm:$0xf]
  %v151 = vld [vmem:[%s0 + $0x230] sm:$0xf]
  %v152 = vld [vmem:[%s0 + $0x234] sm:$0xf]
  %v153 = vld [vmem:[%s0 + $0x238] sm:$0xf]
  %v154 = vld [vmem:[%s0 + $0x23c] sm:$0xf]
  %v155 = vld [vmem:[%s0 + $0x240] sm:$0xf]
  %v156 = vld [vmem:[%s0 + $0x244] sm:$0xf]
  %v157 = vld [vmem:[%s0 + $0x248] sm:$0xf]
  %v158 = vld [vmem:[%s0 + $0x24c] sm:$0xf]
  %v159 = vld [vmem:[%s0 + $0x250] sm:$0xf]
  %v160 = vld [vmem:[%s0 + $0x254] sm:$0xf]
  %v161 = vld [vmem:[%s0 + $0x258] sm:$0xf]
  %v162 = vld [vmem:[%s0 + $0x25c] sm:$0xf]
  %v163 = vld [vmem:[%s0 + $0x260] sm:$0xf]
  %v164 = vld [vmem:[%s0 + $0x264] sm:$0xf]
  %v165 = vld [vmem:[%s0 + $0x268] sm:$0xf]
  %v166 = vld [vmem:[%s0 + $0x26c] sm:$0xf]
  %v167 = vld [vmem:[%s0 + $0x270] sm:$0xf]
  %v168 = vld [vmem:[%s0 + $0x274] sm:$0xf]
  %v169 = vld [vmem:[%s0 + $0x278] sm:$0xf]
  %v170 = vld [vmem:[%s0 + $0x27c] sm:$0xf]
  %v171 = vld [vmem:[%s0 + $0x280] sm:$0xf]
  %v172 = vld [vmem:[%s0 + $0x284] sm:$0xf]
  %v173 = vld [vmem:[%s0 + $0x288] sm:$0xf]
  %v174 = vld [vmem:[%s0 + $0x28c] sm:$0xf]
  %v175 = vld [vmem:[%s0 + $0x290] sm:$0xf]
  %v176 = vld [vmem:[%s0 + $0x294] sm:$0xf]
  %v177 = vld [vmem:[%s0 + $0x298] sm:$0xf]
  %v178 = vld [vmem:[%s0 + $0x29c] sm:$0xf]
  %v179 = vld [vmem:[%s0 + $0x2a0] sm:$0xf]
  %v180 = vld [vmem:[%s0 + $0x2a4] sm:$0xf]
  %v181 = vld [vmem:[%s0 + $0x2a8] sm:$0xf]
  %v182 = vld [vmem:[%s0 + $0x2ac] sm:$0xf]
  %v183 = vld [vmem:[%s0 + $0x2b0] sm:$0xf]
  %v184 = vld [vmem:[%s0 + $0x2b4] sm:$0xf]
  %v185 = vld [vmem:[%s0 + $0x2b8] sm:$0xf]
  %v186 = vld [vmem:[%s0 + $0x2bc] sm:$0xf]
  %v187 = vld [vmem:[%s0 + $0x2c0] sm:$0xf]
  %v188 = vld [vmem:[%s0 + $0x2c4] sm:$0xf]
  %v189 = vld [vmem:[%s0 + $0x2c8] sm:$0xf]
  %v190 = vld [vmem:[%s0 + $0x2cc] sm:$0xf]
  %v191 = vld [vmem:[%s0 + $0x2d0] sm:$0xf]
  %v192 = vld [vmem:[%s0 + $0x2d4] sm:$0xf]
  %v193 = vld [vmem:[%s0 + $0x2d8] sm:$0xf]
  %v194 = vld [vmem:[%s0 + $0x2dc] sm:$0xf]
  %v195 = vld [vmem:[%s0 + $0x2e0] sm:$0xf]
  %v196 = vld [vmem:[%s0 + $0x2e4] sm:$0xf]
  %v197 = vld [vmem:[%s0 + $0x2e8] sm:$0xf]
  %v198 = vld [vmem:[%s0 + $0x2ec] sm:$0xf]
  %v199 = vld [vmem:[%s0 + $0x2f0] sm:$0xf]
  %v200 = vld [vmem:[%s0 + $0x2f4] sm:$0xf]
  %v201 = vld [vmem:[%s0 + $0x2f8] sm:$0xf]
  %v202 = vld [vmem:[%s0 + $0x2fc] sm:$0xf]
  %v203 = vld [vmem:[%s0 + $0x300] sm:$0xf]
  %v204 = vld [vmem:[%s0 + $0x304] sm:$0xf]
  %v205 = vld [vmem:[%s0 + $0x308] sm:$0xf]
  %v206 = vld [vmem:[%s0 + $0x30c] sm:$0xf]
  %v207 = vld [vmem:[%s0 + $0x310] sm:$0xf]
  %v208 = vld [vmem:[%s0 + $0x314] sm:$0xf]
  %v209 = vld [vmem:[%s0 + $0x318] sm:$0xf]
  %v210 = vld [vmem:[%s0 + $0x31c] sm:$0xf]
  %v211 = vld [vmem:[%s0 + $0x320] sm:$0xf]
  %v212 = vld [vmem:[%s0 + $0x324] sm:$0xf]
  %v213 = vld [vmem:[%s0 + $0x328] sm:$0xf]
  %v214 = vld [vmem:[%s0 + $0x32c] sm:$0xf]
  %v215 = vld [vmem:[%s0 + $0x330] sm:$0xf]
  %v216 = vld [vmem:[%s0 + $0x334] sm:$0xf]
  %v217 = vld [vmem:[%s0 + $0x338] sm:$0xf]
  %v218 = vld [vmem:[%s0 + $0x33c] sm:$0xf]
  %v219 = vld [vmem:[%s0 + $0x340] sm:$0xf]
  %v220 = vld [vmem:[%s0 + $0x344] sm:$0xf]
  %v221 = vld [vmem:[%s0 + $0x348] sm:$0xf]
  %v222 = vld [vmem:[%s0 + $0x34c] sm:$0xf]
  %v223 = vld [vmem:[%s0 + $0x350] sm:$0xf]
  %v224 = vld [vmem:[%s0 + $0x354] sm:$0xf]
  %v225 = vld [vmem:[%s0 + $0x358] sm:$0xf]
  %v226 = vld [vmem:[%s0 + $0x35c] sm:$0xf]
  %v227 = vld [vmem:[%s0 + $0x360] sm:$0xf]
  %v228 = vld [vmem:[%s0 + $0x364] sm:$0xf]
  %v229 = vld [vmem:[%s0 + $0x368] sm:$0xf]
  %v230 = vld [vmem:[%s0 + $0x36c] sm:$0xf]
  %v231 = vld [vmem:[%s0 + $0x370] sm:$0xf]
  %v232 = vld [vmem:[%s0 + $0x374] sm:$0xf]
  %v233 = vld [vmem:[%s0 + $0x378] sm:$0xf]
  %v234 = vld [vmem:[%s0 + $0x37c] sm:$0xf]
  %v235 = vld [vmem:[%s0 + $0x380] sm:$0xf]
  %v236 = vld [vmem:[%s0 + $0x384] sm:$0xf]
  %v237 = vld [vmem:[%s0 + $0x388] sm:$0xf]
  %v238 = vld [vmem:[%s0 + $0x38c] sm:$0xf]
  %v239 = vld [vmem:[%s0 + $0x390] sm:$0xf]
  %v240 = vld [vmem:[%s0 + $0x394] sm:$0xf]
  %v241 = vld [vmem:[%s0 + $0x398] sm:$0xf]
  %v242 = vld [vmem:[%s0 + $0x39c] sm:$0xf]
  %v243 = vld [vmem:[%s0 + $0x3a0] sm:$0xf]
  %v244 = vld [vmem:[%s0 + $0x3a4] sm:$0xf]
  %v245 = vld [vmem:[%s0 + $0x3a8] sm:$0xf]
  %v246 = vld [vmem:[%s0 + $0x3ac] sm:$0xf]
  %v247 = vld [vmem:[%s0 + $0x3b0] sm:$0xf]
  %v248 = vld [vmem:[%s0 + $0x3b4] sm:$0xf]
  %v249 = vld [vmem:[%s0 + $0x3b8] sm:$0xf]
  %v250 = vld [vmem:[%s0 + $0x3bc] sm:$0xf]
  %v251 = vld [vmem:[%s0 + $0x3c0] sm:$0xf]
  %v252 = vld [vmem:[%s0 + $0x3c4] sm:$0xf]
  %v253 = vld [vmem:[%s0 + $0x3c8] sm:$0xf]
  %v254 = vld [vmem:[%s0 + $0x3cc] sm:$0xf]
  %v255 = vld [vmem:[%s0 + $0x3d0] sm:$0xf]
  %v256 = vld [vmem:[%s0 + $0x3d4] sm:$0xf]
  %v257 = vld [vmem:[%s0 + $0x3d8] sm:$0xf]
  %v258 = vld [vmem:[%s0 + $0x3dc] sm:$0xf]
  %v259 = vld [vmem:[%s0 + $0x3e0] sm:$0xf]
  %v260 = vld [vmem:[%s0 + $0x3e4] sm:$0xf]
  %v261 = vld [vmem:[%s0 + $0x3e8] sm:$0xf]
  %v262 = vld [vmem:[%s0 + $0x3ec] sm:$0xf]
  %v263 = vld [vmem:[%s0 + $0x3f0] sm:$0xf]
  %v264 = vld [vmem:[%s0 + $0x3f4] sm:$0xf]
  %v265 = vld [vmem:[%s0 + $0x3f8] sm:$0xf]
  %v266 = vld [vmem:[%s0 + $0x3fc] sm:$0xf]
  %v267 = vld [vmem:[%s1] sm:$0xf]
  %v268 = vld [vmem:[%s1 + $0x4] sm:$0xf]
  %v269 = vld [vmem:[%s1 + $0x8] sm:$0xf]
  %v270 = vld [vmem:[%s1 + $0xc] sm:$0xf]
  %v271 = vld [vmem:[%s1 + $0x10] sm:$0xf]
  %v272 = vld [vmem:[%s1 + $0x14] sm:$0xf]
  %v273 = vld [vmem:[%s1 + $0x18] sm:$0xf]
  %v274 = vld [vmem:[%s1 + $0x1c] sm:$0xf]
  %v275 = vld [vmem:[%s1 + $0x20] sm:$0xf]
  %v276 = vld [vmem:[%s1 + $0x24] sm:$0xf]
  %v277 = vld [vmem:[%s1 + $0x28] sm:$0xf]
  %v278 = vld [vmem:[%s1 + $0x2c] sm:$0xf]
  %v279 = vld [vmem:[%s1 + $0x30] sm:$0xf]
  %v280 = vld [vmem:[%s1 + $0x34] sm:$0xf]
  %v281 = vld [vmem:[%s1 + $0x38] sm:$0xf]
  %v282 = vld [vmem:[%s1 + $0x3c] sm:$0xf]
  %v539 = vunpack.c.l.b16 %v11
  %v540 = vunpack.c.l.b16 %v12
  %v541 = vunpack.c.l.b16 %v13
  %v542 = vunpack.c.l.b16 %v14
  %v543 = vunpack.c.l.b16 %v15
  %v544 = vunpack.c.l.b16 %v16
  %v545 = vunpack.c.l.b16 %v17
  %v546 = vunpack.c.l.b16 %v18
  %v547 = vunpack.c.l.b16 %v19
  %v548 = vunpack.c.l.b16 %v20
  %v549 = vunpack.c.l.b16 %v21
  %v550 = vunpack.c.l.b16 %v22
  %v551 = vunpack.c.l.b16 %v23
  %v552 = vunpack.c.l.b16 %v24
  %v553 = vunpack.c.l.b16 %v25
  %v554 = vunpack.c.l.b16 %v26
  %v555 = vunpack.c.l.b16 %v27
  %v556 = vunpack.c.l.b16 %v28
  %v557 = vunpack.c.l.b16 %v29
  %v558 = vunpack.c.l.b16 %v30
  %v559 = vunpack.c.l.b16 %v31
  %v560 = vunpack.c.l.b16 %v32
  %v561 = vunpack.c.l.b16 %v33
  %v562 = vunpack.c.l.b16 %v34
  %v563 = vunpack.c.l.b16 %v35
  %v564 = vunpack.c.l.b16 %v36
  %v565 = vunpack.c.l.b16 %v37
  %v566 = vunpack.c.l.b16 %v38
  %v567 = vunpack.c.l.b16 %v39
  %v568 = vunpack.c.l.b16 %v40
  %v569 = vunpack.c.l.b16 %v41
  %v570 = vunpack.c.l.b16 %v42
  %v571 = vunpack.c.l.b16 %v43
  %v572 = vunpack.c.l.b16 %v44
  %v573 = vunpack.c.l.b16 %v45
  %v574 = vunpack.c.l.b16 %v46
  %v575 = vunpack.c.l.b16 %v47
  %v576 = vunpack.c.l.b16 %v48
  %v577 = vunpack.c.l.b16 %v49
  %v578 = vunpack.c.l.b16 %v50
  %v579 = vunpack.c.l.b16 %v51
  %v580 = vunpack.c.l.b16 %v52
  %v581 = vunpack.c.l.b16 %v53
  %v582 = vunpack.c.l.b16 %v54
  %v583 = vunpack.c.l.b16 %v55
  %v584 = vunpack.c.l.b16 %v56
  %v585 = vunpack.c.l.b16 %v57
  %v586 = vunpack.c.l.b16 %v58
  %v587 = vunpack.c.l.b16 %v59
  %v588 = vunpack.c.l.b16 %v60
  %v589 = vunpack.c.l.b16 %v61
  %v590 = vunpack.c.l.b16 %v62
  %v591 = vunpack.c.l.b16 %v63
  %v592 = vunpack.c.l.b16 %v64
  %v593 = vunpack.c.l.b16 %v65
  %v594 = vunpack.c.l.b16 %v66
  %v595 = vunpack.c.l.b16 %v67
  %v596 = vunpack.c.l.b16 %v68
  %v597 = vunpack.c.l.b16 %v69
  %v598 = vunpack.c.l.b16 %v70
  %v599 = vunpack.c.l.b16 %v71
  %v600 = vunpack.c.l.b16 %v72
  %v601 = vunpack.c.l.b16 %v73
  %v602 = vunpack.c.l.b16 %v74
  %v603 = vunpack.c.l.b16 %v75
  %v604 = vunpack.c.l.b16 %v76
  %v605 = vunpack.c.l.b16 %v77
  %v606 = vunpack.c.l.b16 %v78
  %v607 = vunpack.c.l.b16 %v79
  %v608 = vunpack.c.l.b16 %v80
  %v609 = vunpack.c.l.b16 %v81
  %v610 = vunpack.c.l.b16 %v82
  %v611 = vunpack.c.l.b16 %v83
  %v612 = vunpack.c.l.b16 %v84
  %v613 = vunpack.c.l.b16 %v85
  %v614 = vunpack.c.l.b16 %v86
  %v615 = vunpack.c.l.b16 %v87
  %v616 = vunpack.c.l.b16 %v88
  %v617 = vunpack.c.l.b16 %v89
  %v618 = vunpack.c.l.b16 %v90
  %v619 = vunpack.c.l.b16 %v91
  %v620 = vunpack.c.l.b16 %v92
  %v621 = vunpack.c.l.b16 %v93
  %v622 = vunpack.c.l.b16 %v94
  %v623 = vunpack.c.l.b16 %v95
  %v624 = vunpack.c.l.b16 %v96
  %v625 = vunpack.c.l.b16 %v97
  %v626 = vunpack.c.l.b16 %v98
  %v627 = vunpack.c.l.b16 %v99
  %v628 = vunpack.c.l.b16 %v100
  %v629 = vunpack.c.l.b16 %v101
  %v630 = vunpack.c.l.b16 %v102
  %v631 = vunpack.c.l.b16 %v103
  %v632 = vunpack.c.l.b16 %v104
  %v633 = vunpack.c.l.b16 %v105
  %v634 = vunpack.c.l.b16 %v106
  %v635 = vunpack.c.l.b16 %v107
  %v636 = vunpack.c.l.b16 %v108
  %v637 = vunpack.c.l.b16 %v109
  %v638 = vunpack.c.l.b16 %v110
  %v639 = vunpack.c.l.b16 %v111
  %v640 = vunpack.c.l.b16 %v112
  %v641 = vunpack.c.l.b16 %v113
  %v642 = vunpack.c.l.b16 %v114
  %v643 = vunpack.c.l.b16 %v115
  %v644 = vunpack.c.l.b16 %v116
  %v645 = vunpack.c.l.b16 %v117
  %v646 = vunpack.c.l.b16 %v118
  %v647 = vunpack.c.l.b16 %v119
  %v648 = vunpack.c.l.b16 %v120
  %v649 = vunpack.c.l.b16 %v121
  %v650 = vunpack.c.l.b16 %v122
  %v651 = vunpack.c.l.b16 %v123
  %v652 = vunpack.c.l.b16 %v124
  %v653 = vunpack.c.l.b16 %v125
  %v654 = vunpack.c.l.b16 %v126
  %v655 = vunpack.c.l.b16 %v127
  %v656 = vunpack.c.l.b16 %v128
  %v657 = vunpack.c.l.b16 %v129
  %v658 = vunpack.c.l.b16 %v130
  %v659 = vunpack.c.l.b16 %v131
  %v660 = vunpack.c.l.b16 %v132
  %v661 = vunpack.c.l.b16 %v133
  %v662 = vunpack.c.l.b16 %v134
  %v663 = vunpack.c.l.b16 %v135
  %v664 = vunpack.c.l.b16 %v136
  %v665 = vunpack.c.l.b16 %v137
  %v666 = vunpack.c.l.b16 %v138
  %v667 = vunpack.c.l.b16 %v139
  %v668 = vunpack.c.l.b16 %v140
  %v669 = vunpack.c.l.b16 %v141
  %v670 = vunpack.c.l.b16 %v142
  %v671 = vunpack.c.l.b16 %v143
  %v672 = vunpack.c.l.b16 %v144
  %v673 = vunpack.c.l.b16 %v145
  %v674 = vunpack.c.l.b16 %v146
  %v675 = vunpack.c.l.b16 %v147
  %v676 = vunpack.c.l.b16 %v148
  %v677 = vunpack.c.l.b16 %v149
  %v678 = vunpack.c.l.b16 %v150
  %v679 = vunpack.c.l.b16 %v151
  %v680 = vunpack.c.l.b16 %v152
  %v681 = vunpack.c.l.b16 %v153
  %v682 = vunpack.c.l.b16 %v154
  %v683 = vunpack.c.l.b16 %v155
  %v684 = vunpack.c.l.b16 %v156
  %v685 = vunpack.c.l.b16 %v157
  %v686 = vunpack.c.l.b16 %v158
  %v687 = vunpack.c.l.b16 %v159
  %v688 = vunpack.c.l.b16 %v160
  %v689 = vunpack.c.l.b16 %v161
  %v690 = vunpack.c.l.b16 %v162
  %v691 = vunpack.c.l.b16 %v163
  %v692 = vunpack.c.l.b16 %v164
  %v693 = vunpack.c.l.b16 %v165
  %v694 = vunpack.c.l.b16 %v166
  %v695 = vunpack.c.l.b16 %v167
  %v696 = vunpack.c.l.b16 %v168
  %v697 = vunpack.c.l.b16 %v169
  %v698 = vunpack.c.l.b16 %v170
  %v699 = vunpack.c.l.b16 %v171
  %v700 = vunpack.c.l.b16 %v172
  %v701 = vunpack.c.l.b16 %v173
  %v702 = vunpack.c.l.b16 %v174
  %v703 = vunpack.c.l.b16 %v175
  %v704 = vunpack.c.l.b16 %v176
  %v705 = vunpack.c.l.b16 %v177
  %v706 = vunpack.c.l.b16 %v178
  %v707 = vunpack.c.l.b16 %v179
  %v708 = vunpack.c.l.b16 %v180
  %v709 = vunpack.c.l.b16 %v181
  %v710 = vunpack.c.l.b16 %v182
  %v711 = vunpack.c.l.b16 %v183
  %v712 = vunpack.c.l.b16 %v184
  %v713 = vunpack.c.l.b16 %v185
  %v714 = vunpack.c.l.b16 %v186
  %v715 = vunpack.c.l.b16 %v187
  %v716 = vunpack.c.l.b16 %v188
  %v717 = vunpack.c.l.b16 %v189
  %v718 = vunpack.c.l.b16 %v190
  %v719 = vunpack.c.l.b16 %v191
  %v720 = vunpack.c.l.b16 %v192
  %v721 = vunpack.c.l.b16 %v193
  %v722 = vunpack.c.l.b16 %v194
  %v723 = vunpack.c.l.b16 %v195
  %v724 = vunpack.c.l.b16 %v196
  %v725 = vunpack.c.l.b16 %v197
  %v726 = vunpack.c.l.b16 %v198
  %v727 = vunpack.c.l.b16 %v199
  %v728 = vunpack.c.l.b16 %v200
  %v729 = vunpack.c.l.b16 %v201
  %v730 = vunpack.c.l.b16 %v202
  %v731 = vunpack.c.l.b16 %v203
  %v732 = vunpack.c.l.b16 %v204
  %v733 = vunpack.c.l.b16 %v205
  %v734 = vunpack.c.l.b16 %v206
  %v735 = vunpack.c.l.b16 %v207
  %v736 = vunpack.c.l.b16 %v208
  %v737 = vunpack.c.l.b16 %v209
  %v738 = vunpack.c.l.b16 %v210
  %v739 = vunpack.c.l.b16 %v211
  %v740 = vunpack.c.l.b16 %v212
  %v741 = vunpack.c.l.b16 %v213
  %v742 = vunpack.c.l.b16 %v214
  %v743 = vunpack.c.l.b16 %v215
  %v744 = vunpack.c.l.b16 %v216
  %v745 = vunpack.c.l.b16 %v217
  %v746 = vunpack.c.l.b16 %v218
  %v747 = vunpack.c.l.b16 %v219
  %v748 = vunpack.c.l.b16 %v220
  %v749 = vunpack.c.l.b16 %v221
  %v750 = vunpack.c.l.b16 %v222
  %v751 = vunpack.c.l.b16 %v223
  %v752 = vunpack.c.l.b16 %v224
  %v753 = vunpack.c.l.b16 %v225
  %v754 = vunpack.c.l.b16 %v226
  %v755 = vunpack.c.l.b16 %v227
  %v756 = vunpack.c.l.b16 %v228
  %v757 = vunpack.c.l.b16 %v229
  %v758 = vunpack.c.l.b16 %v230
  %v759 = vunpack.c.l.b16 %v231
  %v760 = vunpack.c.l.b16 %v232
  %v761 = vunpack.c.l.b16 %v233
  %v762 = vunpack.c.l.b16 %v234
  %v763 = vunpack.c.l.b16 %v235
  %v764 = vunpack.c.l.b16 %v236
  %v765 = vunpack.c.l.b16 %v237
  %v766 = vunpack.c.l.b16 %v238
  %v767 = vunpack.c.l.b16 %v239
  %v768 = vunpack.c.l.b16 %v240
  %v769 = vunpack.c.l.b16 %v241
  %v770 = vunpack.c.l.b16 %v242
  %v771 = vunpack.c.l.b16 %v243
  %v772 = vunpack.c.l.b16 %v244
  %v773 = vunpack.c.l.b16 %v245
  %v774 = vunpack.c.l.b16 %v246
  %v775 = vunpack.c.l.b16 %v247
  %v776 = vunpack.c.l.b16 %v248
  %v777 = vunpack.c.l.b16 %v249
  %v778 = vunpack.c.l.b16 %v250
  %v779 = vunpack.c.l.b16 %v251
  %v780 = vunpack.c.l.b16 %v252
  %v781 = vunpack.c.l.b16 %v253
  %v782 = vunpack.c.l.b16 %v254
  %v783 = vunpack.c.l.b16 %v255
  %v784 = vunpack.c.l.b16 %v256
  %v785 = vunpack.c.l.b16 %v257
  %v786 = vunpack.c.l.b16 %v258
  %v787 = vunpack.c.l.b16 %v259
  %v788 = vunpack.c.l.b16 %v260
  %v789 = vunpack.c.l.b16 %v261
  %v790 = vunpack.c.l.b16 %v262
  %v791 = vunpack.c.l.b16 %v263
  %v792 = vunpack.c.l.b16 %v264
  %v793 = vunpack.c.l.b16 %v265
  %v794 = vunpack.c.l.b16 %v266
  %v795 = vpack.c.b16 %v540, %v539
  %v796 = vpack.c.b16 %v542, %v541
  %v797 = vpack.c.b16 %v544, %v543
  %v798 = vpack.c.b16 %v546, %v545
  %v799 = vpack.c.b16 %v548, %v547
  %v800 = vpack.c.b16 %v550, %v549
  %v801 = vpack.c.b16 %v552, %v551
  %v802 = vpack.c.b16 %v554, %v553
  %v803 = vpack.c.b16 %v556, %v555
  %v804 = vpack.c.b16 %v558, %v557
  %v805 = vpack.c.b16 %v560, %v559
  %v806 = vpack.c.b16 %v562, %v561
  %v807 = vpack.c.b16 %v564, %v563
  %v808 = vpack.c.b16 %v566, %v565
  %v809 = vpack.c.b16 %v568, %v567
  %v810 = vpack.c.b16 %v570, %v569
  %v811 = vpack.c.b16 %v572, %v571
  %v812 = vpack.c.b16 %v574, %v573
  %v813 = vpack.c.b16 %v576, %v575
  %v814 = vpack.c.b16 %v578, %v577
  %v815 = vpack.c.b16 %v580, %v579
  %v816 = vpack.c.b16 %v582, %v581
  %v817 = vpack.c.b16 %v584, %v583
  %v818 = vpack.c.b16 %v586, %v585
  %v819 = vpack.c.b16 %v588, %v587
  %v820 = vpack.c.b16 %v590, %v589
  %v821 = vpack.c.b16 %v592, %v591
  %v822 = vpack.c.b16 %v594, %v593
  %v823 = vpack.c.b16 %v596, %v595
  %v824 = vpack.c.b16 %v598, %v597
  %v825 = vpack.c.b16 %v600, %v599
  %v826 = vpack.c.b16 %v602, %v601
  %v827 = vpack.c.b16 %v604, %v603
  %v828 = vpack.c.b16 %v606, %v605
  %v829 = vpack.c.b16 %v608, %v607
  %v830 = vpack.c.b16 %v610, %v609
  %v831 = vpack.c.b16 %v612, %v611
  %v832 = vpack.c.b16 %v614, %v613
  %v833 = vpack.c.b16 %v616, %v615
  %v834 = vpack.c.b16 %v618, %v617
  %v835 = vpack.c.b16 %v620, %v619
  %v836 = vpack.c.b16 %v622, %v621
  %v837 = vpack.c.b16 %v624, %v623
  %v838 = vpack.c.b16 %v626, %v625
  %v839 = vpack.c.b16 %v628, %v627
  %v840 = vpack.c.b16 %v630, %v629
  %v841 = vpack.c.b16 %v632, %v631
  %v842 = vpack.c.b16 %v634, %v633
  %v843 = vpack.c.b16 %v636, %v635
  %v844 = vpack.c.b16 %v638, %v637
  %v845 = vpack.c.b16 %v640, %v639
  %v846 = vpack.c.b16 %v642, %v641
  %v847 = vpack.c.b16 %v644, %v643
  %v848 = vpack.c.b16 %v646, %v645
  %v849 = vpack.c.b16 %v648, %v647
  %v850 = vpack.c.b16 %v650, %v649
  %v851 = vpack.c.b16 %v652, %v651
  %v852 = vpack.c.b16 %v654, %v653
  %v853 = vpack.c.b16 %v656, %v655
  %v854 = vpack.c.b16 %v658, %v657
  %v855 = vpack.c.b16 %v660, %v659
  %v856 = vpack.c.b16 %v662, %v661
  %v857 = vpack.c.b16 %v664, %v663
  %v858 = vpack.c.b16 %v666, %v665
  %v859 = vpack.c.b16 %v668, %v667
  %v860 = vpack.c.b16 %v670, %v669
  %v861 = vpack.c.b16 %v672, %v671
  %v862 = vpack.c.b16 %v674, %v673
  %v863 = vpack.c.b16 %v676, %v675
  %v864 = vpack.c.b16 %v678, %v677
  %v865 = vpack.c.b16 %v680, %v679
  %v866 = vpack.c.b16 %v682, %v681
  %v867 = vpack.c.b16 %v684, %v683
  %v868 = vpack.c.b16 %v686, %v685
  %v869 = vpack.c.b16 %v688, %v687
  %v870 = vpack.c.b16 %v690, %v689
  %v871 = vpack.c.b16 %v692, %v691
  %v872 = vpack.c.b16 %v694, %v693
  %v873 = vpack.c.b16 %v696, %v695
  %v874 = vpack.c.b16 %v698, %v697
  %v875 = vpack.c.b16 %v700, %v699
  %v876 = vpack.c.b16 %v702, %v701
  %v877 = vpack.c.b16 %v704, %v703
  %v878 = vpack.c.b16 %v706, %v705
  %v879 = vpack.c.b16 %v708, %v707
  %v880 = vpack.c.b16 %v710, %v709
  %v881 = vpack.c.b16 %v712, %v711
  %v882 = vpack.c.b16 %v714, %v713
  %v883 = vpack.c.b16 %v716, %v715
  %v884 = vpack.c.b16 %v718, %v717
  %v885 = vpack.c.b16 %v720, %v719
  %v886 = vpack.c.b16 %v722, %v721
  %v887 = vpack.c.b16 %v724, %v723
  %v888 = vpack.c.b16 %v726, %v725
  %v889 = vpack.c.b16 %v728, %v727
  %v890 = vpack.c.b16 %v730, %v729
  %v891 = vpack.c.b16 %v732, %v731
  %v892 = vpack.c.b16 %v734, %v733
  %v893 = vpack.c.b16 %v736, %v735
  %v894 = vpack.c.b16 %v738, %v737
  %v895 = vpack.c.b16 %v740, %v739
  %v896 = vpack.c.b16 %v742, %v741
  %v897 = vpack.c.b16 %v744, %v743
  %v898 = vpack.c.b16 %v746, %v745
  %v899 = vpack.c.b16 %v748, %v747
  %v900 = vpack.c.b16 %v750, %v749
  %v901 = vpack.c.b16 %v752, %v751
  %v902 = vpack.c.b16 %v754, %v753
  %v903 = vpack.c.b16 %v756, %v755
  %v904 = vpack.c.b16 %v758, %v757
  %v905 = vpack.c.b16 %v760, %v759
  %v906 = vpack.c.b16 %v762, %v761
  %v907 = vpack.c.b16 %v764, %v763
  %v908 = vpack.c.b16 %v766, %v765
  %v909 = vpack.c.b16 %v768, %v767
  %v910 = vpack.c.b16 %v770, %v769
  %v911 = vpack.c.b16 %v772, %v771
  %v912 = vpack.c.b16 %v774, %v773
  %v913 = vpack.c.b16 %v776, %v775
  %v914 = vpack.c.b16 %v778, %v777
  %v915 = vpack.c.b16 %v780, %v779
  %v916 = vpack.c.b16 %v782, %v781
  %v917 = vpack.c.b16 %v784, %v783
  %v918 = vpack.c.b16 %v786, %v785
  %v919 = vpack.c.b16 %v788, %v787
  %v920 = vpack.c.b16 %v790, %v789
  %v921 = vpack.c.b16 %v792, %v791
  %v922 = vpack.c.b16 %v794, %v793
  %v1067 = vunpack.c.l.b16 %v267
  %v1068 = vunpack.c.l.b16 %v268
  %v1069 = vunpack.c.l.b16 %v269
  %v1070 = vunpack.c.l.b16 %v270
  %v1071 = vunpack.c.l.b16 %v271
  %v1072 = vunpack.c.l.b16 %v272
  %v1073 = vunpack.c.l.b16 %v273
  %v1074 = vunpack.c.l.b16 %v274
  %v1075 = vunpack.c.l.b16 %v275
  %v1076 = vunpack.c.l.b16 %v276
  %v1077 = vunpack.c.l.b16 %v277
  %v1078 = vunpack.c.l.b16 %v278
  %v1079 = vunpack.c.l.b16 %v279
  %v1080 = vunpack.c.l.b16 %v280
  %v1081 = vunpack.c.l.b16 %v281
  %v1082 = vunpack.c.l.b16 %v282
  %v1083 = vpack.c.b16 %v1068, %v1067
  %v1084 = vpack.c.b16 %v1070, %v1069
  %v1085 = vpack.c.b16 %v1072, %v1071
  %v1086 = vpack.c.b16 %v1074, %v1073
  %v1087 = vpack.c.b16 %v1076, %v1075
  %v1088 = vpack.c.b16 %v1078, %v1077
  %v1089 = vpack.c.b16 %v1080, %v1079
  %v1090 = vpack.c.b16 %v1082, %v1081
  %1099 = vmatpush.bf16.msra.mxu0 %v1090
  %1100 = vmatpush.bf16.msra.mxu0 %v1089
  %1101 = vmatpush.bf16.msra.mxu0 %v1088
  %1102 = vmatpush.bf16.msra.mxu0 %v1087
  %1103 = vmatpush.bf16.msra.mxu0 %v1086
  %1104 = vmatpush.bf16.msra.mxu0 %v1085
  %1105 = vmatpush.bf16.msra.mxu0 %v1084
  %1106 = vmatpush.bf16.msra.mxu0 %v1083
  %1107 = vmatmul.bf16.gmra.mxu0 %v795
  %v1108 = vpop.f32.mrf.mxu0
  %v1109 = vadd.f32 0.0, %v1108
  %v1110 = vpop.f32.mrf.mxu0
  %v1111 = vadd.f32 0.0, %v1110
  %1112 = vmatmul.bf16.gmra.mxu0 %v796
  %v1113 = vpop.f32.mrf.mxu0
  %v1114 = vadd.f32 0.0, %v1113
  %v1115 = vpop.f32.mrf.mxu0
  %v1116 = vadd.f32 0.0, %v1115
  %1117 = vmatmul.bf16.gmra.mxu0 %v797
  %v1118 = vpop.f32.mrf.mxu0
  %v1119 = vadd.f32 0.0, %v1118
  %v1120 = vpop.f32.mrf.mxu0
  %v1121 = vadd.f32 0.0, %v1120
  %1122 = vmatmul.bf16.gmra.mxu0 %v798
  %v1123 = vpop.f32.mrf.mxu0
  %v1124 = vadd.f32 0.0, %v1123
  %v1125 = vpop.f32.mrf.mxu0
  %v1126 = vadd.f32 0.0, %v1125
  %1127 = vmatmul.bf16.gmra.mxu0 %v799
  %v1128 = vpop.f32.mrf.mxu0
  %v1129 = vadd.f32 0.0, %v1128
  %v1130 = vpop.f32.mrf.mxu0
  %v1131 = vadd.f32 0.0, %v1130
  %1132 = vmatmul.bf16.gmra.mxu0 %v800
  %v1133 = vpop.f32.mrf.mxu0
  %v1134 = vadd.f32 0.0, %v1133
  %v1135 = vpop.f32.mrf.mxu0
  %v1136 = vadd.f32 0.0, %v1135
  %1137 = vmatmul.bf16.gmra.mxu0 %v801
  %v1138 = vpop.f32.mrf.mxu0
  %v1139 = vadd.f32 0.0, %v1138
  %v1140 = vpop.f32.mrf.mxu0
  %v1141 = vadd.f32 0.0, %v1140
  %1142 = vmatmul.bf16.gmra.mxu0 %v802
  %v1143 = vpop.f32.mrf.mxu0
  %v1144 = vadd.f32 0.0, %v1143
  %v1145 = vpop.f32.mrf.mxu0
  %v1146 = vadd.f32 0.0, %v1145
  %1147 = vmatmul.bf16.gmra.mxu0 %v803
  %v1148 = vpop.f32.mrf.mxu0
  %v1149 = vadd.f32 0.0, %v1148
  %v1150 = vpop.f32.mrf.mxu0
  %v1151 = vadd.f32 0.0, %v1150
  %1152 = vmatmul.bf16.gmra.mxu0 %v804
  %v1153 = vpop.f32.mrf.mxu0
  %v1154 = vadd.f32 0.0, %v1153
  %v1155 = vpop.f32.mrf.mxu0
  %v1156 = vadd.f32 0.0, %v1155
  %1157 = vmatmul.bf16.gmra.mxu0 %v805
  %v1158 = vpop.f32.mrf.mxu0
  %v1159 = vadd.f32 0.0, %v1158
  %v1160 = vpop.f32.mrf.mxu0
  %v1161 = vadd.f32 0.0, %v1160
  %1162 = vmatmul.bf16.gmra.mxu0 %v806
  %v1163 = vpop.f32.mrf.mxu0
  %v1164 = vadd.f32 0.0, %v1163
  %v1165 = vpop.f32.mrf.mxu0
  %v1166 = vadd.f32 0.0, %v1165
  %1167 = vmatmul.bf16.gmra.mxu0 %v807
  %v1168 = vpop.f32.mrf.mxu0
  %v1169 = vadd.f32 0.0, %v1168
  %v1170 = vpop.f32.mrf.mxu0
  %v1171 = vadd.f32 0.0, %v1170
  %1172 = vmatmul.bf16.gmra.mxu0 %v808
  %v1173 = vpop.f32.mrf.mxu0
  %v1174 = vadd.f32 0.0, %v1173
  %v1175 = vpop.f32.mrf.mxu0
  %v1176 = vadd.f32 0.0, %v1175
  %1177 = vmatmul.bf16.gmra.mxu0 %v809
  %v1178 = vpop.f32.mrf.mxu0
  %v1179 = vadd.f32 0.0, %v1178
  %v1180 = vpop.f32.mrf.mxu0
  %v1181 = vadd.f32 0.0, %v1180
  %1182 = vmatmul.bf16.gmra.mxu0 %v810
  %v1183 = vpop.f32.mrf.mxu0
  %v1184 = vadd.f32 0.0, %v1183
  %v1185 = vpop.f32.mrf.mxu0
  %v1186 = vadd.f32 0.0, %v1185
  %1187 = vmatmul.bf16.gmra.mxu0 %v811
  %v1188 = vpop.f32.mrf.mxu0
  %v1189 = vadd.f32 0.0, %v1188
  %v1190 = vpop.f32.mrf.mxu0
  %v1191 = vadd.f32 0.0, %v1190
  %1192 = vmatmul.bf16.gmra.mxu0 %v812
  %v1193 = vpop.f32.mrf.mxu0
  %v1194 = vadd.f32 0.0, %v1193
  %v1195 = vpop.f32.mrf.mxu0
  %v1196 = vadd.f32 0.0, %v1195
  %1197 = vmatmul.bf16.gmra.mxu0 %v813
  %v1198 = vpop.f32.mrf.mxu0
  %v1199 = vadd.f32 0.0, %v1198
  %v1200 = vpop.f32.mrf.mxu0
  %v1201 = vadd.f32 0.0, %v1200
  %1202 = vmatmul.bf16.gmra.mxu0 %v814
  %v1203 = vpop.f32.mrf.mxu0
  %v1204 = vadd.f32 0.0, %v1203
  %v1205 = vpop.f32.mrf.mxu0
  %v1206 = vadd.f32 0.0, %v1205
  %1207 = vmatmul.bf16.gmra.mxu0 %v815
  %v1208 = vpop.f32.mrf.mxu0
  %v1209 = vadd.f32 0.0, %v1208
  %v1210 = vpop.f32.mrf.mxu0
  %v1211 = vadd.f32 0.0, %v1210
  %1212 = vmatmul.bf16.gmra.mxu0 %v816
  %v1213 = vpop.f32.mrf.mxu0
  %v1214 = vadd.f32 0.0, %v1213
  %v1215 = vpop.f32.mrf.mxu0
  %v1216 = vadd.f32 0.0, %v1215
  %1217 = vmatmul.bf16.gmra.mxu0 %v817
  %v1218 = vpop.f32.mrf.mxu0
  %v1219 = vadd.f32 0.0, %v1218
  %v1220 = vpop.f32.mrf.mxu0
  %v1221 = vadd.f32 0.0, %v1220
  %1222 = vmatmul.bf16.gmra.mxu0 %v818
  %v1223 = vpop.f32.mrf.mxu0
  %v1224 = vadd.f32 0.0, %v1223
  %v1225 = vpop.f32.mrf.mxu0
  %v1226 = vadd.f32 0.0, %v1225
  %1227 = vmatmul.bf16.gmra.mxu0 %v819
  %v1228 = vpop.f32.mrf.mxu0
  %v1229 = vadd.f32 0.0, %v1228
  %v1230 = vpop.f32.mrf.mxu0
  %v1231 = vadd.f32 0.0, %v1230
  %1232 = vmatmul.bf16.gmra.mxu0 %v820
  %v1233 = vpop.f32.mrf.mxu0
  %v1234 = vadd.f32 0.0, %v1233
  %v1235 = vpop.f32.mrf.mxu0
  %v1236 = vadd.f32 0.0, %v1235
  %1237 = vmatmul.bf16.gmra.mxu0 %v821
  %v1238 = vpop.f32.mrf.mxu0
  %v1239 = vadd.f32 0.0, %v1238
  %v1240 = vpop.f32.mrf.mxu0
  %v1241 = vadd.f32 0.0, %v1240
  %1242 = vmatmul.bf16.gmra.mxu0 %v822
  %v1243 = vpop.f32.mrf.mxu0
  %v1244 = vadd.f32 0.0, %v1243
  %v1245 = vpop.f32.mrf.mxu0
  %v1246 = vadd.f32 0.0, %v1245
  %1247 = vmatmul.bf16.gmra.mxu0 %v823
  %v1248 = vpop.f32.mrf.mxu0
  %v1249 = vadd.f32 0.0, %v1248
  %v1250 = vpop.f32.mrf.mxu0
  %v1251 = vadd.f32 0.0, %v1250
  %1252 = vmatmul.bf16.gmra.mxu0 %v824
  %v1253 = vpop.f32.mrf.mxu0
  %v1254 = vadd.f32 0.0, %v1253
  %v1255 = vpop.f32.mrf.mxu0
  %v1256 = vadd.f32 0.0, %v1255
  %1257 = vmatmul.bf16.gmra.mxu0 %v825
  %v1258 = vpop.f32.mrf.mxu0
  %v1259 = vadd.f32 0.0, %v1258
  %v1260 = vpop.f32.mrf.mxu0
  %v1261 = vadd.f32 0.0, %v1260
  %1262 = vmatmul.bf16.gmra.mxu0 %v826
  %v1263 = vpop.f32.mrf.mxu0
  %v1264 = vadd.f32 0.0, %v1263
  %v1265 = vpop.f32.mrf.mxu0
  %v1266 = vadd.f32 0.0, %v1265
  %1267 = vmatmul.bf16.gmra.mxu0 %v827
  %v1268 = vpop.f32.mrf.mxu0
  %v1269 = vadd.f32 0.0, %v1268
  %v1270 = vpop.f32.mrf.mxu0
  %v1271 = vadd.f32 0.0, %v1270
  %1272 = vmatmul.bf16.gmra.mxu0 %v828
  %v1273 = vpop.f32.mrf.mxu0
  %v1274 = vadd.f32 0.0, %v1273
  %v1275 = vpop.f32.mrf.mxu0
  %v1276 = vadd.f32 0.0, %v1275
  %1277 = vmatmul.bf16.gmra.mxu0 %v829
  %v1278 = vpop.f32.mrf.mxu0
  %v1279 = vadd.f32 0.0, %v1278
  %v1280 = vpop.f32.mrf.mxu0
  %v1281 = vadd.f32 0.0, %v1280
  %1282 = vmatmul.bf16.gmra.mxu0 %v830
  %v1283 = vpop.f32.mrf.mxu0
  %v1284 = vadd.f32 0.0, %v1283
  %v1285 = vpop.f32.mrf.mxu0
  %v1286 = vadd.f32 0.0, %v1285
  %1287 = vmatmul.bf16.gmra.mxu0 %v831
  %v1288 = vpop.f32.mrf.mxu0
  %v1289 = vadd.f32 0.0, %v1288
  %v1290 = vpop.f32.mrf.mxu0
  %v1291 = vadd.f32 0.0, %v1290
  %1292 = vmatmul.bf16.gmra.mxu0 %v832
  %v1293 = vpop.f32.mrf.mxu0
  %v1294 = vadd.f32 0.0, %v1293
  %v1295 = vpop.f32.mrf.mxu0
  %v1296 = vadd.f32 0.0, %v1295
  %1297 = vmatmul.bf16.gmra.mxu0 %v833
  %v1298 = vpop.f32.mrf.mxu0
  %v1299 = vadd.f32 0.0, %v1298
  %v1300 = vpop.f32.mrf.mxu0
  %v1301 = vadd.f32 0.0, %v1300
  %1302 = vmatmul.bf16.gmra.mxu0 %v834
  %v1303 = vpop.f32.mrf.mxu0
  %v1304 = vadd.f32 0.0, %v1303
  %v1305 = vpop.f32.mrf.mxu0
  %v1306 = vadd.f32 0.0, %v1305
  %1307 = vmatmul.bf16.gmra.mxu0 %v835
  %v1308 = vpop.f32.mrf.mxu0
  %v1309 = vadd.f32 0.0, %v1308
  %v1310 = vpop.f32.mrf.mxu0
  %v1311 = vadd.f32 0.0, %v1310
  %1312 = vmatmul.bf16.gmra.mxu0 %v836
  %v1313 = vpop.f32.mrf.mxu0
  %v1314 = vadd.f32 0.0, %v1313
  %v1315 = vpop.f32.mrf.mxu0
  %v1316 = vadd.f32 0.0, %v1315
  %1317 = vmatmul.bf16.gmra.mxu0 %v837
  %v1318 = vpop.f32.mrf.mxu0
  %v1319 = vadd.f32 0.0, %v1318
  %v1320 = vpop.f32.mrf.mxu0
  %v1321 = vadd.f32 0.0, %v1320
  %1322 = vmatmul.bf16.gmra.mxu0 %v838
  %v1323 = vpop.f32.mrf.mxu0
  %v1324 = vadd.f32 0.0, %v1323
  %v1325 = vpop.f32.mrf.mxu0
  %v1326 = vadd.f32 0.0, %v1325
  %1327 = vmatmul.bf16.gmra.mxu0 %v839
  %v1328 = vpop.f32.mrf.mxu0
  %v1329 = vadd.f32 0.0, %v1328
  %v1330 = vpop.f32.mrf.mxu0
  %v1331 = vadd.f32 0.0, %v1330
  %1332 = vmatmul.bf16.gmra.mxu0 %v840
  %v1333 = vpop.f32.mrf.mxu0
  %v1334 = vadd.f32 0.0, %v1333
  %v1335 = vpop.f32.mrf.mxu0
  %v1336 = vadd.f32 0.0, %v1335
  %1337 = vmatmul.bf16.gmra.mxu0 %v841
  %v1338 = vpop.f32.mrf.mxu0
  %v1339 = vadd.f32 0.0, %v1338
  %v1340 = vpop.f32.mrf.mxu0
  %v1341 = vadd.f32 0.0, %v1340
  %1342 = vmatmul.bf16.gmra.mxu0 %v842
  %v1343 = vpop.f32.mrf.mxu0
  %v1344 = vadd.f32 0.0, %v1343
  %v1345 = vpop.f32.mrf.mxu0
  %v1346 = vadd.f32 0.0, %v1345
  %1347 = vmatmul.bf16.gmra.mxu0 %v843
  %v1348 = vpop.f32.mrf.mxu0
  %v1349 = vadd.f32 0.0, %v1348
  %v1350 = vpop.f32.mrf.mxu0
  %v1351 = vadd.f32 0.0, %v1350
  %1352 = vmatmul.bf16.gmra.mxu0 %v844
  %v1353 = vpop.f32.mrf.mxu0
  %v1354 = vadd.f32 0.0, %v1353
  %v1355 = vpop.f32.mrf.mxu0
  %v1356 = vadd.f32 0.0, %v1355
  %1357 = vmatmul.bf16.gmra.mxu0 %v845
  %v1358 = vpop.f32.mrf.mxu0
  %v1359 = vadd.f32 0.0, %v1358
  %v1360 = vpop.f32.mrf.mxu0
  %v1361 = vadd.f32 0.0, %v1360
  %1362 = vmatmul.bf16.gmra.mxu0 %v846
  %v1363 = vpop.f32.mrf.mxu0
  %v1364 = vadd.f32 0.0, %v1363
  %v1365 = vpop.f32.mrf.mxu0
  %v1366 = vadd.f32 0.0, %v1365
  %1367 = vmatmul.bf16.gmra.mxu0 %v847
  %v1368 = vpop.f32.mrf.mxu0
  %v1369 = vadd.f32 0.0, %v1368
  %v1370 = vpop.f32.mrf.mxu0
  %v1371 = vadd.f32 0.0, %v1370
  %1372 = vmatmul.bf16.gmra.mxu0 %v848
  %v1373 = vpop.f32.mrf.mxu0
  %v1374 = vadd.f32 0.0, %v1373
  %v1375 = vpop.f32.mrf.mxu0
  %v1376 = vadd.f32 0.0, %v1375
  %1377 = vmatmul.bf16.gmra.mxu0 %v849
  %v1378 = vpop.f32.mrf.mxu0
  %v1379 = vadd.f32 0.0, %v1378
  %v1380 = vpop.f32.mrf.mxu0
  %v1381 = vadd.f32 0.0, %v1380
  %1382 = vmatmul.bf16.gmra.mxu0 %v850
  %v1383 = vpop.f32.mrf.mxu0
  %v1384 = vadd.f32 0.0, %v1383
  %v1385 = vpop.f32.mrf.mxu0
  %v1386 = vadd.f32 0.0, %v1385
  %1387 = vmatmul.bf16.gmra.mxu0 %v851
  %v1388 = vpop.f32.mrf.mxu0
  %v1389 = vadd.f32 0.0, %v1388
  %v1390 = vpop.f32.mrf.mxu0
  %v1391 = vadd.f32 0.0, %v1390
  %1392 = vmatmul.bf16.gmra.mxu0 %v852
  %v1393 = vpop.f32.mrf.mxu0
  %v1394 = vadd.f32 0.0, %v1393
  %v1395 = vpop.f32.mrf.mxu0
  %v1396 = vadd.f32 0.0, %v1395
  %1397 = vmatmul.bf16.gmra.mxu0 %v853
  %v1398 = vpop.f32.mrf.mxu0
  %v1399 = vadd.f32 0.0, %v1398
  %v1400 = vpop.f32.mrf.mxu0
  %v1401 = vadd.f32 0.0, %v1400
  %1402 = vmatmul.bf16.gmra.mxu0 %v854
  %v1403 = vpop.f32.mrf.mxu0
  %v1404 = vadd.f32 0.0, %v1403
  %v1405 = vpop.f32.mrf.mxu0
  %v1406 = vadd.f32 0.0, %v1405
  %1407 = vmatmul.bf16.gmra.mxu0 %v855
  %v1408 = vpop.f32.mrf.mxu0
  %v1409 = vadd.f32 0.0, %v1408
  %v1410 = vpop.f32.mrf.mxu0
  %v1411 = vadd.f32 0.0, %v1410
  %1412 = vmatmul.bf16.gmra.mxu0 %v856
  %v1413 = vpop.f32.mrf.mxu0
  %v1414 = vadd.f32 0.0, %v1413
  %v1415 = vpop.f32.mrf.mxu0
  %v1416 = vadd.f32 0.0, %v1415
  %1417 = vmatmul.bf16.gmra.mxu0 %v857
  %v1418 = vpop.f32.mrf.mxu0
  %v1419 = vadd.f32 0.0, %v1418
  %v1420 = vpop.f32.mrf.mxu0
  %v1421 = vadd.f32 0.0, %v1420
  %1422 = vmatmul.bf16.gmra.mxu0 %v858
  %v1423 = vpop.f32.mrf.mxu0
  %v1424 = vadd.f32 0.0, %v1423
  %v1425 = vpop.f32.mrf.mxu0
  %v1426 = vadd.f32 0.0, %v1425
  %1427 = vmatmul.bf16.gmra.mxu0 %v859
  %v1428 = vpop.f32.mrf.mxu0
  %v1429 = vadd.f32 0.0, %v1428
  %v1430 = vpop.f32.mrf.mxu0
  %v1431 = vadd.f32 0.0, %v1430
  %1432 = vmatmul.bf16.gmra.mxu0 %v860
  %v1433 = vpop.f32.mrf.mxu0
  %v1434 = vadd.f32 0.0, %v1433
  %v1435 = vpop.f32.mrf.mxu0
  %v1436 = vadd.f32 0.0, %v1435
  %1437 = vmatmul.bf16.gmra.mxu0 %v861
  %v1438 = vpop.f32.mrf.mxu0
  %v1439 = vadd.f32 0.0, %v1438
  %v1440 = vpop.f32.mrf.mxu0
  %v1441 = vadd.f32 0.0, %v1440
  %1442 = vmatmul.bf16.gmra.mxu0 %v862
  %v1443 = vpop.f32.mrf.mxu0
  %v1444 = vadd.f32 0.0, %v1443
  %v1445 = vpop.f32.mrf.mxu0
  %v1446 = vadd.f32 0.0, %v1445
  %1447 = vmatmul.bf16.gmra.mxu0 %v863
  %v1448 = vpop.f32.mrf.mxu0
  %v1449 = vadd.f32 0.0, %v1448
  %v1450 = vpop.f32.mrf.mxu0
  %v1451 = vadd.f32 0.0, %v1450
  %1452 = vmatmul.bf16.gmra.mxu0 %v864
  %v1453 = vpop.f32.mrf.mxu0
  %v1454 = vadd.f32 0.0, %v1453
  %v1455 = vpop.f32.mrf.mxu0
  %v1456 = vadd.f32 0.0, %v1455
  %1457 = vmatmul.bf16.gmra.mxu0 %v865
  %v1458 = vpop.f32.mrf.mxu0
  %v1459 = vadd.f32 0.0, %v1458
  %v1460 = vpop.f32.mrf.mxu0
  %v1461 = vadd.f32 0.0, %v1460
  %1462 = vmatmul.bf16.gmra.mxu0 %v866
  %v1463 = vpop.f32.mrf.mxu0
  %v1464 = vadd.f32 0.0, %v1463
  %v1465 = vpop.f32.mrf.mxu0
  %v1466 = vadd.f32 0.0, %v1465
  %1467 = vmatmul.bf16.gmra.mxu0 %v867
  %v1468 = vpop.f32.mrf.mxu0
  %v1469 = vadd.f32 0.0, %v1468
  %v1470 = vpop.f32.mrf.mxu0
  %v1471 = vadd.f32 0.0, %v1470
  %1472 = vmatmul.bf16.gmra.mxu0 %v868
  %v1473 = vpop.f32.mrf.mxu0
  %v1474 = vadd.f32 0.0, %v1473
  %v1475 = vpop.f32.mrf.mxu0
  %v1476 = vadd.f32 0.0, %v1475
  %1477 = vmatmul.bf16.gmra.mxu0 %v869
  %v1478 = vpop.f32.mrf.mxu0
  %v1479 = vadd.f32 0.0, %v1478
  %v1480 = vpop.f32.mrf.mxu0
  %v1481 = vadd.f32 0.0, %v1480
  %1482 = vmatmul.bf16.gmra.mxu0 %v870
  %v1483 = vpop.f32.mrf.mxu0
  %v1484 = vadd.f32 0.0, %v1483
  %v1485 = vpop.f32.mrf.mxu0
  %v1486 = vadd.f32 0.0, %v1485
  %1487 = vmatmul.bf16.gmra.mxu0 %v871
  %v1488 = vpop.f32.mrf.mxu0
  %v1489 = vadd.f32 0.0, %v1488
  %v1490 = vpop.f32.mrf.mxu0
  %v1491 = vadd.f32 0.0, %v1490
  %1492 = vmatmul.bf16.gmra.mxu0 %v872
  %v1493 = vpop.f32.mrf.mxu0
  %v1494 = vadd.f32 0.0, %v1493
  %v1495 = vpop.f32.mrf.mxu0
  %v1496 = vadd.f32 0.0, %v1495
  %1497 = vmatmul.bf16.gmra.mxu0 %v873
  %v1498 = vpop.f32.mrf.mxu0
  %v1499 = vadd.f32 0.0, %v1498
  %v1500 = vpop.f32.mrf.mxu0
  %v1501 = vadd.f32 0.0, %v1500
  %1502 = vmatmul.bf16.gmra.mxu0 %v874
  %v1503 = vpop.f32.mrf.mxu0
  %v1504 = vadd.f32 0.0, %v1503
  %v1505 = vpop.f32.mrf.mxu0
  %v1506 = vadd.f32 0.0, %v1505
  %1507 = vmatmul.bf16.gmra.mxu0 %v875
  %v1508 = vpop.f32.mrf.mxu0
  %v1509 = vadd.f32 0.0, %v1508
  %v1510 = vpop.f32.mrf.mxu0
  %v1511 = vadd.f32 0.0, %v1510
  %1512 = vmatmul.bf16.gmra.mxu0 %v876
  %v1513 = vpop.f32.mrf.mxu0
  %v1514 = vadd.f32 0.0, %v1513
  %v1515 = vpop.f32.mrf.mxu0
  %v1516 = vadd.f32 0.0, %v1515
  %1517 = vmatmul.bf16.gmra.mxu0 %v877
  %v1518 = vpop.f32.mrf.mxu0
  %v1519 = vadd.f32 0.0, %v1518
  %v1520 = vpop.f32.mrf.mxu0
  %v1521 = vadd.f32 0.0, %v1520
  %1522 = vmatmul.bf16.gmra.mxu0 %v878
  %v1523 = vpop.f32.mrf.mxu0
  %v1524 = vadd.f32 0.0, %v1523
  %v1525 = vpop.f32.mrf.mxu0
  %v1526 = vadd.f32 0.0, %v1525
  %1527 = vmatmul.bf16.gmra.mxu0 %v879
  %v1528 = vpop.f32.mrf.mxu0
  %v1529 = vadd.f32 0.0, %v1528
  %v1530 = vpop.f32.mrf.mxu0
  %v1531 = vadd.f32 0.0, %v1530
  %1532 = vmatmul.bf16.gmra.mxu0 %v880
  %v1533 = vpop.f32.mrf.mxu0
  %v1534 = vadd.f32 0.0, %v1533
  %v1535 = vpop.f32.mrf.mxu0
  %v1536 = vadd.f32 0.0, %v1535
  %1537 = vmatmul.bf16.gmra.mxu0 %v881
  %v1538 = vpop.f32.mrf.mxu0
  %v1539 = vadd.f32 0.0, %v1538
  %v1540 = vpop.f32.mrf.mxu0
  %v1541 = vadd.f32 0.0, %v1540
  %1542 = vmatmul.bf16.gmra.mxu0 %v882
  %v1543 = vpop.f32.mrf.mxu0
  %v1544 = vadd.f32 0.0, %v1543
  %v1545 = vpop.f32.mrf.mxu0
  %v1546 = vadd.f32 0.0, %v1545
  %1547 = vmatmul.bf16.gmra.mxu0 %v883
  %v1548 = vpop.f32.mrf.mxu0
  %v1549 = vadd.f32 0.0, %v1548
  %v1550 = vpop.f32.mrf.mxu0
  %v1551 = vadd.f32 0.0, %v1550
  %1552 = vmatmul.bf16.gmra.mxu0 %v884
  %v1553 = vpop.f32.mrf.mxu0
  %v1554 = vadd.f32 0.0, %v1553
  %v1555 = vpop.f32.mrf.mxu0
  %v1556 = vadd.f32 0.0, %v1555
  %1557 = vmatmul.bf16.gmra.mxu0 %v885
  %v1558 = vpop.f32.mrf.mxu0
  %v1559 = vadd.f32 0.0, %v1558
  %v1560 = vpop.f32.mrf.mxu0
  %v1561 = vadd.f32 0.0, %v1560
  %1562 = vmatmul.bf16.gmra.mxu0 %v886
  %v1563 = vpop.f32.mrf.mxu0
  %v1564 = vadd.f32 0.0, %v1563
  %v1565 = vpop.f32.mrf.mxu0
  %v1566 = vadd.f32 0.0, %v1565
  %1567 = vmatmul.bf16.gmra.mxu0 %v887
  %v1568 = vpop.f32.mrf.mxu0
  %v1569 = vadd.f32 0.0, %v1568
  %v1570 = vpop.f32.mrf.mxu0
  %v1571 = vadd.f32 0.0, %v1570
  %1572 = vmatmul.bf16.gmra.mxu0 %v888
  %v1573 = vpop.f32.mrf.mxu0
  %v1574 = vadd.f32 0.0, %v1573
  %v1575 = vpop.f32.mrf.mxu0
  %v1576 = vadd.f32 0.0, %v1575
  %1577 = vmatmul.bf16.gmra.mxu0 %v889
  %v1578 = vpop.f32.mrf.mxu0
  %v1579 = vadd.f32 0.0, %v1578
  %v1580 = vpop.f32.mrf.mxu0
  %v1581 = vadd.f32 0.0, %v1580
  %1582 = vmatmul.bf16.gmra.mxu0 %v890
  %v1583 = vpop.f32.mrf.mxu0
  %v1584 = vadd.f32 0.0, %v1583
  %v1585 = vpop.f32.mrf.mxu0
  %v1586 = vadd.f32 0.0, %v1585
  %1587 = vmatmul.bf16.gmra.mxu0 %v891
  %v1588 = vpop.f32.mrf.mxu0
  %v1589 = vadd.f32 0.0, %v1588
  %v1590 = vpop.f32.mrf.mxu0
  %v1591 = vadd.f32 0.0, %v1590
  %1592 = vmatmul.bf16.gmra.mxu0 %v892
  %v1593 = vpop.f32.mrf.mxu0
  %v1594 = vadd.f32 0.0, %v1593
  %v1595 = vpop.f32.mrf.mxu0
  %v1596 = vadd.f32 0.0, %v1595
  %1597 = vmatmul.bf16.gmra.mxu0 %v893
  %v1598 = vpop.f32.mrf.mxu0
  %v1599 = vadd.f32 0.0, %v1598
  %v1600 = vpop.f32.mrf.mxu0
  %v1601 = vadd.f32 0.0, %v1600
  %1602 = vmatmul.bf16.gmra.mxu0 %v894
  %v1603 = vpop.f32.mrf.mxu0
  %v1604 = vadd.f32 0.0, %v1603
  %v1605 = vpop.f32.mrf.mxu0
  %v1606 = vadd.f32 0.0, %v1605
  %1607 = vmatmul.bf16.gmra.mxu0 %v895
  %v1608 = vpop.f32.mrf.mxu0
  %v1609 = vadd.f32 0.0, %v1608
  %v1610 = vpop.f32.mrf.mxu0
  %v1611 = vadd.f32 0.0, %v1610
  %1612 = vmatmul.bf16.gmra.mxu0 %v896
  %v1613 = vpop.f32.mrf.mxu0
  %v1614 = vadd.f32 0.0, %v1613
  %v1615 = vpop.f32.mrf.mxu0
  %v1616 = vadd.f32 0.0, %v1615
  %1617 = vmatmul.bf16.gmra.mxu0 %v897
  %v1618 = vpop.f32.mrf.mxu0
  %v1619 = vadd.f32 0.0, %v1618
  %v1620 = vpop.f32.mrf.mxu0
  %v1621 = vadd.f32 0.0, %v1620
  %1622 = vmatmul.bf16.gmra.mxu0 %v898
  %v1623 = vpop.f32.mrf.mxu0
  %v1624 = vadd.f32 0.0, %v1623
  %v1625 = vpop.f32.mrf.mxu0
  %v1626 = vadd.f32 0.0, %v1625
  %1627 = vmatmul.bf16.gmra.mxu0 %v899
  %v1628 = vpop.f32.mrf.mxu0
  %v1629 = vadd.f32 0.0, %v1628
  %v1630 = vpop.f32.mrf.mxu0
  %v1631 = vadd.f32 0.0, %v1630
  %1632 = vmatmul.bf16.gmra.mxu0 %v900
  %v1633 = vpop.f32.mrf.mxu0
  %v1634 = vadd.f32 0.0, %v1633
  %v1635 = vpop.f32.mrf.mxu0
  %v1636 = vadd.f32 0.0, %v1635
  %1637 = vmatmul.bf16.gmra.mxu0 %v901
  %v1638 = vpop.f32.mrf.mxu0
  %v1639 = vadd.f32 0.0, %v1638
  %v1640 = vpop.f32.mrf.mxu0
  %v1641 = vadd.f32 0.0, %v1640
  %1642 = vmatmul.bf16.gmra.mxu0 %v902
  %v1643 = vpop.f32.mrf.mxu0
  %v1644 = vadd.f32 0.0, %v1643
  %v1645 = vpop.f32.mrf.mxu0
  %v1646 = vadd.f32 0.0, %v1645
  %1647 = vmatmul.bf16.gmra.mxu0 %v903
  %v1648 = vpop.f32.mrf.mxu0
  %v1649 = vadd.f32 0.0, %v1648
  %v1650 = vpop.f32.mrf.mxu0
  %v1651 = vadd.f32 0.0, %v1650
  %1652 = vmatmul.bf16.gmra.mxu0 %v904
  %v1653 = vpop.f32.mrf.mxu0
  %v1654 = vadd.f32 0.0, %v1653
  %v1655 = vpop.f32.mrf.mxu0
  %v1656 = vadd.f32 0.0, %v1655
  %1657 = vmatmul.bf16.gmra.mxu0 %v905
  %v1658 = vpop.f32.mrf.mxu0
  %v1659 = vadd.f32 0.0, %v1658
  %v1660 = vpop.f32.mrf.mxu0
  %v1661 = vadd.f32 0.0, %v1660
  %1662 = vmatmul.bf16.gmra.mxu0 %v906
  %v1663 = vpop.f32.mrf.mxu0
  %v1664 = vadd.f32 0.0, %v1663
  %v1665 = vpop.f32.mrf.mxu0
  %v1666 = vadd.f32 0.0, %v1665
  %1667 = vmatmul.bf16.gmra.mxu0 %v907
  %v1668 = vpop.f32.mrf.mxu0
  %v1669 = vadd.f32 0.0, %v1668
  %v1670 = vpop.f32.mrf.mxu0
  %v1671 = vadd.f32 0.0, %v1670
  %1672 = vmatmul.bf16.gmra.mxu0 %v908
  %v1673 = vpop.f32.mrf.mxu0
  %v1674 = vadd.f32 0.0, %v1673
  %v1675 = vpop.f32.mrf.mxu0
  %v1676 = vadd.f32 0.0, %v1675
  %1677 = vmatmul.bf16.gmra.mxu0 %v909
  %v1678 = vpop.f32.mrf.mxu0
  %v1679 = vadd.f32 0.0, %v1678
  %v1680 = vpop.f32.mrf.mxu0
  %v1681 = vadd.f32 0.0, %v1680
  %1682 = vmatmul.bf16.gmra.mxu0 %v910
  %v1683 = vpop.f32.mrf.mxu0
  %v1684 = vadd.f32 0.0, %v1683
  %v1685 = vpop.f32.mrf.mxu0
  %v1686 = vadd.f32 0.0, %v1685
  %1687 = vmatmul.bf16.gmra.mxu0 %v911
  %v1688 = vpop.f32.mrf.mxu0
  %v1689 = vadd.f32 0.0, %v1688
  %v1690 = vpop.f32.mrf.mxu0
  %v1691 = vadd.f32 0.0, %v1690
  %1692 = vmatmul.bf16.gmra.mxu0 %v912
  %v1693 = vpop.f32.mrf.mxu0
  %v1694 = vadd.f32 0.0, %v1693
  %v1695 = vpop.f32.mrf.mxu0
  %v1696 = vadd.f32 0.0, %v1695
  %1697 = vmatmul.bf16.gmra.mxu0 %v913
  %v1698 = vpop.f32.mrf.mxu0
  %v1699 = vadd.f32 0.0, %v1698
  %v1700 = vpop.f32.mrf.mxu0
  %v1701 = vadd.f32 0.0, %v1700
  %1702 = vmatmul.bf16.gmra.mxu0 %v914
  %v1703 = vpop.f32.mrf.mxu0
  %v1704 = vadd.f32 0.0, %v1703
  %v1705 = vpop.f32.mrf.mxu0
  %v1706 = vadd.f32 0.0, %v1705
  %1707 = vmatmul.bf16.gmra.mxu0 %v915
  %v1708 = vpop.f32.mrf.mxu0
  %v1709 = vadd.f32 0.0, %v1708
  %v1710 = vpop.f32.mrf.mxu0
  %v1711 = vadd.f32 0.0, %v1710
  %1712 = vmatmul.bf16.gmra.mxu0 %v916
  %v1713 = vpop.f32.mrf.mxu0
  %v1714 = vadd.f32 0.0, %v1713
  %v1715 = vpop.f32.mrf.mxu0
  %v1716 = vadd.f32 0.0, %v1715
  %1717 = vmatmul.bf16.gmra.mxu0 %v917
  %v1718 = vpop.f32.mrf.mxu0
  %v1719 = vadd.f32 0.0, %v1718
  %v1720 = vpop.f32.mrf.mxu0
  %v1721 = vadd.f32 0.0, %v1720
  %1722 = vmatmul.bf16.gmra.mxu0 %v918
  %v1723 = vpop.f32.mrf.mxu0
  %v1724 = vadd.f32 0.0, %v1723
  %v1725 = vpop.f32.mrf.mxu0
  %v1726 = vadd.f32 0.0, %v1725
  %1727 = vmatmul.bf16.gmra.mxu0 %v919
  %v1728 = vpop.f32.mrf.mxu0
  %v1729 = vadd.f32 0.0, %v1728
  %v1730 = vpop.f32.mrf.mxu0
  %v1731 = vadd.f32 0.0, %v1730
  %1732 = vmatmul.bf16.gmra.mxu0 %v920
  %v1733 = vpop.f32.mrf.mxu0
  %v1734 = vadd.f32 0.0, %v1733
  %v1735 = vpop.f32.mrf.mxu0
  %v1736 = vadd.f32 0.0, %v1735
  %1737 = vmatmul.bf16.gmra.mxu0 %v921
  %v1738 = vpop.f32.mrf.mxu0
  %v1739 = vadd.f32 0.0, %v1738
  %v1740 = vpop.f32.mrf.mxu0
  %v1741 = vadd.f32 0.0, %v1740
  %1742 = vmatmul.bf16.gmra.mxu0 %v922
  %v1743 = vpop.f32.mrf.mxu0
  %v1744 = vadd.f32 0.0, %v1743
  %v1745 = vpop.f32.mrf.mxu0
  %v1746 = vadd.f32 0.0, %v1745
  %1747 = vdwg.mxu0
  %vm1748 = vcmp.gt.f32.partialorder %v1109, 0.0
  %vm1749 = vcmp.gt.f32.partialorder %v1111, 0.0
  %vm1750 = vcmp.gt.f32.partialorder %v1114, 0.0
  %vm1751 = vcmp.gt.f32.partialorder %v1116, 0.0
  %vm1752 = vcmp.gt.f32.partialorder %v1119, 0.0
  %vm1753 = vcmp.gt.f32.partialorder %v1121, 0.0
  %vm1754 = vcmp.gt.f32.partialorder %v1124, 0.0
  %vm1755 = vcmp.gt.f32.partialorder %v1126, 0.0
  %vm1756 = vcmp.gt.f32.partialorder %v1129, 0.0
  %vm1757 = vcmp.gt.f32.partialorder %v1131, 0.0
  %vm1758 = vcmp.gt.f32.partialorder %v1134, 0.0
  %vm1759 = vcmp.gt.f32.partialorder %v1136, 0.0
  %vm1760 = vcmp.gt.f32.partialorder %v1139, 0.0
  %vm1761 = vcmp.gt.f32.partialorder %v1141, 0.0
  %vm1762 = vcmp.gt.f32.partialorder %v1144, 0.0
  %vm1763 = vcmp.gt.f32.partialorder %v1146, 0.0
  %vm1764 = vcmp.gt.f32.partialorder %v1149, 0.0
  %vm1765 = vcmp.gt.f32.partialorder %v1151, 0.0
  %vm1766 = vcmp.gt.f32.partialorder %v1154, 0.0
  %vm1767 = vcmp.gt.f32.partialorder %v1156, 0.0
  %vm1768 = vcmp.gt.f32.partialorder %v1159, 0.0
  %vm1769 = vcmp.gt.f32.partialorder %v1161, 0.0
  %vm1770 = vcmp.gt.f32.partialorder %v1164, 0.0
  %vm1771 = vcmp.gt.f32.partialorder %v1166, 0.0
  %vm1772 = vcmp.gt.f32.partialorder %v1169, 0.0
  %vm1773 = vcmp.gt.f32.partialorder %v1171, 0.0
  %vm1774 = vcmp.gt.f32.partialorder %v1174, 0.0
  %vm1775 = vcmp.gt.f32.partialorder %v1176, 0.0
  %vm1776 = vcmp.gt.f32.partialorder %v1179, 0.0
  %vm1777 = vcmp.gt.f32.partialorder %v1181, 0.0
  %vm1778 = vcmp.gt.f32.partialorder %v1184, 0.0
  %vm1779 = vcmp.gt.f32.partialorder %v1186, 0.0
  %vm1780 = vcmp.gt.f32.partialorder %v1189, 0.0
  %vm1781 = vcmp.gt.f32.partialorder %v1191, 0.0
  %vm1782 = vcmp.gt.f32.partialorder %v1194, 0.0
  %vm1783 = vcmp.gt.f32.partialorder %v1196, 0.0
  %vm1784 = vcmp.gt.f32.partialorder %v1199, 0.0
  %vm1785 = vcmp.gt.f32.partialorder %v1201, 0.0
  %vm1786 = vcmp.gt.f32.partialorder %v1204, 0.0
  %vm1787 = vcmp.gt.f32.partialorder %v1206, 0.0
  %vm1788 = vcmp.gt.f32.partialorder %v1209, 0.0
  %vm1789 = vcmp.gt.f32.partialorder %v1211, 0.0
  %vm1790 = vcmp.gt.f32.partialorder %v1214, 0.0
  %vm1791 = vcmp.gt.f32.partialorder %v1216, 0.0
  %vm1792 = vcmp.gt.f32.partialorder %v1219, 0.0
  %vm1793 = vcmp.gt.f32.partialorder %v1221, 0.0
  %vm1794 = vcmp.gt.f32.partialorder %v1224, 0.0
  %vm1795 = vcmp.gt.f32.partialorder %v1226, 0.0
  %vm1796 = vcmp.gt.f32.partialorder %v1229, 0.0
  %vm1797 = vcmp.gt.f32.partialorder %v1231, 0.0
  %vm1798 = vcmp.gt.f32.partialorder %v1234, 0.0
  %vm1799 = vcmp.gt.f32.partialorder %v1236, 0.0
  %vm1800 = vcmp.gt.f32.partialorder %v1239, 0.0
  %vm1801 = vcmp.gt.f32.partialorder %v1241, 0.0
  %vm1802 = vcmp.gt.f32.partialorder %v1244, 0.0
  %vm1803 = vcmp.gt.f32.partialorder %v1246, 0.0
  %vm1804 = vcmp.gt.f32.partialorder %v1249, 0.0
  %vm1805 = vcmp.gt.f32.partialorder %v1251, 0.0
  %vm1806 = vcmp.gt.f32.partialorder %v1254, 0.0
  %vm1807 = vcmp.gt.f32.partialorder %v1256, 0.0
  %vm1808 = vcmp.gt.f32.partialorder %v1259, 0.0
  %vm1809 = vcmp.gt.f32.partialorder %v1261, 0.0
  %vm1810 = vcmp.gt.f32.partialorder %v1264, 0.0
  %vm1811 = vcmp.gt.f32.partialorder %v1266, 0.0
  %vm1812 = vcmp.gt.f32.partialorder %v1269, 0.0
  %vm1813 = vcmp.gt.f32.partialorder %v1271, 0.0
  %vm1814 = vcmp.gt.f32.partialorder %v1274, 0.0
  %vm1815 = vcmp.gt.f32.partialorder %v1276, 0.0
  %vm1816 = vcmp.gt.f32.partialorder %v1279, 0.0
  %vm1817 = vcmp.gt.f32.partialorder %v1281, 0.0
  %vm1818 = vcmp.gt.f32.partialorder %v1284, 0.0
  %vm1819 = vcmp.gt.f32.partialorder %v1286, 0.0
  %vm1820 = vcmp.gt.f32.partialorder %v1289, 0.0
  %vm1821 = vcmp.gt.f32.partialorder %v1291, 0.0
  %vm1822 = vcmp.gt.f32.partialorder %v1294, 0.0
  %vm1823 = vcmp.gt.f32.partialorder %v1296, 0.0
  %vm1824 = vcmp.gt.f32.partialorder %v1299, 0.0
  %vm1825 = vcmp.gt.f32.partialorder %v1301, 0.0
  %vm1826 = vcmp.gt.f32.partialorder %v1304, 0.0
  %vm1827 = vcmp.gt.f32.partialorder %v1306, 0.0
  %vm1828 = vcmp.gt.f32.partialorder %v1309, 0.0
  %vm1829 = vcmp.gt.f32.partialorder %v1311, 0.0
  %vm1830 = vcmp.gt.f32.partialorder %v1314, 0.0
  %vm1831 = vcmp.gt.f32.partialorder %v1316, 0.0
  %vm1832 = vcmp.gt.f32.partialorder %v1319, 0.0
  %vm1833 = vcmp.gt.f32.partialorder %v1321, 0.0
  %vm1834 = vcmp.gt.f32.partialorder %v1324, 0.0
  %vm1835 = vcmp.gt.f32.partialorder %v1326, 0.0
  %vm1836 = vcmp.gt.f32.partialorder %v1329, 0.0
  %vm1837 = vcmp.gt.f32.partialorder %v1331, 0.0
  %vm1838 = vcmp.gt.f32.partialorder %v1334, 0.0
  %vm1839 = vcmp.gt.f32.partialorder %v1336, 0.0
  %vm1840 = vcmp.gt.f32.partialorder %v1339, 0.0
  %vm1841 = vcmp.gt.f32.partialorder %v1341, 0.0
  %vm1842 = vcmp.gt.f32.partialorder %v1344, 0.0
  %vm1843 = vcmp.gt.f32.partialorder %v1346, 0.0
  %vm1844 = vcmp.gt.f32.partialorder %v1349, 0.0
  %vm1845 = vcmp.gt.f32.partialorder %v1351, 0.0
  %vm1846 = vcmp.gt.f32.partialorder %v1354, 0.0
  %vm1847 = vcmp.gt.f32.partialorder %v1356, 0.0
  %vm1848 = vcmp.gt.f32.partialorder %v1359, 0.0
  %vm1849 = vcmp.gt.f32.partialorder %v1361, 0.0
  %vm1850 = vcmp.gt.f32.partialorder %v1364, 0.0
  %vm1851 = vcmp.gt.f32.partialorder %v1366, 0.0
  %vm1852 = vcmp.gt.f32.partialorder %v1369, 0.0
  %vm1853 = vcmp.gt.f32.partialorder %v1371, 0.0
  %vm1854 = vcmp.gt.f32.partialorder %v1374, 0.0
  %vm1855 = vcmp.gt.f32.partialorder %v1376, 0.0
  %vm1856 = vcmp.gt.f32.partialorder %v1379, 0.0
  %vm1857 = vcmp.gt.f32.partialorder %v1381, 0.0
  %vm1858 = vcmp.gt.f32.partialorder %v1384, 0.0
  %vm1859 = vcmp.gt.f32.partialorder %v1386, 0.0
  %vm1860 = vcmp.gt.f32.partialorder %v1389, 0.0
  %vm1861 = vcmp.gt.f32.partialorder %v1391, 0.0
  %vm1862 = vcmp.gt.f32.partialorder %v1394, 0.0
  %vm1863 = vcmp.gt.f32.partialorder %v1396, 0.0
  %vm1864 = vcmp.gt.f32.partialorder %v1399, 0.0
  %vm1865 = vcmp.gt.f32.partialorder %v1401, 0.0
  %vm1866 = vcmp.gt.f32.partialorder %v1404, 0.0
  %vm1867 = vcmp.gt.f32.partialorder %v1406, 0.0
  %vm1868 = vcmp.gt.f32.partialorder %v1409, 0.0
  %vm1869 = vcmp.gt.f32.partialorder %v1411, 0.0
  %vm1870 = vcmp.gt.f32.partialorder %v1414, 0.0
  %vm1871 = vcmp.gt.f32.partialorder %v1416, 0.0
  %vm1872 = vcmp.gt.f32.partialorder %v1419, 0.0
  %vm1873 = vcmp.gt.f32.partialorder %v1421, 0.0
  %vm1874 = vcmp.gt.f32.partialorder %v1424, 0.0
  %vm1875 = vcmp.gt.f32.partialorder %v1426, 0.0
  %vm1876 = vcmp.gt.f32.partialorder %v1429, 0.0
  %vm1877 = vcmp.gt.f32.partialorder %v1431, 0.0
  %vm1878 = vcmp.gt.f32.partialorder %v1434, 0.0
  %vm1879 = vcmp.gt.f32.partialorder %v1436, 0.0
  %vm1880 = vcmp.gt.f32.partialorder %v1439, 0.0
  %vm1881 = vcmp.gt.f32.partialorder %v1441, 0.0
  %vm1882 = vcmp.gt.f32.partialorder %v1444, 0.0
  %vm1883 = vcmp.gt.f32.partialorder %v1446, 0.0
  %vm1884 = vcmp.gt.f32.partialorder %v1449, 0.0
  %vm1885 = vcmp.gt.f32.partialorder %v1451, 0.0
  %vm1886 = vcmp.gt.f32.partialorder %v1454, 0.0
  %vm1887 = vcmp.gt.f32.partialorder %v1456, 0.0
  %vm1888 = vcmp.gt.f32.partialorder %v1459, 0.0
  %vm1889 = vcmp.gt.f32.partialorder %v1461, 0.0
  %vm1890 = vcmp.gt.f32.partialorder %v1464, 0.0
  %vm1891 = vcmp.gt.f32.partialorder %v1466, 0.0
  %vm1892 = vcmp.gt.f32.partialorder %v1469, 0.0
  %vm1893 = vcmp.gt.f32.partialorder %v1471, 0.0
  %vm1894 = vcmp.gt.f32.partialorder %v1474, 0.0
  %vm1895 = vcmp.gt.f32.partialorder %v1476, 0.0
  %vm1896 = vcmp.gt.f32.partialorder %v1479, 0.0
  %vm1897 = vcmp.gt.f32.partialorder %v1481, 0.0
  %vm1898 = vcmp.gt.f32.partialorder %v1484, 0.0
  %vm1899 = vcmp.gt.f32.partialorder %v1486, 0.0
  %vm1900 = vcmp.gt.f32.partialorder %v1489, 0.0
  %vm1901 = vcmp.gt.f32.partialorder %v1491, 0.0
  %vm1902 = vcmp.gt.f32.partialorder %v1494, 0.0
  %vm1903 = vcmp.gt.f32.partialorder %v1496, 0.0
  %vm1904 = vcmp.gt.f32.partialorder %v1499, 0.0
  %vm1905 = vcmp.gt.f32.partialorder %v1501, 0.0
  %vm1906 = vcmp.gt.f32.partialorder %v1504, 0.0
  %vm1907 = vcmp.gt.f32.partialorder %v1506, 0.0
  %vm1908 = vcmp.gt.f32.partialorder %v1509, 0.0
  %vm1909 = vcmp.gt.f32.partialorder %v1511, 0.0
  %vm1910 = vcmp.gt.f32.partialorder %v1514, 0.0
  %vm1911 = vcmp.gt.f32.partialorder %v1516, 0.0
  %vm1912 = vcmp.gt.f32.partialorder %v1519, 0.0
  %vm1913 = vcmp.gt.f32.partialorder %v1521, 0.0
  %vm1914 = vcmp.gt.f32.partialorder %v1524, 0.0
  %vm1915 = vcmp.gt.f32.partialorder %v1526, 0.0
  %vm1916 = vcmp.gt.f32.partialorder %v1529, 0.0
  %vm1917 = vcmp.gt.f32.partialorder %v1531, 0.0
  %vm1918 = vcmp.gt.f32.partialorder %v1534, 0.0
  %vm1919 = vcmp.gt.f32.partialorder %v1536, 0.0
  %vm1920 = vcmp.gt.f32.partialorder %v1539, 0.0
  %vm1921 = vcmp.gt.f32.partialorder %v1541, 0.0
  %vm1922 = vcmp.gt.f32.partialorder %v1544, 0.0
  %vm1923 = vcmp.gt.f32.partialorder %v1546, 0.0
  %vm1924 = vcmp.gt.f32.partialorder %v1549, 0.0
  %vm1925 = vcmp.gt.f32.partialorder %v1551, 0.0
  %vm1926 = vcmp.gt.f32.partialorder %v1554, 0.0
  %vm1927 = vcmp.gt.f32.partialorder %v1556, 0.0
  %vm1928 = vcmp.gt.f32.partialorder %v1559, 0.0
  %vm1929 = vcmp.gt.f32.partialorder %v1561, 0.0
  %vm1930 = vcmp.gt.f32.partialorder %v1564, 0.0
  %vm1931 = vcmp.gt.f32.partialorder %v1566, 0.0
  %vm1932 = vcmp.gt.f32.partialorder %v1569, 0.0
  %vm1933 = vcmp.gt.f32.partialorder %v1571, 0.0
  %vm1934 = vcmp.gt.f32.partialorder %v1574, 0.0
  %vm1935 = vcmp.gt.f32.partialorder %v1576, 0.0
  %vm1936 = vcmp.gt.f32.partialorder %v1579, 0.0
  %vm1937 = vcmp.gt.f32.partialorder %v1581, 0.0
  %vm1938 = vcmp.gt.f32.partialorder %v1584, 0.0
  %vm1939 = vcmp.gt.f32.partialorder %v1586, 0.0
  %vm1940 = vcmp.gt.f32.partialorder %v1589, 0.0
  %vm1941 = vcmp.gt.f32.partialorder %v1591, 0.0
  %vm1942 = vcmp.gt.f32.partialorder %v1594, 0.0
  %vm1943 = vcmp.gt.f32.partialorder %v1596, 0.0
  %vm1944 = vcmp.gt.f32.partialorder %v1599, 0.0
  %vm1945 = vcmp.gt.f32.partialorder %v1601, 0.0
  %vm1946 = vcmp.gt.f32.partialorder %v1604, 0.0
  %vm1947 = vcmp.gt.f32.partialorder %v1606, 0.0
  %vm1948 = vcmp.gt.f32.partialorder %v1609, 0.0
  %vm1949 = vcmp.gt.f32.partialorder %v1611, 0.0
  %vm1950 = vcmp.gt.f32.partialorder %v1614, 0.0
  %vm1951 = vcmp.gt.f32.partialorder %v1616, 0.0
  %vm1952 = vcmp.gt.f32.partialorder %v1619, 0.0
  %vm1953 = vcmp.gt.f32.partialorder %v1621, 0.0
  %vm1954 = vcmp.gt.f32.partialorder %v1624, 0.0
  %vm1955 = vcmp.gt.f32.partialorder %v1626, 0.0
  %vm1956 = vcmp.gt.f32.partialorder %v1629, 0.0
  %vm1957 = vcmp.gt.f32.partialorder %v1631, 0.0
  %vm1958 = vcmp.gt.f32.partialorder %v1634, 0.0
  %vm1959 = vcmp.gt.f32.partialorder %v1636, 0.0
  %vm1960 = vcmp.gt.f32.partialorder %v1639, 0.0
  %vm1961 = vcmp.gt.f32.partialorder %v1641, 0.0
  %vm1962 = vcmp.gt.f32.partialorder %v1644, 0.0
  %vm1963 = vcmp.gt.f32.partialorder %v1646, 0.0
  %vm1964 = vcmp.gt.f32.partialorder %v1649, 0.0
  %vm1965 = vcmp.gt.f32.partialorder %v1651, 0.0
  %vm1966 = vcmp.gt.f32.partialorder %v1654, 0.0
  %vm1967 = vcmp.gt.f32.partialorder %v1656, 0.0
  %vm1968 = vcmp.gt.f32.partialorder %v1659, 0.0
  %vm1969 = vcmp.gt.f32.partialorder %v1661, 0.0
  %vm1970 = vcmp.gt.f32.partialorder %v1664, 0.0
  %vm1971 = vcmp.gt.f32.partialorder %v1666, 0.0
  %vm1972 = vcmp.gt.f32.partialorder %v1669, 0.0
  %vm1973 = vcmp.gt.f32.partialorder %v1671, 0.0
  %vm1974 = vcmp.gt.f32.partialorder %v1674, 0.0
  %vm1975 = vcmp.gt.f32.partialorder %v1676, 0.0
  %vm1976 = vcmp.gt.f32.partialorder %v1679, 0.0
  %vm1977 = vcmp.gt.f32.partialorder %v1681, 0.0
  %vm1978 = vcmp.gt.f32.partialorder %v1684, 0.0
  %vm1979 = vcmp.gt.f32.partialorder %v1686, 0.0
  %vm1980 = vcmp.gt.f32.partialorder %v1689, 0.0
  %vm1981 = vcmp.gt.f32.partialorder %v1691, 0.0
  %vm1982 = vcmp.gt.f32.partialorder %v1694, 0.0
  %vm1983 = vcmp.gt.f32.partialorder %v1696, 0.0
  %vm1984 = vcmp.gt.f32.partialorder %v1699, 0.0
  %vm1985 = vcmp.gt.f32.partialorder %v1701, 0.0
  %vm1986 = vcmp.gt.f32.partialorder %v1704, 0.0
  %vm1987 = vcmp.gt.f32.partialorder %v1706, 0.0
  %vm1988 = vcmp.gt.f32.partialorder %v1709, 0.0
  %vm1989 = vcmp.gt.f32.partialorder %v1711, 0.0
  %vm1990 = vcmp.gt.f32.partialorder %v1714, 0.0
  %vm1991 = vcmp.gt.f32.partialorder %v1716, 0.0
  %vm1992 = vcmp.gt.f32.partialorder %v1719, 0.0
  %vm1993 = vcmp.gt.f32.partialorder %v1721, 0.0
  %vm1994 = vcmp.gt.f32.partialorder %v1724, 0.0
  %vm1995 = vcmp.gt.f32.partialorder %v1726, 0.0
  %vm1996 = vcmp.gt.f32.partialorder %v1729, 0.0
  %vm1997 = vcmp.gt.f32.partialorder %v1731, 0.0
  %vm1998 = vcmp.gt.f32.partialorder %v1734, 0.0
  %vm1999 = vcmp.gt.f32.partialorder %v1736, 0.0
  %vm2000 = vcmp.gt.f32.partialorder %v1739, 0.0
  %vm2001 = vcmp.gt.f32.partialorder %v1741, 0.0
  %vm2002 = vcmp.gt.f32.partialorder %v1744, 0.0
  %vm2003 = vcmp.gt.f32.partialorder %v1746, 0.0
  %v2004 = vmul.f32 %v1109, 0.2
  %v2005 = vmul.f32 %v1111, 0.2
  %v2006 = vmul.f32 %v1114, 0.2
  %v2007 = vmul.f32 %v1116, 0.2
  %v2008 = vmul.f32 %v1119, 0.2
  %v2009 = vmul.f32 %v1121, 0.2
  %v2010 = vmul.f32 %v1124, 0.2
  %v2011 = vmul.f32 %v1126, 0.2
  %v2012 = vmul.f32 %v1129, 0.2
  %v2013 = vmul.f32 %v1131, 0.2
  %v2014 = vmul.f32 %v1134, 0.2
  %v2015 = vmul.f32 %v1136, 0.2
  %v2016 = vmul.f32 %v1139, 0.2
  %v2017 = vmul.f32 %v1141, 0.2
  %v2018 = vmul.f32 %v1144, 0.2
  %v2019 = vmul.f32 %v1146, 0.2
  %v2020 = vmul.f32 %v1149, 0.2
  %v2021 = vmul.f32 %v1151, 0.2
  %v2022 = vmul.f32 %v1154, 0.2
  %v2023 = vmul.f32 %v1156, 0.2
  %v2024 = vmul.f32 %v1159, 0.2
  %v2025 = vmul.f32 %v1161, 0.2
  %v2026 = vmul.f32 %v1164, 0.2
  %v2027 = vmul.f32 %v1166, 0.2
  %v2028 = vmul.f32 %v1169, 0.2
  %v2029 = vmul.f32 %v1171, 0.2
  %v2030 = vmul.f32 %v1174, 0.2
  %v2031 = vmul.f32 %v1176, 0.2
  %v2032 = vmul.f32 %v1179, 0.2
  %v2033 = vmul.f32 %v1181, 0.2
  %v2034 = vmul.f32 %v1184, 0.2
  %v2035 = vmul.f32 %v1186, 0.2
  %v2036 = vmul.f32 %v1189, 0.2
  %v2037 = vmul.f32 %v1191, 0.2
  %v2038 = vmul.f32 %v1194, 0.2
  %v2039 = vmul.f32 %v1196, 0.2
  %v2040 = vmul.f32 %v1199, 0.2
  %v2041 = vmul.f32 %v1201, 0.2
  %v2042 = vmul.f32 %v1204, 0.2
  %v2043 = vmul.f32 %v1206, 0.2
  %v2044 = vmul.f32 %v1209, 0.2
  %v2045 = vmul.f32 %v1211, 0.2
  %v2046 = vmul.f32 %v1214, 0.2
  %v2047 = vmul.f32 %v1216, 0.2
  %v2048 = vmul.f32 %v1219, 0.2
  %v2049 = vmul.f32 %v1221, 0.2
  %v2050 = vmul.f32 %v1224, 0.2
  %v2051 = vmul.f32 %v1226, 0.2
  %v2052 = vmul.f32 %v1229, 0.2
  %v2053 = vmul.f32 %v1231, 0.2
  %v2054 = vmul.f32 %v1234, 0.2
  %v2055 = vmul.f32 %v1236, 0.2
  %v2056 = vmul.f32 %v1239, 0.2
  %v2057 = vmul.f32 %v1241, 0.2
  %v2058 = vmul.f32 %v1244, 0.2
  %v2059 = vmul.f32 %v1246, 0.2
  %v2060 = vmul.f32 %v1249, 0.2
  %v2061 = vmul.f32 %v1251, 0.2
  %v2062 = vmul.f32 %v1254, 0.2
  %v2063 = vmul.f32 %v1256, 0.2
  %v2064 = vmul.f32 %v1259, 0.2
  %v2065 = vmul.f32 %v1261, 0.2
  %v2066 = vmul.f32 %v1264, 0.2
  %v2067 = vmul.f32 %v1266, 0.2
  %v2068 = vmul.f32 %v1269, 0.2
  %v2069 = vmul.f32 %v1271, 0.2
  %v2070 = vmul.f32 %v1274, 0.2
  %v2071 = vmul.f32 %v1276, 0.2
  %v2072 = vmul.f32 %v1279, 0.2
  %v2073 = vmul.f32 %v1281, 0.2
  %v2074 = vmul.f32 %v1284, 0.2
  %v2075 = vmul.f32 %v1286, 0.2
  %v2076 = vmul.f32 %v1289, 0.2
  %v2077 = vmul.f32 %v1291, 0.2
  %v2078 = vmul.f32 %v1294, 0.2
  %v2079 = vmul.f32 %v1296, 0.2
  %v2080 = vmul.f32 %v1299, 0.2
  %v2081 = vmul.f32 %v1301, 0.2
  %v2082 = vmul.f32 %v1304, 0.2
  %v2083 = vmul.f32 %v1306, 0.2
  %v2084 = vmul.f32 %v1309, 0.2
  %v2085 = vmul.f32 %v1311, 0.2
  %v2086 = vmul.f32 %v1314, 0.2
  %v2087 = vmul.f32 %v1316, 0.2
  %v2088 = vmul.f32 %v1319, 0.2
  %v2089 = vmul.f32 %v1321, 0.2
  %v2090 = vmul.f32 %v1324, 0.2
  %v2091 = vmul.f32 %v1326, 0.2
  %v2092 = vmul.f32 %v1329, 0.2
  %v2093 = vmul.f32 %v1331, 0.2
  %v2094 = vmul.f32 %v1334, 0.2
  %v2095 = vmul.f32 %v1336, 0.2
  %v2096 = vmul.f32 %v1339, 0.2
  %v2097 = vmul.f32 %v1341, 0.2
  %v2098 = vmul.f32 %v1344, 0.2
  %v2099 = vmul.f32 %v1346, 0.2
  %v2100 = vmul.f32 %v1349, 0.2
  %v2101 = vmul.f32 %v1351, 0.2
  %v2102 = vmul.f32 %v1354, 0.2
  %v2103 = vmul.f32 %v1356, 0.2
  %v2104 = vmul.f32 %v1359, 0.2
  %v2105 = vmul.f32 %v1361, 0.2
  %v2106 = vmul.f32 %v1364, 0.2
  %v2107 = vmul.f32 %v1366, 0.2
  %v2108 = vmul.f32 %v1369, 0.2
  %v2109 = vmul.f32 %v1371, 0.2
  %v2110 = vmul.f32 %v1374, 0.2
  %v2111 = vmul.f32 %v1376, 0.2
  %v2112 = vmul.f32 %v1379, 0.2
  %v2113 = vmul.f32 %v1381, 0.2
  %v2114 = vmul.f32 %v1384, 0.2
  %v2115 = vmul.f32 %v1386, 0.2
  %v2116 = vmul.f32 %v1389, 0.2
  %v2117 = vmul.f32 %v1391, 0.2
  %v2118 = vmul.f32 %v1394, 0.2
  %v2119 = vmul.f32 %v1396, 0.2
  %v2120 = vmul.f32 %v1399, 0.2
  %v2121 = vmul.f32 %v1401, 0.2
  %v2122 = vmul.f32 %v1404, 0.2
  %v2123 = vmul.f32 %v1406, 0.2
  %v2124 = vmul.f32 %v1409, 0.2
  %v2125 = vmul.f32 %v1411, 0.2
  %v2126 = vmul.f32 %v1414, 0.2
  %v2127 = vmul.f32 %v1416, 0.2
  %v2128 = vmul.f32 %v1419, 0.2
  %v2129 = vmul.f32 %v1421, 0.2
  %v2130 = vmul.f32 %v1424, 0.2
  %v2131 = vmul.f32 %v1426, 0.2
  %v2132 = vmul.f32 %v1429, 0.2
  %v2133 = vmul.f32 %v1431, 0.2
  %v2134 = vmul.f32 %v1434, 0.2
  %v2135 = vmul.f32 %v1436, 0.2
  %v2136 = vmul.f32 %v1439, 0.2
  %v2137 = vmul.f32 %v1441, 0.2
  %v2138 = vmul.f32 %v1444, 0.2
  %v2139 = vmul.f32 %v1446, 0.2
  %v2140 = vmul.f32 %v1449, 0.2
  %v2141 = vmul.f32 %v1451, 0.2
  %v2142 = vmul.f32 %v1454, 0.2
  %v2143 = vmul.f32 %v1456, 0.2
  %v2144 = vmul.f32 %v1459, 0.2
  %v2145 = vmul.f32 %v1461, 0.2
  %v2146 = vmul.f32 %v1464, 0.2
  %v2147 = vmul.f32 %v1466, 0.2
  %v2148 = vmul.f32 %v1469, 0.2
  %v2149 = vmul.f32 %v1471, 0.2
  %v2150 = vmul.f32 %v1474, 0.2
  %v2151 = vmul.f32 %v1476, 0.2
  %v2152 = vmul.f32 %v1479, 0.2
  %v2153 = vmul.f32 %v1481, 0.2
  %v2154 = vmul.f32 %v1484, 0.2
  %v2155 = vmul.f32 %v1486, 0.2
  %v2156 = vmul.f32 %v1489, 0.2
  %v2157 = vmul.f32 %v1491, 0.2
  %v2158 = vmul.f32 %v1494, 0.2
  %v2159 = vmul.f32 %v1496, 0.2
  %v2160 = vmul.f32 %v1499, 0.2
  %v2161 = vmul.f32 %v1501, 0.2
  %v2162 = vmul.f32 %v1504, 0.2
  %v2163 = vmul.f32 %v1506, 0.2
  %v2164 = vmul.f32 %v1509, 0.2
  %v2165 = vmul.f32 %v1511, 0.2
  %v2166 = vmul.f32 %v1514, 0.2
  %v2167 = vmul.f32 %v1516, 0.2
  %v2168 = vmul.f32 %v1519, 0.2
  %v2169 = vmul.f32 %v1521, 0.2
  %v2170 = vmul.f32 %v1524, 0.2
  %v2171 = vmul.f32 %v1526, 0.2
  %v2172 = vmul.f32 %v1529, 0.2
  %v2173 = vmul.f32 %v1531, 0.2
  %v2174 = vmul.f32 %v1534, 0.2
  %v2175 = vmul.f32 %v1536, 0.2
  %v2176 = vmul.f32 %v1539, 0.2
  %v2177 = vmul.f32 %v1541, 0.2
  %v2178 = vmul.f32 %v1544, 0.2
  %v2179 = vmul.f32 %v1546, 0.2
  %v2180 = vmul.f32 %v1549, 0.2
  %v2181 = vmul.f32 %v1551, 0.2
  %v2182 = vmul.f32 %v1554, 0.2
  %v2183 = vmul.f32 %v1556, 0.2
  %v2184 = vmul.f32 %v1559, 0.2
  %v2185 = vmul.f32 %v1561, 0.2
  %v2186 = vmul.f32 %v1564, 0.2
  %v2187 = vmul.f32 %v1566, 0.2
  %v2188 = vmul.f32 %v1569, 0.2
  %v2189 = vmul.f32 %v1571, 0.2
  %v2190 = vmul.f32 %v1574, 0.2
  %v2191 = vmul.f32 %v1576, 0.2
  %v2192 = vmul.f32 %v1579, 0.2
  %v2193 = vmul.f32 %v1581, 0.2
  %v2194 = vmul.f32 %v1584, 0.2
  %v2195 = vmul.f32 %v1586, 0.2
  %v2196 = vmul.f32 %v1589, 0.2
  %v2197 = vmul.f32 %v1591, 0.2
  %v2198 = vmul.f32 %v1594, 0.2
  %v2199 = vmul.f32 %v1596, 0.2
  %v2200 = vmul.f32 %v1599, 0.2
  %v2201 = vmul.f32 %v1601, 0.2
  %v2202 = vmul.f32 %v1604, 0.2
  %v2203 = vmul.f32 %v1606, 0.2
  %v2204 = vmul.f32 %v1609, 0.2
  %v2205 = vmul.f32 %v1611, 0.2
  %v2206 = vmul.f32 %v1614, 0.2
  %v2207 = vmul.f32 %v1616, 0.2
  %v2208 = vmul.f32 %v1619, 0.2
  %v2209 = vmul.f32 %v1621, 0.2
  %v2210 = vmul.f32 %v1624, 0.2
  %v2211 = vmul.f32 %v1626, 0.2
  %v2212 = vmul.f32 %v1629, 0.2
  %v2213 = vmul.f32 %v1631, 0.2
  %v2214 = vmul.f32 %v1634, 0.2
  %v2215 = vmul.f32 %v1636, 0.2
  %v2216 = vmul.f32 %v1639, 0.2
  %v2217 = vmul.f32 %v1641, 0.2
  %v2218 = vmul.f32 %v1644, 0.2
  %v2219 = vmul.f32 %v1646, 0.2
  %v2220 = vmul.f32 %v1649, 0.2
  %v2221 = vmul.f32 %v1651, 0.2
  %v2222 = vmul.f32 %v1654, 0.2
  %v2223 = vmul.f32 %v1656, 0.2
  %v2224 = vmul.f32 %v1659, 0.2
  %v2225 = vmul.f32 %v1661, 0.2
  %v2226 = vmul.f32 %v1664, 0.2
  %v2227 = vmul.f32 %v1666, 0.2
  %v2228 = vmul.f32 %v1669, 0.2
  %v2229 = vmul.f32 %v1671, 0.2
  %v2230 = vmul.f32 %v1674, 0.2
  %v2231 = vmul.f32 %v1676, 0.2
  %v2232 = vmul.f32 %v1679, 0.2
  %v2233 = vmul.f32 %v1681, 0.2
  %v2234 = vmul.f32 %v1684, 0.2
  %v2235 = vmul.f32 %v1686, 0.2
  %v2236 = vmul.f32 %v1689, 0.2
  %v2237 = vmul.f32 %v1691, 0.2
  %v2238 = vmul.f32 %v1694, 0.2
  %v2239 = vmul.f32 %v1696, 0.2
  %v2240 = vmul.f32 %v1699, 0.2
  %v2241 = vmul.f32 %v1701, 0.2
  %v2242 = vmul.f32 %v1704, 0.2
  %v2243 = vmul.f32 %v1706, 0.2
  %v2244 = vmul.f32 %v1709, 0.2
  %v2245 = vmul.f32 %v1711, 0.2
  %v2246 = vmul.f32 %v1714, 0.2
  %v2247 = vmul.f32 %v1716, 0.2
  %v2248 = vmul.f32 %v1719, 0.2
  %v2249 = vmul.f32 %v1721, 0.2
  %v2250 = vmul.f32 %v1724, 0.2
  %v2251 = vmul.f32 %v1726, 0.2
  %v2252 = vmul.f32 %v1729, 0.2
  %v2253 = vmul.f32 %v1731, 0.2
  %v2254 = vmul.f32 %v1734, 0.2
  %v2255 = vmul.f32 %v1736, 0.2
  %v2256 = vmul.f32 %v1739, 0.2
  %v2257 = vmul.f32 %v1741, 0.2
  %v2258 = vmul.f32 %v1744, 0.2
  %v2259 = vmul.f32 %v1746, 0.2
  %v2260 = vsel %vm1748, %v1109, %v2004
  %v2261 = vsel %vm1749, %v1111, %v2005
  %v2262 = vsel %vm1750, %v1114, %v2006
  %v2263 = vsel %vm1751, %v1116, %v2007
  %v2264 = vsel %vm1752, %v1119, %v2008
  %v2265 = vsel %vm1753, %v1121, %v2009
  %v2266 = vsel %vm1754, %v1124, %v2010
  %v2267 = vsel %vm1755, %v1126, %v2011
  %v2268 = vsel %vm1756, %v1129, %v2012
  %v2269 = vsel %vm1757, %v1131, %v2013
  %v2270 = vsel %vm1758, %v1134, %v2014
  %v2271 = vsel %vm1759, %v1136, %v2015
  %v2272 = vsel %vm1760, %v1139, %v2016
  %v2273 = vsel %vm1761, %v1141, %v2017
  %v2274 = vsel %vm1762, %v1144, %v2018
  %v2275 = vsel %vm1763, %v1146, %v2019
  %v2276 = vsel %vm1764, %v1149, %v2020
  %v2277 = vsel %vm1765, %v1151, %v2021
  %v2278 = vsel %vm1766, %v1154, %v2022
  %v2279 = vsel %vm1767, %v1156, %v2023
  %v2280 = vsel %vm1768, %v1159, %v2024
  %v2281 = vsel %vm1769, %v1161, %v2025
  %v2282 = vsel %vm1770, %v1164, %v2026
  %v2283 = vsel %vm1771, %v1166, %v2027
  %v2284 = vsel %vm1772, %v1169, %v2028
  %v2285 = vsel %vm1773, %v1171, %v2029
  %v2286 = vsel %vm1774, %v1174, %v2030
  %v2287 = vsel %vm1775, %v1176, %v2031
  %v2288 = vsel %vm1776, %v1179, %v2032
  %v2289 = vsel %vm1777, %v1181, %v2033
  %v2290 = vsel %vm1778, %v1184, %v2034
  %v2291 = vsel %vm1779, %v1186, %v2035
  %v2292 = vsel %vm1780, %v1189, %v2036
  %v2293 = vsel %vm1781, %v1191, %v2037
  %v2294 = vsel %vm1782, %v1194, %v2038
  %v2295 = vsel %vm1783, %v1196, %v2039
  %v2296 = vsel %vm1784, %v1199, %v2040
  %v2297 = vsel %vm1785, %v1201, %v2041
  %v2298 = vsel %vm1786, %v1204, %v2042
  %v2299 = vsel %vm1787, %v1206, %v2043
  %v2300 = vsel %vm1788, %v1209, %v2044
  %v2301 = vsel %vm1789, %v1211, %v2045
  %v2302 = vsel %vm1790, %v1214, %v2046
  %v2303 = vsel %vm1791, %v1216, %v2047
  %v2304 = vsel %vm1792, %v1219, %v2048
  %v2305 = vsel %vm1793, %v1221, %v2049
  %v2306 = vsel %vm1794, %v1224, %v2050
  %v2307 = vsel %vm1795, %v1226, %v2051
  %v2308 = vsel %vm1796, %v1229, %v2052
  %v2309 = vsel %vm1797, %v1231, %v2053
  %v2310 = vsel %vm1798, %v1234, %v2054
  %v2311 = vsel %vm1799, %v1236, %v2055
  %v2312 = vsel %vm1800, %v1239, %v2056
  %v2313 = vsel %vm1801, %v1241, %v2057
  %v2314 = vsel %vm1802, %v1244, %v2058
  %v2315 = vsel %vm1803, %v1246, %v2059
  %v2316 = vsel %vm1804, %v1249, %v2060
  %v2317 = vsel %vm1805, %v1251, %v2061
  %v2318 = vsel %vm1806, %v1254, %v2062
  %v2319 = vsel %vm1807, %v1256, %v2063
  %v2320 = vsel %vm1808, %v1259, %v2064
  %v2321 = vsel %vm1809, %v1261, %v2065
  %v2322 = vsel %vm1810, %v1264, %v2066
  %v2323 = vsel %vm1811, %v1266, %v2067
  %v2324 = vsel %vm1812, %v1269, %v2068
  %v2325 = vsel %vm1813, %v1271, %v2069
  %v2326 = vsel %vm1814, %v1274, %v2070
  %v2327 = vsel %vm1815, %v1276, %v2071
  %v2328 = vsel %vm1816, %v1279, %v2072
  %v2329 = vsel %vm1817, %v1281, %v2073
  %v2330 = vsel %vm1818, %v1284, %v2074
  %v2331 = vsel %vm1819, %v1286, %v2075
  %v2332 = vsel %vm1820, %v1289, %v2076
  %v2333 = vsel %vm1821, %v1291, %v2077
  %v2334 = vsel %vm1822, %v1294, %v2078
  %v2335 = vsel %vm1823, %v1296, %v2079
  %v2336 = vsel %vm1824, %v1299, %v2080
  %v2337 = vsel %vm1825, %v1301, %v2081
  %v2338 = vsel %vm1826, %v1304, %v2082
  %v2339 = vsel %vm1827, %v1306, %v2083
  %v2340 = vsel %vm1828, %v1309, %v2084
  %v2341 = vsel %vm1829, %v1311, %v2085
  %v2342 = vsel %vm1830, %v1314, %v2086
  %v2343 = vsel %vm1831, %v1316, %v2087
  %v2344 = vsel %vm1832, %v1319, %v2088
  %v2345 = vsel %vm1833, %v1321, %v2089
  %v2346 = vsel %vm1834, %v1324, %v2090
  %v2347 = vsel %vm1835, %v1326, %v2091
  %v2348 = vsel %vm1836, %v1329, %v2092
  %v2349 = vsel %vm1837, %v1331, %v2093
  %v2350 = vsel %vm1838, %v1334, %v2094
  %v2351 = vsel %vm1839, %v1336, %v2095
  %v2352 = vsel %vm1840, %v1339, %v2096
  %v2353 = vsel %vm1841, %v1341, %v2097
  %v2354 = vsel %vm1842, %v1344, %v2098
  %v2355 = vsel %vm1843, %v1346, %v2099
  %v2356 = vsel %vm1844, %v1349, %v2100
  %v2357 = vsel %vm1845, %v1351, %v2101
  %v2358 = vsel %vm1846, %v1354, %v2102
  %v2359 = vsel %vm1847, %v1356, %v2103
  %v2360 = vsel %vm1848, %v1359, %v2104
  %v2361 = vsel %vm1849, %v1361, %v2105
  %v2362 = vsel %vm1850, %v1364, %v2106
  %v2363 = vsel %vm1851, %v1366, %v2107
  %v2364 = vsel %vm1852, %v1369, %v2108
  %v2365 = vsel %vm1853, %v1371, %v2109
  %v2366 = vsel %vm1854, %v1374, %v2110
  %v2367 = vsel %vm1855, %v1376, %v2111
  %v2368 = vsel %vm1856, %v1379, %v2112
  %v2369 = vsel %vm1857, %v1381, %v2113
  %v2370 = vsel %vm1858, %v1384, %v2114
  %v2371 = vsel %vm1859, %v1386, %v2115
  %v2372 = vsel %vm1860, %v1389, %v2116
  %v2373 = vsel %vm1861, %v1391, %v2117
  %v2374 = vsel %vm1862, %v1394, %v2118
  %v2375 = vsel %vm1863, %v1396, %v2119
  %v2376 = vsel %vm1864, %v1399, %v2120
  %v2377 = vsel %vm1865, %v1401, %v2121
  %v2378 = vsel %vm1866, %v1404, %v2122
  %v2379 = vsel %vm1867, %v1406, %v2123
  %v2380 = vsel %vm1868, %v1409, %v2124
  %v2381 = vsel %vm1869, %v1411, %v2125
  %v2382 = vsel %vm1870, %v1414, %v2126
  %v2383 = vsel %vm1871, %v1416, %v2127
  %v2384 = vsel %vm1872, %v1419, %v2128
  %v2385 = vsel %vm1873, %v1421, %v2129
  %v2386 = vsel %vm1874, %v1424, %v2130
  %v2387 = vsel %vm1875, %v1426, %v2131
  %v2388 = vsel %vm1876, %v1429, %v2132
  %v2389 = vsel %vm1877, %v1431, %v2133
  %v2390 = vsel %vm1878, %v1434, %v2134
  %v2391 = vsel %vm1879, %v1436, %v2135
  %v2392 = vsel %vm1880, %v1439, %v2136
  %v2393 = vsel %vm1881, %v1441, %v2137
  %v2394 = vsel %vm1882, %v1444, %v2138
  %v2395 = vsel %vm1883, %v1446, %v2139
  %v2396 = vsel %vm1884, %v1449, %v2140
  %v2397 = vsel %vm1885, %v1451, %v2141
  %v2398 = vsel %vm1886, %v1454, %v2142
  %v2399 = vsel %vm1887, %v1456, %v2143
  %v2400 = vsel %vm1888, %v1459, %v2144
  %v2401 = vsel %vm1889, %v1461, %v2145
  %v2402 = vsel %vm1890, %v1464, %v2146
  %v2403 = vsel %vm1891, %v1466, %v2147
  %v2404 = vsel %vm1892, %v1469, %v2148
  %v2405 = vsel %vm1893, %v1471, %v2149
  %v2406 = vsel %vm1894, %v1474, %v2150
  %v2407 = vsel %vm1895, %v1476, %v2151
  %v2408 = vsel %vm1896, %v1479, %v2152
  %v2409 = vsel %vm1897, %v1481, %v2153
  %v2410 = vsel %vm1898, %v1484, %v2154
  %v2411 = vsel %vm1899, %v1486, %v2155
  %v2412 = vsel %vm1900, %v1489, %v2156
  %v2413 = vsel %vm1901, %v1491, %v2157
  %v2414 = vsel %vm1902, %v1494, %v2158
  %v2415 = vsel %vm1903, %v1496, %v2159
  %v2416 = vsel %vm1904, %v1499, %v2160
  %v2417 = vsel %vm1905, %v1501, %v2161
  %v2418 = vsel %vm1906, %v1504, %v2162
  %v2419 = vsel %vm1907, %v1506, %v2163
  %v2420 = vsel %vm1908, %v1509, %v2164
  %v2421 = vsel %vm1909, %v1511, %v2165
  %v2422 = vsel %vm1910, %v1514, %v2166
  %v2423 = vsel %vm1911, %v1516, %v2167
  %v2424 = vsel %vm1912, %v1519, %v2168
  %v2425 = vsel %vm1913, %v1521, %v2169
  %v2426 = vsel %vm1914, %v1524, %v2170
  %v2427 = vsel %vm1915, %v1526, %v2171
  %v2428 = vsel %vm1916, %v1529, %v2172
  %v2429 = vsel %vm1917, %v1531, %v2173
  %v2430 = vsel %vm1918, %v1534, %v2174
  %v2431 = vsel %vm1919, %v1536, %v2175
  %v2432 = vsel %vm1920, %v1539, %v2176
  %v2433 = vsel %vm1921, %v1541, %v2177
  %v2434 = vsel %vm1922, %v1544, %v2178
  %v2435 = vsel %vm1923, %v1546, %v2179
  %v2436 = vsel %vm1924, %v1549, %v2180
  %v2437 = vsel %vm1925, %v1551, %v2181
  %v2438 = vsel %vm1926, %v1554, %v2182
  %v2439 = vsel %vm1927, %v1556, %v2183
  %v2440 = vsel %vm1928, %v1559, %v2184
  %v2441 = vsel %vm1929, %v1561, %v2185
  %v2442 = vsel %vm1930, %v1564, %v2186
  %v2443 = vsel %vm1931, %v1566, %v2187
  %v2444 = vsel %vm1932, %v1569, %v2188
  %v2445 = vsel %vm1933, %v1571, %v2189
  %v2446 = vsel %vm1934, %v1574, %v2190
  %v2447 = vsel %vm1935, %v1576, %v2191
  %v2448 = vsel %vm1936, %v1579, %v2192
  %v2449 = vsel %vm1937, %v1581, %v2193
  %v2450 = vsel %vm1938, %v1584, %v2194
  %v2451 = vsel %vm1939, %v1586, %v2195
  %v2452 = vsel %vm1940, %v1589, %v2196
  %v2453 = vsel %vm1941, %v1591, %v2197
  %v2454 = vsel %vm1942, %v1594, %v2198
  %v2455 = vsel %vm1943, %v1596, %v2199
  %v2456 = vsel %vm1944, %v1599, %v2200
  %v2457 = vsel %vm1945, %v1601, %v2201
  %v2458 = vsel %vm1946, %v1604, %v2202
  %v2459 = vsel %vm1947, %v1606, %v2203
  %v2460 = vsel %vm1948, %v1609, %v2204
  %v2461 = vsel %vm1949, %v1611, %v2205
  %v2462 = vsel %vm1950, %v1614, %v2206
  %v2463 = vsel %vm1951, %v1616, %v2207
  %v2464 = vsel %vm1952, %v1619, %v2208
  %v2465 = vsel %vm1953, %v1621, %v2209
  %v2466 = vsel %vm1954, %v1624, %v2210
  %v2467 = vsel %vm1955, %v1626, %v2211
  %v2468 = vsel %vm1956, %v1629, %v2212
  %v2469 = vsel %vm1957, %v1631, %v2213
  %v2470 = vsel %vm1958, %v1634, %v2214
  %v2471 = vsel %vm1959, %v1636, %v2215
  %v2472 = vsel %vm1960, %v1639, %v2216
  %v2473 = vsel %vm1961, %v1641, %v2217
  %v2474 = vsel %vm1962, %v1644, %v2218
  %v2475 = vsel %vm1963, %v1646, %v2219
  %v2476 = vsel %vm1964, %v1649, %v2220
  %v2477 = vsel %vm1965, %v1651, %v2221
  %v2478 = vsel %vm1966, %v1654, %v2222
  %v2479 = vsel %vm1967, %v1656, %v2223
  %v2480 = vsel %vm1968, %v1659, %v2224
  %v2481 = vsel %vm1969, %v1661, %v2225
  %v2482 = vsel %vm1970, %v1664, %v2226
  %v2483 = vsel %vm1971, %v1666, %v2227
  %v2484 = vsel %vm1972, %v1669, %v2228
  %v2485 = vsel %vm1973, %v1671, %v2229
  %v2486 = vsel %vm1974, %v1674, %v2230
  %v2487 = vsel %vm1975, %v1676, %v2231
  %v2488 = vsel %vm1976, %v1679, %v2232
  %v2489 = vsel %vm1977, %v1681, %v2233
  %v2490 = vsel %vm1978, %v1684, %v2234
  %v2491 = vsel %vm1979, %v1686, %v2235
  %v2492 = vsel %vm1980, %v1689, %v2236
  %v2493 = vsel %vm1981, %v1691, %v2237
  %v2494 = vsel %vm1982, %v1694, %v2238
  %v2495 = vsel %vm1983, %v1696, %v2239
  %v2496 = vsel %vm1984, %v1699, %v2240
  %v2497 = vsel %vm1985, %v1701, %v2241
  %v2498 = vsel %vm1986, %v1704, %v2242
  %v2499 = vsel %vm1987, %v1706, %v2243
  %v2500 = vsel %vm1988, %v1709, %v2244
  %v2501 = vsel %vm1989, %v1711, %v2245
  %v2502 = vsel %vm1990, %v1714, %v2246
  %v2503 = vsel %vm1991, %v1716, %v2247
  %v2504 = vsel %vm1992, %v1719, %v2248
  %v2505 = vsel %vm1993, %v1721, %v2249
  %v2506 = vsel %vm1994, %v1724, %v2250
  %v2507 = vsel %vm1995, %v1726, %v2251
  %v2508 = vsel %vm1996, %v1729, %v2252
  %v2509 = vsel %vm1997, %v1731, %v2253
  %v2510 = vsel %vm1998, %v1734, %v2254
  %v2511 = vsel %vm1999, %v1736, %v2255
  %v2512 = vsel %vm2000, %v1739, %v2256
  %v2513 = vsel %vm2001, %v1741, %v2257
  %v2514 = vsel %vm2002, %v1744, %v2258
  %v2515 = vsel %vm2003, %v1746, %v2259
  %v2516 = vpack.c.bf16 %v2260, %v2260
  %v2517 = vpack.c.bf16 %v2261, %v2261
  %v2518 = vpack.c.bf16 %v2262, %v2262
  %v2519 = vpack.c.bf16 %v2263, %v2263
  %v2520 = vpack.c.bf16 %v2264, %v2264
  %v2521 = vpack.c.bf16 %v2265, %v2265
  %v2522 = vpack.c.bf16 %v2266, %v2266
  %v2523 = vpack.c.bf16 %v2267, %v2267
  %v2524 = vpack.c.bf16 %v2268, %v2268
  %v2525 = vpack.c.bf16 %v2269, %v2269
  %v2526 = vpack.c.bf16 %v2270, %v2270
  %v2527 = vpack.c.bf16 %v2271, %v2271
  %v2528 = vpack.c.bf16 %v2272, %v2272
  %v2529 = vpack.c.bf16 %v2273, %v2273
  %v2530 = vpack.c.bf16 %v2274, %v2274
  %v2531 = vpack.c.bf16 %v2275, %v2275
  %v2532 = vpack.c.bf16 %v2276, %v2276
  %v2533 = vpack.c.bf16 %v2277, %v2277
  %v2534 = vpack.c.bf16 %v2278, %v2278
  %v2535 = vpack.c.bf16 %v2279, %v2279
  %v2536 = vpack.c.bf16 %v2280, %v2280
  %v2537 = vpack.c.bf16 %v2281, %v2281
  %v2538 = vpack.c.bf16 %v2282, %v2282
  %v2539 = vpack.c.bf16 %v2283, %v2283
  %v2540 = vpack.c.bf16 %v2284, %v2284
  %v2541 = vpack.c.bf16 %v2285, %v2285
  %v2542 = vpack.c.bf16 %v2286, %v2286
  %v2543 = vpack.c.bf16 %v2287, %v2287
  %v2544 = vpack.c.bf16 %v2288, %v2288
  %v2545 = vpack.c.bf16 %v2289, %v2289
  %v2546 = vpack.c.bf16 %v2290, %v2290
  %v2547 = vpack.c.bf16 %v2291, %v2291
  %v2548 = vpack.c.bf16 %v2292, %v2292
  %v2549 = vpack.c.bf16 %v2293, %v2293
  %v2550 = vpack.c.bf16 %v2294, %v2294
  %v2551 = vpack.c.bf16 %v2295, %v2295
  %v2552 = vpack.c.bf16 %v2296, %v2296
  %v2553 = vpack.c.bf16 %v2297, %v2297
  %v2554 = vpack.c.bf16 %v2298, %v2298
  %v2555 = vpack.c.bf16 %v2299, %v2299
  %v2556 = vpack.c.bf16 %v2300, %v2300
  %v2557 = vpack.c.bf16 %v2301, %v2301
  %v2558 = vpack.c.bf16 %v2302, %v2302
  %v2559 = vpack.c.bf16 %v2303, %v2303
  %v2560 = vpack.c.bf16 %v2304, %v2304
  %v2561 = vpack.c.bf16 %v2305, %v2305
  %v2562 = vpack.c.bf16 %v2306, %v2306
  %v2563 = vpack.c.bf16 %v2307, %v2307
  %v2564 = vpack.c.bf16 %v2308, %v2308
  %v2565 = vpack.c.bf16 %v2309, %v2309
  %v2566 = vpack.c.bf16 %v2310, %v2310
  %v2567 = vpack.c.bf16 %v2311, %v2311
  %v2568 = vpack.c.bf16 %v2312, %v2312
  %v2569 = vpack.c.bf16 %v2313, %v2313
  %v2570 = vpack.c.bf16 %v2314, %v2314
  %v2571 = vpack.c.bf16 %v2315, %v2315
  %v2572 = vpack.c.bf16 %v2316, %v2316
  %v2573 = vpack.c.bf16 %v2317, %v2317
  %v2574 = vpack.c.bf16 %v2318, %v2318
  %v2575 = vpack.c.bf16 %v2319, %v2319
  %v2576 = vpack.c.bf16 %v2320, %v2320
  %v2577 = vpack.c.bf16 %v2321, %v2321
  %v2578 = vpack.c.bf16 %v2322, %v2322
  %v2579 = vpack.c.bf16 %v2323, %v2323
  %v2580 = vpack.c.bf16 %v2324, %v2324
  %v2581 = vpack.c.bf16 %v2325, %v2325
  %v2582 = vpack.c.bf16 %v2326, %v2326
  %v2583 = vpack.c.bf16 %v2327, %v2327
  %v2584 = vpack.c.bf16 %v2328, %v2328
  %v2585 = vpack.c.bf16 %v2329, %v2329
  %v2586 = vpack.c.bf16 %v2330, %v2330
  %v2587 = vpack.c.bf16 %v2331, %v2331
  %v2588 = vpack.c.bf16 %v2332, %v2332
  %v2589 = vpack.c.bf16 %v2333, %v2333
  %v2590 = vpack.c.bf16 %v2334, %v2334
  %v2591 = vpack.c.bf16 %v2335, %v2335
  %v2592 = vpack.c.bf16 %v2336, %v2336
  %v2593 = vpack.c.bf16 %v2337, %v2337
  %v2594 = vpack.c.bf16 %v2338, %v2338
  %v2595 = vpack.c.bf16 %v2339, %v2339
  %v2596 = vpack.c.bf16 %v2340, %v2340
  %v2597 = vpack.c.bf16 %v2341, %v2341
  %v2598 = vpack.c.bf16 %v2342, %v2342
  %v2599 = vpack.c.bf16 %v2343, %v2343
  %v2600 = vpack.c.bf16 %v2344, %v2344
  %v2601 = vpack.c.bf16 %v2345, %v2345
  %v2602 = vpack.c.bf16 %v2346, %v2346
  %v2603 = vpack.c.bf16 %v2347, %v2347
  %v2604 = vpack.c.bf16 %v2348, %v2348
  %v2605 = vpack.c.bf16 %v2349, %v2349
  %v2606 = vpack.c.bf16 %v2350, %v2350
  %v2607 = vpack.c.bf16 %v2351, %v2351
  %v2608 = vpack.c.bf16 %v2352, %v2352
  %v2609 = vpack.c.bf16 %v2353, %v2353
  %v2610 = vpack.c.bf16 %v2354, %v2354
  %v2611 = vpack.c.bf16 %v2355, %v2355
  %v2612 = vpack.c.bf16 %v2356, %v2356
  %v2613 = vpack.c.bf16 %v2357, %v2357
  %v2614 = vpack.c.bf16 %v2358, %v2358
  %v2615 = vpack.c.bf16 %v2359, %v2359
  %v2616 = vpack.c.bf16 %v2360, %v2360
  %v2617 = vpack.c.bf16 %v2361, %v2361
  %v2618 = vpack.c.bf16 %v2362, %v2362
  %v2619 = vpack.c.bf16 %v2363, %v2363
  %v2620 = vpack.c.bf16 %v2364, %v2364
  %v2621 = vpack.c.bf16 %v2365, %v2365
  %v2622 = vpack.c.bf16 %v2366, %v2366
  %v2623 = vpack.c.bf16 %v2367, %v2367
  %v2624 = vpack.c.bf16 %v2368, %v2368
  %v2625 = vpack.c.bf16 %v2369, %v2369
  %v2626 = vpack.c.bf16 %v2370, %v2370
  %v2627 = vpack.c.bf16 %v2371, %v2371
  %v2628 = vpack.c.bf16 %v2372, %v2372
  %v2629 = vpack.c.bf16 %v2373, %v2373
  %v2630 = vpack.c.bf16 %v2374, %v2374
  %v2631 = vpack.c.bf16 %v2375, %v2375
  %v2632 = vpack.c.bf16 %v2376, %v2376
  %v2633 = vpack.c.bf16 %v2377, %v2377
  %v2634 = vpack.c.bf16 %v2378, %v2378
  %v2635 = vpack.c.bf16 %v2379, %v2379
  %v2636 = vpack.c.bf16 %v2380, %v2380
  %v2637 = vpack.c.bf16 %v2381, %v2381
  %v2638 = vpack.c.bf16 %v2382, %v2382
  %v2639 = vpack.c.bf16 %v2383, %v2383
  %v2640 = vpack.c.bf16 %v2384, %v2384
  %v2641 = vpack.c.bf16 %v2385, %v2385
  %v2642 = vpack.c.bf16 %v2386, %v2386
  %v2643 = vpack.c.bf16 %v2387, %v2387
  %v2644 = vpack.c.bf16 %v2388, %v2388
  %v2645 = vpack.c.bf16 %v2389, %v2389
  %v2646 = vpack.c.bf16 %v2390, %v2390
  %v2647 = vpack.c.bf16 %v2391, %v2391
  %v2648 = vpack.c.bf16 %v2392, %v2392
  %v2649 = vpack.c.bf16 %v2393, %v2393
  %v2650 = vpack.c.bf16 %v2394, %v2394
  %v2651 = vpack.c.bf16 %v2395, %v2395
  %v2652 = vpack.c.bf16 %v2396, %v2396
  %v2653 = vpack.c.bf16 %v2397, %v2397
  %v2654 = vpack.c.bf16 %v2398, %v2398
  %v2655 = vpack.c.bf16 %v2399, %v2399
  %v2656 = vpack.c.bf16 %v2400, %v2400
  %v2657 = vpack.c.bf16 %v2401, %v2401
  %v2658 = vpack.c.bf16 %v2402, %v2402
  %v2659 = vpack.c.bf16 %v2403, %v2403
  %v2660 = vpack.c.bf16 %v2404, %v2404
  %v2661 = vpack.c.bf16 %v2405, %v2405
  %v2662 = vpack.c.bf16 %v2406, %v2406
  %v2663 = vpack.c.bf16 %v2407, %v2407
  %v2664 = vpack.c.bf16 %v2408, %v2408
  %v2665 = vpack.c.bf16 %v2409, %v2409
  %v2666 = vpack.c.bf16 %v2410, %v2410
  %v2667 = vpack.c.bf16 %v2411, %v2411
  %v2668 = vpack.c.bf16 %v2412, %v2412
  %v2669 = vpack.c.bf16 %v2413, %v2413
  %v2670 = vpack.c.bf16 %v2414, %v2414
  %v2671 = vpack.c.bf16 %v2415, %v2415
  %v2672 = vpack.c.bf16 %v2416, %v2416
  %v2673 = vpack.c.bf16 %v2417, %v2417
  %v2674 = vpack.c.bf16 %v2418, %v2418
  %v2675 = vpack.c.bf16 %v2419, %v2419
  %v2676 = vpack.c.bf16 %v2420, %v2420
  %v2677 = vpack.c.bf16 %v2421, %v2421
  %v2678 = vpack.c.bf16 %v2422, %v2422
  %v2679 = vpack.c.bf16 %v2423, %v2423
  %v2680 = vpack.c.bf16 %v2424, %v2424
  %v2681 = vpack.c.bf16 %v2425, %v2425
  %v2682 = vpack.c.bf16 %v2426, %v2426
  %v2683 = vpack.c.bf16 %v2427, %v2427
  %v2684 = vpack.c.bf16 %v2428, %v2428
  %v2685 = vpack.c.bf16 %v2429, %v2429
  %v2686 = vpack.c.bf16 %v2430, %v2430
  %v2687 = vpack.c.bf16 %v2431, %v2431
  %v2688 = vpack.c.bf16 %v2432, %v2432
  %v2689 = vpack.c.bf16 %v2433, %v2433
  %v2690 = vpack.c.bf16 %v2434, %v2434
  %v2691 = vpack.c.bf16 %v2435, %v2435
  %v2692 = vpack.c.bf16 %v2436, %v2436
  %v2693 = vpack.c.bf16 %v2437, %v2437
  %v2694 = vpack.c.bf16 %v2438, %v2438
  %v2695 = vpack.c.bf16 %v2439, %v2439
  %v2696 = vpack.c.bf16 %v2440, %v2440
  %v2697 = vpack.c.bf16 %v2441, %v2441
  %v2698 = vpack.c.bf16 %v2442, %v2442
  %v2699 = vpack.c.bf16 %v2443, %v2443
  %v2700 = vpack.c.bf16 %v2444, %v2444
  %v2701 = vpack.c.bf16 %v2445, %v2445
  %v2702 = vpack.c.bf16 %v2446, %v2446
  %v2703 = vpack.c.bf16 %v2447, %v2447
  %v2704 = vpack.c.bf16 %v2448, %v2448
  %v2705 = vpack.c.bf16 %v2449, %v2449
  %v2706 = vpack.c.bf16 %v2450, %v2450
  %v2707 = vpack.c.bf16 %v2451, %v2451
  %v2708 = vpack.c.bf16 %v2452, %v2452
  %v2709 = vpack.c.bf16 %v2453, %v2453
  %v2710 = vpack.c.bf16 %v2454, %v2454
  %v2711 = vpack.c.bf16 %v2455, %v2455
  %v2712 = vpack.c.bf16 %v2456, %v2456
  %v2713 = vpack.c.bf16 %v2457, %v2457
  %v2714 = vpack.c.bf16 %v2458, %v2458
  %v2715 = vpack.c.bf16 %v2459, %v2459
  %v2716 = vpack.c.bf16 %v2460, %v2460
  %v2717 = vpack.c.bf16 %v2461, %v2461
  %v2718 = vpack.c.bf16 %v2462, %v2462
  %v2719 = vpack.c.bf16 %v2463, %v2463
  %v2720 = vpack.c.bf16 %v2464, %v2464
  %v2721 = vpack.c.bf16 %v2465, %v2465
  %v2722 = vpack.c.bf16 %v2466, %v2466
  %v2723 = vpack.c.bf16 %v2467, %v2467
  %v2724 = vpack.c.bf16 %v2468, %v2468
  %v2725 = vpack.c.bf16 %v2469, %v2469
  %v2726 = vpack.c.bf16 %v2470, %v2470
  %v2727 = vpack.c.bf16 %v2471, %v2471
  %v2728 = vpack.c.bf16 %v2472, %v2472
  %v2729 = vpack.c.bf16 %v2473, %v2473
  %v2730 = vpack.c.bf16 %v2474, %v2474
  %v2731 = vpack.c.bf16 %v2475, %v2475
  %v2732 = vpack.c.bf16 %v2476, %v2476
  %v2733 = vpack.c.bf16 %v2477, %v2477
  %v2734 = vpack.c.bf16 %v2478, %v2478
  %v2735 = vpack.c.bf16 %v2479, %v2479
  %v2736 = vpack.c.bf16 %v2480, %v2480
  %v2737 = vpack.c.bf16 %v2481, %v2481
  %v2738 = vpack.c.bf16 %v2482, %v2482
  %v2739 = vpack.c.bf16 %v2483, %v2483
  %v2740 = vpack.c.bf16 %v2484, %v2484
  %v2741 = vpack.c.bf16 %v2485, %v2485
  %v2742 = vpack.c.bf16 %v2486, %v2486
  %v2743 = vpack.c.bf16 %v2487, %v2487
  %v2744 = vpack.c.bf16 %v2488, %v2488
  %v2745 = vpack.c.bf16 %v2489, %v2489
  %v2746 = vpack.c.bf16 %v2490, %v2490
  %v2747 = vpack.c.bf16 %v2491, %v2491
  %v2748 = vpack.c.bf16 %v2492, %v2492
  %v2749 = vpack.c.bf16 %v2493, %v2493
  %v2750 = vpack.c.bf16 %v2494, %v2494
  %v2751 = vpack.c.bf16 %v2495, %v2495
  %v2752 = vpack.c.bf16 %v2496, %v2496
  %v2753 = vpack.c.bf16 %v2497, %v2497
  %v2754 = vpack.c.bf16 %v2498, %v2498
  %v2755 = vpack.c.bf16 %v2499, %v2499
  %v2756 = vpack.c.bf16 %v2500, %v2500
  %v2757 = vpack.c.bf16 %v2501, %v2501
  %v2758 = vpack.c.bf16 %v2502, %v2502
  %v2759 = vpack.c.bf16 %v2503, %v2503
  %v2760 = vpack.c.bf16 %v2504, %v2504
  %v2761 = vpack.c.bf16 %v2505, %v2505
  %v2762 = vpack.c.bf16 %v2506, %v2506
  %v2763 = vpack.c.bf16 %v2507, %v2507
  %v2764 = vpack.c.bf16 %v2508, %v2508
  %v2765 = vpack.c.bf16 %v2509, %v2509
  %v2766 = vpack.c.bf16 %v2510, %v2510
  %v2767 = vpack.c.bf16 %v2511, %v2511
  %v2768 = vpack.c.bf16 %v2512, %v2512
  %v2769 = vpack.c.bf16 %v2513, %v2513
  %v2770 = vpack.c.bf16 %v2514, %v2514
  %v2771 = vpack.c.bf16 %v2515, %v2515
  %2772 = vst [vmem:[%s2] sm:$0xf] %v2516
  %2773 = vst [vmem:[%s2 + $0x4] sm:$0xf] %v2517
  %2774 = vst [vmem:[%s2 + $0x8] sm:$0xf] %v2518
  %2775 = vst [vmem:[%s2 + $0xc] sm:$0xf] %v2519
  %2776 = vst [vmem:[%s2 + $0x10] sm:$0xf] %v2520
  %2777 = vst [vmem:[%s2 + $0x14] sm:$0xf] %v2521
  %2778 = vst [vmem:[%s2 + $0x18] sm:$0xf] %v2522
  %2779 = vst [vmem:[%s2 + $0x1c] sm:$0xf] %v2523
  %2780 = vst [vmem:[%s2 + $0x20] sm:$0xf] %v2524
  %2781 = vst [vmem:[%s2 + $0x24] sm:$0xf] %v2525
  %2782 = vst [vmem:[%s2 + $0x28] sm:$0xf] %v2526
  %2783 = vst [vmem:[%s2 + $0x2c] sm:$0xf] %v2527
  %2784 = vst [vmem:[%s2 + $0x30] sm:$0xf] %v2528
  %2785 = vst [vmem:[%s2 + $0x34] sm:$0xf] %v2529
  %2786 = vst [vmem:[%s2 + $0x38] sm:$0xf] %v2530
  %2787 = vst [vmem:[%s2 + $0x3c] sm:$0xf] %v2531
  %2788 = vst [vmem:[%s2 + $0x40] sm:$0xf] %v2532
  %2789 = vst [vmem:[%s2 + $0x44] sm:$0xf] %v2533
  %2790 = vst [vmem:[%s2 + $0x48] sm:$0xf] %v2534
  %2791 = vst [vmem:[%s2 + $0x4c] sm:$0xf] %v2535
  %2792 = vst [vmem:[%s2 + $0x50] sm:$0xf] %v2536
  %2793 = vst [vmem:[%s2 + $0x54] sm:$0xf] %v2537
  %2794 = vst [vmem:[%s2 + $0x58] sm:$0xf] %v2538
  %2795 = vst [vmem:[%s2 + $0x5c] sm:$0xf] %v2539
  %2796 = vst [vmem:[%s2 + $0x60] sm:$0xf] %v2540
  %2797 = vst [vmem:[%s2 + $0x64] sm:$0xf] %v2541
  %2798 = vst [vmem:[%s2 + $0x68] sm:$0xf] %v2542
  %2799 = vst [vmem:[%s2 + $0x6c] sm:$0xf] %v2543
  %2800 = vst [vmem:[%s2 + $0x70] sm:$0xf] %v2544
  %2801 = vst [vmem:[%s2 + $0x74] sm:$0xf] %v2545
  %2802 = vst [vmem:[%s2 + $0x78] sm:$0xf] %v2546
  %2803 = vst [vmem:[%s2 + $0x7c] sm:$0xf] %v2547
  %2804 = vst [vmem:[%s2 + $0x80] sm:$0xf] %v2548
  %2805 = vst [vmem:[%s2 + $0x84] sm:$0xf] %v2549
  %2806 = vst [vmem:[%s2 + $0x88] sm:$0xf] %v2550
  %2807 = vst [vmem:[%s2 + $0x8c] sm:$0xf] %v2551
  %2808 = vst [vmem:[%s2 + $0x90] sm:$0xf] %v2552
  %2809 = vst [vmem:[%s2 + $0x94] sm:$0xf] %v2553
  %2810 = vst [vmem:[%s2 + $0x98] sm:$0xf] %v2554
  %2811 = vst [vmem:[%s2 + $0x9c] sm:$0xf] %v2555
  %2812 = vst [vmem:[%s2 + $0xa0] sm:$0xf] %v2556
  %2813 = vst [vmem:[%s2 + $0xa4] sm:$0xf] %v2557
  %2814 = vst [vmem:[%s2 + $0xa8] sm:$0xf] %v2558
  %2815 = vst [vmem:[%s2 + $0xac] sm:$0xf] %v2559
  %2816 = vst [vmem:[%s2 + $0xb0] sm:$0xf] %v2560
  %2817 = vst [vmem:[%s2 + $0xb4] sm:$0xf] %v2561
  %2818 = vst [vmem:[%s2 + $0xb8] sm:$0xf] %v2562
  %2819 = vst [vmem:[%s2 + $0xbc] sm:$0xf] %v2563
  %2820 = vst [vmem:[%s2 + $0xc0] sm:$0xf] %v2564
  %2821 = vst [vmem:[%s2 + $0xc4] sm:$0xf] %v2565
  %2822 = vst [vmem:[%s2 + $0xc8] sm:$0xf] %v2566
  %2823 = vst [vmem:[%s2 + $0xcc] sm:$0xf] %v2567
  %2824 = vst [vmem:[%s2 + $0xd0] sm:$0xf] %v2568
  %2825 = vst [vmem:[%s2 + $0xd4] sm:$0xf] %v2569
  %2826 = vst [vmem:[%s2 + $0xd8] sm:$0xf] %v2570
  %2827 = vst [vmem:[%s2 + $0xdc] sm:$0xf] %v2571
  %2828 = vst [vmem:[%s2 + $0xe0] sm:$0xf] %v2572
  %2829 = vst [vmem:[%s2 + $0xe4] sm:$0xf] %v2573
  %2830 = vst [vmem:[%s2 + $0xe8] sm:$0xf] %v2574
  %2831 = vst [vmem:[%s2 + $0xec] sm:$0xf] %v2575
  %2832 = vst [vmem:[%s2 + $0xf0] sm:$0xf] %v2576
  %2833 = vst [vmem:[%s2 + $0xf4] sm:$0xf] %v2577
  %2834 = vst [vmem:[%s2 + $0xf8] sm:$0xf] %v2578
  %2835 = vst [vmem:[%s2 + $0xfc] sm:$0xf] %v2579
  %2836 = vst [vmem:[%s2 + $0x100] sm:$0xf] %v2580
  %2837 = vst [vmem:[%s2 + $0x104] sm:$0xf] %v2581
  %2838 = vst [vmem:[%s2 + $0x108] sm:$0xf] %v2582
  %2839 = vst [vmem:[%s2 + $0x10c] sm:$0xf] %v2583
  %2840 = vst [vmem:[%s2 + $0x110] sm:$0xf] %v2584
  %2841 = vst [vmem:[%s2 + $0x114] sm:$0xf] %v2585
  %2842 = vst [vmem:[%s2 + $0x118] sm:$0xf] %v2586
  %2843 = vst [vmem:[%s2 + $0x11c] sm:$0xf] %v2587
  %2844 = vst [vmem:[%s2 + $0x120] sm:$0xf] %v2588
  %2845 = vst [vmem:[%s2 + $0x124] sm:$0xf] %v2589
  %2846 = vst [vmem:[%s2 + $0x128] sm:$0xf] %v2590
  %2847 = vst [vmem:[%s2 + $0x12c] sm:$0xf] %v2591
  %2848 = vst [vmem:[%s2 + $0x130] sm:$0xf] %v2592
  %2849 = vst [vmem:[%s2 + $0x134] sm:$0xf] %v2593
  %2850 = vst [vmem:[%s2 + $0x138] sm:$0xf] %v2594
  %2851 = vst [vmem:[%s2 + $0x13c] sm:$0xf] %v2595
  %2852 = vst [vmem:[%s2 + $0x140] sm:$0xf] %v2596
  %2853 = vst [vmem:[%s2 + $0x144] sm:$0xf] %v2597
  %2854 = vst [vmem:[%s2 + $0x148] sm:$0xf] %v2598
  %2855 = vst [vmem:[%s2 + $0x14c] sm:$0xf] %v2599
  %2856 = vst [vmem:[%s2 + $0x150] sm:$0xf] %v2600
  %2857 = vst [vmem:[%s2 + $0x154] sm:$0xf] %v2601
  %2858 = vst [vmem:[%s2 + $0x158] sm:$0xf] %v2602
  %2859 = vst [vmem:[%s2 + $0x15c] sm:$0xf] %v2603
  %2860 = vst [vmem:[%s2 + $0x160] sm:$0xf] %v2604
  %2861 = vst [vmem:[%s2 + $0x164] sm:$0xf] %v2605
  %2862 = vst [vmem:[%s2 + $0x168] sm:$0xf] %v2606
  %2863 = vst [vmem:[%s2 + $0x16c] sm:$0xf] %v2607
  %2864 = vst [vmem:[%s2 + $0x170] sm:$0xf] %v2608
  %2865 = vst [vmem:[%s2 + $0x174] sm:$0xf] %v2609
  %2866 = vst [vmem:[%s2 + $0x178] sm:$0xf] %v2610
  %2867 = vst [vmem:[%s2 + $0x17c] sm:$0xf] %v2611
  %2868 = vst [vmem:[%s2 + $0x180] sm:$0xf] %v2612
  %2869 = vst [vmem:[%s2 + $0x184] sm:$0xf] %v2613
  %2870 = vst [vmem:[%s2 + $0x188] sm:$0xf] %v2614
  %2871 = vst [vmem:[%s2 + $0x18c] sm:$0xf] %v2615
  %2872 = vst [vmem:[%s2 + $0x190] sm:$0xf] %v2616
  %2873 = vst [vmem:[%s2 + $0x194] sm:$0xf] %v2617
  %2874 = vst [vmem:[%s2 + $0x198] sm:$0xf] %v2618
  %2875 = vst [vmem:[%s2 + $0x19c] sm:$0xf] %v2619
  %2876 = vst [vmem:[%s2 + $0x1a0] sm:$0xf] %v2620
  %2877 = vst [vmem:[%s2 + $0x1a4] sm:$0xf] %v2621
  %2878 = vst [vmem:[%s2 + $0x1a8] sm:$0xf] %v2622
  %2879 = vst [vmem:[%s2 + $0x1ac] sm:$0xf] %v2623
  %2880 = vst [vmem:[%s2 + $0x1b0] sm:$0xf] %v2624
  %2881 = vst [vmem:[%s2 + $0x1b4] sm:$0xf] %v2625
  %2882 = vst [vmem:[%s2 + $0x1b8] sm:$0xf] %v2626
  %2883 = vst [vmem:[%s2 + $0x1bc] sm:$0xf] %v2627
  %2884 = vst [vmem:[%s2 + $0x1c0] sm:$0xf] %v2628
  %2885 = vst [vmem:[%s2 + $0x1c4] sm:$0xf] %v2629
  %2886 = vst [vmem:[%s2 + $0x1c8] sm:$0xf] %v2630
  %2887 = vst [vmem:[%s2 + $0x1cc] sm:$0xf] %v2631
  %2888 = vst [vmem:[%s2 + $0x1d0] sm:$0xf] %v2632
  %2889 = vst [vmem:[%s2 + $0x1d4] sm:$0xf] %v2633
  %2890 = vst [vmem:[%s2 + $0x1d8] sm:$0xf] %v2634
  %2891 = vst [vmem:[%s2 + $0x1dc] sm:$0xf] %v2635
  %2892 = vst [vmem:[%s2 + $0x1e0] sm:$0xf] %v2636
  %2893 = vst [vmem:[%s2 + $0x1e4] sm:$0xf] %v2637
  %2894 = vst [vmem:[%s2 + $0x1e8] sm:$0xf] %v2638
  %2895 = vst [vmem:[%s2 + $0x1ec] sm:$0xf] %v2639
  %2896 = vst [vmem:[%s2 + $0x1f0] sm:$0xf] %v2640
  %2897 = vst [vmem:[%s2 + $0x1f4] sm:$0xf] %v2641
  %2898 = vst [vmem:[%s2 + $0x1f8] sm:$0xf] %v2642
  %2899 = vst [vmem:[%s2 + $0x1fc] sm:$0xf] %v2643
  %2900 = vst [vmem:[%s2 + $0x200] sm:$0xf] %v2644
  %2901 = vst [vmem:[%s2 + $0x204] sm:$0xf] %v2645
  %2902 = vst [vmem:[%s2 + $0x208] sm:$0xf] %v2646
  %2903 = vst [vmem:[%s2 + $0x20c] sm:$0xf] %v2647
  %2904 = vst [vmem:[%s2 + $0x210] sm:$0xf] %v2648
  %2905 = vst [vmem:[%s2 + $0x214] sm:$0xf] %v2649
  %2906 = vst [vmem:[%s2 + $0x218] sm:$0xf] %v2650
  %2907 = vst [vmem:[%s2 + $0x21c] sm:$0xf] %v2651
  %2908 = vst [vmem:[%s2 + $0x220] sm:$0xf] %v2652
  %2909 = vst [vmem:[%s2 + $0x224] sm:$0xf] %v2653
  %2910 = vst [vmem:[%s2 + $0x228] sm:$0xf] %v2654
  %2911 = vst [vmem:[%s2 + $0x22c] sm:$0xf] %v2655
  %2912 = vst [vmem:[%s2 + $0x230] sm:$0xf] %v2656
  %2913 = vst [vmem:[%s2 + $0x234] sm:$0xf] %v2657
  %2914 = vst [vmem:[%s2 + $0x238] sm:$0xf] %v2658
  %2915 = vst [vmem:[%s2 + $0x23c] sm:$0xf] %v2659
  %2916 = vst [vmem:[%s2 + $0x240] sm:$0xf] %v2660
  %2917 = vst [vmem:[%s2 + $0x244] sm:$0xf] %v2661
  %2918 = vst [vmem:[%s2 + $0x248] sm:$0xf] %v2662
  %2919 = vst [vmem:[%s2 + $0x24c] sm:$0xf] %v2663
  %2920 = vst [vmem:[%s2 + $0x250] sm:$0xf] %v2664
  %2921 = vst [vmem:[%s2 + $0x254] sm:$0xf] %v2665
  %2922 = vst [vmem:[%s2 + $0x258] sm:$0xf] %v2666
  %2923 = vst [vmem:[%s2 + $0x25c] sm:$0xf] %v2667
  %2924 = vst [vmem:[%s2 + $0x260] sm:$0xf] %v2668
  %2925 = vst [vmem:[%s2 + $0x264] sm:$0xf] %v2669
  %2926 = vst [vmem:[%s2 + $0x268] sm:$0xf] %v2670
  %2927 = vst [vmem:[%s2 + $0x26c] sm:$0xf] %v2671
  %2928 = vst [vmem:[%s2 + $0x270] sm:$0xf] %v2672
  %2929 = vst [vmem:[%s2 + $0x274] sm:$0xf] %v2673
  %2930 = vst [vmem:[%s2 + $0x278] sm:$0xf] %v2674
  %2931 = vst [vmem:[%s2 + $0x27c] sm:$0xf] %v2675
  %2932 = vst [vmem:[%s2 + $0x280] sm:$0xf] %v2676
  %2933 = vst [vmem:[%s2 + $0x284] sm:$0xf] %v2677
  %2934 = vst [vmem:[%s2 + $0x288] sm:$0xf] %v2678
  %2935 = vst [vmem:[%s2 + $0x28c] sm:$0xf] %v2679
  %2936 = vst [vmem:[%s2 + $0x290] sm:$0xf] %v2680
  %2937 = vst [vmem:[%s2 + $0x294] sm:$0xf] %v2681
  %2938 = vst [vmem:[%s2 + $0x298] sm:$0xf] %v2682
  %2939 = vst [vmem:[%s2 + $0x29c] sm:$0xf] %v2683
  %2940 = vst [vmem:[%s2 + $0x2a0] sm:$0xf] %v2684
  %2941 = vst [vmem:[%s2 + $0x2a4] sm:$0xf] %v2685
  %2942 = vst [vmem:[%s2 + $0x2a8] sm:$0xf] %v2686
  %2943 = vst [vmem:[%s2 + $0x2ac] sm:$0xf] %v2687
  %2944 = vst [vmem:[%s2 + $0x2b0] sm:$0xf] %v2688
  %2945 = vst [vmem:[%s2 + $0x2b4] sm:$0xf] %v2689
  %2946 = vst [vmem:[%s2 + $0x2b8] sm:$0xf] %v2690
  %2947 = vst [vmem:[%s2 + $0x2bc] sm:$0xf] %v2691
  %2948 = vst [vmem:[%s2 + $0x2c0] sm:$0xf] %v2692
  %2949 = vst [vmem:[%s2 + $0x2c4] sm:$0xf] %v2693
  %2950 = vst [vmem:[%s2 + $0x2c8] sm:$0xf] %v2694
  %2951 = vst [vmem:[%s2 + $0x2cc] sm:$0xf] %v2695
  %2952 = vst [vmem:[%s2 + $0x2d0] sm:$0xf] %v2696
  %2953 = vst [vmem:[%s2 + $0x2d4] sm:$0xf] %v2697
  %2954 = vst [vmem:[%s2 + $0x2d8] sm:$0xf] %v2698
  %2955 = vst [vmem:[%s2 + $0x2dc] sm:$0xf] %v2699
  %2956 = vst [vmem:[%s2 + $0x2e0] sm:$0xf] %v2700
  %2957 = vst [vmem:[%s2 + $0x2e4] sm:$0xf] %v2701
  %2958 = vst [vmem:[%s2 + $0x2e8] sm:$0xf] %v2702
  %2959 = vst [vmem:[%s2 + $0x2ec] sm:$0xf] %v2703
  %2960 = vst [vmem:[%s2 + $0x2f0] sm:$0xf] %v2704
  %2961 = vst [vmem:[%s2 + $0x2f4] sm:$0xf] %v2705
  %2962 = vst [vmem:[%s2 + $0x2f8] sm:$0xf] %v2706
  %2963 = vst [vmem:[%s2 + $0x2fc] sm:$0xf] %v2707
  %2964 = vst [vmem:[%s2 + $0x300] sm:$0xf] %v2708
  %2965 = vst [vmem:[%s2 + $0x304] sm:$0xf] %v2709
  %2966 = vst [vmem:[%s2 + $0x308] sm:$0xf] %v2710
  %2967 = vst [vmem:[%s2 + $0x30c] sm:$0xf] %v2711
  %2968 = vst [vmem:[%s2 + $0x310] sm:$0xf] %v2712
  %2969 = vst [vmem:[%s2 + $0x314] sm:$0xf] %v2713
  %2970 = vst [vmem:[%s2 + $0x318] sm:$0xf] %v2714
  %2971 = vst [vmem:[%s2 + $0x31c] sm:$0xf] %v2715
  %2972 = vst [vmem:[%s2 + $0x320] sm:$0xf] %v2716
  %2973 = vst [vmem:[%s2 + $0x324] sm:$0xf] %v2717
  %2974 = vst [vmem:[%s2 + $0x328] sm:$0xf] %v2718
  %2975 = vst [vmem:[%s2 + $0x32c] sm:$0xf] %v2719
  %2976 = vst [vmem:[%s2 + $0x330] sm:$0xf] %v2720
  %2977 = vst [vmem:[%s2 + $0x334] sm:$0xf] %v2721
  %2978 = vst [vmem:[%s2 + $0x338] sm:$0xf] %v2722
  %2979 = vst [vmem:[%s2 + $0x33c] sm:$0xf] %v2723
  %2980 = vst [vmem:[%s2 + $0x340] sm:$0xf] %v2724
  %2981 = vst [vmem:[%s2 + $0x344] sm:$0xf] %v2725
  %2982 = vst [vmem:[%s2 + $0x348] sm:$0xf] %v2726
  %2983 = vst [vmem:[%s2 + $0x34c] sm:$0xf] %v2727
  %2984 = vst [vmem:[%s2 + $0x350] sm:$0xf] %v2728
  %2985 = vst [vmem:[%s2 + $0x354] sm:$0xf] %v2729
  %2986 = vst [vmem:[%s2 + $0x358] sm:$0xf] %v2730
  %2987 = vst [vmem:[%s2 + $0x35c] sm:$0xf] %v2731
  %2988 = vst [vmem:[%s2 + $0x360] sm:$0xf] %v2732
  %2989 = vst [vmem:[%s2 + $0x364] sm:$0xf] %v2733
  %2990 = vst [vmem:[%s2 + $0x368] sm:$0xf] %v2734
  %2991 = vst [vmem:[%s2 + $0x36c] sm:$0xf] %v2735
  %2992 = vst [vmem:[%s2 + $0x370] sm:$0xf] %v2736
  %2993 = vst [vmem:[%s2 + $0x374] sm:$0xf] %v2737
  %2994 = vst [vmem:[%s2 + $0x378] sm:$0xf] %v2738
  %2995 = vst [vmem:[%s2 + $0x37c] sm:$0xf] %v2739
  %2996 = vst [vmem:[%s2 + $0x380] sm:$0xf] %v2740
  %2997 = vst [vmem:[%s2 + $0x384] sm:$0xf] %v2741
  %2998 = vst [vmem:[%s2 + $0x388] sm:$0xf] %v2742
  %2999 = vst [vmem:[%s2 + $0x38c] sm:$0xf] %v2743
  %3000 = vst [vmem:[%s2 + $0x390] sm:$0xf] %v2744
  %3001 = vst [vmem:[%s2 + $0x394] sm:$0xf] %v2745
  %3002 = vst [vmem:[%s2 + $0x398] sm:$0xf] %v2746
  %3003 = vst [vmem:[%s2 + $0x39c] sm:$0xf] %v2747
  %3004 = vst [vmem:[%s2 + $0x3a0] sm:$0xf] %v2748
  %3005 = vst [vmem:[%s2 + $0x3a4] sm:$0xf] %v2749
  %3006 = vst [vmem:[%s2 + $0x3a8] sm:$0xf] %v2750
  %3007 = vst [vmem:[%s2 + $0x3ac] sm:$0xf] %v2751
  %3008 = vst [vmem:[%s2 + $0x3b0] sm:$0xf] %v2752
  %3009 = vst [vmem:[%s2 + $0x3b4] sm:$0xf] %v2753
  %3010 = vst [vmem:[%s2 + $0x3b8] sm:$0xf] %v2754
  %3011 = vst [vmem:[%s2 + $0x3bc] sm:$0xf] %v2755
  %3012 = vst [vmem:[%s2 + $0x3c0] sm:$0xf] %v2756
  %3013 = vst [vmem:[%s2 + $0x3c4] sm:$0xf] %v2757
  %3014 = vst [vmem:[%s2 + $0x3c8] sm:$0xf] %v2758
  %3015 = vst [vmem:[%s2 + $0x3cc] sm:$0xf] %v2759
  %3016 = vst [vmem:[%s2 + $0x3d0] sm:$0xf] %v2760
  %3017 = vst [vmem:[%s2 + $0x3d4] sm:$0xf] %v2761
  %3018 = vst [vmem:[%s2 + $0x3d8] sm:$0xf] %v2762
  %3019 = vst [vmem:[%s2 + $0x3dc] sm:$0xf] %v2763
  %3020 = vst [vmem:[%s2 + $0x3e0] sm:$0xf] %v2764
  %3021 = vst [vmem:[%s2 + $0x3e4] sm:$0xf] %v2765
  %3022 = vst [vmem:[%s2 + $0x3e8] sm:$0xf] %v2766
  %3023 = vst [vmem:[%s2 + $0x3ec] sm:$0xf] %v2767
  %3024 = vst [vmem:[%s2 + $0x3f0] sm:$0xf] %v2768
  %3025 = vst [vmem:[%s2 + $0x3f4] sm:$0xf] %v2769
  %3026 = vst [vmem:[%s2 + $0x3f8] sm:$0xf] %v2770
  %3027 = vst [vmem:[%s2 + $0x3fc] sm:$0xf] %v2771
  // Predicated region
  $region10: #{discriminator_forward.7} parent=0 // pred_check
    _
  $region11: #{discriminator_forward.7} parent=0 // pred_check_branch
    %3029 = sbr.rel (0) target = $region13
  $region12: #{discriminator_forward.7} parent=0 // pred_region
    _
  $region13: #{discriminator_forward.7} parent=0 // pred_fallthru
    _
  // Predicated region
  $region14: #{discriminator_forward.7} parent=0 // pred_check
    _
  $region15: #{discriminator_forward.7} parent=0 // pred_check_branch
    %3031 = sbr.rel (0) target = $region17
  $region16: #{discriminator_forward.7} parent=0 // pred_region
    _
  $region17: #{discriminator_forward.7} parent=0 // pred_fallthru
    _

// kernel: discriminator_forward.8
$region0: #{discriminator_forward.8}
  #allocation0 [shape = 'u32[]', space=smem, size = 0x4, offset = 0x4, fixed_abs, tag = 'smem constant byte address 0x4 - core index']
  #allocation1 [shape = 'u32[72,128]{1,0:T(1,128)}', space=vmem, size = 0x9000, scoped, tag = 'internal scratch']
  %s0 = inlined_call_operand.vmem [shape: bf16[512,512], index: 0, kind: input, shape index: {}]
  %s1 = inlined_call_operand.vmem [shape: bf16[512,128], index: 1, kind: input, shape index: {}]
  %s2 = inlined_call_operand.vmem [shape: bf16[512,128], index: 2, kind: output, shape index: {}]
  %s3 = sld [smem:[#allocation0]]
  $region18: #{discriminator_forward.8} parent=0
    _
  %s5 = ssub.s32 1, %s3
  %s6 = scalar_select 0, %s5, %s3
  // Predicated region
  $region2: #{discriminator_forward.8} parent=0 // pred_check
    _
  $region3: #{discriminator_forward.8} parent=0 // pred_check_branch
    %8 = sbr.rel (0) target = $region5
  $region4: #{discriminator_forward.8} parent=0 // pred_region
    _
  $region5: #{discriminator_forward.8} parent=0 // pred_fallthru
    _
  // Predicated region
  $region6: #{discriminator_forward.8} parent=0 // pred_check
    _
  $region7: #{discriminator_forward.8} parent=0 // pred_check_branch
    %10 = sbr.rel (0) target = $region9
  $region8: #{discriminator_forward.8} parent=0 // pred_region
    _
  $region9: #{discriminator_forward.8} parent=0 // pred_fallthru
    _
  %v11 = vld [vmem:[%s0] sm:$0xff]
  %v12 = vld [vmem:[%s0 + $0x8] sm:$0xff]
  %v13 = vld [vmem:[%s0 + $0x10] sm:$0xff]
  %v14 = vld [vmem:[%s0 + $0x18] sm:$0xff]
  %v15 = vld [vmem:[%s0 + $0x20] sm:$0xff]
  %v16 = vld [vmem:[%s0 + $0x28] sm:$0xff]
  %v17 = vld [vmem:[%s0 + $0x30] sm:$0xff]
  %v18 = vld [vmem:[%s0 + $0x38] sm:$0xff]
  %v19 = vld [vmem:[%s0 + $0x40] sm:$0xff]
  %v20 = vld [vmem:[%s0 + $0x48] sm:$0xff]
  %v21 = vld [vmem:[%s0 + $0x50] sm:$0xff]
  %v22 = vld [vmem:[%s0 + $0x58] sm:$0xff]
  %v23 = vld [vmem:[%s0 + $0x60] sm:$0xff]
  %v24 = vld [vmem:[%s0 + $0x68] sm:$0xff]
  %v25 = vld [vmem:[%s0 + $0x70] sm:$0xff]
  %v26 = vld [vmem:[%s0 + $0x78] sm:$0xff]
  %v27 = vld [vmem:[%s0 + $0x80] sm:$0xff]
  %v28 = vld [vmem:[%s0 + $0x88] sm:$0xff]
  %v29 = vld [vmem:[%s0 + $0x90] sm:$0xff]
  %v30 = vld [vmem:[%s0 + $0x98] sm:$0xff]
  %v31 = vld [vmem:[%s0 + $0xa0] sm:$0xff]
  %v32 = vld [vmem:[%s0 + $0xa8] sm:$0xff]
  %v33 = vld [vmem:[%s0 + $0xb0] sm:$0xff]
  %v34 = vld [vmem:[%s0 + $0xb8] sm:$0xff]
  %v35 = vld [vmem:[%s0 + $0xc0] sm:$0xff]
  %v36 = vld [vmem:[%s0 + $0xc8] sm:$0xff]
  %v37 = vld [vmem:[%s0 + $0xd0] sm:$0xff]
  %v38 = vld [vmem:[%s0 + $0xd8] sm:$0xff]
  %v39 = vld [vmem:[%s0 + $0xe0] sm:$0xff]
  %v40 = vld [vmem:[%s0 + $0xe8] sm:$0xff]
  %v41 = vld [vmem:[%s0 + $0xf0] sm:$0xff]
  %v42 = vld [vmem:[%s0 + $0xf8] sm:$0xff]
  %v43 = vld [vmem:[%s0 + $0x100] sm:$0xff]
  %v44 = vld [vmem:[%s0 + $0x108] sm:$0xff]
  %v45 = vld [vmem:[%s0 + $0x110] sm:$0xff]
  %v46 = vld [vmem:[%s0 + $0x118] sm:$0xff]
  %v47 = vld [vmem:[%s0 + $0x120] sm:$0xff]
  %v48 = vld [vmem:[%s0 + $0x128] sm:$0xff]
  %v49 = vld [vmem:[%s0 + $0x130] sm:$0xff]
  %v50 = vld [vmem:[%s0 + $0x138] sm:$0xff]
  %v51 = vld [vmem:[%s0 + $0x140] sm:$0xff]
  %v52 = vld [vmem:[%s0 + $0x148] sm:$0xff]
  %v53 = vld [vmem:[%s0 + $0x150] sm:$0xff]
  %v54 = vld [vmem:[%s0 + $0x158] sm:$0xff]
  %v55 = vld [vmem:[%s0 + $0x160] sm:$0xff]
  %v56 = vld [vmem:[%s0 + $0x168] sm:$0xff]
  %v57 = vld [vmem:[%s0 + $0x170] sm:$0xff]
  %v58 = vld [vmem:[%s0 + $0x178] sm:$0xff]
  %v59 = vld [vmem:[%s0 + $0x180] sm:$0xff]
  %v60 = vld [vmem:[%s0 + $0x188] sm:$0xff]
  %v61 = vld [vmem:[%s0 + $0x190] sm:$0xff]
  %v62 = vld [vmem:[%s0 + $0x198] sm:$0xff]
  %v63 = vld [vmem:[%s0 + $0x1a0] sm:$0xff]
  %v64 = vld [vmem:[%s0 + $0x1a8] sm:$0xff]
  %v65 = vld [vmem:[%s0 + $0x1b0] sm:$0xff]
  %v66 = vld [vmem:[%s0 + $0x1b8] sm:$0xff]
  %v67 = vld [vmem:[%s0 + $0x1c0] sm:$0xff]
  %v68 = vld [vmem:[%s0 + $0x1c8] sm:$0xff]
  %v69 = vld [vmem:[%s0 + $0x1d0] sm:$0xff]
  %v70 = vld [vmem:[%s0 + $0x1d8] sm:$0xff]
  %v71 = vld [vmem:[%s0 + $0x1e0] sm:$0xff]
  %v72 = vld [vmem:[%s0 + $0x1e8] sm:$0xff]
  %v73 = vld [vmem:[%s0 + $0x1f0] sm:$0xff]
  %v74 = vld [vmem:[%s0 + $0x1f8] sm:$0xff]
  %v75 = vld [vmem:[%s0 + $0x200] sm:$0xff]
  %v76 = vld [vmem:[%s0 + $0x208] sm:$0xff]
  %v77 = vld [vmem:[%s0 + $0x210] sm:$0xff]
  %v78 = vld [vmem:[%s0 + $0x218] sm:$0xff]
  %v79 = vld [vmem:[%s0 + $0x220] sm:$0xff]
  %v80 = vld [vmem:[%s0 + $0x228] sm:$0xff]
  %v81 = vld [vmem:[%s0 + $0x230] sm:$0xff]
  %v82 = vld [vmem:[%s0 + $0x238] sm:$0xff]
  %v83 = vld [vmem:[%s0 + $0x240] sm:$0xff]
  %v84 = vld [vmem:[%s0 + $0x248] sm:$0xff]
  %v85 = vld [vmem:[%s0 + $0x250] sm:$0xff]
  %v86 = vld [vmem:[%s0 + $0x258] sm:$0xff]
  %v87 = vld [vmem:[%s0 + $0x260] sm:$0xff]
  %v88 = vld [vmem:[%s0 + $0x268] sm:$0xff]
  %v89 = vld [vmem:[%s0 + $0x270] sm:$0xff]
  %v90 = vld [vmem:[%s0 + $0x278] sm:$0xff]
  %v91 = vld [vmem:[%s0 + $0x280] sm:$0xff]
  %v92 = vld [vmem:[%s0 + $0x288] sm:$0xff]
  %v93 = vld [vmem:[%s0 + $0x290] sm:$0xff]
  %v94 = vld [vmem:[%s0 + $0x298] sm:$0xff]
  %v95 = vld [vmem:[%s0 + $0x2a0] sm:$0xff]
  %v96 = vld [vmem:[%s0 + $0x2a8] sm:$0xff]
  %v97 = vld [vmem:[%s0 + $0x2b0] sm:$0xff]
  %v98 = vld [vmem:[%s0 + $0x2b8] sm:$0xff]
  %v99 = vld [vmem:[%s0 + $0x2c0] sm:$0xff]
  %v100 = vld [vmem:[%s0 + $0x2c8] sm:$0xff]
  %v101 = vld [vmem:[%s0 + $0x2d0] sm:$0xff]
  %v102 = vld [vmem:[%s0 + $0x2d8] sm:$0xff]
  %v103 = vld [vmem:[%s0 + $0x2e0] sm:$0xff]
  %v104 = vld [vmem:[%s0 + $0x2e8] sm:$0xff]
  %v105 = vld [vmem:[%s0 + $0x2f0] sm:$0xff]
  %v106 = vld [vmem:[%s0 + $0x2f8] sm:$0xff]
  %v107 = vld [vmem:[%s0 + $0x300] sm:$0xff]
  %v108 = vld [vmem:[%s0 + $0x308] sm:$0xff]
  %v109 = vld [vmem:[%s0 + $0x310] sm:$0xff]
  %v110 = vld [vmem:[%s0 + $0x318] sm:$0xff]
  %v111 = vld [vmem:[%s0 + $0x320] sm:$0xff]
  %v112 = vld [vmem:[%s0 + $0x328] sm:$0xff]
  %v113 = vld [vmem:[%s0 + $0x330] sm:$0xff]
  %v114 = vld [vmem:[%s0 + $0x338] sm:$0xff]
  %v115 = vld [vmem:[%s0 + $0x340] sm:$0xff]
  %v116 = vld [vmem:[%s0 + $0x348] sm:$0xff]
  %v117 = vld [vmem:[%s0 + $0x350] sm:$0xff]
  %v118 = vld [vmem:[%s0 + $0x358] sm:$0xff]
  %v119 = vld [vmem:[%s0 + $0x360] sm:$0xff]
  %v120 = vld [vmem:[%s0 + $0x368] sm:$0xff]
  %v121 = vld [vmem:[%s0 + $0x370] sm:$0xff]
  %v122 = vld [vmem:[%s0 + $0x378] sm:$0xff]
  %v123 = vld [vmem:[%s0 + $0x380] sm:$0xff]
  %v124 = vld [vmem:[%s0 + $0x388] sm:$0xff]
  %v125 = vld [vmem:[%s0 + $0x390] sm:$0xff]
  %v126 = vld [vmem:[%s0 + $0x398] sm:$0xff]
  %v127 = vld [vmem:[%s0 + $0x3a0] sm:$0xff]
  %v128 = vld [vmem:[%s0 + $0x3a8] sm:$0xff]
  %v129 = vld [vmem:[%s0 + $0x3b0] sm:$0xff]
  %v130 = vld [vmem:[%s0 + $0x3b8] sm:$0xff]
  %v131 = vld [vmem:[%s0 + $0x3c0] sm:$0xff]
  %v132 = vld [vmem:[%s0 + $0x3c8] sm:$0xff]
  %v133 = vld [vmem:[%s0 + $0x3d0] sm:$0xff]
  %v134 = vld [vmem:[%s0 + $0x3d8] sm:$0xff]
  %v135 = vld [vmem:[%s0 + $0x3e0] sm:$0xff]
  %v136 = vld [vmem:[%s0 + $0x3e8] sm:$0xff]
  %v137 = vld [vmem:[%s0 + $0x3f0] sm:$0xff]
  %v138 = vld [vmem:[%s0 + $0x3f8] sm:$0xff]
  %v139 = vld [vmem:[%s1] sm:$0xf]
  %v140 = vld [vmem:[%s1 + $0x4] sm:$0xf]
  %v141 = vld [vmem:[%s1 + $0x8] sm:$0xf]
  %v142 = vld [vmem:[%s1 + $0xc] sm:$0xf]
  %v143 = vld [vmem:[%s1 + $0x10] sm:$0xf]
  %v144 = vld [vmem:[%s1 + $0x14] sm:$0xf]
  %v145 = vld [vmem:[%s1 + $0x18] sm:$0xf]
  %v146 = vld [vmem:[%s1 + $0x1c] sm:$0xf]
  %v147 = vld [vmem:[%s1 + $0x20] sm:$0xf]
  %v148 = vld [vmem:[%s1 + $0x24] sm:$0xf]
  %v149 = vld [vmem:[%s1 + $0x28] sm:$0xf]
  %v150 = vld [vmem:[%s1 + $0x2c] sm:$0xf]
  %v151 = vld [vmem:[%s1 + $0x30] sm:$0xf]
  %v152 = vld [vmem:[%s1 + $0x34] sm:$0xf]
  %v153 = vld [vmem:[%s1 + $0x38] sm:$0xf]
  %v154 = vld [vmem:[%s1 + $0x3c] sm:$0xf]
  %v155 = vld [vmem:[%s1 + $0x40] sm:$0xf]
  %v156 = vld [vmem:[%s1 + $0x44] sm:$0xf]
  %v157 = vld [vmem:[%s1 + $0x48] sm:$0xf]
  %v158 = vld [vmem:[%s1 + $0x4c] sm:$0xf]
  %v159 = vld [vmem:[%s1 + $0x50] sm:$0xf]
  %v160 = vld [vmem:[%s1 + $0x54] sm:$0xf]
  %v161 = vld [vmem:[%s1 + $0x58] sm:$0xf]
  %v162 = vld [vmem:[%s1 + $0x5c] sm:$0xf]
  %v163 = vld [vmem:[%s1 + $0x60] sm:$0xf]
  %v164 = vld [vmem:[%s1 + $0x64] sm:$0xf]
  %v165 = vld [vmem:[%s1 + $0x68] sm:$0xf]
  %v166 = vld [vmem:[%s1 + $0x6c] sm:$0xf]
  %v167 = vld [vmem:[%s1 + $0x70] sm:$0xf]
  %v168 = vld [vmem:[%s1 + $0x74] sm:$0xf]
  %v169 = vld [vmem:[%s1 + $0x78] sm:$0xf]
  %v170 = vld [vmem:[%s1 + $0x7c] sm:$0xf]
  %v171 = vld [vmem:[%s1 + $0x80] sm:$0xf]
  %v172 = vld [vmem:[%s1 + $0x84] sm:$0xf]
  %v173 = vld [vmem:[%s1 + $0x88] sm:$0xf]
  %v174 = vld [vmem:[%s1 + $0x8c] sm:$0xf]
  %v175 = vld [vmem:[%s1 + $0x90] sm:$0xf]
  %v176 = vld [vmem:[%s1 + $0x94] sm:$0xf]
  %v177 = vld [vmem:[%s1 + $0x98] sm:$0xf]
  %v178 = vld [vmem:[%s1 + $0x9c] sm:$0xf]
  %v179 = vld [vmem:[%s1 + $0xa0] sm:$0xf]
  %v180 = vld [vmem:[%s1 + $0xa4] sm:$0xf]
  %v181 = vld [vmem:[%s1 + $0xa8] sm:$0xf]
  %v182 = vld [vmem:[%s1 + $0xac] sm:$0xf]
  %v183 = vld [vmem:[%s1 + $0xb0] sm:$0xf]
  %v184 = vld [vmem:[%s1 + $0xb4] sm:$0xf]
  %v185 = vld [vmem:[%s1 + $0xb8] sm:$0xf]
  %v186 = vld [vmem:[%s1 + $0xbc] sm:$0xf]
  %v187 = vld [vmem:[%s1 + $0xc0] sm:$0xf]
  %v188 = vld [vmem:[%s1 + $0xc4] sm:$0xf]
  %v189 = vld [vmem:[%s1 + $0xc8] sm:$0xf]
  %v190 = vld [vmem:[%s1 + $0xcc] sm:$0xf]
  %v191 = vld [vmem:[%s1 + $0xd0] sm:$0xf]
  %v192 = vld [vmem:[%s1 + $0xd4] sm:$0xf]
  %v193 = vld [vmem:[%s1 + $0xd8] sm:$0xf]
  %v194 = vld [vmem:[%s1 + $0xdc] sm:$0xf]
  %v195 = vld [vmem:[%s1 + $0xe0] sm:$0xf]
  %v196 = vld [vmem:[%s1 + $0xe4] sm:$0xf]
  %v197 = vld [vmem:[%s1 + $0xe8] sm:$0xf]
  %v198 = vld [vmem:[%s1 + $0xec] sm:$0xf]
  %v199 = vld [vmem:[%s1 + $0xf0] sm:$0xf]
  %v200 = vld [vmem:[%s1 + $0xf4] sm:$0xf]
  %v201 = vld [vmem:[%s1 + $0xf8] sm:$0xf]
  %v202 = vld [vmem:[%s1 + $0xfc] sm:$0xf]
  %v331 = vunpack.c.l.b16 %v11
  %v332 = vunpack.c.h.b16 %v11
  %v333 = vunpack.c.l.b16 %v12
  %v334 = vunpack.c.h.b16 %v12
  %v335 = vunpack.c.l.b16 %v13
  %v336 = vunpack.c.h.b16 %v13
  %v337 = vunpack.c.l.b16 %v14
  %v338 = vunpack.c.h.b16 %v14
  %v339 = vunpack.c.l.b16 %v15
  %v340 = vunpack.c.h.b16 %v15
  %v341 = vunpack.c.l.b16 %v16
  %v342 = vunpack.c.h.b16 %v16
  %v343 = vunpack.c.l.b16 %v17
  %v344 = vunpack.c.h.b16 %v17
  %v345 = vunpack.c.l.b16 %v18
  %v346 = vunpack.c.h.b16 %v18
  %v347 = vunpack.c.l.b16 %v19
  %v348 = vunpack.c.h.b16 %v19
  %v349 = vunpack.c.l.b16 %v20
  %v350 = vunpack.c.h.b16 %v20
  %v351 = vunpack.c.l.b16 %v21
  %v352 = vunpack.c.h.b16 %v21
  %v353 = vunpack.c.l.b16 %v22
  %v354 = vunpack.c.h.b16 %v22
  %v355 = vunpack.c.l.b16 %v23
  %v356 = vunpack.c.h.b16 %v23
  %v357 = vunpack.c.l.b16 %v24
  %v358 = vunpack.c.h.b16 %v24
  %v359 = vunpack.c.l.b16 %v25
  %v360 = vunpack.c.h.b16 %v25
  %v361 = vunpack.c.l.b16 %v26
  %v362 = vunpack.c.h.b16 %v26
  %v363 = vunpack.c.l.b16 %v27
  %v364 = vunpack.c.h.b16 %v27
  %v365 = vunpack.c.l.b16 %v28
  %v366 = vunpack.c.h.b16 %v28
  %v367 = vunpack.c.l.b16 %v29
  %v368 = vunpack.c.h.b16 %v29
  %v369 = vunpack.c.l.b16 %v30
  %v370 = vunpack.c.h.b16 %v30
  %v371 = vunpack.c.l.b16 %v31
  %v372 = vunpack.c.h.b16 %v31
  %v373 = vunpack.c.l.b16 %v32
  %v374 = vunpack.c.h.b16 %v32
  %v375 = vunpack.c.l.b16 %v33
  %v376 = vunpack.c.h.b16 %v33
  %v377 = vunpack.c.l.b16 %v34
  %v378 = vunpack.c.h.b16 %v34
  %v379 = vunpack.c.l.b16 %v35
  %v380 = vunpack.c.h.b16 %v35
  %v381 = vunpack.c.l.b16 %v36
  %v382 = vunpack.c.h.b16 %v36
  %v383 = vunpack.c.l.b16 %v37
  %v384 = vunpack.c.h.b16 %v37
  %v385 = vunpack.c.l.b16 %v38
  %v386 = vunpack.c.h.b16 %v38
  %v387 = vunpack.c.l.b16 %v39
  %v388 = vunpack.c.h.b16 %v39
  %v389 = vunpack.c.l.b16 %v40
  %v390 = vunpack.c.h.b16 %v40
  %v391 = vunpack.c.l.b16 %v41
  %v392 = vunpack.c.h.b16 %v41
  %v393 = vunpack.c.l.b16 %v42
  %v394 = vunpack.c.h.b16 %v42
  %v395 = vunpack.c.l.b16 %v43
  %v396 = vunpack.c.h.b16 %v43
  %v397 = vunpack.c.l.b16 %v44
  %v398 = vunpack.c.h.b16 %v44
  %v399 = vunpack.c.l.b16 %v45
  %v400 = vunpack.c.h.b16 %v45
  %v401 = vunpack.c.l.b16 %v46
  %v402 = vunpack.c.h.b16 %v46
  %v403 = vunpack.c.l.b16 %v47
  %v404 = vunpack.c.h.b16 %v47
  %v405 = vunpack.c.l.b16 %v48
  %v406 = vunpack.c.h.b16 %v48
  %v407 = vunpack.c.l.b16 %v49
  %v408 = vunpack.c.h.b16 %v49
  %v409 = vunpack.c.l.b16 %v50
  %v410 = vunpack.c.h.b16 %v50
  %v411 = vunpack.c.l.b16 %v51
  %v412 = vunpack.c.h.b16 %v51
  %v413 = vunpack.c.l.b16 %v52
  %v414 = vunpack.c.h.b16 %v52
  %v415 = vunpack.c.l.b16 %v53
  %v416 = vunpack.c.h.b16 %v53
  %v417 = vunpack.c.l.b16 %v54
  %v418 = vunpack.c.h.b16 %v54
  %v419 = vunpack.c.l.b16 %v55
  %v420 = vunpack.c.h.b16 %v55
  %v421 = vunpack.c.l.b16 %v56
  %v422 = vunpack.c.h.b16 %v56
  %v423 = vunpack.c.l.b16 %v57
  %v424 = vunpack.c.h.b16 %v57
  %v425 = vunpack.c.l.b16 %v58
  %v426 = vunpack.c.h.b16 %v58
  %v427 = vunpack.c.l.b16 %v59
  %v428 = vunpack.c.h.b16 %v59
  %v429 = vunpack.c.l.b16 %v60
  %v430 = vunpack.c.h.b16 %v60
  %v431 = vunpack.c.l.b16 %v61
  %v432 = vunpack.c.h.b16 %v61
  %v433 = vunpack.c.l.b16 %v62
  %v434 = vunpack.c.h.b16 %v62
  %v435 = vunpack.c.l.b16 %v63
  %v436 = vunpack.c.h.b16 %v63
  %v437 = vunpack.c.l.b16 %v64
  %v438 = vunpack.c.h.b16 %v64
  %v439 = vunpack.c.l.b16 %v65
  %v440 = vunpack.c.h.b16 %v65
  %v441 = vunpack.c.l.b16 %v66
  %v442 = vunpack.c.h.b16 %v66
  %v443 = vunpack.c.l.b16 %v67
  %v444 = vunpack.c.h.b16 %v67
  %v445 = vunpack.c.l.b16 %v68
  %v446 = vunpack.c.h.b16 %v68
  %v447 = vunpack.c.l.b16 %v69
  %v448 = vunpack.c.h.b16 %v69
  %v449 = vunpack.c.l.b16 %v70
  %v450 = vunpack.c.h.b16 %v70
  %v451 = vunpack.c.l.b16 %v71
  %v452 = vunpack.c.h.b16 %v71
  %v453 = vunpack.c.l.b16 %v72
  %v454 = vunpack.c.h.b16 %v72
  %v455 = vunpack.c.l.b16 %v73
  %v456 = vunpack.c.h.b16 %v73
  %v457 = vunpack.c.l.b16 %v74
  %v458 = vunpack.c.h.b16 %v74
  %v459 = vunpack.c.l.b16 %v75
  %v460 = vunpack.c.h.b16 %v75
  %v461 = vunpack.c.l.b16 %v76
  %v462 = vunpack.c.h.b16 %v76
  %v463 = vunpack.c.l.b16 %v77
  %v464 = vunpack.c.h.b16 %v77
  %v465 = vunpack.c.l.b16 %v78
  %v466 = vunpack.c.h.b16 %v78
  %v467 = vunpack.c.l.b16 %v79
  %v468 = vunpack.c.h.b16 %v79
  %v469 = vunpack.c.l.b16 %v80
  %v470 = vunpack.c.h.b16 %v80
  %v471 = vunpack.c.l.b16 %v81
  %v472 = vunpack.c.h.b16 %v81
  %v473 = vunpack.c.l.b16 %v82
  %v474 = vunpack.c.h.b16 %v82
  %v475 = vunpack.c.l.b16 %v83
  %v476 = vunpack.c.h.b16 %v83
  %v477 = vunpack.c.l.b16 %v84
  %v478 = vunpack.c.h.b16 %v84
  %v479 = vunpack.c.l.b16 %v85
  %v480 = vunpack.c.h.b16 %v85
  %v481 = vunpack.c.l.b16 %v86
  %v482 = vunpack.c.h.b16 %v86
  %v483 = vunpack.c.l.b16 %v87
  %v484 = vunpack.c.h.b16 %v87
  %v485 = vunpack.c.l.b16 %v88
  %v486 = vunpack.c.h.b16 %v88
  %v487 = vunpack.c.l.b16 %v89
  %v488 = vunpack.c.h.b16 %v89
  %v489 = vunpack.c.l.b16 %v90
  %v490 = vunpack.c.h.b16 %v90
  %v491 = vunpack.c.l.b16 %v91
  %v492 = vunpack.c.h.b16 %v91
  %v493 = vunpack.c.l.b16 %v92
  %v494 = vunpack.c.h.b16 %v92
  %v495 = vunpack.c.l.b16 %v93
  %v496 = vunpack.c.h.b16 %v93
  %v497 = vunpack.c.l.b16 %v94
  %v498 = vunpack.c.h.b16 %v94
  %v499 = vunpack.c.l.b16 %v95
  %v500 = vunpack.c.h.b16 %v95
  %v501 = vunpack.c.l.b16 %v96
  %v502 = vunpack.c.h.b16 %v96
  %v503 = vunpack.c.l.b16 %v97
  %v504 = vunpack.c.h.b16 %v97
  %v505 = vunpack.c.l.b16 %v98
  %v506 = vunpack.c.h.b16 %v98
  %v507 = vunpack.c.l.b16 %v99
  %v508 = vunpack.c.h.b16 %v99
  %v509 = vunpack.c.l.b16 %v100
  %v510 = vunpack.c.h.b16 %v100
  %v511 = vunpack.c.l.b16 %v101
  %v512 = vunpack.c.h.b16 %v101
  %v513 = vunpack.c.l.b16 %v102
  %v514 = vunpack.c.h.b16 %v102
  %v515 = vunpack.c.l.b16 %v103
  %v516 = vunpack.c.h.b16 %v103
  %v517 = vunpack.c.l.b16 %v104
  %v518 = vunpack.c.h.b16 %v104
  %v519 = vunpack.c.l.b16 %v105
  %v520 = vunpack.c.h.b16 %v105
  %v521 = vunpack.c.l.b16 %v106
  %v522 = vunpack.c.h.b16 %v106
  %v523 = vunpack.c.l.b16 %v107
  %v524 = vunpack.c.h.b16 %v107
  %v525 = vunpack.c.l.b16 %v108
  %v526 = vunpack.c.h.b16 %v108
  %v527 = vunpack.c.l.b16 %v109
  %v528 = vunpack.c.h.b16 %v109
  %v529 = vunpack.c.l.b16 %v110
  %v530 = vunpack.c.h.b16 %v110
  %v531 = vunpack.c.l.b16 %v111
  %v532 = vunpack.c.h.b16 %v111
  %v533 = vunpack.c.l.b16 %v112
  %v534 = vunpack.c.h.b16 %v112
  %v535 = vunpack.c.l.b16 %v113
  %v536 = vunpack.c.h.b16 %v113
  %v537 = vunpack.c.l.b16 %v114
  %v538 = vunpack.c.h.b16 %v114
  %v539 = vunpack.c.l.b16 %v115
  %v540 = vunpack.c.h.b16 %v115
  %v541 = vunpack.c.l.b16 %v116
  %v542 = vunpack.c.h.b16 %v116
  %v543 = vunpack.c.l.b16 %v117
  %v544 = vunpack.c.h.b16 %v117
  %v545 = vunpack.c.l.b16 %v118
  %v546 = vunpack.c.h.b16 %v118
  %v547 = vunpack.c.l.b16 %v119
  %v548 = vunpack.c.h.b16 %v119
  %v549 = vunpack.c.l.b16 %v120
  %v550 = vunpack.c.h.b16 %v120
  %v551 = vunpack.c.l.b16 %v121
  %v552 = vunpack.c.h.b16 %v121
  %v553 = vunpack.c.l.b16 %v122
  %v554 = vunpack.c.h.b16 %v122
  %v555 = vunpack.c.l.b16 %v123
  %v556 = vunpack.c.h.b16 %v123
  %v557 = vunpack.c.l.b16 %v124
  %v558 = vunpack.c.h.b16 %v124
  %v559 = vunpack.c.l.b16 %v125
  %v560 = vunpack.c.h.b16 %v125
  %v561 = vunpack.c.l.b16 %v126
  %v562 = vunpack.c.h.b16 %v126
  %v563 = vunpack.c.l.b16 %v127
  %v564 = vunpack.c.h.b16 %v127
  %v565 = vunpack.c.l.b16 %v128
  %v566 = vunpack.c.h.b16 %v128
  %v567 = vunpack.c.l.b16 %v129
  %v568 = vunpack.c.h.b16 %v129
  %v569 = vunpack.c.l.b16 %v130
  %v570 = vunpack.c.h.b16 %v130
  %v571 = vunpack.c.l.b16 %v131
  %v572 = vunpack.c.h.b16 %v131
  %v573 = vunpack.c.l.b16 %v132
  %v574 = vunpack.c.h.b16 %v132
  %v575 = vunpack.c.l.b16 %v133
  %v576 = vunpack.c.h.b16 %v133
  %v577 = vunpack.c.l.b16 %v134
  %v578 = vunpack.c.h.b16 %v134
  %v579 = vunpack.c.l.b16 %v135
  %v580 = vunpack.c.h.b16 %v135
  %v581 = vunpack.c.l.b16 %v136
  %v582 = vunpack.c.h.b16 %v136
  %v583 = vunpack.c.l.b16 %v137
  %v584 = vunpack.c.h.b16 %v137
  %v585 = vunpack.c.l.b16 %v138
  %v586 = vunpack.c.h.b16 %v138
  %v587 = vpack.c.b16 %v335, %v331
  %v588 = vpack.c.b16 %v336, %v332
  %v589 = vpack.c.b16 %v337, %v333
  %v590 = vpack.c.b16 %v338, %v334
  %v591 = vpack.c.b16 %v343, %v339
  %v592 = vpack.c.b16 %v344, %v340
  %v593 = vpack.c.b16 %v345, %v341
  %v594 = vpack.c.b16 %v346, %v342
  %v595 = vpack.c.b16 %v351, %v347
  %v596 = vpack.c.b16 %v352, %v348
  %v597 = vpack.c.b16 %v353, %v349
  %v598 = vpack.c.b16 %v354, %v350
  %v599 = vpack.c.b16 %v359, %v355
  %v600 = vpack.c.b16 %v360, %v356
  %v601 = vpack.c.b16 %v361, %v357
  %v602 = vpack.c.b16 %v362, %v358
  %v603 = vpack.c.b16 %v367, %v363
  %v604 = vpack.c.b16 %v368, %v364
  %v605 = vpack.c.b16 %v369, %v365
  %v606 = vpack.c.b16 %v370, %v366
  %v607 = vpack.c.b16 %v375, %v371
  %v608 = vpack.c.b16 %v376, %v372
  %v609 = vpack.c.b16 %v377, %v373
  %v610 = vpack.c.b16 %v378, %v374
  %v611 = vpack.c.b16 %v383, %v379
  %v612 = vpack.c.b16 %v384, %v380
  %v613 = vpack.c.b16 %v385, %v381
  %v614 = vpack.c.b16 %v386, %v382
  %v615 = vpack.c.b16 %v391, %v387
  %v616 = vpack.c.b16 %v392, %v388
  %v617 = vpack.c.b16 %v393, %v389
  %v618 = vpack.c.b16 %v394, %v390
  %v619 = vpack.c.b16 %v399, %v395
  %v620 = vpack.c.b16 %v400, %v396
  %v621 = vpack.c.b16 %v401, %v397
  %v622 = vpack.c.b16 %v402, %v398
  %v623 = vpack.c.b16 %v407, %v403
  %v624 = vpack.c.b16 %v408, %v404
  %v625 = vpack.c.b16 %v409, %v405
  %v626 = vpack.c.b16 %v410, %v406
  %v627 = vpack.c.b16 %v415, %v411
  %v628 = vpack.c.b16 %v416, %v412
  %v629 = vpack.c.b16 %v417, %v413
  %v630 = vpack.c.b16 %v418, %v414
  %v631 = vpack.c.b16 %v423, %v419
  %v632 = vpack.c.b16 %v424, %v420
  %v633 = vpack.c.b16 %v425, %v421
  %v634 = vpack.c.b16 %v426, %v422
  %v635 = vpack.c.b16 %v431, %v427
  %v636 = vpack.c.b16 %v432, %v428
  %v637 = vpack.c.b16 %v433, %v429
  %v638 = vpack.c.b16 %v434, %v430
  %v639 = vpack.c.b16 %v439, %v435
  %v640 = vpack.c.b16 %v440, %v436
  %v641 = vpack.c.b16 %v441, %v437
  %v642 = vpack.c.b16 %v442, %v438
  %v643 = vpack.c.b16 %v447, %v443
  %v644 = vpack.c.b16 %v448, %v444
  %v645 = vpack.c.b16 %v449, %v445
  %v646 = vpack.c.b16 %v450, %v446
  %v647 = vpack.c.b16 %v455, %v451
  %v648 = vpack.c.b16 %v456, %v452
  %v649 = vpack.c.b16 %v457, %v453
  %v650 = vpack.c.b16 %v458, %v454
  %v651 = vpack.c.b16 %v463, %v459
  %v652 = vpack.c.b16 %v464, %v460
  %v653 = vpack.c.b16 %v465, %v461
  %v654 = vpack.c.b16 %v466, %v462
  %v655 = vpack.c.b16 %v471, %v467
  %v656 = vpack.c.b16 %v472, %v468
  %v657 = vpack.c.b16 %v473, %v469
  %v658 = vpack.c.b16 %v474, %v470
  %v659 = vpack.c.b16 %v479, %v475
  %v660 = vpack.c.b16 %v480, %v476
  %v661 = vpack.c.b16 %v481, %v477
  %v662 = vpack.c.b16 %v482, %v478
  %v663 = vpack.c.b16 %v487, %v483
  %v664 = vpack.c.b16 %v488, %v484
  %v665 = vpack.c.b16 %v489, %v485
  %v666 = vpack.c.b16 %v490, %v486
  %v667 = vpack.c.b16 %v495, %v491
  %v668 = vpack.c.b16 %v496, %v492
  %v669 = vpack.c.b16 %v497, %v493
  %v670 = vpack.c.b16 %v498, %v494
  %v671 = vpack.c.b16 %v503, %v499
  %v672 = vpack.c.b16 %v504, %v500
  %v673 = vpack.c.b16 %v505, %v501
  %v674 = vpack.c.b16 %v506, %v502
  %v675 = vpack.c.b16 %v511, %v507
  %v676 = vpack.c.b16 %v512, %v508
  %v677 = vpack.c.b16 %v513, %v509
  %v678 = vpack.c.b16 %v514, %v510
  %v679 = vpack.c.b16 %v519, %v515
  %v680 = vpack.c.b16 %v520, %v516
  %v681 = vpack.c.b16 %v521, %v517
  %v682 = vpack.c.b16 %v522, %v518
  %v683 = vpack.c.b16 %v527, %v523
  %v684 = vpack.c.b16 %v528, %v524
  %v685 = vpack.c.b16 %v529, %v525
  %v686 = vpack.c.b16 %v530, %v526
  %v687 = vpack.c.b16 %v535, %v531
  %v688 = vpack.c.b16 %v536, %v532
  %v689 = vpack.c.b16 %v537, %v533
  %v690 = vpack.c.b16 %v538, %v534
  %v691 = vpack.c.b16 %v543, %v539
  %v692 = vpack.c.b16 %v544, %v540
  %v693 = vpack.c.b16 %v545, %v541
  %v694 = vpack.c.b16 %v546, %v542
  %v695 = vpack.c.b16 %v551, %v547
  %v696 = vpack.c.b16 %v552, %v548
  %v697 = vpack.c.b16 %v553, %v549
  %v698 = vpack.c.b16 %v554, %v550
  %v699 = vpack.c.b16 %v559, %v555
  %v700 = vpack.c.b16 %v560, %v556
  %v701 = vpack.c.b16 %v561, %v557
  %v702 = vpack.c.b16 %v562, %v558
  %v703 = vpack.c.b16 %v567, %v563
  %v704 = vpack.c.b16 %v568, %v564
  %v705 = vpack.c.b16 %v569, %v565
  %v706 = vpack.c.b16 %v570, %v566
  %v707 = vpack.c.b16 %v575, %v571
  %v708 = vpack.c.b16 %v576, %v572
  %v709 = vpack.c.b16 %v577, %v573
  %v710 = vpack.c.b16 %v578, %v574
  %v711 = vpack.c.b16 %v583, %v579
  %v712 = vpack.c.b16 %v584, %v580
  %v713 = vpack.c.b16 %v585, %v581
  %v714 = vpack.c.b16 %v586, %v582
  %v907 = vunpack.c.l.b16 %v139
  %v908 = vunpack.c.l.b16 %v140
  %v909 = vunpack.c.l.b16 %v141
  %v910 = vunpack.c.l.b16 %v142
  %v911 = vunpack.c.l.b16 %v143
  %v912 = vunpack.c.l.b16 %v144
  %v913 = vunpack.c.l.b16 %v145
  %v914 = vunpack.c.l.b16 %v146
  %v915 = vunpack.c.l.b16 %v147
  %v916 = vunpack.c.l.b16 %v148
  %v917 = vunpack.c.l.b16 %v149
  %v918 = vunpack.c.l.b16 %v150
  %v919 = vunpack.c.l.b16 %v151
  %v920 = vunpack.c.l.b16 %v152
  %v921 = vunpack.c.l.b16 %v153
  %v922 = vunpack.c.l.b16 %v154
  %v923 = vunpack.c.l.b16 %v155
  %v924 = vunpack.c.l.b16 %v156
  %v925 = vunpack.c.l.b16 %v157
  %v926 = vunpack.c.l.b16 %v158
  %v927 = vunpack.c.l.b16 %v159
  %v928 = vunpack.c.l.b16 %v160
  %v929 = vunpack.c.l.b16 %v161
  %v930 = vunpack.c.l.b16 %v162
  %v931 = vunpack.c.l.b16 %v163
  %v932 = vunpack.c.l.b16 %v164
  %v933 = vunpack.c.l.b16 %v165
  %v934 = vunpack.c.l.b16 %v166
  %v935 = vunpack.c.l.b16 %v167
  %v936 = vunpack.c.l.b16 %v168
  %v937 = vunpack.c.l.b16 %v169
  %v938 = vunpack.c.l.b16 %v170
  %v939 = vunpack.c.l.b16 %v171
  %v940 = vunpack.c.l.b16 %v172
  %v941 = vunpack.c.l.b16 %v173
  %v942 = vunpack.c.l.b16 %v174
  %v943 = vunpack.c.l.b16 %v175
  %v944 = vunpack.c.l.b16 %v176
  %v945 = vunpack.c.l.b16 %v177
  %v946 = vunpack.c.l.b16 %v178
  %v947 = vunpack.c.l.b16 %v179
  %v948 = vunpack.c.l.b16 %v180
  %v949 = vunpack.c.l.b16 %v181
  %v950 = vunpack.c.l.b16 %v182
  %v951 = vunpack.c.l.b16 %v183
  %v952 = vunpack.c.l.b16 %v184
  %v953 = vunpack.c.l.b16 %v185
  %v954 = vunpack.c.l.b16 %v186
  %v955 = vunpack.c.l.b16 %v187
  %v956 = vunpack.c.l.b16 %v188
  %v957 = vunpack.c.l.b16 %v189
  %v958 = vunpack.c.l.b16 %v190
  %v959 = vunpack.c.l.b16 %v191
  %v960 = vunpack.c.l.b16 %v192
  %v961 = vunpack.c.l.b16 %v193
  %v962 = vunpack.c.l.b16 %v194
  %v963 = vunpack.c.l.b16 %v195
  %v964 = vunpack.c.l.b16 %v196
  %v965 = vunpack.c.l.b16 %v197
  %v966 = vunpack.c.l.b16 %v198
  %v967 = vunpack.c.l.b16 %v199
  %v968 = vunpack.c.l.b16 %v200
  %v969 = vunpack.c.l.b16 %v201
  %v970 = vunpack.c.l.b16 %v202
  %v971 = vpack.c.b16 %v908, %v907
  %v972 = vpack.c.b16 %v910, %v909
  %v973 = vpack.c.b16 %v912, %v911
  %v974 = vpack.c.b16 %v914, %v913
  %v975 = vpack.c.b16 %v916, %v915
  %v976 = vpack.c.b16 %v918, %v917
  %v977 = vpack.c.b16 %v920, %v919
  %v978 = vpack.c.b16 %v922, %v921
  %v979 = vpack.c.b16 %v924, %v923
  %v980 = vpack.c.b16 %v926, %v925
  %v981 = vpack.c.b16 %v928, %v927
  %v982 = vpack.c.b16 %v930, %v929
  %v983 = vpack.c.b16 %v932, %v931
  %v984 = vpack.c.b16 %v934, %v933
  %v985 = vpack.c.b16 %v936, %v935
  %v986 = vpack.c.b16 %v938, %v937
  %v987 = vpack.c.b16 %v940, %v939
  %v988 = vpack.c.b16 %v942, %v941
  %v989 = vpack.c.b16 %v944, %v943
  %v990 = vpack.c.b16 %v946, %v945
  %v991 = vpack.c.b16 %v948, %v947
  %v992 = vpack.c.b16 %v950, %v949
  %v993 = vpack.c.b16 %v952, %v951
  %v994 = vpack.c.b16 %v954, %v953
  %v995 = vpack.c.b16 %v956, %v955
  %v996 = vpack.c.b16 %v958, %v957
  %v997 = vpack.c.b16 %v960, %v959
  %v998 = vpack.c.b16 %v962, %v961
  %v999 = vpack.c.b16 %v964, %v963
  %v1000 = vpack.c.b16 %v966, %v965
  %v1001 = vpack.c.b16 %v968, %v967
  %v1002 = vpack.c.b16 %v970, %v969
  %1035 = vmatpush.bf16.msra.mxu0 %v978
  %1036 = vmatpush.bf16.msra.mxu0 %v977
  %1037 = vmatpush.bf16.msra.mxu0 %v976
  %1038 = vmatpush.bf16.msra.mxu0 %v975
  %1039 = vmatpush.bf16.msra.mxu0 %v974
  %1040 = vmatpush.bf16.msra.mxu0 %v973
  %1041 = vmatpush.bf16.msra.mxu0 %v972
  %1042 = vmatpush.bf16.msra.mxu0 %v971
  %1043 = vmatmul.bf16.gmra.mxu0 %v587
  %v1044 = vpop.f32.mrf.mxu0
  %v1045 = vadd.f32 0.0, %v1044
  %v1046 = vpop.f32.mrf.mxu0
  %v1047 = vadd.f32 0.0, %v1046
  %1048 = vmatmul.bf16.gmra.mxu0 %v591
  %v1049 = vpop.f32.mrf.mxu0
  %v1050 = vadd.f32 0.0, %v1049
  %v1051 = vpop.f32.mrf.mxu0
  %v1052 = vadd.f32 0.0, %v1051
  %1053 = vmatmul.bf16.gmra.mxu0 %v595
  %v1054 = vpop.f32.mrf.mxu0
  %v1055 = vadd.f32 0.0, %v1054
  %v1056 = vpop.f32.mrf.mxu0
  %v1057 = vadd.f32 0.0, %v1056
  %1058 = vmatmul.bf16.gmra.mxu0 %v599
  %v1059 = vpop.f32.mrf.mxu0
  %v1060 = vadd.f32 0.0, %v1059
  %v1061 = vpop.f32.mrf.mxu0
  %v1062 = vadd.f32 0.0, %v1061
  %1063 = vmatmul.bf16.gmra.mxu0 %v603
  %v1064 = vpop.f32.mrf.mxu0
  %v1065 = vadd.f32 0.0, %v1064
  %v1066 = vpop.f32.mrf.mxu0
  %v1067 = vadd.f32 0.0, %v1066
  %1068 = vmatmul.bf16.gmra.mxu0 %v607
  %v1069 = vpop.f32.mrf.mxu0
  %v1070 = vadd.f32 0.0, %v1069
  %v1071 = vpop.f32.mrf.mxu0
  %v1072 = vadd.f32 0.0, %v1071
  %1073 = vmatmul.bf16.gmra.mxu0 %v611
  %v1074 = vpop.f32.mrf.mxu0
  %v1075 = vadd.f32 0.0, %v1074
  %v1076 = vpop.f32.mrf.mxu0
  %v1077 = vadd.f32 0.0, %v1076
  %1078 = vmatmul.bf16.gmra.mxu0 %v615
  %v1079 = vpop.f32.mrf.mxu0
  %v1080 = vadd.f32 0.0, %v1079
  %v1081 = vpop.f32.mrf.mxu0
  %v1082 = vadd.f32 0.0, %v1081
  %1083 = vmatmul.bf16.gmra.mxu0 %v619
  %v1084 = vpop.f32.mrf.mxu0
  %v1085 = vadd.f32 0.0, %v1084
  %v1086 = vpop.f32.mrf.mxu0
  %v1087 = vadd.f32 0.0, %v1086
  %1088 = vmatmul.bf16.gmra.mxu0 %v623
  %v1089 = vpop.f32.mrf.mxu0
  %v1090 = vadd.f32 0.0, %v1089
  %v1091 = vpop.f32.mrf.mxu0
  %v1092 = vadd.f32 0.0, %v1091
  %1093 = vmatmul.bf16.gmra.mxu0 %v627
  %v1094 = vpop.f32.mrf.mxu0
  %v1095 = vadd.f32 0.0, %v1094
  %v1096 = vpop.f32.mrf.mxu0
  %v1097 = vadd.f32 0.0, %v1096
  %1098 = vmatmul.bf16.gmra.mxu0 %v631
  %v1099 = vpop.f32.mrf.mxu0
  %v1100 = vadd.f32 0.0, %v1099
  %v1101 = vpop.f32.mrf.mxu0
  %v1102 = vadd.f32 0.0, %v1101
  %1103 = vmatmul.bf16.gmra.mxu0 %v635
  %v1104 = vpop.f32.mrf.mxu0
  %v1105 = vadd.f32 0.0, %v1104
  %v1106 = vpop.f32.mrf.mxu0
  %v1107 = vadd.f32 0.0, %v1106
  %1108 = vmatmul.bf16.gmra.mxu0 %v639
  %v1109 = vpop.f32.mrf.mxu0
  %v1110 = vadd.f32 0.0, %v1109
  %v1111 = vpop.f32.mrf.mxu0
  %v1112 = vadd.f32 0.0, %v1111
  %1113 = vmatmul.bf16.gmra.mxu0 %v643
  %v1114 = vpop.f32.mrf.mxu0
  %v1115 = vadd.f32 0.0, %v1114
  %v1116 = vpop.f32.mrf.mxu0
  %v1117 = vadd.f32 0.0, %v1116
  %1118 = vmatmul.bf16.gmra.mxu0 %v647
  %v1119 = vpop.f32.mrf.mxu0
  %v1120 = vadd.f32 0.0, %v1119
  %v1121 = vpop.f32.mrf.mxu0
  %v1122 = vadd.f32 0.0, %v1121
  %1123 = vmatmul.bf16.gmra.mxu0 %v651
  %v1124 = vpop.f32.mrf.mxu0
  %v1125 = vadd.f32 0.0, %v1124
  %v1126 = vpop.f32.mrf.mxu0
  %v1127 = vadd.f32 0.0, %v1126
  %1128 = vmatmul.bf16.gmra.mxu0 %v655
  %v1129 = vpop.f32.mrf.mxu0
  %v1130 = vadd.f32 0.0, %v1129
  %v1131 = vpop.f32.mrf.mxu0
  %v1132 = vadd.f32 0.0, %v1131
  %1133 = vmatmul.bf16.gmra.mxu0 %v659
  %v1134 = vpop.f32.mrf.mxu0
  %v1135 = vadd.f32 0.0, %v1134
  %v1136 = vpop.f32.mrf.mxu0
  %v1137 = vadd.f32 0.0, %v1136
  %1138 = vmatmul.bf16.gmra.mxu0 %v663
  %v1139 = vpop.f32.mrf.mxu0
  %v1140 = vadd.f32 0.0, %v1139
  %v1141 = vpop.f32.mrf.mxu0
  %v1142 = vadd.f32 0.0, %v1141
  %1143 = vmatmul.bf16.gmra.mxu0 %v667
  %v1144 = vpop.f32.mrf.mxu0
  %v1145 = vadd.f32 0.0, %v1144
  %v1146 = vpop.f32.mrf.mxu0
  %v1147 = vadd.f32 0.0, %v1146
  %1148 = vmatmul.bf16.gmra.mxu0 %v671
  %v1149 = vpop.f32.mrf.mxu0
  %v1150 = vadd.f32 0.0, %v1149
  %v1151 = vpop.f32.mrf.mxu0
  %v1152 = vadd.f32 0.0, %v1151
  %1153 = vmatmul.bf16.gmra.mxu0 %v675
  %v1154 = vpop.f32.mrf.mxu0
  %v1155 = vadd.f32 0.0, %v1154
  %v1156 = vpop.f32.mrf.mxu0
  %v1157 = vadd.f32 0.0, %v1156
  %1158 = vmatmul.bf16.gmra.mxu0 %v679
  %v1159 = vpop.f32.mrf.mxu0
  %v1160 = vadd.f32 0.0, %v1159
  %v1161 = vpop.f32.mrf.mxu0
  %v1162 = vadd.f32 0.0, %v1161
  %1163 = vmatmul.bf16.gmra.mxu0 %v683
  %v1164 = vpop.f32.mrf.mxu0
  %v1165 = vadd.f32 0.0, %v1164
  %v1166 = vpop.f32.mrf.mxu0
  %v1167 = vadd.f32 0.0, %v1166
  %1168 = vmatmul.bf16.gmra.mxu0 %v687
  %v1169 = vpop.f32.mrf.mxu0
  %v1170 = vadd.f32 0.0, %v1169
  %v1171 = vpop.f32.mrf.mxu0
  %v1172 = vadd.f32 0.0, %v1171
  %1173 = vmatmul.bf16.gmra.mxu0 %v691
  %v1174 = vpop.f32.mrf.mxu0
  %v1175 = vadd.f32 0.0, %v1174
  %v1176 = vpop.f32.mrf.mxu0
  %v1177 = vadd.f32 0.0, %v1176
  %1178 = vmatmul.bf16.gmra.mxu0 %v695
  %v1179 = vpop.f32.mrf.mxu0
  %v1180 = vadd.f32 0.0, %v1179
  %v1181 = vpop.f32.mrf.mxu0
  %v1182 = vadd.f32 0.0, %v1181
  %1183 = vmatmul.bf16.gmra.mxu0 %v699
  %v1184 = vpop.f32.mrf.mxu0
  %v1185 = vadd.f32 0.0, %v1184
  %v1186 = vpop.f32.mrf.mxu0
  %v1187 = vadd.f32 0.0, %v1186
  %1188 = vmatmul.bf16.gmra.mxu0 %v703
  %v1189 = vpop.f32.mrf.mxu0
  %v1190 = vadd.f32 0.0, %v1189
  %v1191 = vpop.f32.mrf.mxu0
  %v1192 = vadd.f32 0.0, %v1191
  %1193 = vmatmul.bf16.gmra.mxu0 %v707
  %v1194 = vpop.f32.mrf.mxu0
  %v1195 = vadd.f32 0.0, %v1194
  %v1196 = vpop.f32.mrf.mxu0
  %v1197 = vadd.f32 0.0, %v1196
  %1198 = vmatmul.bf16.gmra.mxu0 %v711
  %v1199 = vpop.f32.mrf.mxu0
  %v1200 = vadd.f32 0.0, %v1199
  %v1201 = vpop.f32.mrf.mxu0
  %v1202 = vadd.f32 0.0, %v1201
  %1203 = vdwg.mxu0
  %1204 = vmatpush.bf16.msra.mxu0 %v986
  %1205 = vmatpush.bf16.msra.mxu0 %v985
  %1206 = vmatpush.bf16.msra.mxu0 %v984
  %1207 = vmatpush.bf16.msra.mxu0 %v983
  %1208 = vmatpush.bf16.msra.mxu0 %v982
  %1209 = vmatpush.bf16.msra.mxu0 %v981
  %1210 = vmatpush.bf16.msra.mxu0 %v980
  %1211 = vmatpush.bf16.msra.mxu0 %v979
  %1212 = vmatmul.bf16.gmra.mxu0 %v588
  %v1213 = vpop.f32.mrf.mxu0
  %v1214 = vadd.f32 %v1045, %v1213
  %v1215 = vpop.f32.mrf.mxu0
  %v1216 = vadd.f32 %v1047, %v1215
  %1217 = vmatmul.bf16.gmra.mxu0 %v592
  %v1218 = vpop.f32.mrf.mxu0
  %v1219 = vadd.f32 %v1050, %v1218
  %v1220 = vpop.f32.mrf.mxu0
  %v1221 = vadd.f32 %v1052, %v1220
  %1222 = vmatmul.bf16.gmra.mxu0 %v596
  %v1223 = vpop.f32.mrf.mxu0
  %v1224 = vadd.f32 %v1055, %v1223
  %v1225 = vpop.f32.mrf.mxu0
  %v1226 = vadd.f32 %v1057, %v1225
  %1227 = vmatmul.bf16.gmra.mxu0 %v600
  %v1228 = vpop.f32.mrf.mxu0
  %v1229 = vadd.f32 %v1060, %v1228
  %v1230 = vpop.f32.mrf.mxu0
  %v1231 = vadd.f32 %v1062, %v1230
  %1232 = vmatmul.bf16.gmra.mxu0 %v604
  %v1233 = vpop.f32.mrf.mxu0
  %v1234 = vadd.f32 %v1065, %v1233
  %v1235 = vpop.f32.mrf.mxu0
  %v1236 = vadd.f32 %v1067, %v1235
  %1237 = vmatmul.bf16.gmra.mxu0 %v608
  %v1238 = vpop.f32.mrf.mxu0
  %v1239 = vadd.f32 %v1070, %v1238
  %v1240 = vpop.f32.mrf.mxu0
  %v1241 = vadd.f32 %v1072, %v1240
  %1242 = vmatmul.bf16.gmra.mxu0 %v612
  %v1243 = vpop.f32.mrf.mxu0
  %v1244 = vadd.f32 %v1075, %v1243
  %v1245 = vpop.f32.mrf.mxu0
  %v1246 = vadd.f32 %v1077, %v1245
  %1247 = vmatmul.bf16.gmra.mxu0 %v616
  %v1248 = vpop.f32.mrf.mxu0
  %v1249 = vadd.f32 %v1080, %v1248
  %v1250 = vpop.f32.mrf.mxu0
  %v1251 = vadd.f32 %v1082, %v1250
  %1252 = vmatmul.bf16.gmra.mxu0 %v620
  %v1253 = vpop.f32.mrf.mxu0
  %v1254 = vadd.f32 %v1085, %v1253
  %v1255 = vpop.f32.mrf.mxu0
  %v1256 = vadd.f32 %v1087, %v1255
  %1257 = vmatmul.bf16.gmra.mxu0 %v624
  %v1258 = vpop.f32.mrf.mxu0
  %v1259 = vadd.f32 %v1090, %v1258
  %v1260 = vpop.f32.mrf.mxu0
  %v1261 = vadd.f32 %v1092, %v1260
  %1262 = vmatmul.bf16.gmra.mxu0 %v628
  %v1263 = vpop.f32.mrf.mxu0
  %v1264 = vadd.f32 %v1095, %v1263
  %v1265 = vpop.f32.mrf.mxu0
  %v1266 = vadd.f32 %v1097, %v1265
  %1267 = vmatmul.bf16.gmra.mxu0 %v632
  %v1268 = vpop.f32.mrf.mxu0
  %v1269 = vadd.f32 %v1100, %v1268
  %v1270 = vpop.f32.mrf.mxu0
  %v1271 = vadd.f32 %v1102, %v1270
  %1272 = vmatmul.bf16.gmra.mxu0 %v636
  %v1273 = vpop.f32.mrf.mxu0
  %v1274 = vadd.f32 %v1105, %v1273
  %v1275 = vpop.f32.mrf.mxu0
  %v1276 = vadd.f32 %v1107, %v1275
  %1277 = vmatmul.bf16.gmra.mxu0 %v640
  %v1278 = vpop.f32.mrf.mxu0
  %v1279 = vadd.f32 %v1110, %v1278
  %v1280 = vpop.f32.mrf.mxu0
  %v1281 = vadd.f32 %v1112, %v1280
  %1282 = vmatmul.bf16.gmra.mxu0 %v644
  %v1283 = vpop.f32.mrf.mxu0
  %v1284 = vadd.f32 %v1115, %v1283
  %v1285 = vpop.f32.mrf.mxu0
  %v1286 = vadd.f32 %v1117, %v1285
  %1287 = vmatmul.bf16.gmra.mxu0 %v648
  %v1288 = vpop.f32.mrf.mxu0
  %v1289 = vadd.f32 %v1120, %v1288
  %v1290 = vpop.f32.mrf.mxu0
  %v1291 = vadd.f32 %v1122, %v1290
  %1292 = vmatmul.bf16.gmra.mxu0 %v652
  %v1293 = vpop.f32.mrf.mxu0
  %v1294 = vadd.f32 %v1125, %v1293
  %v1295 = vpop.f32.mrf.mxu0
  %v1296 = vadd.f32 %v1127, %v1295
  %1297 = vmatmul.bf16.gmra.mxu0 %v656
  %v1298 = vpop.f32.mrf.mxu0
  %v1299 = vadd.f32 %v1130, %v1298
  %v1300 = vpop.f32.mrf.mxu0
  %v1301 = vadd.f32 %v1132, %v1300
  %1302 = vmatmul.bf16.gmra.mxu0 %v660
  %v1303 = vpop.f32.mrf.mxu0
  %v1304 = vadd.f32 %v1135, %v1303
  %v1305 = vpop.f32.mrf.mxu0
  %v1306 = vadd.f32 %v1137, %v1305
  %1307 = vmatmul.bf16.gmra.mxu0 %v664
  %v1308 = vpop.f32.mrf.mxu0
  %v1309 = vadd.f32 %v1140, %v1308
  %v1310 = vpop.f32.mrf.mxu0
  %v1311 = vadd.f32 %v1142, %v1310
  %1312 = vmatmul.bf16.gmra.mxu0 %v668
  %v1313 = vpop.f32.mrf.mxu0
  %v1314 = vadd.f32 %v1145, %v1313
  %v1315 = vpop.f32.mrf.mxu0
  %v1316 = vadd.f32 %v1147, %v1315
  %1317 = vmatmul.bf16.gmra.mxu0 %v672
  %v1318 = vpop.f32.mrf.mxu0
  %v1319 = vadd.f32 %v1150, %v1318
  %v1320 = vpop.f32.mrf.mxu0
  %v1321 = vadd.f32 %v1152, %v1320
  %1322 = vmatmul.bf16.gmra.mxu0 %v676
  %v1323 = vpop.f32.mrf.mxu0
  %v1324 = vadd.f32 %v1155, %v1323
  %v1325 = vpop.f32.mrf.mxu0
  %v1326 = vadd.f32 %v1157, %v1325
  %1327 = vmatmul.bf16.gmra.mxu0 %v680
  %v1328 = vpop.f32.mrf.mxu0
  %v1329 = vadd.f32 %v1160, %v1328
  %v1330 = vpop.f32.mrf.mxu0
  %v1331 = vadd.f32 %v1162, %v1330
  %1332 = vmatmul.bf16.gmra.mxu0 %v684
  %v1333 = vpop.f32.mrf.mxu0
  %v1334 = vadd.f32 %v1165, %v1333
  %v1335 = vpop.f32.mrf.mxu0
  %v1336 = vadd.f32 %v1167, %v1335
  %1337 = vmatmul.bf16.gmra.mxu0 %v688
  %v1338 = vpop.f32.mrf.mxu0
  %v1339 = vadd.f32 %v1170, %v1338
  %v1340 = vpop.f32.mrf.mxu0
  %v1341 = vadd.f32 %v1172, %v1340
  %1342 = vmatmul.bf16.gmra.mxu0 %v692
  %v1343 = vpop.f32.mrf.mxu0
  %v1344 = vadd.f32 %v1175, %v1343
  %v1345 = vpop.f32.mrf.mxu0
  %v1346 = vadd.f32 %v1177, %v1345
  %1347 = vmatmul.bf16.gmra.mxu0 %v696
  %v1348 = vpop.f32.mrf.mxu0
  %v1349 = vadd.f32 %v1180, %v1348
  %v1350 = vpop.f32.mrf.mxu0
  %v1351 = vadd.f32 %v1182, %v1350
  %1352 = vmatmul.bf16.gmra.mxu0 %v700
  %v1353 = vpop.f32.mrf.mxu0
  %v1354 = vadd.f32 %v1185, %v1353
  %v1355 = vpop.f32.mrf.mxu0
  %v1356 = vadd.f32 %v1187, %v1355
  %1357 = vmatmul.bf16.gmra.mxu0 %v704
  %v1358 = vpop.f32.mrf.mxu0
  %v1359 = vadd.f32 %v1190, %v1358
  %v1360 = vpop.f32.mrf.mxu0
  %v1361 = vadd.f32 %v1192, %v1360
  %1362 = vmatmul.bf16.gmra.mxu0 %v708
  %v1363 = vpop.f32.mrf.mxu0
  %v1364 = vadd.f32 %v1195, %v1363
  %v1365 = vpop.f32.mrf.mxu0
  %v1366 = vadd.f32 %v1197, %v1365
  %1367 = vmatmul.bf16.gmra.mxu0 %v712
  %v1368 = vpop.f32.mrf.mxu0
  %v1369 = vadd.f32 %v1200, %v1368
  %v1370 = vpop.f32.mrf.mxu0
  %v1371 = vadd.f32 %v1202, %v1370
  %1372 = vdwg.mxu0
  %1373 = vmatpush.bf16.msra.mxu0 %v994
  %1374 = vmatpush.bf16.msra.mxu0 %v993
  %1375 = vmatpush.bf16.msra.mxu0 %v992
  %1376 = vmatpush.bf16.msra.mxu0 %v991
  %1377 = vmatpush.bf16.msra.mxu0 %v990
  %1378 = vmatpush.bf16.msra.mxu0 %v989
  %1379 = vmatpush.bf16.msra.mxu0 %v988
  %1380 = vmatpush.bf16.msra.mxu0 %v987
  %1381 = vmatmul.bf16.gmra.mxu0 %v589
  %v1382 = vpop.f32.mrf.mxu0
  %v1383 = vadd.f32 %v1214, %v1382
  %v1384 = vpop.f32.mrf.mxu0
  %v1385 = vadd.f32 %v1216, %v1384
  %1386 = vmatmul.bf16.gmra.mxu0 %v593
  %v1387 = vpop.f32.mrf.mxu0
  %v1388 = vadd.f32 %v1219, %v1387
  %v1389 = vpop.f32.mrf.mxu0
  %v1390 = vadd.f32 %v1221, %v1389
  %1391 = vmatmul.bf16.gmra.mxu0 %v597
  %v1392 = vpop.f32.mrf.mxu0
  %v1393 = vadd.f32 %v1224, %v1392
  %v1394 = vpop.f32.mrf.mxu0
  %v1395 = vadd.f32 %v1226, %v1394
  %1396 = vmatmul.bf16.gmra.mxu0 %v601
  %v1397 = vpop.f32.mrf.mxu0
  %v1398 = vadd.f32 %v1229, %v1397
  %v1399 = vpop.f32.mrf.mxu0
  %v1400 = vadd.f32 %v1231, %v1399
  %1401 = vmatmul.bf16.gmra.mxu0 %v605
  %v1402 = vpop.f32.mrf.mxu0
  %v1403 = vadd.f32 %v1234, %v1402
  %v1404 = vpop.f32.mrf.mxu0
  %v1405 = vadd.f32 %v1236, %v1404
  %1406 = vmatmul.bf16.gmra.mxu0 %v609
  %v1407 = vpop.f32.mrf.mxu0
  %v1408 = vadd.f32 %v1239, %v1407
  %v1409 = vpop.f32.mrf.mxu0
  %v1410 = vadd.f32 %v1241, %v1409
  %1411 = vmatmul.bf16.gmra.mxu0 %v613
  %v1412 = vpop.f32.mrf.mxu0
  %v1413 = vadd.f32 %v1244, %v1412
  %v1414 = vpop.f32.mrf.mxu0
  %v1415 = vadd.f32 %v1246, %v1414
  %1416 = vmatmul.bf16.gmra.mxu0 %v617
  %v1417 = vpop.f32.mrf.mxu0
  %v1418 = vadd.f32 %v1249, %v1417
  %v1419 = vpop.f32.mrf.mxu0
  %v1420 = vadd.f32 %v1251, %v1419
  %1421 = vmatmul.bf16.gmra.mxu0 %v621
  %v1422 = vpop.f32.mrf.mxu0
  %v1423 = vadd.f32 %v1254, %v1422
  %v1424 = vpop.f32.mrf.mxu0
  %v1425 = vadd.f32 %v1256, %v1424
  %1426 = vmatmul.bf16.gmra.mxu0 %v625
  %v1427 = vpop.f32.mrf.mxu0
  %v1428 = vadd.f32 %v1259, %v1427
  %v1429 = vpop.f32.mrf.mxu0
  %v1430 = vadd.f32 %v1261, %v1429
  %1431 = vmatmul.bf16.gmra.mxu0 %v629
  %v1432 = vpop.f32.mrf.mxu0
  %v1433 = vadd.f32 %v1264, %v1432
  %v1434 = vpop.f32.mrf.mxu0
  %v1435 = vadd.f32 %v1266, %v1434
  %1436 = vmatmul.bf16.gmra.mxu0 %v633
  %v1437 = vpop.f32.mrf.mxu0
  %v1438 = vadd.f32 %v1269, %v1437
  %v1439 = vpop.f32.mrf.mxu0
  %v1440 = vadd.f32 %v1271, %v1439
  %1441 = vmatmul.bf16.gmra.mxu0 %v637
  %v1442 = vpop.f32.mrf.mxu0
  %v1443 = vadd.f32 %v1274, %v1442
  %v1444 = vpop.f32.mrf.mxu0
  %v1445 = vadd.f32 %v1276, %v1444
  %1446 = vmatmul.bf16.gmra.mxu0 %v641
  %v1447 = vpop.f32.mrf.mxu0
  %v1448 = vadd.f32 %v1279, %v1447
  %v1449 = vpop.f32.mrf.mxu0
  %v1450 = vadd.f32 %v1281, %v1449
  %1451 = vmatmul.bf16.gmra.mxu0 %v645
  %v1452 = vpop.f32.mrf.mxu0
  %v1453 = vadd.f32 %v1284, %v1452
  %v1454 = vpop.f32.mrf.mxu0
  %v1455 = vadd.f32 %v1286, %v1454
  %1456 = vmatmul.bf16.gmra.mxu0 %v649
  %v1457 = vpop.f32.mrf.mxu0
  %v1458 = vadd.f32 %v1289, %v1457
  %v1459 = vpop.f32.mrf.mxu0
  %v1460 = vadd.f32 %v1291, %v1459
  %1461 = vmatmul.bf16.gmra.mxu0 %v653
  %v1462 = vpop.f32.mrf.mxu0
  %v1463 = vadd.f32 %v1294, %v1462
  %v1464 = vpop.f32.mrf.mxu0
  %v1465 = vadd.f32 %v1296, %v1464
  %1466 = vmatmul.bf16.gmra.mxu0 %v657
  %v1467 = vpop.f32.mrf.mxu0
  %v1468 = vadd.f32 %v1299, %v1467
  %v1469 = vpop.f32.mrf.mxu0
  %v1470 = vadd.f32 %v1301, %v1469
  %1471 = vmatmul.bf16.gmra.mxu0 %v661
  %v1472 = vpop.f32.mrf.mxu0
  %v1473 = vadd.f32 %v1304, %v1472
  %v1474 = vpop.f32.mrf.mxu0
  %v1475 = vadd.f32 %v1306, %v1474
  %1476 = vmatmul.bf16.gmra.mxu0 %v665
  %v1477 = vpop.f32.mrf.mxu0
  %v1478 = vadd.f32 %v1309, %v1477
  %v1479 = vpop.f32.mrf.mxu0
  %v1480 = vadd.f32 %v1311, %v1479
  %1481 = vmatmul.bf16.gmra.mxu0 %v669
  %v1482 = vpop.f32.mrf.mxu0
  %v1483 = vadd.f32 %v1314, %v1482
  %v1484 = vpop.f32.mrf.mxu0
  %v1485 = vadd.f32 %v1316, %v1484
  %1486 = vmatmul.bf16.gmra.mxu0 %v673
  %v1487 = vpop.f32.mrf.mxu0
  %v1488 = vadd.f32 %v1319, %v1487
  %v1489 = vpop.f32.mrf.mxu0
  %v1490 = vadd.f32 %v1321, %v1489
  %1491 = vmatmul.bf16.gmra.mxu0 %v677
  %v1492 = vpop.f32.mrf.mxu0
  %v1493 = vadd.f32 %v1324, %v1492
  %v1494 = vpop.f32.mrf.mxu0
  %v1495 = vadd.f32 %v1326, %v1494
  %1496 = vmatmul.bf16.gmra.mxu0 %v681
  %v1497 = vpop.f32.mrf.mxu0
  %v1498 = vadd.f32 %v1329, %v1497
  %v1499 = vpop.f32.mrf.mxu0
  %v1500 = vadd.f32 %v1331, %v1499
  %1501 = vmatmul.bf16.gmra.mxu0 %v685
  %v1502 = vpop.f32.mrf.mxu0
  %v1503 = vadd.f32 %v1334, %v1502
  %v1504 = vpop.f32.mrf.mxu0
  %v1505 = vadd.f32 %v1336, %v1504
  %1506 = vmatmul.bf16.gmra.mxu0 %v689
  %v1507 = vpop.f32.mrf.mxu0
  %v1508 = vadd.f32 %v1339, %v1507
  %v1509 = vpop.f32.mrf.mxu0
  %v1510 = vadd.f32 %v1341, %v1509
  %1511 = vmatmul.bf16.gmra.mxu0 %v693
  %v1512 = vpop.f32.mrf.mxu0
  %v1513 = vadd.f32 %v1344, %v1512
  %v1514 = vpop.f32.mrf.mxu0
  %v1515 = vadd.f32 %v1346, %v1514
  %1516 = vmatmul.bf16.gmra.mxu0 %v697
  %v1517 = vpop.f32.mrf.mxu0
  %v1518 = vadd.f32 %v1349, %v1517
  %v1519 = vpop.f32.mrf.mxu0
  %v1520 = vadd.f32 %v1351, %v1519
  %1521 = vmatmul.bf16.gmra.mxu0 %v701
  %v1522 = vpop.f32.mrf.mxu0
  %v1523 = vadd.f32 %v1354, %v1522
  %v1524 = vpop.f32.mrf.mxu0
  %v1525 = vadd.f32 %v1356, %v1524
  %1526 = vmatmul.bf16.gmra.mxu0 %v705
  %v1527 = vpop.f32.mrf.mxu0
  %v1528 = vadd.f32 %v1359, %v1527
  %v1529 = vpop.f32.mrf.mxu0
  %v1530 = vadd.f32 %v1361, %v1529
  %1531 = vmatmul.bf16.gmra.mxu0 %v709
  %v1532 = vpop.f32.mrf.mxu0
  %v1533 = vadd.f32 %v1364, %v1532
  %v1534 = vpop.f32.mrf.mxu0
  %v1535 = vadd.f32 %v1366, %v1534
  %1536 = vmatmul.bf16.gmra.mxu0 %v713
  %v1537 = vpop.f32.mrf.mxu0
  %v1538 = vadd.f32 %v1369, %v1537
  %v1539 = vpop.f32.mrf.mxu0
  %v1540 = vadd.f32 %v1371, %v1539
  %1541 = vdwg.mxu0
  %1542 = vmatpush.bf16.msra.mxu0 %v1002
  %1543 = vmatpush.bf16.msra.mxu0 %v1001
  %1544 = vmatpush.bf16.msra.mxu0 %v1000
  %1545 = vmatpush.bf16.msra.mxu0 %v999
  %1546 = vmatpush.bf16.msra.mxu0 %v998
  %1547 = vmatpush.bf16.msra.mxu0 %v997
  %1548 = vmatpush.bf16.msra.mxu0 %v996
  %1549 = vmatpush.bf16.msra.mxu0 %v995
  %1550 = vmatmul.bf16.gmra.mxu0 %v590
  %v1551 = vpop.f32.mrf.mxu0
  %v1552 = vadd.f32 %v1383, %v1551
  %v1553 = vpop.f32.mrf.mxu0
  %v1554 = vadd.f32 %v1385, %v1553
  %1555 = vmatmul.bf16.gmra.mxu0 %v594
  %v1556 = vpop.f32.mrf.mxu0
  %v1557 = vadd.f32 %v1388, %v1556
  %v1558 = vpop.f32.mrf.mxu0
  %v1559 = vadd.f32 %v1390, %v1558
  %1560 = vmatmul.bf16.gmra.mxu0 %v598
  %v1561 = vpop.f32.mrf.mxu0
  %v1562 = vadd.f32 %v1393, %v1561
  %v1563 = vpop.f32.mrf.mxu0
  %v1564 = vadd.f32 %v1395, %v1563
  %1565 = vmatmul.bf16.gmra.mxu0 %v602
  %v1566 = vpop.f32.mrf.mxu0
  %v1567 = vadd.f32 %v1398, %v1566
  %v1568 = vpop.f32.mrf.mxu0
  %v1569 = vadd.f32 %v1400, %v1568
  %1570 = vmatmul.bf16.gmra.mxu0 %v606
  %v1571 = vpop.f32.mrf.mxu0
  %v1572 = vadd.f32 %v1403, %v1571
  %v1573 = vpop.f32.mrf.mxu0
  %v1574 = vadd.f32 %v1405, %v1573
  %1575 = vmatmul.bf16.gmra.mxu0 %v610
  %v1576 = vpop.f32.mrf.mxu0
  %v1577 = vadd.f32 %v1408, %v1576
  %v1578 = vpop.f32.mrf.mxu0
  %v1579 = vadd.f32 %v1410, %v1578
  %1580 = vmatmul.bf16.gmra.mxu0 %v614
  %v1581 = vpop.f32.mrf.mxu0
  %v1582 = vadd.f32 %v1413, %v1581
  %v1583 = vpop.f32.mrf.mxu0
  %v1584 = vadd.f32 %v1415, %v1583
  %1585 = vmatmul.bf16.gmra.mxu0 %v618
  %v1586 = vpop.f32.mrf.mxu0
  %v1587 = vadd.f32 %v1418, %v1586
  %v1588 = vpop.f32.mrf.mxu0
  %v1589 = vadd.f32 %v1420, %v1588
  %1590 = vmatmul.bf16.gmra.mxu0 %v622
  %v1591 = vpop.f32.mrf.mxu0
  %v1592 = vadd.f32 %v1423, %v1591
  %v1593 = vpop.f32.mrf.mxu0
  %v1594 = vadd.f32 %v1425, %v1593
  %1595 = vmatmul.bf16.gmra.mxu0 %v626
  %v1596 = vpop.f32.mrf.mxu0
  %v1597 = vadd.f32 %v1428, %v1596
  %v1598 = vpop.f32.mrf.mxu0
  %v1599 = vadd.f32 %v1430, %v1598
  %1600 = vmatmul.bf16.gmra.mxu0 %v630
  %v1601 = vpop.f32.mrf.mxu0
  %v1602 = vadd.f32 %v1433, %v1601
  %v1603 = vpop.f32.mrf.mxu0
  %v1604 = vadd.f32 %v1435, %v1603
  %1605 = vmatmul.bf16.gmra.mxu0 %v634
  %v1606 = vpop.f32.mrf.mxu0
  %v1607 = vadd.f32 %v1438, %v1606
  %v1608 = vpop.f32.mrf.mxu0
  %v1609 = vadd.f32 %v1440, %v1608
  %1610 = vmatmul.bf16.gmra.mxu0 %v638
  %v1611 = vpop.f32.mrf.mxu0
  %v1612 = vadd.f32 %v1443, %v1611
  %v1613 = vpop.f32.mrf.mxu0
  %v1614 = vadd.f32 %v1445, %v1613
  %1615 = vmatmul.bf16.gmra.mxu0 %v642
  %v1616 = vpop.f32.mrf.mxu0
  %v1617 = vadd.f32 %v1448, %v1616
  %v1618 = vpop.f32.mrf.mxu0
  %v1619 = vadd.f32 %v1450, %v1618
  %1620 = vmatmul.bf16.gmra.mxu0 %v646
  %v1621 = vpop.f32.mrf.mxu0
  %v1622 = vadd.f32 %v1453, %v1621
  %v1623 = vpop.f32.mrf.mxu0
  %v1624 = vadd.f32 %v1455, %v1623
  %1625 = vmatmul.bf16.gmra.mxu0 %v650
  %v1626 = vpop.f32.mrf.mxu0
  %v1627 = vadd.f32 %v1458, %v1626
  %v1628 = vpop.f32.mrf.mxu0
  %v1629 = vadd.f32 %v1460, %v1628
  %1630 = vmatmul.bf16.gmra.mxu0 %v654
  %v1631 = vpop.f32.mrf.mxu0
  %v1632 = vadd.f32 %v1463, %v1631
  %v1633 = vpop.f32.mrf.mxu0
  %v1634 = vadd.f32 %v1465, %v1633
  %1635 = vmatmul.bf16.gmra.mxu0 %v658
  %v1636 = vpop.f32.mrf.mxu0
  %v1637 = vadd.f32 %v1468, %v1636
  %v1638 = vpop.f32.mrf.mxu0
  %v1639 = vadd.f32 %v1470, %v1638
  %1640 = vmatmul.bf16.gmra.mxu0 %v662
  %v1641 = vpop.f32.mrf.mxu0
  %v1642 = vadd.f32 %v1473, %v1641
  %v1643 = vpop.f32.mrf.mxu0
  %v1644 = vadd.f32 %v1475, %v1643
  %1645 = vmatmul.bf16.gmra.mxu0 %v666
  %v1646 = vpop.f32.mrf.mxu0
  %v1647 = vadd.f32 %v1478, %v1646
  %v1648 = vpop.f32.mrf.mxu0
  %v1649 = vadd.f32 %v1480, %v1648
  %1650 = vmatmul.bf16.gmra.mxu0 %v670
  %v1651 = vpop.f32.mrf.mxu0
  %v1652 = vadd.f32 %v1483, %v1651
  %v1653 = vpop.f32.mrf.mxu0
  %v1654 = vadd.f32 %v1485, %v1653
  %1655 = vmatmul.bf16.gmra.mxu0 %v674
  %v1656 = vpop.f32.mrf.mxu0
  %v1657 = vadd.f32 %v1488, %v1656
  %v1658 = vpop.f32.mrf.mxu0
  %v1659 = vadd.f32 %v1490, %v1658
  %1660 = vmatmul.bf16.gmra.mxu0 %v678
  %v1661 = vpop.f32.mrf.mxu0
  %v1662 = vadd.f32 %v1493, %v1661
  %v1663 = vpop.f32.mrf.mxu0
  %v1664 = vadd.f32 %v1495, %v1663
  %1665 = vmatmul.bf16.gmra.mxu0 %v682
  %v1666 = vpop.f32.mrf.mxu0
  %v1667 = vadd.f32 %v1498, %v1666
  %v1668 = vpop.f32.mrf.mxu0
  %v1669 = vadd.f32 %v1500, %v1668
  %1670 = vmatmul.bf16.gmra.mxu0 %v686
  %v1671 = vpop.f32.mrf.mxu0
  %v1672 = vadd.f32 %v1503, %v1671
  %v1673 = vpop.f32.mrf.mxu0
  %v1674 = vadd.f32 %v1505, %v1673
  %1675 = vmatmul.bf16.gmra.mxu0 %v690
  %v1676 = vpop.f32.mrf.mxu0
  %v1677 = vadd.f32 %v1508, %v1676
  %v1678 = vpop.f32.mrf.mxu0
  %v1679 = vadd.f32 %v1510, %v1678
  %1680 = vmatmul.bf16.gmra.mxu0 %v694
  %v1681 = vpop.f32.mrf.mxu0
  %v1682 = vadd.f32 %v1513, %v1681
  %v1683 = vpop.f32.mrf.mxu0
  %v1684 = vadd.f32 %v1515, %v1683
  %1685 = vmatmul.bf16.gmra.mxu0 %v698
  %v1686 = vpop.f32.mrf.mxu0
  %v1687 = vadd.f32 %v1518, %v1686
  %v1688 = vpop.f32.mrf.mxu0
  %v1689 = vadd.f32 %v1520, %v1688
  %1690 = vmatmul.bf16.gmra.mxu0 %v702
  %v1691 = vpop.f32.mrf.mxu0
  %v1692 = vadd.f32 %v1523, %v1691
  %v1693 = vpop.f32.mrf.mxu0
  %v1694 = vadd.f32 %v1525, %v1693
  %1695 = vmatmul.bf16.gmra.mxu0 %v706
  %v1696 = vpop.f32.mrf.mxu0
  %v1697 = vadd.f32 %v1528, %v1696
  %v1698 = vpop.f32.mrf.mxu0
  %v1699 = vadd.f32 %v1530, %v1698
  %1700 = vmatmul.bf16.gmra.mxu0 %v710
  %v1701 = vpop.f32.mrf.mxu0
  %v1702 = vadd.f32 %v1533, %v1701
  %v1703 = vpop.f32.mrf.mxu0
  %v1704 = vadd.f32 %v1535, %v1703
  %1705 = vmatmul.bf16.gmra.mxu0 %v714
  %v1706 = vpop.f32.mrf.mxu0
  %v1707 = vadd.f32 %v1538, %v1706
  %v1708 = vpop.f32.mrf.mxu0
  %v1709 = vadd.f32 %v1540, %v1708
  %1710 = vdwg.mxu0
  %vm1711 = vcmp.gt.f32.partialorder %v1552, 0.0
  %vm1712 = vcmp.gt.f32.partialorder %v1554, 0.0
  %vm1713 = vcmp.gt.f32.partialorder %v1557, 0.0
  %vm1714 = vcmp.gt.f32.partialorder %v1559, 0.0
  %vm1715 = vcmp.gt.f32.partialorder %v1562, 0.0
  %vm1716 = vcmp.gt.f32.partialorder %v1564, 0.0
  %vm1717 = vcmp.gt.f32.partialorder %v1567, 0.0
  %vm1718 = vcmp.gt.f32.partialorder %v1569, 0.0
  %vm1719 = vcmp.gt.f32.partialorder %v1572, 0.0
  %vm1720 = vcmp.gt.f32.partialorder %v1574, 0.0
  %vm1721 = vcmp.gt.f32.partialorder %v1577, 0.0
  %vm1722 = vcmp.gt.f32.partialorder %v1579, 0.0
  %vm1723 = vcmp.gt.f32.partialorder %v1582, 0.0
  %vm1724 = vcmp.gt.f32.partialorder %v1584, 0.0
  %vm1725 = vcmp.gt.f32.partialorder %v1587, 0.0
  %vm1726 = vcmp.gt.f32.partialorder %v1589, 0.0
  %vm1727 = vcmp.gt.f32.partialorder %v1592, 0.0
  %vm1728 = vcmp.gt.f32.partialorder %v1594, 0.0
  %vm1729 = vcmp.gt.f32.partialorder %v1597, 0.0
  %vm1730 = vcmp.gt.f32.partialorder %v1599, 0.0
  %vm1731 = vcmp.gt.f32.partialorder %v1602, 0.0
  %vm1732 = vcmp.gt.f32.partialorder %v1604, 0.0
  %vm1733 = vcmp.gt.f32.partialorder %v1607, 0.0
  %vm1734 = vcmp.gt.f32.partialorder %v1609, 0.0
  %vm1735 = vcmp.gt.f32.partialorder %v1612, 0.0
  %vm1736 = vcmp.gt.f32.partialorder %v1614, 0.0
  %vm1737 = vcmp.gt.f32.partialorder %v1617, 0.0
  %vm1738 = vcmp.gt.f32.partialorder %v1619, 0.0
  %vm1739 = vcmp.gt.f32.partialorder %v1622, 0.0
  %vm1740 = vcmp.gt.f32.partialorder %v1624, 0.0
  %vm1741 = vcmp.gt.f32.partialorder %v1627, 0.0
  %vm1742 = vcmp.gt.f32.partialorder %v1629, 0.0
  %vm1743 = vcmp.gt.f32.partialorder %v1632, 0.0
  %vm1744 = vcmp.gt.f32.partialorder %v1634, 0.0
  %vm1745 = vcmp.gt.f32.partialorder %v1637, 0.0
  %vm1746 = vcmp.gt.f32.partialorder %v1639, 0.0
  %vm1747 = vcmp.gt.f32.partialorder %v1642, 0.0
  %vm1748 = vcmp.gt.f32.partialorder %v1644, 0.0
  %vm1749 = vcmp.gt.f32.partialorder %v1647, 0.0
  %vm1750 = vcmp.gt.f32.partialorder %v1649, 0.0
  %vm1751 = vcmp.gt.f32.partialorder %v1652, 0.0
  %vm1752 = vcmp.gt.f32.partialorder %v1654, 0.0
  %vm1753 = vcmp.gt.f32.partialorder %v1657, 0.0
  %vm1754 = vcmp.gt.f32.partialorder %v1659, 0.0
  %vm1755 = vcmp.gt.f32.partialorder %v1662, 0.0
  %vm1756 = vcmp.gt.f32.partialorder %v1664, 0.0
  %vm1757 = vcmp.gt.f32.partialorder %v1667, 0.0
  %vm1758 = vcmp.gt.f32.partialorder %v1669, 0.0
  %vm1759 = vcmp.gt.f32.partialorder %v1672, 0.0
  %vm1760 = vcmp.gt.f32.partialorder %v1674, 0.0
  %vm1761 = vcmp.gt.f32.partialorder %v1677, 0.0
  %vm1762 = vcmp.gt.f32.partialorder %v1679, 0.0
  %vm1763 = vcmp.gt.f32.partialorder %v1682, 0.0
  %vm1764 = vcmp.gt.f32.partialorder %v1684, 0.0
  %vm1765 = vcmp.gt.f32.partialorder %v1687, 0.0
  %vm1766 = vcmp.gt.f32.partialorder %v1689, 0.0
  %vm1767 = vcmp.gt.f32.partialorder %v1692, 0.0
  %vm1768 = vcmp.gt.f32.partialorder %v1694, 0.0
  %vm1769 = vcmp.gt.f32.partialorder %v1697, 0.0
  %vm1770 = vcmp.gt.f32.partialorder %v1699, 0.0
  %vm1771 = vcmp.gt.f32.partialorder %v1702, 0.0
  %vm1772 = vcmp.gt.f32.partialorder %v1704, 0.0
  %vm1773 = vcmp.gt.f32.partialorder %v1707, 0.0
  %vm1774 = vcmp.gt.f32.partialorder %v1709, 0.0
  %v1775 = vmul.f32 %v1552, 0.2
  %v1776 = vmul.f32 %v1554, 0.2
  %v1777 = vmul.f32 %v1557, 0.2
  %v1778 = vmul.f32 %v1559, 0.2
  %v1779 = vmul.f32 %v1562, 0.2
  %v1780 = vmul.f32 %v1564, 0.2
  %v1781 = vmul.f32 %v1567, 0.2
  %v1782 = vmul.f32 %v1569, 0.2
  %v1783 = vmul.f32 %v1572, 0.2
  %v1784 = vmul.f32 %v1574, 0.2
  %v1785 = vmul.f32 %v1577, 0.2
  %v1786 = vmul.f32 %v1579, 0.2
  %v1787 = vmul.f32 %v1582, 0.2
  %v1788 = vmul.f32 %v1584, 0.2
  %v1789 = vmul.f32 %v1587, 0.2
  %v1790 = vmul.f32 %v1589, 0.2
  %v1791 = vmul.f32 %v1592, 0.2
  %v1792 = vmul.f32 %v1594, 0.2
  %v1793 = vmul.f32 %v1597, 0.2
  %v1794 = vmul.f32 %v1599, 0.2
  %v1795 = vmul.f32 %v1602, 0.2
  %v1796 = vmul.f32 %v1604, 0.2
  %v1797 = vmul.f32 %v1607, 0.2
  %v1798 = vmul.f32 %v1609, 0.2
  %v1799 = vmul.f32 %v1612, 0.2
  %v1800 = vmul.f32 %v1614, 0.2
  %v1801 = vmul.f32 %v1617, 0.2
  %v1802 = vmul.f32 %v1619, 0.2
  %v1803 = vmul.f32 %v1622, 0.2
  %v1804 = vmul.f32 %v1624, 0.2
  %v1805 = vmul.f32 %v1627, 0.2
  %v1806 = vmul.f32 %v1629, 0.2
  %v1807 = vmul.f32 %v1632, 0.2
  %v1808 = vmul.f32 %v1634, 0.2
  %v1809 = vmul.f32 %v1637, 0.2
  %v1810 = vmul.f32 %v1639, 0.2
  %v1811 = vmul.f32 %v1642, 0.2
  %v1812 = vmul.f32 %v1644, 0.2
  %v1813 = vmul.f32 %v1647, 0.2
  %v1814 = vmul.f32 %v1649, 0.2
  %v1815 = vmul.f32 %v1652, 0.2
  %v1816 = vmul.f32 %v1654, 0.2
  %v1817 = vmul.f32 %v1657, 0.2
  %v1818 = vmul.f32 %v1659, 0.2
  %v1819 = vmul.f32 %v1662, 0.2
  %v1820 = vmul.f32 %v1664, 0.2
  %v1821 = vmul.f32 %v1667, 0.2
  %v1822 = vmul.f32 %v1669, 0.2
  %v1823 = vmul.f32 %v1672, 0.2
  %v1824 = vmul.f32 %v1674, 0.2
  %v1825 = vmul.f32 %v1677, 0.2
  %v1826 = vmul.f32 %v1679, 0.2
  %v1827 = vmul.f32 %v1682, 0.2
  %v1828 = vmul.f32 %v1684, 0.2
  %v1829 = vmul.f32 %v1687, 0.2
  %v1830 = vmul.f32 %v1689, 0.2
  %v1831 = vmul.f32 %v1692, 0.2
  %v1832 = vmul.f32 %v1694, 0.2
  %v1833 = vmul.f32 %v1697, 0.2
  %v1834 = vmul.f32 %v1699, 0.2
  %v1835 = vmul.f32 %v1702, 0.2
  %v1836 = vmul.f32 %v1704, 0.2
  %v1837 = vmul.f32 %v1707, 0.2
  %v1838 = vmul.f32 %v1709, 0.2
  %v1839 = vsel %vm1711, %v1552, %v1775
  %v1840 = vsel %vm1712, %v1554, %v1776
  %v1841 = vsel %vm1713, %v1557, %v1777
  %v1842 = vsel %vm1714, %v1559, %v1778
  %v1843 = vsel %vm1715, %v1562, %v1779
  %v1844 = vsel %vm1716, %v1564, %v1780
  %v1845 = vsel %vm1717, %v1567, %v1781
  %v1846 = vsel %vm1718, %v1569, %v1782
  %v1847 = vsel %vm1719, %v1572, %v1783
  %v1848 = vsel %vm1720, %v1574, %v1784
  %v1849 = vsel %vm1721, %v1577, %v1785
  %v1850 = vsel %vm1722, %v1579, %v1786
  %v1851 = vsel %vm1723, %v1582, %v1787
  %v1852 = vsel %vm1724, %v1584, %v1788
  %v1853 = vsel %vm1725, %v1587, %v1789
  %v1854 = vsel %vm1726, %v1589, %v1790
  %v1855 = vsel %vm1727, %v1592, %v1791
  %v1856 = vsel %vm1728, %v1594, %v1792
  %v1857 = vsel %vm1729, %v1597, %v1793
  %v1858 = vsel %vm1730, %v1599, %v1794
  %v1859 = vsel %vm1731, %v1602, %v1795
  %v1860 = vsel %vm1732, %v1604, %v1796
  %v1861 = vsel %vm1733, %v1607, %v1797
  %v1862 = vsel %vm1734, %v1609, %v1798
  %v1863 = vsel %vm1735, %v1612, %v1799
  %v1864 = vsel %vm1736, %v1614, %v1800
  %v1865 = vsel %vm1737, %v1617, %v1801
  %v1866 = vsel %vm1738, %v1619, %v1802
  %v1867 = vsel %vm1739, %v1622, %v1803
  %v1868 = vsel %vm1740, %v1624, %v1804
  %v1869 = vsel %vm1741, %v1627, %v1805
  %v1870 = vsel %vm1742, %v1629, %v1806
  %v1871 = vsel %vm1743, %v1632, %v1807
  %v1872 = vsel %vm1744, %v1634, %v1808
  %v1873 = vsel %vm1745, %v1637, %v1809
  %v1874 = vsel %vm1746, %v1639, %v1810
  %v1875 = vsel %vm1747, %v1642, %v1811
  %v1876 = vsel %vm1748, %v1644, %v1812
  %v1877 = vsel %vm1749, %v1647, %v1813
  %v1878 = vsel %vm1750, %v1649, %v1814
  %v1879 = vsel %vm1751, %v1652, %v1815
  %v1880 = vsel %vm1752, %v1654, %v1816
  %v1881 = vsel %vm1753, %v1657, %v1817
  %v1882 = vsel %vm1754, %v1659, %v1818
  %v1883 = vsel %vm1755, %v1662, %v1819
  %v1884 = vsel %vm1756, %v1664, %v1820
  %v1885 = vsel %vm1757, %v1667, %v1821
  %v1886 = vsel %vm1758, %v1669, %v1822
  %v1887 = vsel %vm1759, %v1672, %v1823
  %v1888 = vsel %vm1760, %v1674, %v1824
  %v1889 = vsel %vm1761, %v1677, %v1825
  %v1890 = vsel %vm1762, %v1679, %v1826
  %v1891 = vsel %vm1763, %v1682, %v1827
  %v1892 = vsel %vm1764, %v1684, %v1828
  %v1893 = vsel %vm1765, %v1687, %v1829
  %v1894 = vsel %vm1766, %v1689, %v1830
  %v1895 = vsel %vm1767, %v1692, %v1831
  %v1896 = vsel %vm1768, %v1694, %v1832
  %v1897 = vsel %vm1769, %v1697, %v1833
  %v1898 = vsel %vm1770, %v1699, %v1834
  %v1899 = vsel %vm1771, %v1702, %v1835
  %v1900 = vsel %vm1772, %v1704, %v1836
  %v1901 = vsel %vm1773, %v1707, %v1837
  %v1902 = vsel %vm1774, %v1709, %v1838
  %v1903 = vpack.c.bf16 %v1839, %v1839
  %v1904 = vpack.c.bf16 %v1840, %v1840
  %v1905 = vpack.c.bf16 %v1841, %v1841
  %v1906 = vpack.c.bf16 %v1842, %v1842
  %v1907 = vpack.c.bf16 %v1843, %v1843
  %v1908 = vpack.c.bf16 %v1844, %v1844
  %v1909 = vpack.c.bf16 %v1845, %v1845
  %v1910 = vpack.c.bf16 %v1846, %v1846
  %v1911 = vpack.c.bf16 %v1847, %v1847
  %v1912 = vpack.c.bf16 %v1848, %v1848
  %v1913 = vpack.c.bf16 %v1849, %v1849
  %v1914 = vpack.c.bf16 %v1850, %v1850
  %v1915 = vpack.c.bf16 %v1851, %v1851
  %v1916 = vpack.c.bf16 %v1852, %v1852
  %v1917 = vpack.c.bf16 %v1853, %v1853
  %v1918 = vpack.c.bf16 %v1854, %v1854
  %v1919 = vpack.c.bf16 %v1855, %v1855
  %v1920 = vpack.c.bf16 %v1856, %v1856
  %v1921 = vpack.c.bf16 %v1857, %v1857
  %v1922 = vpack.c.bf16 %v1858, %v1858
  %v1923 = vpack.c.bf16 %v1859, %v1859
  %v1924 = vpack.c.bf16 %v1860, %v1860
  %v1925 = vpack.c.bf16 %v1861, %v1861
  %v1926 = vpack.c.bf16 %v1862, %v1862
  %v1927 = vpack.c.bf16 %v1863, %v1863
  %v1928 = vpack.c.bf16 %v1864, %v1864
  %v1929 = vpack.c.bf16 %v1865, %v1865
  %v1930 = vpack.c.bf16 %v1866, %v1866
  %v1931 = vpack.c.bf16 %v1867, %v1867
  %v1932 = vpack.c.bf16 %v1868, %v1868
  %v1933 = vpack.c.bf16 %v1869, %v1869
  %v1934 = vpack.c.bf16 %v1870, %v1870
  %v1935 = vpack.c.bf16 %v1871, %v1871
  %v1936 = vpack.c.bf16 %v1872, %v1872
  %v1937 = vpack.c.bf16 %v1873, %v1873
  %v1938 = vpack.c.bf16 %v1874, %v1874
  %v1939 = vpack.c.bf16 %v1875, %v1875
  %v1940 = vpack.c.bf16 %v1876, %v1876
  %v1941 = vpack.c.bf16 %v1877, %v1877
  %v1942 = vpack.c.bf16 %v1878, %v1878
  %v1943 = vpack.c.bf16 %v1879, %v1879
  %v1944 = vpack.c.bf16 %v1880, %v1880
  %v1945 = vpack.c.bf16 %v1881, %v1881
  %v1946 = vpack.c.bf16 %v1882, %v1882
  %v1947 = vpack.c.bf16 %v1883, %v1883
  %v1948 = vpack.c.bf16 %v1884, %v1884
  %v1949 = vpack.c.bf16 %v1885, %v1885
  %v1950 = vpack.c.bf16 %v1886, %v1886
  %v1951 = vpack.c.bf16 %v1887, %v1887
  %v1952 = vpack.c.bf16 %v1888, %v1888
  %v1953 = vpack.c.bf16 %v1889, %v1889
  %v1954 = vpack.c.bf16 %v1890, %v1890
  %v1955 = vpack.c.bf16 %v1891, %v1891
  %v1956 = vpack.c.bf16 %v1892, %v1892
  %v1957 = vpack.c.bf16 %v1893, %v1893
  %v1958 = vpack.c.bf16 %v1894, %v1894
  %v1959 = vpack.c.bf16 %v1895, %v1895
  %v1960 = vpack.c.bf16 %v1896, %v1896
  %v1961 = vpack.c.bf16 %v1897, %v1897
  %v1962 = vpack.c.bf16 %v1898, %v1898
  %v1963 = vpack.c.bf16 %v1899, %v1899
  %v1964 = vpack.c.bf16 %v1900, %v1900
  %v1965 = vpack.c.bf16 %v1901, %v1901
  %v1966 = vpack.c.bf16 %v1902, %v1902
  %1967 = vst [vmem:[%s2] sm:$0xf] %v1903
  %1968 = vst [vmem:[%s2 + $0x4] sm:$0xf] %v1904
  %1969 = vst [vmem:[%s2 + $0x8] sm:$0xf] %v1905
  %1970 = vst [vmem:[%s2 + $0xc] sm:$0xf] %v1906
  %1971 = vst [vmem:[%s2 + $0x10] sm:$0xf] %v1907
  %1972 = vst [vmem:[%s2 + $0x14] sm:$0xf] %v1908
  %1973 = vst [vmem:[%s2 + $0x18] sm:$0xf] %v1909
  %1974 = vst [vmem:[%s2 + $0x1c] sm:$0xf] %v1910
  %1975 = vst [vmem:[%s2 + $0x20] sm:$0xf] %v1911
  %1976 = vst [vmem:[%s2 + $0x24] sm:$0xf] %v1912
  %1977 = vst [vmem:[%s2 + $0x28] sm:$0xf] %v1913
  %1978 = vst [vmem:[%s2 + $0x2c] sm:$0xf] %v1914
  %1979 = vst [vmem:[%s2 + $0x30] sm:$0xf] %v1915
  %1980 = vst [vmem:[%s2 + $0x34] sm:$0xf] %v1916
  %1981 = vst [vmem:[%s2 + $0x38] sm:$0xf] %v1917
  %1982 = vst [vmem:[%s2 + $0x3c] sm:$0xf] %v1918
  %1983 = vst [vmem:[%s2 + $0x40] sm:$0xf] %v1919
  %1984 = vst [vmem:[%s2 + $0x44] sm:$0xf] %v1920
  %1985 = vst [vmem:[%s2 + $0x48] sm:$0xf] %v1921
  %1986 = vst [vmem:[%s2 + $0x4c] sm:$0xf] %v1922
  %1987 = vst [vmem:[%s2 + $0x50] sm:$0xf] %v1923
  %1988 = vst [vmem:[%s2 + $0x54] sm:$0xf] %v1924
  %1989 = vst [vmem:[%s2 + $0x58] sm:$0xf] %v1925
  %1990 = vst [vmem:[%s2 + $0x5c] sm:$0xf] %v1926
  %1991 = vst [vmem:[%s2 + $0x60] sm:$0xf] %v1927
  %1992 = vst [vmem:[%s2 + $0x64] sm:$0xf] %v1928
  %1993 = vst [vmem:[%s2 + $0x68] sm:$0xf] %v1929
  %1994 = vst [vmem:[%s2 + $0x6c] sm:$0xf] %v1930
  %1995 = vst [vmem:[%s2 + $0x70] sm:$0xf] %v1931
  %1996 = vst [vmem:[%s2 + $0x74] sm:$0xf] %v1932
  %1997 = vst [vmem:[%s2 + $0x78] sm:$0xf] %v1933
  %1998 = vst [vmem:[%s2 + $0x7c] sm:$0xf] %v1934
  %1999 = vst [vmem:[%s2 + $0x80] sm:$0xf] %v1935
  %2000 = vst [vmem:[%s2 + $0x84] sm:$0xf] %v1936
  %2001 = vst [vmem:[%s2 + $0x88] sm:$0xf] %v1937
  %2002 = vst [vmem:[%s2 + $0x8c] sm:$0xf] %v1938
  %2003 = vst [vmem:[%s2 + $0x90] sm:$0xf] %v1939
  %2004 = vst [vmem:[%s2 + $0x94] sm:$0xf] %v1940
  %2005 = vst [vmem:[%s2 + $0x98] sm:$0xf] %v1941
  %2006 = vst [vmem:[%s2 + $0x9c] sm:$0xf] %v1942
  %2007 = vst [vmem:[%s2 + $0xa0] sm:$0xf] %v1943
  %2008 = vst [vmem:[%s2 + $0xa4] sm:$0xf] %v1944
  %2009 = vst [vmem:[%s2 + $0xa8] sm:$0xf] %v1945
  %2010 = vst [vmem:[%s2 + $0xac] sm:$0xf] %v1946
  %2011 = vst [vmem:[%s2 + $0xb0] sm:$0xf] %v1947
  %2012 = vst [vmem:[%s2 + $0xb4] sm:$0xf] %v1948
  %2013 = vst [vmem:[%s2 + $0xb8] sm:$0xf] %v1949
  %2014 = vst [vmem:[%s2 + $0xbc] sm:$0xf] %v1950
  %2015 = vst [vmem:[%s2 + $0xc0] sm:$0xf] %v1951
  %2016 = vst [vmem:[%s2 + $0xc4] sm:$0xf] %v1952
  %2017 = vst [vmem:[%s2 + $0xc8] sm:$0xf] %v1953
  %2018 = vst [vmem:[%s2 + $0xcc] sm:$0xf] %v1954
  %2019 = vst [vmem:[%s2 + $0xd0] sm:$0xf] %v1955
  %2020 = vst [vmem:[%s2 + $0xd4] sm:$0xf] %v1956
  %2021 = vst [vmem:[%s2 + $0xd8] sm:$0xf] %v1957
  %2022 = vst [vmem:[%s2 + $0xdc] sm:$0xf] %v1958
  %2023 = vst [vmem:[%s2 + $0xe0] sm:$0xf] %v1959
  %2024 = vst [vmem:[%s2 + $0xe4] sm:$0xf] %v1960
  %2025 = vst [vmem:[%s2 + $0xe8] sm:$0xf] %v1961
  %2026 = vst [vmem:[%s2 + $0xec] sm:$0xf] %v1962
  %2027 = vst [vmem:[%s2 + $0xf0] sm:$0xf] %v1963
  %2028 = vst [vmem:[%s2 + $0xf4] sm:$0xf] %v1964
  %2029 = vst [vmem:[%s2 + $0xf8] sm:$0xf] %v1965
  %2030 = vst [vmem:[%s2 + $0xfc] sm:$0xf] %v1966
  // Predicated region
  $region10: #{discriminator_forward.8} parent=0 // pred_check
    _
  $region11: #{discriminator_forward.8} parent=0 // pred_check_branch
    %2032 = sbr.rel (0) target = $region13
  $region12: #{discriminator_forward.8} parent=0 // pred_region
    _
  $region13: #{discriminator_forward.8} parent=0 // pred_fallthru
    _
  // Predicated region
  $region14: #{discriminator_forward.8} parent=0 // pred_check
    _
  $region15: #{discriminator_forward.8} parent=0 // pred_check_branch
    %2034 = sbr.rel (0) target = $region17
  $region16: #{discriminator_forward.8} parent=0 // pred_region
    _
  $region17: #{discriminator_forward.8} parent=0 // pred_fallthru
    _

// kernel: discriminator_forward.10
$region0: #{discriminator_forward.10}
  #allocation0 [shape = 'u32[]', space=smem, size = 0x4, offset = 0x4, fixed_abs, tag = 'smem constant byte address 0x4 - core index']
  #allocation1 [shape = 'u32[72,128]{1,0:T(1,128)}', space=vmem, size = 0x9000, scoped, tag = 'internal scratch']
  %s0 = inlined_call_operand.vmem [shape: bf16[128,128], index: 0, kind: input, shape index: {}]
  %s1 = inlined_call_operand.vmem [shape: f32[1,128], index: 1, kind: input, shape index: {}]
  %s2 = inlined_call_operand.vmem [shape: f32[1,128], index: 2, kind: input, shape index: {}]
  %s3 = inlined_call_operand.vmem [shape: bf16[128,128], index: 3, kind: output, shape index: {}]
  %s4 = sld [smem:[#allocation0]]
  $region22: #{discriminator_forward.10} parent=0
    _
  %s6 = ssub.s32 1, %s4
  %s7 = scalar_select 0, %s6, %s4
  // Predicated region
  $region2: #{discriminator_forward.10} parent=0 // pred_check
    _
  $region3: #{discriminator_forward.10} parent=0 // pred_check_branch
    %9 = sbr.rel (0) target = $region5
  $region4: #{discriminator_forward.10} parent=0 // pred_region
    _
  $region5: #{discriminator_forward.10} parent=0 // pred_fallthru
    _
  // Predicated region
  $region6: #{discriminator_forward.10} parent=0 // pred_check
    _
  $region7: #{discriminator_forward.10} parent=0 // pred_check_branch
    %11 = sbr.rel (0) target = $region9
  $region8: #{discriminator_forward.10} parent=0 // pred_region
    _
  $region9: #{discriminator_forward.10} parent=0 // pred_fallthru
    _
  // Predicated region
  $region10: #{discriminator_forward.10} parent=0 // pred_check
    _
  $region11: #{discriminator_forward.10} parent=0 // pred_check_branch
    %13 = sbr.rel (0) target = $region13
  $region12: #{discriminator_forward.10} parent=0 // pred_region
    _
  $region13: #{discriminator_forward.10} parent=0 // pred_fallthru
    _
  %v14 = vld [vmem:[%s0] sm:$0xf]
  %v15 = vld [vmem:[%s0 + $0x4] sm:$0xf]
  %v16 = vld [vmem:[%s0 + $0x8] sm:$0xf]
  %v17 = vld [vmem:[%s0 + $0xc] sm:$0xf]
  %v18 = vld [vmem:[%s0 + $0x10] sm:$0xf]
  %v19 = vld [vmem:[%s0 + $0x14] sm:$0xf]
  %v20 = vld [vmem:[%s0 + $0x18] sm:$0xf]
  %v21 = vld [vmem:[%s0 + $0x1c] sm:$0xf]
  %v22 = vld [vmem:[%s0 + $0x20] sm:$0xf]
  %v23 = vld [vmem:[%s0 + $0x24] sm:$0xf]
  %v24 = vld [vmem:[%s0 + $0x28] sm:$0xf]
  %v25 = vld [vmem:[%s0 + $0x2c] sm:$0xf]
  %v26 = vld [vmem:[%s0 + $0x30] sm:$0xf]
  %v27 = vld [vmem:[%s0 + $0x34] sm:$0xf]
  %v28 = vld [vmem:[%s0 + $0x38] sm:$0xf]
  %v29 = vld [vmem:[%s0 + $0x3c] sm:$0xf]
  %v30 = vunpack.c.l.bf16 %v14
  %v31 = vunpack.c.l.bf16 %v15
  %v32 = vunpack.c.l.bf16 %v16
  %v33 = vunpack.c.l.bf16 %v17
  %v34 = vunpack.c.l.bf16 %v18
  %v35 = vunpack.c.l.bf16 %v19
  %v36 = vunpack.c.l.bf16 %v20
  %v37 = vunpack.c.l.bf16 %v21
  %v38 = vunpack.c.l.bf16 %v22
  %v39 = vunpack.c.l.bf16 %v23
  %v40 = vunpack.c.l.bf16 %v24
  %v41 = vunpack.c.l.bf16 %v25
  %v42 = vunpack.c.l.bf16 %v26
  %v43 = vunpack.c.l.bf16 %v27
  %v44 = vunpack.c.l.bf16 %v28
  %v45 = vunpack.c.l.bf16 %v29
  %v46 = vld [vmem:[%s1] sm:$0x1]
  %v48 = vperm.slane %v46, 0
  %v50 = vmul.f32 %v30, %v48
  %v51 = vmul.f32 %v31, %v48
  %v52 = vmul.f32 %v32, %v48
  %v53 = vmul.f32 %v33, %v48
  %v54 = vmul.f32 %v34, %v48
  %v55 = vmul.f32 %v35, %v48
  %v56 = vmul.f32 %v36, %v48
  %v57 = vmul.f32 %v37, %v48
  %v58 = vmul.f32 %v38, %v48
  %v59 = vmul.f32 %v39, %v48
  %v60 = vmul.f32 %v40, %v48
  %v61 = vmul.f32 %v41, %v48
  %v62 = vmul.f32 %v42, %v48
  %v63 = vmul.f32 %v43, %v48
  %v64 = vmul.f32 %v44, %v48
  %v65 = vmul.f32 %v45, %v48
  %v66 = vld [vmem:[%s2] sm:$0x1]
  %v68 = vperm.slane %v66, 0
  %v70 = vadd.f32 %v50, %v68
  %v71 = vadd.f32 %v51, %v68
  %v72 = vadd.f32 %v52, %v68
  %v73 = vadd.f32 %v53, %v68
  %v74 = vadd.f32 %v54, %v68
  %v75 = vadd.f32 %v55, %v68
  %v76 = vadd.f32 %v56, %v68
  %v77 = vadd.f32 %v57, %v68
  %v78 = vadd.f32 %v58, %v68
  %v79 = vadd.f32 %v59, %v68
  %v80 = vadd.f32 %v60, %v68
  %v81 = vadd.f32 %v61, %v68
  %v82 = vadd.f32 %v62, %v68
  %v83 = vadd.f32 %v63, %v68
  %v84 = vadd.f32 %v64, %v68
  %v85 = vadd.f32 %v65, %v68
  %vm86 = vcmp.gt.f32.partialorder %v70, 0.0
  %vm87 = vcmp.gt.f32.partialorder %v71, 0.0
  %vm88 = vcmp.gt.f32.partialorder %v72, 0.0
  %vm89 = vcmp.gt.f32.partialorder %v73, 0.0
  %vm90 = vcmp.gt.f32.partialorder %v74, 0.0
  %vm91 = vcmp.gt.f32.partialorder %v75, 0.0
  %vm92 = vcmp.gt.f32.partialorder %v76, 0.0
  %vm93 = vcmp.gt.f32.partialorder %v77, 0.0
  %vm94 = vcmp.gt.f32.partialorder %v78, 0.0
  %vm95 = vcmp.gt.f32.partialorder %v79, 0.0
  %vm96 = vcmp.gt.f32.partialorder %v80, 0.0
  %vm97 = vcmp.gt.f32.partialorder %v81, 0.0
  %vm98 = vcmp.gt.f32.partialorder %v82, 0.0
  %vm99 = vcmp.gt.f32.partialorder %v83, 0.0
  %vm100 = vcmp.gt.f32.partialorder %v84, 0.0
  %vm101 = vcmp.gt.f32.partialorder %v85, 0.0
  %v102 = vmul.f32 %v70, 0.2
  %v103 = vmul.f32 %v71, 0.2
  %v104 = vmul.f32 %v72, 0.2
  %v105 = vmul.f32 %v73, 0.2
  %v106 = vmul.f32 %v74, 0.2
  %v107 = vmul.f32 %v75, 0.2
  %v108 = vmul.f32 %v76, 0.2
  %v109 = vmul.f32 %v77, 0.2
  %v110 = vmul.f32 %v78, 0.2
  %v111 = vmul.f32 %v79, 0.2
  %v112 = vmul.f32 %v80, 0.2
  %v113 = vmul.f32 %v81, 0.2
  %v114 = vmul.f32 %v82, 0.2
  %v115 = vmul.f32 %v83, 0.2
  %v116 = vmul.f32 %v84, 0.2
  %v117 = vmul.f32 %v85, 0.2
  %v118 = vsel %vm86, %v70, %v102
  %v119 = vsel %vm87, %v71, %v103
  %v120 = vsel %vm88, %v72, %v104
  %v121 = vsel %vm89, %v73, %v105
  %v122 = vsel %vm90, %v74, %v106
  %v123 = vsel %vm91, %v75, %v107
  %v124 = vsel %vm92, %v76, %v108
  %v125 = vsel %vm93, %v77, %v109
  %v126 = vsel %vm94, %v78, %v110
  %v127 = vsel %vm95, %v79, %v111
  %v128 = vsel %vm96, %v80, %v112
  %v129 = vsel %vm97, %v81, %v113
  %v130 = vsel %vm98, %v82, %v114
  %v131 = vsel %vm99, %v83, %v115
  %v132 = vsel %vm100, %v84, %v116
  %v133 = vsel %vm101, %v85, %v117
  %v134 = vpack.c.bf16 %v118, %v118
  %v135 = vpack.c.bf16 %v119, %v119
  %v136 = vpack.c.bf16 %v120, %v120
  %v137 = vpack.c.bf16 %v121, %v121
  %v138 = vpack.c.bf16 %v122, %v122
  %v139 = vpack.c.bf16 %v123, %v123
  %v140 = vpack.c.bf16 %v124, %v124
  %v141 = vpack.c.bf16 %v125, %v125
  %v142 = vpack.c.bf16 %v126, %v126
  %v143 = vpack.c.bf16 %v127, %v127
  %v144 = vpack.c.bf16 %v128, %v128
  %v145 = vpack.c.bf16 %v129, %v129
  %v146 = vpack.c.bf16 %v130, %v130
  %v147 = vpack.c.bf16 %v131, %v131
  %v148 = vpack.c.bf16 %v132, %v132
  %v149 = vpack.c.bf16 %v133, %v133
  %150 = vst [vmem:[%s3] sm:$0xf] %v134
  %151 = vst [vmem:[%s3 + $0x4] sm:$0xf] %v135
  %152 = vst [vmem:[%s3 + $0x8] sm:$0xf] %v136
  %153 = vst [vmem:[%s3 + $0xc] sm:$0xf] %v137
  %154 = vst [vmem:[%s3 + $0x10] sm:$0xf] %v138
  %155 = vst [vmem:[%s3 + $0x14] sm:$0xf] %v139
  %156 = vst [vmem:[%s3 + $0x18] sm:$0xf] %v140
  %157 = vst [vmem:[%s3 + $0x1c] sm:$0xf] %v141
  %158 = vst [vmem:[%s3 + $0x20] sm:$0xf] %v142
  %159 = vst [vmem:[%s3 + $0x24] sm:$0xf] %v143
  %160 = vst [vmem:[%s3 + $0x28] sm:$0xf] %v144
  %161 = vst [vmem:[%s3 + $0x2c] sm:$0xf] %v145
  %162 = vst [vmem:[%s3 + $0x30] sm:$0xf] %v146
  %163 = vst [vmem:[%s3 + $0x34] sm:$0xf] %v147
  %164 = vst [vmem:[%s3 + $0x38] sm:$0xf] %v148
  %165 = vst [vmem:[%s3 + $0x3c] sm:$0xf] %v149
  // Predicated region
  $region14: #{discriminator_forward.10} parent=0 // pred_check
    _
  $region15: #{discriminator_forward.10} parent=0 // pred_check_branch
    %167 = sbr.rel (0) target = $region17
  $region16: #{discriminator_forward.10} parent=0 // pred_region
    _
  $region17: #{discriminator_forward.10} parent=0 // pred_fallthru
    _
  // Predicated region
  $region18: #{discriminator_forward.10} parent=0 // pred_check
    _
  $region19: #{discriminator_forward.10} parent=0 // pred_check_branch
    %169 = sbr.rel (0) target = $region21
  $region20: #{discriminator_forward.10} parent=0 // pred_region
    _
  $region21: #{discriminator_forward.10} parent=0 // pred_fallthru
    _

// kernel: discriminator_forward.9
$region0: #{discriminator_forward.9}
  #allocation0 [shape = 'u32[]', space=smem, size = 0x4, offset = 0x4, fixed_abs, tag = 'smem constant byte address 0x4 - core index']
  #allocation1 [shape = 'u32[72,128]{1,0:T(1,128)}', space=vmem, size = 0x9000, scoped, tag = 'internal scratch']
  %s0 = inlined_call_operand.vmem [shape: bf16[128,1024], index: 0, kind: input, shape index: {}]
  %s1 = inlined_call_operand.vmem [shape: bf16[1024,128], index: 1, kind: input, shape index: {}]
  %s2 = inlined_call_operand.vmem [shape: bf16[128,128], index: 2, kind: output, shape index: {0}]
  %s3 = inlined_call_operand.vmem [shape: f32[1,2,128], index: 3, kind: output, shape index: {1}]
  %4 = xla_tuple %s2, %s3
  %s5 = sld [smem:[#allocation0]]
  $region26: #{discriminator_forward.9} parent=0
    _
  %s7 = ssub.s32 1, %s5
  %s8 = scalar_select 0, %s7, %s5
  // Predicated region
  $region2: #{discriminator_forward.9} parent=0 // pred_check
    _
  $region3: #{discriminator_forward.9} parent=0 // pred_check_branch
    %10 = sbr.rel (0) target = $region5
  $region4: #{discriminator_forward.9} parent=0 // pred_region
    _
  $region5: #{discriminator_forward.9} parent=0 // pred_fallthru
    _
  // Predicated region
  $region6: #{discriminator_forward.9} parent=0 // pred_check
    _
  $region7: #{discriminator_forward.9} parent=0 // pred_check_branch
    %12 = sbr.rel (0) target = $region9
  $region8: #{discriminator_forward.9} parent=0 // pred_region
    _
  $region9: #{discriminator_forward.9} parent=0 // pred_fallthru
    _
  %v13 = vld [vmem:[%s0] sm:$0xff]
  %v14 = vld [vmem:[%s0 + $0x8] sm:$0xff]
  %v15 = vld [vmem:[%s0 + $0x10] sm:$0xff]
  %v16 = vld [vmem:[%s0 + $0x18] sm:$0xff]
  %v17 = vld [vmem:[%s0 + $0x20] sm:$0xff]
  %v18 = vld [vmem:[%s0 + $0x28] sm:$0xff]
  %v19 = vld [vmem:[%s0 + $0x30] sm:$0xff]
  %v20 = vld [vmem:[%s0 + $0x38] sm:$0xff]
  %v21 = vld [vmem:[%s0 + $0x40] sm:$0xff]
  %v22 = vld [vmem:[%s0 + $0x48] sm:$0xff]
  %v23 = vld [vmem:[%s0 + $0x50] sm:$0xff]
  %v24 = vld [vmem:[%s0 + $0x58] sm:$0xff]
  %v25 = vld [vmem:[%s0 + $0x60] sm:$0xff]
  %v26 = vld [vmem:[%s0 + $0x68] sm:$0xff]
  %v27 = vld [vmem:[%s0 + $0x70] sm:$0xff]
  %v28 = vld [vmem:[%s0 + $0x78] sm:$0xff]
  %v29 = vld [vmem:[%s0 + $0x80] sm:$0xff]
  %v30 = vld [vmem:[%s0 + $0x88] sm:$0xff]
  %v31 = vld [vmem:[%s0 + $0x90] sm:$0xff]
  %v32 = vld [vmem:[%s0 + $0x98] sm:$0xff]
  %v33 = vld [vmem:[%s0 + $0xa0] sm:$0xff]
  %v34 = vld [vmem:[%s0 + $0xa8] sm:$0xff]
  %v35 = vld [vmem:[%s0 + $0xb0] sm:$0xff]
  %v36 = vld [vmem:[%s0 + $0xb8] sm:$0xff]
  %v37 = vld [vmem:[%s0 + $0xc0] sm:$0xff]
  %v38 = vld [vmem:[%s0 + $0xc8] sm:$0xff]
  %v39 = vld [vmem:[%s0 + $0xd0] sm:$0xff]
  %v40 = vld [vmem:[%s0 + $0xd8] sm:$0xff]
  %v41 = vld [vmem:[%s0 + $0xe0] sm:$0xff]
  %v42 = vld [vmem:[%s0 + $0xe8] sm:$0xff]
  %v43 = vld [vmem:[%s0 + $0xf0] sm:$0xff]
  %v44 = vld [vmem:[%s0 + $0xf8] sm:$0xff]
  %v45 = vld [vmem:[%s0 + $0x100] sm:$0xff]
  %v46 = vld [vmem:[%s0 + $0x108] sm:$0xff]
  %v47 = vld [vmem:[%s0 + $0x110] sm:$0xff]
  %v48 = vld [vmem:[%s0 + $0x118] sm:$0xff]
  %v49 = vld [vmem:[%s0 + $0x120] sm:$0xff]
  %v50 = vld [vmem:[%s0 + $0x128] sm:$0xff]
  %v51 = vld [vmem:[%s0 + $0x130] sm:$0xff]
  %v52 = vld [vmem:[%s0 + $0x138] sm:$0xff]
  %v53 = vld [vmem:[%s0 + $0x140] sm:$0xff]
  %v54 = vld [vmem:[%s0 + $0x148] sm:$0xff]
  %v55 = vld [vmem:[%s0 + $0x150] sm:$0xff]
  %v56 = vld [vmem:[%s0 + $0x158] sm:$0xff]
  %v57 = vld [vmem:[%s0 + $0x160] sm:$0xff]
  %v58 = vld [vmem:[%s0 + $0x168] sm:$0xff]
  %v59 = vld [vmem:[%s0 + $0x170] sm:$0xff]
  %v60 = vld [vmem:[%s0 + $0x178] sm:$0xff]
  %v61 = vld [vmem:[%s0 + $0x180] sm:$0xff]
  %v62 = vld [vmem:[%s0 + $0x188] sm:$0xff]
  %v63 = vld [vmem:[%s0 + $0x190] sm:$0xff]
  %v64 = vld [vmem:[%s0 + $0x198] sm:$0xff]
  %v65 = vld [vmem:[%s0 + $0x1a0] sm:$0xff]
  %v66 = vld [vmem:[%s0 + $0x1a8] sm:$0xff]
  %v67 = vld [vmem:[%s0 + $0x1b0] sm:$0xff]
  %v68 = vld [vmem:[%s0 + $0x1b8] sm:$0xff]
  %v69 = vld [vmem:[%s0 + $0x1c0] sm:$0xff]
  %v70 = vld [vmem:[%s0 + $0x1c8] sm:$0xff]
  %v71 = vld [vmem:[%s0 + $0x1d0] sm:$0xff]
  %v72 = vld [vmem:[%s0 + $0x1d8] sm:$0xff]
  %v73 = vld [vmem:[%s0 + $0x1e0] sm:$0xff]
  %v74 = vld [vmem:[%s0 + $0x1e8] sm:$0xff]
  %v75 = vld [vmem:[%s0 + $0x1f0] sm:$0xff]
  %v76 = vld [vmem:[%s0 + $0x1f8] sm:$0xff]
  %v77 = vld [vmem:[%s1] sm:$0xf]
  %v78 = vld [vmem:[%s1 + $0x4] sm:$0xf]
  %v79 = vld [vmem:[%s1 + $0x8] sm:$0xf]
  %v80 = vld [vmem:[%s1 + $0xc] sm:$0xf]
  %v81 = vld [vmem:[%s1 + $0x10] sm:$0xf]
  %v82 = vld [vmem:[%s1 + $0x14] sm:$0xf]
  %v83 = vld [vmem:[%s1 + $0x18] sm:$0xf]
  %v84 = vld [vmem:[%s1 + $0x1c] sm:$0xf]
  %v85 = vld [vmem:[%s1 + $0x20] sm:$0xf]
  %v86 = vld [vmem:[%s1 + $0x24] sm:$0xf]
  %v87 = vld [vmem:[%s1 + $0x28] sm:$0xf]
  %v88 = vld [vmem:[%s1 + $0x2c] sm:$0xf]
  %v89 = vld [vmem:[%s1 + $0x30] sm:$0xf]
  %v90 = vld [vmem:[%s1 + $0x34] sm:$0xf]
  %v91 = vld [vmem:[%s1 + $0x38] sm:$0xf]
  %v92 = vld [vmem:[%s1 + $0x3c] sm:$0xf]
  %v93 = vld [vmem:[%s1 + $0x40] sm:$0xf]
  %v94 = vld [vmem:[%s1 + $0x44] sm:$0xf]
  %v95 = vld [vmem:[%s1 + $0x48] sm:$0xf]
  %v96 = vld [vmem:[%s1 + $0x4c] sm:$0xf]
  %v97 = vld [vmem:[%s1 + $0x50] sm:$0xf]
  %v98 = vld [vmem:[%s1 + $0x54] sm:$0xf]
  %v99 = vld [vmem:[%s1 + $0x58] sm:$0xf]
  %v100 = vld [vmem:[%s1 + $0x5c] sm:$0xf]
  %v101 = vld [vmem:[%s1 + $0x60] sm:$0xf]
  %v102 = vld [vmem:[%s1 + $0x64] sm:$0xf]
  %v103 = vld [vmem:[%s1 + $0x68] sm:$0xf]
  %v104 = vld [vmem:[%s1 + $0x6c] sm:$0xf]
  %v105 = vld [vmem:[%s1 + $0x70] sm:$0xf]
  %v106 = vld [vmem:[%s1 + $0x74] sm:$0xf]
  %v107 = vld [vmem:[%s1 + $0x78] sm:$0xf]
  %v108 = vld [vmem:[%s1 + $0x7c] sm:$0xf]
  %v109 = vld [vmem:[%s1 + $0x80] sm:$0xf]
  %v110 = vld [vmem:[%s1 + $0x84] sm:$0xf]
  %v111 = vld [vmem:[%s1 + $0x88] sm:$0xf]
  %v112 = vld [vmem:[%s1 + $0x8c] sm:$0xf]
  %v113 = vld [vmem:[%s1 + $0x90] sm:$0xf]
  %v114 = vld [vmem:[%s1 + $0x94] sm:$0xf]
  %v115 = vld [vmem:[%s1 + $0x98] sm:$0xf]
  %v116 = vld [vmem:[%s1 + $0x9c] sm:$0xf]
  %v117 = vld [vmem:[%s1 + $0xa0] sm:$0xf]
  %v118 = vld [vmem:[%s1 + $0xa4] sm:$0xf]
  %v119 = vld [vmem:[%s1 + $0xa8] sm:$0xf]
  %v120 = vld [vmem:[%s1 + $0xac] sm:$0xf]
  %v121 = vld [vmem:[%s1 + $0xb0] sm:$0xf]
  %v122 = vld [vmem:[%s1 + $0xb4] sm:$0xf]
  %v123 = vld [vmem:[%s1 + $0xb8] sm:$0xf]
  %v124 = vld [vmem:[%s1 + $0xbc] sm:$0xf]
  %v125 = vld [vmem:[%s1 + $0xc0] sm:$0xf]
  %v126 = vld [vmem:[%s1 + $0xc4] sm:$0xf]
  %v127 = vld [vmem:[%s1 + $0xc8] sm:$0xf]
  %v128 = vld [vmem:[%s1 + $0xcc] sm:$0xf]
  %v129 = vld [vmem:[%s1 + $0xd0] sm:$0xf]
  %v130 = vld [vmem:[%s1 + $0xd4] sm:$0xf]
  %v131 = vld [vmem:[%s1 + $0xd8] sm:$0xf]
  %v132 = vld [vmem:[%s1 + $0xdc] sm:$0xf]
  %v133 = vld [vmem:[%s1 + $0xe0] sm:$0xf]
  %v134 = vld [vmem:[%s1 + $0xe4] sm:$0xf]
  %v135 = vld [vmem:[%s1 + $0xe8] sm:$0xf]
  %v136 = vld [vmem:[%s1 + $0xec] sm:$0xf]
  %v137 = vld [vmem:[%s1 + $0xf0] sm:$0xf]
  %v138 = vld [vmem:[%s1 + $0xf4] sm:$0xf]
  %v139 = vld [vmem:[%s1 + $0xf8] sm:$0xf]
  %v140 = vld [vmem:[%s1 + $0xfc] sm:$0xf]
  %v141 = vld [vmem:[%s1 + $0x100] sm:$0xf]
  %v142 = vld [vmem:[%s1 + $0x104] sm:$0xf]
  %v143 = vld [vmem:[%s1 + $0x108] sm:$0xf]
  %v144 = vld [vmem:[%s1 + $0x10c] sm:$0xf]
  %v145 = vld [vmem:[%s1 + $0x110] sm:$0xf]
  %v146 = vld [vmem:[%s1 + $0x114] sm:$0xf]
  %v147 = vld [vmem:[%s1 + $0x118] sm:$0xf]
  %v148 = vld [vmem:[%s1 + $0x11c] sm:$0xf]
  %v149 = vld [vmem:[%s1 + $0x120] sm:$0xf]
  %v150 = vld [vmem:[%s1 + $0x124] sm:$0xf]
  %v151 = vld [vmem:[%s1 + $0x128] sm:$0xf]
  %v152 = vld [vmem:[%s1 + $0x12c] sm:$0xf]
  %v153 = vld [vmem:[%s1 + $0x130] sm:$0xf]
  %v154 = vld [vmem:[%s1 + $0x134] sm:$0xf]
  %v155 = vld [vmem:[%s1 + $0x138] sm:$0xf]
  %v156 = vld [vmem:[%s1 + $0x13c] sm:$0xf]
  %v157 = vld [vmem:[%s1 + $0x140] sm:$0xf]
  %v158 = vld [vmem:[%s1 + $0x144] sm:$0xf]
  %v159 = vld [vmem:[%s1 + $0x148] sm:$0xf]
  %v160 = vld [vmem:[%s1 + $0x14c] sm:$0xf]
  %v161 = vld [vmem:[%s1 + $0x150] sm:$0xf]
  %v162 = vld [vmem:[%s1 + $0x154] sm:$0xf]
  %v163 = vld [vmem:[%s1 + $0x158] sm:$0xf]
  %v164 = vld [vmem:[%s1 + $0x15c] sm:$0xf]
  %v165 = vld [vmem:[%s1 + $0x160] sm:$0xf]
  %v166 = vld [vmem:[%s1 + $0x164] sm:$0xf]
  %v167 = vld [vmem:[%s1 + $0x168] sm:$0xf]
  %v168 = vld [vmem:[%s1 + $0x16c] sm:$0xf]
  %v169 = vld [vmem:[%s1 + $0x170] sm:$0xf]
  %v170 = vld [vmem:[%s1 + $0x174] sm:$0xf]
  %v171 = vld [vmem:[%s1 + $0x178] sm:$0xf]
  %v172 = vld [vmem:[%s1 + $0x17c] sm:$0xf]
  %v173 = vld [vmem:[%s1 + $0x180] sm:$0xf]
  %v174 = vld [vmem:[%s1 + $0x184] sm:$0xf]
  %v175 = vld [vmem:[%s1 + $0x188] sm:$0xf]
  %v176 = vld [vmem:[%s1 + $0x18c] sm:$0xf]
  %v177 = vld [vmem:[%s1 + $0x190] sm:$0xf]
  %v178 = vld [vmem:[%s1 + $0x194] sm:$0xf]
  %v179 = vld [vmem:[%s1 + $0x198] sm:$0xf]
  %v180 = vld [vmem:[%s1 + $0x19c] sm:$0xf]
  %v181 = vld [vmem:[%s1 + $0x1a0] sm:$0xf]
  %v182 = vld [vmem:[%s1 + $0x1a4] sm:$0xf]
  %v183 = vld [vmem:[%s1 + $0x1a8] sm:$0xf]
  %v184 = vld [vmem:[%s1 + $0x1ac] sm:$0xf]
  %v185 = vld [vmem:[%s1 + $0x1b0] sm:$0xf]
  %v186 = vld [vmem:[%s1 + $0x1b4] sm:$0xf]
  %v187 = vld [vmem:[%s1 + $0x1b8] sm:$0xf]
  %v188 = vld [vmem:[%s1 + $0x1bc] sm:$0xf]
  %v189 = vld [vmem:[%s1 + $0x1c0] sm:$0xf]
  %v190 = vld [vmem:[%s1 + $0x1c4] sm:$0xf]
  %v191 = vld [vmem:[%s1 + $0x1c8] sm:$0xf]
  %v192 = vld [vmem:[%s1 + $0x1cc] sm:$0xf]
  %v193 = vld [vmem:[%s1 + $0x1d0] sm:$0xf]
  %v194 = vld [vmem:[%s1 + $0x1d4] sm:$0xf]
  %v195 = vld [vmem:[%s1 + $0x1d8] sm:$0xf]
  %v196 = vld [vmem:[%s1 + $0x1dc] sm:$0xf]
  %v197 = vld [vmem:[%s1 + $0x1e0] sm:$0xf]
  %v198 = vld [vmem:[%s1 + $0x1e4] sm:$0xf]
  %v199 = vld [vmem:[%s1 + $0x1e8] sm:$0xf]
  %v200 = vld [vmem:[%s1 + $0x1ec] sm:$0xf]
  %v201 = vld [vmem:[%s1 + $0x1f0] sm:$0xf]
  %v202 = vld [vmem:[%s1 + $0x1f4] sm:$0xf]
  %v203 = vld [vmem:[%s1 + $0x1f8] sm:$0xf]
  %v204 = vld [vmem:[%s1 + $0x1fc] sm:$0xf]
  %v269 = vunpack.c.l.b16 %v13
  %v270 = vunpack.c.h.b16 %v13
  %v271 = vunpack.c.l.b16 %v14
  %v272 = vunpack.c.h.b16 %v14
  %v273 = vunpack.c.l.b16 %v15
  %v274 = vunpack.c.h.b16 %v15
  %v275 = vunpack.c.l.b16 %v16
  %v276 = vunpack.c.h.b16 %v16
  %v277 = vunpack.c.l.b16 %v17
  %v278 = vunpack.c.h.b16 %v17
  %v279 = vunpack.c.l.b16 %v18
  %v280 = vunpack.c.h.b16 %v18
  %v281 = vunpack.c.l.b16 %v19
  %v282 = vunpack.c.h.b16 %v19
  %v283 = vunpack.c.l.b16 %v20
  %v284 = vunpack.c.h.b16 %v20
  %v285 = vunpack.c.l.b16 %v21
  %v286 = vunpack.c.h.b16 %v21
  %v287 = vunpack.c.l.b16 %v22
  %v288 = vunpack.c.h.b16 %v22
  %v289 = vunpack.c.l.b16 %v23
  %v290 = vunpack.c.h.b16 %v23
  %v291 = vunpack.c.l.b16 %v24
  %v292 = vunpack.c.h.b16 %v24
  %v293 = vunpack.c.l.b16 %v25
  %v294 = vunpack.c.h.b16 %v25
  %v295 = vunpack.c.l.b16 %v26
  %v296 = vunpack.c.h.b16 %v26
  %v297 = vunpack.c.l.b16 %v27
  %v298 = vunpack.c.h.b16 %v27
  %v299 = vunpack.c.l.b16 %v28
  %v300 = vunpack.c.h.b16 %v28
  %v301 = vunpack.c.l.b16 %v29
  %v302 = vunpack.c.h.b16 %v29
  %v303 = vunpack.c.l.b16 %v30
  %v304 = vunpack.c.h.b16 %v30
  %v305 = vunpack.c.l.b16 %v31
  %v306 = vunpack.c.h.b16 %v31
  %v307 = vunpack.c.l.b16 %v32
  %v308 = vunpack.c.h.b16 %v32
  %v309 = vunpack.c.l.b16 %v33
  %v310 = vunpack.c.h.b16 %v33
  %v311 = vunpack.c.l.b16 %v34
  %v312 = vunpack.c.h.b16 %v34
  %v313 = vunpack.c.l.b16 %v35
  %v314 = vunpack.c.h.b16 %v35
  %v315 = vunpack.c.l.b16 %v36
  %v316 = vunpack.c.h.b16 %v36
  %v317 = vunpack.c.l.b16 %v37
  %v318 = vunpack.c.h.b16 %v37
  %v319 = vunpack.c.l.b16 %v38
  %v320 = vunpack.c.h.b16 %v38
  %v321 = vunpack.c.l.b16 %v39
  %v322 = vunpack.c.h.b16 %v39
  %v323 = vunpack.c.l.b16 %v40
  %v324 = vunpack.c.h.b16 %v40
  %v325 = vunpack.c.l.b16 %v41
  %v326 = vunpack.c.h.b16 %v41
  %v327 = vunpack.c.l.b16 %v42
  %v328 = vunpack.c.h.b16 %v42
  %v329 = vunpack.c.l.b16 %v43
  %v330 = vunpack.c.h.b16 %v43
  %v331 = vunpack.c.l.b16 %v44
  %v332 = vunpack.c.h.b16 %v44
  %v333 = vunpack.c.l.b16 %v45
  %v334 = vunpack.c.h.b16 %v45
  %v335 = vunpack.c.l.b16 %v46
  %v336 = vunpack.c.h.b16 %v46
  %v337 = vunpack.c.l.b16 %v47
  %v338 = vunpack.c.h.b16 %v47
  %v339 = vunpack.c.l.b16 %v48
  %v340 = vunpack.c.h.b16 %v48
  %v341 = vunpack.c.l.b16 %v49
  %v342 = vunpack.c.h.b16 %v49
  %v343 = vunpack.c.l.b16 %v50
  %v344 = vunpack.c.h.b16 %v50
  %v345 = vunpack.c.l.b16 %v51
  %v346 = vunpack.c.h.b16 %v51
  %v347 = vunpack.c.l.b16 %v52
  %v348 = vunpack.c.h.b16 %v52
  %v349 = vunpack.c.l.b16 %v53
  %v350 = vunpack.c.h.b16 %v53
  %v351 = vunpack.c.l.b16 %v54
  %v352 = vunpack.c.h.b16 %v54
  %v353 = vunpack.c.l.b16 %v55
  %v354 = vunpack.c.h.b16 %v55
  %v355 = vunpack.c.l.b16 %v56
  %v356 = vunpack.c.h.b16 %v56
  %v357 = vunpack.c.l.b16 %v57
  %v358 = vunpack.c.h.b16 %v57
  %v359 = vunpack.c.l.b16 %v58
  %v360 = vunpack.c.h.b16 %v58
  %v361 = vunpack.c.l.b16 %v59
  %v362 = vunpack.c.h.b16 %v59
  %v363 = vunpack.c.l.b16 %v60
  %v364 = vunpack.c.h.b16 %v60
  %v365 = vunpack.c.l.b16 %v61
  %v366 = vunpack.c.h.b16 %v61
  %v367 = vunpack.c.l.b16 %v62
  %v368 = vunpack.c.h.b16 %v62
  %v369 = vunpack.c.l.b16 %v63
  %v370 = vunpack.c.h.b16 %v63
  %v371 = vunpack.c.l.b16 %v64
  %v372 = vunpack.c.h.b16 %v64
  %v373 = vunpack.c.l.b16 %v65
  %v374 = vunpack.c.h.b16 %v65
  %v375 = vunpack.c.l.b16 %v66
  %v376 = vunpack.c.h.b16 %v66
  %v377 = vunpack.c.l.b16 %v67
  %v378 = vunpack.c.h.b16 %v67
  %v379 = vunpack.c.l.b16 %v68
  %v380 = vunpack.c.h.b16 %v68
  %v381 = vunpack.c.l.b16 %v69
  %v382 = vunpack.c.h.b16 %v69
  %v383 = vunpack.c.l.b16 %v70
  %v384 = vunpack.c.h.b16 %v70
  %v385 = vunpack.c.l.b16 %v71
  %v386 = vunpack.c.h.b16 %v71
  %v387 = vunpack.c.l.b16 %v72
  %v388 = vunpack.c.h.b16 %v72
  %v389 = vunpack.c.l.b16 %v73
  %v390 = vunpack.c.h.b16 %v73
  %v391 = vunpack.c.l.b16 %v74
  %v392 = vunpack.c.h.b16 %v74
  %v393 = vunpack.c.l.b16 %v75
  %v394 = vunpack.c.h.b16 %v75
  %v395 = vunpack.c.l.b16 %v76
  %v396 = vunpack.c.h.b16 %v76
  %v397 = vpack.c.b16 %v277, %v269
  %v398 = vpack.c.b16 %v278, %v270
  %v399 = vpack.c.b16 %v279, %v271
  %v400 = vpack.c.b16 %v280, %v272
  %v401 = vpack.c.b16 %v281, %v273
  %v402 = vpack.c.b16 %v282, %v274
  %v403 = vpack.c.b16 %v283, %v275
  %v404 = vpack.c.b16 %v284, %v276
  %v405 = vpack.c.b16 %v293, %v285
  %v406 = vpack.c.b16 %v294, %v286
  %v407 = vpack.c.b16 %v295, %v287
  %v408 = vpack.c.b16 %v296, %v288
  %v409 = vpack.c.b16 %v297, %v289
  %v410 = vpack.c.b16 %v298, %v290
  %v411 = vpack.c.b16 %v299, %v291
  %v412 = vpack.c.b16 %v300, %v292
  %v413 = vpack.c.b16 %v309, %v301
  %v414 = vpack.c.b16 %v310, %v302
  %v415 = vpack.c.b16 %v311, %v303
  %v416 = vpack.c.b16 %v312, %v304
  %v417 = vpack.c.b16 %v313, %v305
  %v418 = vpack.c.b16 %v314, %v306
  %v419 = vpack.c.b16 %v315, %v307
  %v420 = vpack.c.b16 %v316, %v308
  %v421 = vpack.c.b16 %v325, %v317
  %v422 = vpack.c.b16 %v326, %v318
  %v423 = vpack.c.b16 %v327, %v319
  %v424 = vpack.c.b16 %v328, %v320
  %v425 = vpack.c.b16 %v329, %v321
  %v426 = vpack.c.b16 %v330, %v322
  %v427 = vpack.c.b16 %v331, %v323
  %v428 = vpack.c.b16 %v332, %v324
  %v429 = vpack.c.b16 %v341, %v333
  %v430 = vpack.c.b16 %v342, %v334
  %v431 = vpack.c.b16 %v343, %v335
  %v432 = vpack.c.b16 %v344, %v336
  %v433 = vpack.c.b16 %v345, %v337
  %v434 = vpack.c.b16 %v346, %v338
  %v435 = vpack.c.b16 %v347, %v339
  %v436 = vpack.c.b16 %v348, %v340
  %v437 = vpack.c.b16 %v357, %v349
  %v438 = vpack.c.b16 %v358, %v350
  %v439 = vpack.c.b16 %v359, %v351
  %v440 = vpack.c.b16 %v360, %v352
  %v441 = vpack.c.b16 %v361, %v353
  %v442 = vpack.c.b16 %v362, %v354
  %v443 = vpack.c.b16 %v363, %v355
  %v444 = vpack.c.b16 %v364, %v356
  %v445 = vpack.c.b16 %v373, %v365
  %v446 = vpack.c.b16 %v374, %v366
  %v447 = vpack.c.b16 %v375, %v367
  %v448 = vpack.c.b16 %v376, %v368
  %v449 = vpack.c.b16 %v377, %v369
  %v450 = vpack.c.b16 %v378, %v370
  %v451 = vpack.c.b16 %v379, %v371
  %v452 = vpack.c.b16 %v380, %v372
  %v453 = vpack.c.b16 %v389, %v381
  %v454 = vpack.c.b16 %v390, %v382
  %v455 = vpack.c.b16 %v391, %v383
  %v456 = vpack.c.b16 %v392, %v384
  %v457 = vpack.c.b16 %v393, %v385
  %v458 = vpack.c.b16 %v394, %v386
  %v459 = vpack.c.b16 %v395, %v387
  %v460 = vpack.c.b16 %v396, %v388
  %v653 = vunpack.c.l.b16 %v77
  %v654 = vunpack.c.l.b16 %v78
  %v655 = vunpack.c.l.b16 %v79
  %v656 = vunpack.c.l.b16 %v80
  %v657 = vunpack.c.l.b16 %v81
  %v658 = vunpack.c.l.b16 %v82
  %v659 = vunpack.c.l.b16 %v83
  %v660 = vunpack.c.l.b16 %v84
  %v661 = vunpack.c.l.b16 %v85
  %v662 = vunpack.c.l.b16 %v86
  %v663 = vunpack.c.l.b16 %v87
  %v664 = vunpack.c.l.b16 %v88
  %v665 = vunpack.c.l.b16 %v89
  %v666 = vunpack.c.l.b16 %v90
  %v667 = vunpack.c.l.b16 %v91
  %v668 = vunpack.c.l.b16 %v92
  %v669 = vunpack.c.l.b16 %v93
  %v670 = vunpack.c.l.b16 %v94
  %v671 = vunpack.c.l.b16 %v95
  %v672 = vunpack.c.l.b16 %v96
  %v673 = vunpack.c.l.b16 %v97
  %v674 = vunpack.c.l.b16 %v98
  %v675 = vunpack.c.l.b16 %v99
  %v676 = vunpack.c.l.b16 %v100
  %v677 = vunpack.c.l.b16 %v101
  %v678 = vunpack.c.l.b16 %v102
  %v679 = vunpack.c.l.b16 %v103
  %v680 = vunpack.c.l.b16 %v104
  %v681 = vunpack.c.l.b16 %v105
  %v682 = vunpack.c.l.b16 %v106
  %v683 = vunpack.c.l.b16 %v107
  %v684 = vunpack.c.l.b16 %v108
  %v685 = vunpack.c.l.b16 %v109
  %v686 = vunpack.c.l.b16 %v110
  %v687 = vunpack.c.l.b16 %v111
  %v688 = vunpack.c.l.b16 %v112
  %v689 = vunpack.c.l.b16 %v113
  %v690 = vunpack.c.l.b16 %v114
  %v691 = vunpack.c.l.b16 %v115
  %v692 = vunpack.c.l.b16 %v116
  %v693 = vunpack.c.l.b16 %v117
  %v694 = vunpack.c.l.b16 %v118
  %v695 = vunpack.c.l.b16 %v119
  %v696 = vunpack.c.l.b16 %v120
  %v697 = vunpack.c.l.b16 %v121
  %v698 = vunpack.c.l.b16 %v122
  %v699 = vunpack.c.l.b16 %v123
  %v700 = vunpack.c.l.b16 %v124
  %v701 = vunpack.c.l.b16 %v125
  %v702 = vunpack.c.l.b16 %v126
  %v703 = vunpack.c.l.b16 %v127
  %v704 = vunpack.c.l.b16 %v128
  %v705 = vunpack.c.l.b16 %v129
  %v706 = vunpack.c.l.b16 %v130
  %v707 = vunpack.c.l.b16 %v131
  %v708 = vunpack.c.l.b16 %v132
  %v709 = vunpack.c.l.b16 %v133
  %v710 = vunpack.c.l.b16 %v134
  %v711 = vunpack.c.l.b16 %v135
  %v712 = vunpack.c.l.b16 %v136
  %v713 = vunpack.c.l.b16 %v137
  %v714 = vunpack.c.l.b16 %v138
  %v715 = vunpack.c.l.b16 %v139
  %v716 = vunpack.c.l.b16 %v140
  %v717 = vunpack.c.l.b16 %v141
  %v718 = vunpack.c.l.b16 %v142
  %v719 = vunpack.c.l.b16 %v143
  %v720 = vunpack.c.l.b16 %v144
  %v721 = vunpack.c.l.b16 %v145
  %v722 = vunpack.c.l.b16 %v146
  %v723 = vunpack.c.l.b16 %v147
  %v724 = vunpack.c.l.b16 %v148
  %v725 = vunpack.c.l.b16 %v149
  %v726 = vunpack.c.l.b16 %v150
  %v727 = vunpack.c.l.b16 %v151
  %v728 = vunpack.c.l.b16 %v152
  %v729 = vunpack.c.l.b16 %v153
  %v730 = vunpack.c.l.b16 %v154
  %v731 = vunpack.c.l.b16 %v155
  %v732 = vunpack.c.l.b16 %v156
  %v733 = vunpack.c.l.b16 %v157
  %v734 = vunpack.c.l.b16 %v158
  %v735 = vunpack.c.l.b16 %v159
  %v736 = vunpack.c.l.b16 %v160
  %v737 = vunpack.c.l.b16 %v161
  %v738 = vunpack.c.l.b16 %v162
  %v739 = vunpack.c.l.b16 %v163
  %v740 = vunpack.c.l.b16 %v164
  %v741 = vunpack.c.l.b16 %v165
  %v742 = vunpack.c.l.b16 %v166
  %v743 = vunpack.c.l.b16 %v167
  %v744 = vunpack.c.l.b16 %v168
  %v745 = vunpack.c.l.b16 %v169
  %v746 = vunpack.c.l.b16 %v170
  %v747 = vunpack.c.l.b16 %v171
  %v748 = vunpack.c.l.b16 %v172
  %v749 = vunpack.c.l.b16 %v173
  %v750 = vunpack.c.l.b16 %v174
  %v751 = vunpack.c.l.b16 %v175
  %v752 = vunpack.c.l.b16 %v176
  %v753 = vunpack.c.l.b16 %v177
  %v754 = vunpack.c.l.b16 %v178
  %v755 = vunpack.c.l.b16 %v179
  %v756 = vunpack.c.l.b16 %v180
  %v757 = vunpack.c.l.b16 %v181
  %v758 = vunpack.c.l.b16 %v182
  %v759 = vunpack.c.l.b16 %v183
  %v760 = vunpack.c.l.b16 %v184
  %v761 = vunpack.c.l.b16 %v185
  %v762 = vunpack.c.l.b16 %v186
  %v763 = vunpack.c.l.b16 %v187
  %v764 = vunpack.c.l.b16 %v188
  %v765 = vunpack.c.l.b16 %v189
  %v766 = vunpack.c.l.b16 %v190
  %v767 = vunpack.c.l.b16 %v191
  %v768 = vunpack.c.l.b16 %v192
  %v769 = vunpack.c.l.b16 %v193
  %v770 = vunpack.c.l.b16 %v194
  %v771 = vunpack.c.l.b16 %v195
  %v772 = vunpack.c.l.b16 %v196
  %v773 = vunpack.c.l.b16 %v197
  %v774 = vunpack.c.l.b16 %v198
  %v775 = vunpack.c.l.b16 %v199
  %v776 = vunpack.c.l.b16 %v200
  %v777 = vunpack.c.l.b16 %v201
  %v778 = vunpack.c.l.b16 %v202
  %v779 = vunpack.c.l.b16 %v203
  %v780 = vunpack.c.l.b16 %v204
  %v781 = vpack.c.b16 %v654, %v653
  %v782 = vpack.c.b16 %v656, %v655
  %v783 = vpack.c.b16 %v658, %v657
  %v784 = vpack.c.b16 %v660, %v659
  %v785 = vpack.c.b16 %v662, %v661
  %v786 = vpack.c.b16 %v664, %v663
  %v787 = vpack.c.b16 %v666, %v665
  %v788 = vpack.c.b16 %v668, %v667
  %v789 = vpack.c.b16 %v670, %v669
  %v790 = vpack.c.b16 %v672, %v671
  %v791 = vpack.c.b16 %v674, %v673
  %v792 = vpack.c.b16 %v676, %v675
  %v793 = vpack.c.b16 %v678, %v677
  %v794 = vpack.c.b16 %v680, %v679
  %v795 = vpack.c.b16 %v682, %v681
  %v796 = vpack.c.b16 %v684, %v683
  %v797 = vpack.c.b16 %v686, %v685
  %v798 = vpack.c.b16 %v688, %v687
  %v799 = vpack.c.b16 %v690, %v689
  %v800 = vpack.c.b16 %v692, %v691
  %v801 = vpack.c.b16 %v694, %v693
  %v802 = vpack.c.b16 %v696, %v695
  %v803 = vpack.c.b16 %v698, %v697
  %v804 = vpack.c.b16 %v700, %v699
  %v805 = vpack.c.b16 %v702, %v701
  %v806 = vpack.c.b16 %v704, %v703
  %v807 = vpack.c.b16 %v706, %v705
  %v808 = vpack.c.b16 %v708, %v707
  %v809 = vpack.c.b16 %v710, %v709
  %v810 = vpack.c.b16 %v712, %v711
  %v811 = vpack.c.b16 %v714, %v713
  %v812 = vpack.c.b16 %v716, %v715
  %v813 = vpack.c.b16 %v718, %v717
  %v814 = vpack.c.b16 %v720, %v719
  %v815 = vpack.c.b16 %v722, %v721
  %v816 = vpack.c.b16 %v724, %v723
  %v817 = vpack.c.b16 %v726, %v725
  %v818 = vpack.c.b16 %v728, %v727
  %v819 = vpack.c.b16 %v730, %v729
  %v820 = vpack.c.b16 %v732, %v731
  %v821 = vpack.c.b16 %v734, %v733
  %v822 = vpack.c.b16 %v736, %v735
  %v823 = vpack.c.b16 %v738, %v737
  %v824 = vpack.c.b16 %v740, %v739
  %v825 = vpack.c.b16 %v742, %v741
  %v826 = vpack.c.b16 %v744, %v743
  %v827 = vpack.c.b16 %v746, %v745
  %v828 = vpack.c.b16 %v748, %v747
  %v829 = vpack.c.b16 %v750, %v749
  %v830 = vpack.c.b16 %v752, %v751
  %v831 = vpack.c.b16 %v754, %v753
  %v832 = vpack.c.b16 %v756, %v755
  %v833 = vpack.c.b16 %v758, %v757
  %v834 = vpack.c.b16 %v760, %v759
  %v835 = vpack.c.b16 %v762, %v761
  %v836 = vpack.c.b16 %v764, %v763
  %v837 = vpack.c.b16 %v766, %v765
  %v838 = vpack.c.b16 %v768, %v767
  %v839 = vpack.c.b16 %v770, %v769
  %v840 = vpack.c.b16 %v772, %v771
  %v841 = vpack.c.b16 %v774, %v773
  %v842 = vpack.c.b16 %v776, %v775
  %v843 = vpack.c.b16 %v778, %v777
  %v844 = vpack.c.b16 %v780, %v779
  %909 = vmatpush.bf16.msra.mxu0 %v788
  %910 = vmatpush.bf16.msra.mxu0 %v787
  %911 = vmatpush.bf16.msra.mxu0 %v786
  %912 = vmatpush.bf16.msra.mxu0 %v785
  %913 = vmatpush.bf16.msra.mxu0 %v784
  %914 = vmatpush.bf16.msra.mxu0 %v783
  %915 = vmatpush.bf16.msra.mxu0 %v782
  %916 = vmatpush.bf16.msra.mxu0 %v781
  %917 = vmatmul.bf16.gmra.mxu0 %v397
  %v918 = vpop.f32.mrf.mxu0
  %v919 = vadd.f32 0.0, %v918
  %v920 = vpop.f32.mrf.mxu0
  %v921 = vadd.f32 0.0, %v920
  %922 = vmatmul.bf16.gmra.mxu0 %v405
  %v923 = vpop.f32.mrf.mxu0
  %v924 = vadd.f32 0.0, %v923
  %v925 = vpop.f32.mrf.mxu0
  %v926 = vadd.f32 0.0, %v925
  %927 = vmatmul.bf16.gmra.mxu0 %v413
  %v928 = vpop.f32.mrf.mxu0
  %v929 = vadd.f32 0.0, %v928
  %v930 = vpop.f32.mrf.mxu0
  %v931 = vadd.f32 0.0, %v930
  %932 = vmatmul.bf16.gmra.mxu0 %v421
  %v933 = vpop.f32.mrf.mxu0
  %v934 = vadd.f32 0.0, %v933
  %v935 = vpop.f32.mrf.mxu0
  %v936 = vadd.f32 0.0, %v935
  %937 = vmatmul.bf16.gmra.mxu0 %v429
  %v938 = vpop.f32.mrf.mxu0
  %v939 = vadd.f32 0.0, %v938
  %v940 = vpop.f32.mrf.mxu0
  %v941 = vadd.f32 0.0, %v940
  %942 = vmatmul.bf16.gmra.mxu0 %v437
  %v943 = vpop.f32.mrf.mxu0
  %v944 = vadd.f32 0.0, %v943
  %v945 = vpop.f32.mrf.mxu0
  %v946 = vadd.f32 0.0, %v945
  %947 = vmatmul.bf16.gmra.mxu0 %v445
  %v948 = vpop.f32.mrf.mxu0
  %v949 = vadd.f32 0.0, %v948
  %v950 = vpop.f32.mrf.mxu0
  %v951 = vadd.f32 0.0, %v950
  %952 = vmatmul.bf16.gmra.mxu0 %v453
  %v953 = vpop.f32.mrf.mxu0
  %v954 = vadd.f32 0.0, %v953
  %v955 = vpop.f32.mrf.mxu0
  %v956 = vadd.f32 0.0, %v955
  %957 = vdwg.mxu0
  %958 = vmatpush.bf16.msra.mxu0 %v796
  %959 = vmatpush.bf16.msra.mxu0 %v795
  %960 = vmatpush.bf16.msra.mxu0 %v794
  %961 = vmatpush.bf16.msra.mxu0 %v793
  %962 = vmatpush.bf16.msra.mxu0 %v792
  %963 = vmatpush.bf16.msra.mxu0 %v791
  %964 = vmatpush.bf16.msra.mxu0 %v790
  %965 = vmatpush.bf16.msra.mxu0 %v789
  %966 = vmatmul.bf16.gmra.mxu0 %v398
  %v967 = vpop.f32.mrf.mxu0
  %v968 = vadd.f32 %v919, %v967
  %v969 = vpop.f32.mrf.mxu0
  %v970 = vadd.f32 %v921, %v969
  %971 = vmatmul.bf16.gmra.mxu0 %v406
  %v972 = vpop.f32.mrf.mxu0
  %v973 = vadd.f32 %v924, %v972
  %v974 = vpop.f32.mrf.mxu0
  %v975 = vadd.f32 %v926, %v974
  %976 = vmatmul.bf16.gmra.mxu0 %v414
  %v977 = vpop.f32.mrf.mxu0
  %v978 = vadd.f32 %v929, %v977
  %v979 = vpop.f32.mrf.mxu0
  %v980 = vadd.f32 %v931, %v979
  %981 = vmatmul.bf16.gmra.mxu0 %v422
  %v982 = vpop.f32.mrf.mxu0
  %v983 = vadd.f32 %v934, %v982
  %v984 = vpop.f32.mrf.mxu0
  %v985 = vadd.f32 %v936, %v984
  %986 = vmatmul.bf16.gmra.mxu0 %v430
  %v987 = vpop.f32.mrf.mxu0
  %v988 = vadd.f32 %v939, %v987
  %v989 = vpop.f32.mrf.mxu0
  %v990 = vadd.f32 %v941, %v989
  %991 = vmatmul.bf16.gmra.mxu0 %v438
  %v992 = vpop.f32.mrf.mxu0
  %v993 = vadd.f32 %v944, %v992
  %v994 = vpop.f32.mrf.mxu0
  %v995 = vadd.f32 %v946, %v994
  %996 = vmatmul.bf16.gmra.mxu0 %v446
  %v997 = vpop.f32.mrf.mxu0
  %v998 = vadd.f32 %v949, %v997
  %v999 = vpop.f32.mrf.mxu0
  %v1000 = vadd.f32 %v951, %v999
  %1001 = vmatmul.bf16.gmra.mxu0 %v454
  %v1002 = vpop.f32.mrf.mxu0
  %v1003 = vadd.f32 %v954, %v1002
  %v1004 = vpop.f32.mrf.mxu0
  %v1005 = vadd.f32 %v956, %v1004
  %1006 = vdwg.mxu0
  %1007 = vmatpush.bf16.msra.mxu0 %v804
  %1008 = vmatpush.bf16.msra.mxu0 %v803
  %1009 = vmatpush.bf16.msra.mxu0 %v802
  %1010 = vmatpush.bf16.msra.mxu0 %v801
  %1011 = vmatpush.bf16.msra.mxu0 %v800
  %1012 = vmatpush.bf16.msra.mxu0 %v799
  %1013 = vmatpush.bf16.msra.mxu0 %v798
  %1014 = vmatpush.bf16.msra.mxu0 %v797
  %1015 = vmatmul.bf16.gmra.mxu0 %v399
  %v1016 = vpop.f32.mrf.mxu0
  %v1017 = vadd.f32 %v968, %v1016
  %v1018 = vpop.f32.mrf.mxu0
  %v1019 = vadd.f32 %v970, %v1018
  %1020 = vmatmul.bf16.gmra.mxu0 %v407
  %v1021 = vpop.f32.mrf.mxu0
  %v1022 = vadd.f32 %v973, %v1021
  %v1023 = vpop.f32.mrf.mxu0
  %v1024 = vadd.f32 %v975, %v1023
  %1025 = vmatmul.bf16.gmra.mxu0 %v415
  %v1026 = vpop.f32.mrf.mxu0
  %v1027 = vadd.f32 %v978, %v1026
  %v1028 = vpop.f32.mrf.mxu0
  %v1029 = vadd.f32 %v980, %v1028
  %1030 = vmatmul.bf16.gmra.mxu0 %v423
  %v1031 = vpop.f32.mrf.mxu0
  %v1032 = vadd.f32 %v983, %v1031
  %v1033 = vpop.f32.mrf.mxu0
  %v1034 = vadd.f32 %v985, %v1033
  %1035 = vmatmul.bf16.gmra.mxu0 %v431
  %v1036 = vpop.f32.mrf.mxu0
  %v1037 = vadd.f32 %v988, %v1036
  %v1038 = vpop.f32.mrf.mxu0
  %v1039 = vadd.f32 %v990, %v1038
  %1040 = vmatmul.bf16.gmra.mxu0 %v439
  %v1041 = vpop.f32.mrf.mxu0
  %v1042 = vadd.f32 %v993, %v1041
  %v1043 = vpop.f32.mrf.mxu0
  %v1044 = vadd.f32 %v995, %v1043
  %1045 = vmatmul.bf16.gmra.mxu0 %v447
  %v1046 = vpop.f32.mrf.mxu0
  %v1047 = vadd.f32 %v998, %v1046
  %v1048 = vpop.f32.mrf.mxu0
  %v1049 = vadd.f32 %v1000, %v1048
  %1050 = vmatmul.bf16.gmra.mxu0 %v455
  %v1051 = vpop.f32.mrf.mxu0
  %v1052 = vadd.f32 %v1003, %v1051
  %v1053 = vpop.f32.mrf.mxu0
  %v1054 = vadd.f32 %v1005, %v1053
  %1055 = vdwg.mxu0
  %1056 = vmatpush.bf16.msra.mxu0 %v812
  %1057 = vmatpush.bf16.msra.mxu0 %v811
  %1058 = vmatpush.bf16.msra.mxu0 %v810
  %1059 = vmatpush.bf16.msra.mxu0 %v809
  %1060 = vmatpush.bf16.msra.mxu0 %v808
  %1061 = vmatpush.bf16.msra.mxu0 %v807
  %1062 = vmatpush.bf16.msra.mxu0 %v806
  %1063 = vmatpush.bf16.msra.mxu0 %v805
  %1064 = vmatmul.bf16.gmra.mxu0 %v400
  %v1065 = vpop.f32.mrf.mxu0
  %v1066 = vadd.f32 %v1017, %v1065
  %v1067 = vpop.f32.mrf.mxu0
  %v1068 = vadd.f32 %v1019, %v1067
  %1069 = vmatmul.bf16.gmra.mxu0 %v408
  %v1070 = vpop.f32.mrf.mxu0
  %v1071 = vadd.f32 %v1022, %v1070
  %v1072 = vpop.f32.mrf.mxu0
  %v1073 = vadd.f32 %v1024, %v1072
  %1074 = vmatmul.bf16.gmra.mxu0 %v416
  %v1075 = vpop.f32.mrf.mxu0
  %v1076 = vadd.f32 %v1027, %v1075
  %v1077 = vpop.f32.mrf.mxu0
  %v1078 = vadd.f32 %v1029, %v1077
  %1079 = vmatmul.bf16.gmra.mxu0 %v424
  %v1080 = vpop.f32.mrf.mxu0
  %v1081 = vadd.f32 %v1032, %v1080
  %v1082 = vpop.f32.mrf.mxu0
  %v1083 = vadd.f32 %v1034, %v1082
  %1084 = vmatmul.bf16.gmra.mxu0 %v432
  %v1085 = vpop.f32.mrf.mxu0
  %v1086 = vadd.f32 %v1037, %v1085
  %v1087 = vpop.f32.mrf.mxu0
  %v1088 = vadd.f32 %v1039, %v1087
  %1089 = vmatmul.bf16.gmra.mxu0 %v440
  %v1090 = vpop.f32.mrf.mxu0
  %v1091 = vadd.f32 %v1042, %v1090
  %v1092 = vpop.f32.mrf.mxu0
  %v1093 = vadd.f32 %v1044, %v1092
  %1094 = vmatmul.bf16.gmra.mxu0 %v448
  %v1095 = vpop.f32.mrf.mxu0
  %v1096 = vadd.f32 %v1047, %v1095
  %v1097 = vpop.f32.mrf.mxu0
  %v1098 = vadd.f32 %v1049, %v1097
  %1099 = vmatmul.bf16.gmra.mxu0 %v456
  %v1100 = vpop.f32.mrf.mxu0
  %v1101 = vadd.f32 %v1052, %v1100
  %v1102 = vpop.f32.mrf.mxu0
  %v1103 = vadd.f32 %v1054, %v1102
  %1104 = vdwg.mxu0
  %1105 = vmatpush.bf16.msra.mxu0 %v820
  %1106 = vmatpush.bf16.msra.mxu0 %v819
  %1107 = vmatpush.bf16.msra.mxu0 %v818
  %1108 = vmatpush.bf16.msra.mxu0 %v817
  %1109 = vmatpush.bf16.msra.mxu0 %v816
  %1110 = vmatpush.bf16.msra.mxu0 %v815
  %1111 = vmatpush.bf16.msra.mxu0 %v814
  %1112 = vmatpush.bf16.msra.mxu0 %v813
  %1113 = vmatmul.bf16.gmra.mxu0 %v401
  %v1114 = vpop.f32.mrf.mxu0
  %v1115 = vadd.f32 %v1066, %v1114
  %v1116 = vpop.f32.mrf.mxu0
  %v1117 = vadd.f32 %v1068, %v1116
  %1118 = vmatmul.bf16.gmra.mxu0 %v409
  %v1119 = vpop.f32.mrf.mxu0
  %v1120 = vadd.f32 %v1071, %v1119
  %v1121 = vpop.f32.mrf.mxu0
  %v1122 = vadd.f32 %v1073, %v1121
  %1123 = vmatmul.bf16.gmra.mxu0 %v417
  %v1124 = vpop.f32.mrf.mxu0
  %v1125 = vadd.f32 %v1076, %v1124
  %v1126 = vpop.f32.mrf.mxu0
  %v1127 = vadd.f32 %v1078, %v1126
  %1128 = vmatmul.bf16.gmra.mxu0 %v425
  %v1129 = vpop.f32.mrf.mxu0
  %v1130 = vadd.f32 %v1081, %v1129
  %v1131 = vpop.f32.mrf.mxu0
  %v1132 = vadd.f32 %v1083, %v1131
  %1133 = vmatmul.bf16.gmra.mxu0 %v433
  %v1134 = vpop.f32.mrf.mxu0
  %v1135 = vadd.f32 %v1086, %v1134
  %v1136 = vpop.f32.mrf.mxu0
  %v1137 = vadd.f32 %v1088, %v1136
  %1138 = vmatmul.bf16.gmra.mxu0 %v441
  %v1139 = vpop.f32.mrf.mxu0
  %v1140 = vadd.f32 %v1091, %v1139
  %v1141 = vpop.f32.mrf.mxu0
  %v1142 = vadd.f32 %v1093, %v1141
  %1143 = vmatmul.bf16.gmra.mxu0 %v449
  %v1144 = vpop.f32.mrf.mxu0
  %v1145 = vadd.f32 %v1096, %v1144
  %v1146 = vpop.f32.mrf.mxu0
  %v1147 = vadd.f32 %v1098, %v1146
  %1148 = vmatmul.bf16.gmra.mxu0 %v457
  %v1149 = vpop.f32.mrf.mxu0
  %v1150 = vadd.f32 %v1101, %v1149
  %v1151 = vpop.f32.mrf.mxu0
  %v1152 = vadd.f32 %v1103, %v1151
  %1153 = vdwg.mxu0
  %1154 = vmatpush.bf16.msra.mxu0 %v828
  %1155 = vmatpush.bf16.msra.mxu0 %v827
  %1156 = vmatpush.bf16.msra.mxu0 %v826
  %1157 = vmatpush.bf16.msra.mxu0 %v825
  %1158 = vmatpush.bf16.msra.mxu0 %v824
  %1159 = vmatpush.bf16.msra.mxu0 %v823
  %1160 = vmatpush.bf16.msra.mxu0 %v822
  %1161 = vmatpush.bf16.msra.mxu0 %v821
  %1162 = vmatmul.bf16.gmra.mxu0 %v402
  %v1163 = vpop.f32.mrf.mxu0
  %v1164 = vadd.f32 %v1115, %v1163
  %v1165 = vpop.f32.mrf.mxu0
  %v1166 = vadd.f32 %v1117, %v1165
  %1167 = vmatmul.bf16.gmra.mxu0 %v410
  %v1168 = vpop.f32.mrf.mxu0
  %v1169 = vadd.f32 %v1120, %v1168
  %v1170 = vpop.f32.mrf.mxu0
  %v1171 = vadd.f32 %v1122, %v1170
  %1172 = vmatmul.bf16.gmra.mxu0 %v418
  %v1173 = vpop.f32.mrf.mxu0
  %v1174 = vadd.f32 %v1125, %v1173
  %v1175 = vpop.f32.mrf.mxu0
  %v1176 = vadd.f32 %v1127, %v1175
  %1177 = vmatmul.bf16.gmra.mxu0 %v426
  %v1178 = vpop.f32.mrf.mxu0
  %v1179 = vadd.f32 %v1130, %v1178
  %v1180 = vpop.f32.mrf.mxu0
  %v1181 = vadd.f32 %v1132, %v1180
  %1182 = vmatmul.bf16.gmra.mxu0 %v434
  %v1183 = vpop.f32.mrf.mxu0
  %v1184 = vadd.f32 %v1135, %v1183
  %v1185 = vpop.f32.mrf.mxu0
  %v1186 = vadd.f32 %v1137, %v1185
  %1187 = vmatmul.bf16.gmra.mxu0 %v442
  %v1188 = vpop.f32.mrf.mxu0
  %v1189 = vadd.f32 %v1140, %v1188
  %v1190 = vpop.f32.mrf.mxu0
  %v1191 = vadd.f32 %v1142, %v1190
  %1192 = vmatmul.bf16.gmra.mxu0 %v450
  %v1193 = vpop.f32.mrf.mxu0
  %v1194 = vadd.f32 %v1145, %v1193
  %v1195 = vpop.f32.mrf.mxu0
  %v1196 = vadd.f32 %v1147, %v1195
  %1197 = vmatmul.bf16.gmra.mxu0 %v458
  %v1198 = vpop.f32.mrf.mxu0
  %v1199 = vadd.f32 %v1150, %v1198
  %v1200 = vpop.f32.mrf.mxu0
  %v1201 = vadd.f32 %v1152, %v1200
  %1202 = vdwg.mxu0
  %1203 = vmatpush.bf16.msra.mxu0 %v836
  %1204 = vmatpush.bf16.msra.mxu0 %v835
  %1205 = vmatpush.bf16.msra.mxu0 %v834
  %1206 = vmatpush.bf16.msra.mxu0 %v833
  %1207 = vmatpush.bf16.msra.mxu0 %v832
  %1208 = vmatpush.bf16.msra.mxu0 %v831
  %1209 = vmatpush.bf16.msra.mxu0 %v830
  %1210 = vmatpush.bf16.msra.mxu0 %v829
  %1211 = vmatmul.bf16.gmra.mxu0 %v403
  %v1212 = vpop.f32.mrf.mxu0
  %v1213 = vadd.f32 %v1164, %v1212
  %v1214 = vpop.f32.mrf.mxu0
  %v1215 = vadd.f32 %v1166, %v1214
  %1216 = vmatmul.bf16.gmra.mxu0 %v411
  %v1217 = vpop.f32.mrf.mxu0
  %v1218 = vadd.f32 %v1169, %v1217
  %v1219 = vpop.f32.mrf.mxu0
  %v1220 = vadd.f32 %v1171, %v1219
  %1221 = vmatmul.bf16.gmra.mxu0 %v419
  %v1222 = vpop.f32.mrf.mxu0
  %v1223 = vadd.f32 %v1174, %v1222
  %v1224 = vpop.f32.mrf.mxu0
  %v1225 = vadd.f32 %v1176, %v1224
  %1226 = vmatmul.bf16.gmra.mxu0 %v427
  %v1227 = vpop.f32.mrf.mxu0
  %v1228 = vadd.f32 %v1179, %v1227
  %v1229 = vpop.f32.mrf.mxu0
  %v1230 = vadd.f32 %v1181, %v1229
  %1231 = vmatmul.bf16.gmra.mxu0 %v435
  %v1232 = vpop.f32.mrf.mxu0
  %v1233 = vadd.f32 %v1184, %v1232
  %v1234 = vpop.f32.mrf.mxu0
  %v1235 = vadd.f32 %v1186, %v1234
  %1236 = vmatmul.bf16.gmra.mxu0 %v443
  %v1237 = vpop.f32.mrf.mxu0
  %v1238 = vadd.f32 %v1189, %v1237
  %v1239 = vpop.f32.mrf.mxu0
  %v1240 = vadd.f32 %v1191, %v1239
  %1241 = vmatmul.bf16.gmra.mxu0 %v451
  %v1242 = vpop.f32.mrf.mxu0
  %v1243 = vadd.f32 %v1194, %v1242
  %v1244 = vpop.f32.mrf.mxu0
  %v1245 = vadd.f32 %v1196, %v1244
  %1246 = vmatmul.bf16.gmra.mxu0 %v459
  %v1247 = vpop.f32.mrf.mxu0
  %v1248 = vadd.f32 %v1199, %v1247
  %v1249 = vpop.f32.mrf.mxu0
  %v1250 = vadd.f32 %v1201, %v1249
  %1251 = vdwg.mxu0
  %1252 = vmatpush.bf16.msra.mxu0 %v844
  %1253 = vmatpush.bf16.msra.mxu0 %v843
  %1254 = vmatpush.bf16.msra.mxu0 %v842
  %1255 = vmatpush.bf16.msra.mxu0 %v841
  %1256 = vmatpush.bf16.msra.mxu0 %v840
  %1257 = vmatpush.bf16.msra.mxu0 %v839
  %1258 = vmatpush.bf16.msra.mxu0 %v838
  %1259 = vmatpush.bf16.msra.mxu0 %v837
  %1260 = vmatmul.bf16.gmra.mxu0 %v404
  %v1261 = vpop.f32.mrf.mxu0
  %v1262 = vadd.f32 %v1213, %v1261
  %v1263 = vpop.f32.mrf.mxu0
  %v1264 = vadd.f32 %v1215, %v1263
  %1265 = vmatmul.bf16.gmra.mxu0 %v412
  %v1266 = vpop.f32.mrf.mxu0
  %v1267 = vadd.f32 %v1218, %v1266
  %v1268 = vpop.f32.mrf.mxu0
  %v1269 = vadd.f32 %v1220, %v1268
  %1270 = vmatmul.bf16.gmra.mxu0 %v420
  %v1271 = vpop.f32.mrf.mxu0
  %v1272 = vadd.f32 %v1223, %v1271
  %v1273 = vpop.f32.mrf.mxu0
  %v1274 = vadd.f32 %v1225, %v1273
  %1275 = vmatmul.bf16.gmra.mxu0 %v428
  %v1276 = vpop.f32.mrf.mxu0
  %v1277 = vadd.f32 %v1228, %v1276
  %v1278 = vpop.f32.mrf.mxu0
  %v1279 = vadd.f32 %v1230, %v1278
  %1280 = vmatmul.bf16.gmra.mxu0 %v436
  %v1281 = vpop.f32.mrf.mxu0
  %v1282 = vadd.f32 %v1233, %v1281
  %v1283 = vpop.f32.mrf.mxu0
  %v1284 = vadd.f32 %v1235, %v1283
  %1285 = vmatmul.bf16.gmra.mxu0 %v444
  %v1286 = vpop.f32.mrf.mxu0
  %v1287 = vadd.f32 %v1238, %v1286
  %v1288 = vpop.f32.mrf.mxu0
  %v1289 = vadd.f32 %v1240, %v1288
  %1290 = vmatmul.bf16.gmra.mxu0 %v452
  %v1291 = vpop.f32.mrf.mxu0
  %v1292 = vadd.f32 %v1243, %v1291
  %v1293 = vpop.f32.mrf.mxu0
  %v1294 = vadd.f32 %v1245, %v1293
  %1295 = vmatmul.bf16.gmra.mxu0 %v460
  %v1296 = vpop.f32.mrf.mxu0
  %v1297 = vadd.f32 %v1248, %v1296
  %v1298 = vpop.f32.mrf.mxu0
  %v1299 = vadd.f32 %v1250, %v1298
  %1300 = vdwg.mxu0
  %v1301 = vadd.f32 %v1262, %v1264
  %v1302 = vadd.f32 %v1301, %v1267
  %v1303 = vadd.f32 %v1302, %v1269
  %v1304 = vadd.f32 %v1303, %v1272
  %v1305 = vadd.f32 %v1304, %v1274
  %v1306 = vadd.f32 %v1305, %v1277
  %v1307 = vadd.f32 %v1306, %v1279
  %v1308 = vadd.f32 %v1307, %v1282
  %v1309 = vadd.f32 %v1308, %v1284
  %v1310 = vadd.f32 %v1309, %v1287
  %v1311 = vadd.f32 %v1310, %v1289
  %v1312 = vadd.f32 %v1311, %v1292
  %v1313 = vadd.f32 %v1312, %v1294
  %v1314 = vadd.f32 %v1313, %v1297
  %v1315 = vadd.f32 %v1314, %v1299
  %v1316 = vrot.slane %v1315, 4
  %v1317 = vadd.f32 %v1315, %v1316
  %v1318 = vrot.slane %v1317, 2
  %v1319 = vadd.f32 %v1317, %v1318
  %v1320 = vrot.slane %v1319, 1
  %v1321 = vadd.f32 %v1319, %v1320
  %1322 = vst [vmem:[%s3] sm:$0x1] %v1321
  %v1323 = vmul.f32 %v1262, %v1262
  %v1324 = vmul.f32 %v1264, %v1264
  %v1325 = vmul.f32 %v1267, %v1267
  %v1326 = vmul.f32 %v1269, %v1269
  %v1327 = vmul.f32 %v1272, %v1272
  %v1328 = vmul.f32 %v1274, %v1274
  %v1329 = vmul.f32 %v1277, %v1277
  %v1330 = vmul.f32 %v1279, %v1279
  %v1331 = vmul.f32 %v1282, %v1282
  %v1332 = vmul.f32 %v1284, %v1284
  %v1333 = vmul.f32 %v1287, %v1287
  %v1334 = vmul.f32 %v1289, %v1289
  %v1335 = vmul.f32 %v1292, %v1292
  %v1336 = vmul.f32 %v1294, %v1294
  %v1337 = vmul.f32 %v1297, %v1297
  %v1338 = vmul.f32 %v1299, %v1299
  %v1339 = vadd.f32 %v1323, %v1324
  %v1340 = vadd.f32 %v1339, %v1325
  %v1341 = vadd.f32 %v1340, %v1326
  %v1342 = vadd.f32 %v1341, %v1327
  %v1343 = vadd.f32 %v1342, %v1328
  %v1344 = vadd.f32 %v1343, %v1329
  %v1345 = vadd.f32 %v1344, %v1330
  %v1346 = vadd.f32 %v1345, %v1331
  %v1347 = vadd.f32 %v1346, %v1332
  %v1348 = vadd.f32 %v1347, %v1333
  %v1349 = vadd.f32 %v1348, %v1334
  %v1350 = vadd.f32 %v1349, %v1335
  %v1351 = vadd.f32 %v1350, %v1336
  %v1352 = vadd.f32 %v1351, %v1337
  %v1353 = vadd.f32 %v1352, %v1338
  %v1354 = vrot.slane %v1353, 4
  %v1355 = vadd.f32 %v1353, %v1354
  %v1356 = vrot.slane %v1355, 2
  %v1357 = vadd.f32 %v1355, %v1356
  %v1358 = vrot.slane %v1357, 1
  %v1359 = vadd.f32 %v1357, %v1358
  %1360 = vst [vmem:[%s3 + $0x1] sm:$0x1] %v1359
  %v1361 = vpack.c.bf16 %v1262, %v1262
  %v1362 = vpack.c.bf16 %v1264, %v1264
  %v1363 = vpack.c.bf16 %v1267, %v1267
  %v1364 = vpack.c.bf16 %v1269, %v1269
  %v1365 = vpack.c.bf16 %v1272, %v1272
  %v1366 = vpack.c.bf16 %v1274, %v1274
  %v1367 = vpack.c.bf16 %v1277, %v1277
  %v1368 = vpack.c.bf16 %v1279, %v1279
  %v1369 = vpack.c.bf16 %v1282, %v1282
  %v1370 = vpack.c.bf16 %v1284, %v1284
  %v1371 = vpack.c.bf16 %v1287, %v1287
  %v1372 = vpack.c.bf16 %v1289, %v1289
  %v1373 = vpack.c.bf16 %v1292, %v1292
  %v1374 = vpack.c.bf16 %v1294, %v1294
  %v1375 = vpack.c.bf16 %v1297, %v1297
  %v1376 = vpack.c.bf16 %v1299, %v1299
  %1377 = vst [vmem:[%s2] sm:$0xf] %v1361
  %1378 = vst [vmem:[%s2 + $0x4] sm:$0xf] %v1362
  %1379 = vst [vmem:[%s2 + $0x8] sm:$0xf] %v1363
  %1380 = vst [vmem:[%s2 + $0xc] sm:$0xf] %v1364
  %1381 = vst [vmem:[%s2 + $0x10] sm:$0xf] %v1365
  %1382 = vst [vmem:[%s2 + $0x14] sm:$0xf] %v1366
  %1383 = vst [vmem:[%s2 + $0x18] sm:$0xf] %v1367
  %1384 = vst [vmem:[%s2 + $0x1c] sm:$0xf] %v1368
  %1385 = vst [vmem:[%s2 + $0x20] sm:$0xf] %v1369
  %1386 = vst [vmem:[%s2 + $0x24] sm:$0xf] %v1370
  %1387 = vst [vmem:[%s2 + $0x28] sm:$0xf] %v1371
  %1388 = vst [vmem:[%s2 + $0x2c] sm:$0xf] %v1372
  %1389 = vst [vmem:[%s2 + $0x30] sm:$0xf] %v1373
  %1390 = vst [vmem:[%s2 + $0x34] sm:$0xf] %v1374
  %1391 = vst [vmem:[%s2 + $0x38] sm:$0xf] %v1375
  %1392 = vst [vmem:[%s2 + $0x3c] sm:$0xf] %v1376
  // Predicated region
  $region10: #{discriminator_forward.9} parent=0 // pred_check
    _
  $region11: #{discriminator_forward.9} parent=0 // pred_check_branch
    %1394 = sbr.rel (0) target = $region13
  $region12: #{discriminator_forward.9} parent=0 // pred_region
    _
  $region13: #{discriminator_forward.9} parent=0 // pred_fallthru
    _
  // Predicated region
  $region14: #{discriminator_forward.9} parent=0 // pred_check
    _
  $region15: #{discriminator_forward.9} parent=0 // pred_check_branch
    %1396 = sbr.rel (0) target = $region17
  $region16: #{discriminator_forward.9} parent=0 // pred_region
    _
  $region17: #{discriminator_forward.9} parent=0 // pred_fallthru
    _
  // Predicated region
  $region18: #{discriminator_forward.9} parent=0 // pred_check
    _
  $region19: #{discriminator_forward.9} parent=0 // pred_check_branch
    %1398 = sbr.rel (0) target = $region21
  $region20: #{discriminator_forward.9} parent=0 // pred_region
    _
  $region21: #{discriminator_forward.9} parent=0 // pred_fallthru
    _
  // Predicated region
  $region22: #{discriminator_forward.9} parent=0 // pred_check
    _
  $region23: #{discriminator_forward.9} parent=0 // pred_check_branch
    %1400 = sbr.rel (0) target = $region25
  $region24: #{discriminator_forward.9} parent=0 // pred_region
    _
  $region25: #{discriminator_forward.9} parent=0 // pred_fallthru
    _

// kernel: discriminator_forward.11
$region0: #{discriminator_forward.11}
  #allocation0 [shape = 'u32[]', space=smem, size = 0x4, offset = 0x4, fixed_abs, tag = 'smem constant byte address 0x4 - core index']
  #allocation1 [shape = 'u32[72,128]{1,0:T(1,128)}', space=vmem, size = 0x9000, scoped, tag = 'internal scratch']
  %s0 = inlined_call_operand.vmem [shape: bf16[32,2048], index: 0, kind: input, shape index: {}]
  %s1 = inlined_call_operand.vmem [shape: bf16[2048,256], index: 1, kind: input, shape index: {}]
  %s2 = inlined_call_operand.vmem [shape: bf16[32,256], index: 2, kind: output, shape index: {0}]
  %s3 = inlined_call_operand.vmem [shape: f32[1,2,256], index: 3, kind: output, shape index: {1}]
  %4 = xla_tuple %s2, %s3
  %s5 = sld [smem:[#allocation0]]
  $region26: #{discriminator_forward.11} parent=0
    _
  %s7 = ssub.s32 1, %s5
  %s8 = scalar_select 0, %s7, %s5
  // Predicated region
  $region2: #{discriminator_forward.11} parent=0 // pred_check
    _
  $region3: #{discriminator_forward.11} parent=0 // pred_check_branch
    %10 = sbr.rel (0) target = $region5
  $region4: #{discriminator_forward.11} parent=0 // pred_region
    _
  $region5: #{discriminator_forward.11} parent=0 // pred_fallthru
    _
  // Predicated region
  $region6: #{discriminator_forward.11} parent=0 // pred_check
    _
  $region7: #{discriminator_forward.11} parent=0 // pred_check_branch
    %12 = sbr.rel (0) target = $region9
  $region8: #{discriminator_forward.11} parent=0 // pred_region
    _
  $region9: #{discriminator_forward.11} parent=0 // pred_fallthru
    _
  %v13 = vld [vmem:[%s0] sm:$0xff]
  %v14 = vld [vmem:[%s0 + $0x8] sm:$0xff]
  %v15 = vld [vmem:[%s0 + $0x10] sm:$0xff]
  %v16 = vld [vmem:[%s0 + $0x18] sm:$0xff]
  %v17 = vld [vmem:[%s0 + $0x20] sm:$0xff]
  %v18 = vld [vmem:[%s0 + $0x28] sm:$0xff]
  %v19 = vld [vmem:[%s0 + $0x30] sm:$0xff]
  %v20 = vld [vmem:[%s0 + $0x38] sm:$0xff]
  %v21 = vld [vmem:[%s0 + $0x40] sm:$0xff]
  %v22 = vld [vmem:[%s0 + $0x48] sm:$0xff]
  %v23 = vld [vmem:[%s0 + $0x50] sm:$0xff]
  %v24 = vld [vmem:[%s0 + $0x58] sm:$0xff]
  %v25 = vld [vmem:[%s0 + $0x60] sm:$0xff]
  %v26 = vld [vmem:[%s0 + $0x68] sm:$0xff]
  %v27 = vld [vmem:[%s0 + $0x70] sm:$0xff]
  %v28 = vld [vmem:[%s0 + $0x78] sm:$0xff]
  %v29 = vld [vmem:[%s0 + $0x80] sm:$0xff]
  %v30 = vld [vmem:[%s0 + $0x88] sm:$0xff]
  %v31 = vld [vmem:[%s0 + $0x90] sm:$0xff]
  %v32 = vld [vmem:[%s0 + $0x98] sm:$0xff]
  %v33 = vld [vmem:[%s0 + $0xa0] sm:$0xff]
  %v34 = vld [vmem:[%s0 + $0xa8] sm:$0xff]
  %v35 = vld [vmem:[%s0 + $0xb0] sm:$0xff]
  %v36 = vld [vmem:[%s0 + $0xb8] sm:$0xff]
  %v37 = vld [vmem:[%s0 + $0xc0] sm:$0xff]
  %v38 = vld [vmem:[%s0 + $0xc8] sm:$0xff]
  %v39 = vld [vmem:[%s0 + $0xd0] sm:$0xff]
  %v40 = vld [vmem:[%s0 + $0xd8] sm:$0xff]
  %v41 = vld [vmem:[%s0 + $0xe0] sm:$0xff]
  %v42 = vld [vmem:[%s0 + $0xe8] sm:$0xff]
  %v43 = vld [vmem:[%s0 + $0xf0] sm:$0xff]
  %v44 = vld [vmem:[%s0 + $0xf8] sm:$0xff]
  %v45 = vld [vmem:[%s1] sm:$0xff]
  %v46 = vld [vmem:[%s1 + $0x8] sm:$0xff]
  %v47 = vld [vmem:[%s1 + $0x10] sm:$0xff]
  %v48 = vld [vmem:[%s1 + $0x18] sm:$0xff]
  %v49 = vld [vmem:[%s1 + $0x20] sm:$0xff]
  %v50 = vld [vmem:[%s1 + $0x28] sm:$0xff]
  %v51 = vld [vmem:[%s1 + $0x30] sm:$0xff]
  %v52 = vld [vmem:[%s1 + $0x38] sm:$0xff]
  %v53 = vld [vmem:[%s1 + $0x40] sm:$0xff]
  %v54 = vld [vmem:[%s1 + $0x48] sm:$0xff]
  %v55 = vld [vmem:[%s1 + $0x50] sm:$0xff]
  %v56 = vld [vmem:[%s1 + $0x58] sm:$0xff]
  %v57 = vld [vmem:[%s1 + $0x60] sm:$0xff]
  %v58 = vld [vmem:[%s1 + $0x68] sm:$0xff]
  %v59 = vld [vmem:[%s1 + $0x70] sm:$0xff]
  %v60 = vld [vmem:[%s1 + $0x78] sm:$0xff]
  %v61 = vld [vmem:[%s1 + $0x80] sm:$0xff]
  %v62 = vld [vmem:[%s1 + $0x88] sm:$0xff]
  %v63 = vld [vmem:[%s1 + $0x90] sm:$0xff]
  %v64 = vld [vmem:[%s1 + $0x98] sm:$0xff]
  %v65 = vld [vmem:[%s1 + $0xa0] sm:$0xff]
  %v66 = vld [vmem:[%s1 + $0xa8] sm:$0xff]
  %v67 = vld [vmem:[%s1 + $0xb0] sm:$0xff]
  %v68 = vld [vmem:[%s1 + $0xb8] sm:$0xff]
  %v69 = vld [vmem:[%s1 + $0xc0] sm:$0xff]
  %v70 = vld [vmem:[%s1 + $0xc8] sm:$0xff]
  %v71 = vld [vmem:[%s1 + $0xd0] sm:$0xff]
  %v72 = vld [vmem:[%s1 + $0xd8] sm:$0xff]
  %v73 = vld [vmem:[%s1 + $0xe0] sm:$0xff]
  %v74 = vld [vmem:[%s1 + $0xe8] sm:$0xff]
  %v75 = vld [vmem:[%s1 + $0xf0] sm:$0xff]
  %v76 = vld [vmem:[%s1 + $0xf8] sm:$0xff]
  %v77 = vld [vmem:[%s1 + $0x100] sm:$0xff]
  %v78 = vld [vmem:[%s1 + $0x108] sm:$0xff]
  %v79 = vld [vmem:[%s1 + $0x110] sm:$0xff]
  %v80 = vld [vmem:[%s1 + $0x118] sm:$0xff]
  %v81 = vld [vmem:[%s1 + $0x120] sm:$0xff]
  %v82 = vld [vmem:[%s1 + $0x128] sm:$0xff]
  %v83 = vld [vmem:[%s1 + $0x130] sm:$0xff]
  %v84 = vld [vmem:[%s1 + $0x138] sm:$0xff]
  %v85 = vld [vmem:[%s1 + $0x140] sm:$0xff]
  %v86 = vld [vmem:[%s1 + $0x148] sm:$0xff]
  %v87 = vld [vmem:[%s1 + $0x150] sm:$0xff]
  %v88 = vld [vmem:[%s1 + $0x158] sm:$0xff]
  %v89 = vld [vmem:[%s1 + $0x160] sm:$0xff]
  %v90 = vld [vmem:[%s1 + $0x168] sm:$0xff]
  %v91 = vld [vmem:[%s1 + $0x170] sm:$0xff]
  %v92 = vld [vmem:[%s1 + $0x178] sm:$0xff]
  %v93 = vld [vmem:[%s1 + $0x180] sm:$0xff]
  %v94 = vld [vmem:[%s1 + $0x188] sm:$0xff]
  %v95 = vld [vmem:[%s1 + $0x190] sm:$0xff]
  %v96 = vld [vmem:[%s1 + $0x198] sm:$0xff]
  %v97 = vld [vmem:[%s1 + $0x1a0] sm:$0xff]
  %v98 = vld [vmem:[%s1 + $0x1a8] sm:$0xff]
  %v99 = vld [vmem:[%s1 + $0x1b0] sm:$0xff]
  %v100 = vld [vmem:[%s1 + $0x1b8] sm:$0xff]
  %v101 = vld [vmem:[%s1 + $0x1c0] sm:$0xff]
  %v102 = vld [vmem:[%s1 + $0x1c8] sm:$0xff]
  %v103 = vld [vmem:[%s1 + $0x1d0] sm:$0xff]
  %v104 = vld [vmem:[%s1 + $0x1d8] sm:$0xff]
  %v105 = vld [vmem:[%s1 + $0x1e0] sm:$0xff]
  %v106 = vld [vmem:[%s1 + $0x1e8] sm:$0xff]
  %v107 = vld [vmem:[%s1 + $0x1f0] sm:$0xff]
  %v108 = vld [vmem:[%s1 + $0x1f8] sm:$0xff]
  %v109 = vld [vmem:[%s1 + $0x200] sm:$0xff]
  %v110 = vld [vmem:[%s1 + $0x208] sm:$0xff]
  %v111 = vld [vmem:[%s1 + $0x210] sm:$0xff]
  %v112 = vld [vmem:[%s1 + $0x218] sm:$0xff]
  %v113 = vld [vmem:[%s1 + $0x220] sm:$0xff]
  %v114 = vld [vmem:[%s1 + $0x228] sm:$0xff]
  %v115 = vld [vmem:[%s1 + $0x230] sm:$0xff]
  %v116 = vld [vmem:[%s1 + $0x238] sm:$0xff]
  %v117 = vld [vmem:[%s1 + $0x240] sm:$0xff]
  %v118 = vld [vmem:[%s1 + $0x248] sm:$0xff]
  %v119 = vld [vmem:[%s1 + $0x250] sm:$0xff]
  %v120 = vld [vmem:[%s1 + $0x258] sm:$0xff]
  %v121 = vld [vmem:[%s1 + $0x260] sm:$0xff]
  %v122 = vld [vmem:[%s1 + $0x268] sm:$0xff]
  %v123 = vld [vmem:[%s1 + $0x270] sm:$0xff]
  %v124 = vld [vmem:[%s1 + $0x278] sm:$0xff]
  %v125 = vld [vmem:[%s1 + $0x280] sm:$0xff]
  %v126 = vld [vmem:[%s1 + $0x288] sm:$0xff]
  %v127 = vld [vmem:[%s1 + $0x290] sm:$0xff]
  %v128 = vld [vmem:[%s1 + $0x298] sm:$0xff]
  %v129 = vld [vmem:[%s1 + $0x2a0] sm:$0xff]
  %v130 = vld [vmem:[%s1 + $0x2a8] sm:$0xff]
  %v131 = vld [vmem:[%s1 + $0x2b0] sm:$0xff]
  %v132 = vld [vmem:[%s1 + $0x2b8] sm:$0xff]
  %v133 = vld [vmem:[%s1 + $0x2c0] sm:$0xff]
  %v134 = vld [vmem:[%s1 + $0x2c8] sm:$0xff]
  %v135 = vld [vmem:[%s1 + $0x2d0] sm:$0xff]
  %v136 = vld [vmem:[%s1 + $0x2d8] sm:$0xff]
  %v137 = vld [vmem:[%s1 + $0x2e0] sm:$0xff]
  %v138 = vld [vmem:[%s1 + $0x2e8] sm:$0xff]
  %v139 = vld [vmem:[%s1 + $0x2f0] sm:$0xff]
  %v140 = vld [vmem:[%s1 + $0x2f8] sm:$0xff]
  %v141 = vld [vmem:[%s1 + $0x300] sm:$0xff]
  %v142 = vld [vmem:[%s1 + $0x308] sm:$0xff]
  %v143 = vld [vmem:[%s1 + $0x310] sm:$0xff]
  %v144 = vld [vmem:[%s1 + $0x318] sm:$0xff]
  %v145 = vld [vmem:[%s1 + $0x320] sm:$0xff]
  %v146 = vld [vmem:[%s1 + $0x328] sm:$0xff]
  %v147 = vld [vmem:[%s1 + $0x330] sm:$0xff]
  %v148 = vld [vmem:[%s1 + $0x338] sm:$0xff]
  %v149 = vld [vmem:[%s1 + $0x340] sm:$0xff]
  %v150 = vld [vmem:[%s1 + $0x348] sm:$0xff]
  %v151 = vld [vmem:[%s1 + $0x350] sm:$0xff]
  %v152 = vld [vmem:[%s1 + $0x358] sm:$0xff]
  %v153 = vld [vmem:[%s1 + $0x360] sm:$0xff]
  %v154 = vld [vmem:[%s1 + $0x368] sm:$0xff]
  %v155 = vld [vmem:[%s1 + $0x370] sm:$0xff]
  %v156 = vld [vmem:[%s1 + $0x378] sm:$0xff]
  %v157 = vld [vmem:[%s1 + $0x380] sm:$0xff]
  %v158 = vld [vmem:[%s1 + $0x388] sm:$0xff]
  %v159 = vld [vmem:[%s1 + $0x390] sm:$0xff]
  %v160 = vld [vmem:[%s1 + $0x398] sm:$0xff]
  %v161 = vld [vmem:[%s1 + $0x3a0] sm:$0xff]
  %v162 = vld [vmem:[%s1 + $0x3a8] sm:$0xff]
  %v163 = vld [vmem:[%s1 + $0x3b0] sm:$0xff]
  %v164 = vld [vmem:[%s1 + $0x3b8] sm:$0xff]
  %v165 = vld [vmem:[%s1 + $0x3c0] sm:$0xff]
  %v166 = vld [vmem:[%s1 + $0x3c8] sm:$0xff]
  %v167 = vld [vmem:[%s1 + $0x3d0] sm:$0xff]
  %v168 = vld [vmem:[%s1 + $0x3d8] sm:$0xff]
  %v169 = vld [vmem:[%s1 + $0x3e0] sm:$0xff]
  %v170 = vld [vmem:[%s1 + $0x3e8] sm:$0xff]
  %v171 = vld [vmem:[%s1 + $0x3f0] sm:$0xff]
  %v172 = vld [vmem:[%s1 + $0x3f8] sm:$0xff]
  %v173 = vld [vmem:[%s1 + $0x400] sm:$0xff]
  %v174 = vld [vmem:[%s1 + $0x408] sm:$0xff]
  %v175 = vld [vmem:[%s1 + $0x410] sm:$0xff]
  %v176 = vld [vmem:[%s1 + $0x418] sm:$0xff]
  %v177 = vld [vmem:[%s1 + $0x420] sm:$0xff]
  %v178 = vld [vmem:[%s1 + $0x428] sm:$0xff]
  %v179 = vld [vmem:[%s1 + $0x430] sm:$0xff]
  %v180 = vld [vmem:[%s1 + $0x438] sm:$0xff]
  %v181 = vld [vmem:[%s1 + $0x440] sm:$0xff]
  %v182 = vld [vmem:[%s1 + $0x448] sm:$0xff]
  %v183 = vld [vmem:[%s1 + $0x450] sm:$0xff]
  %v184 = vld [vmem:[%s1 + $0x458] sm:$0xff]
  %v185 = vld [vmem:[%s1 + $0x460] sm:$0xff]
  %v186 = vld [vmem:[%s1 + $0x468] sm:$0xff]
  %v187 = vld [vmem:[%s1 + $0x470] sm:$0xff]
  %v188 = vld [vmem:[%s1 + $0x478] sm:$0xff]
  %v189 = vld [vmem:[%s1 + $0x480] sm:$0xff]
  %v190 = vld [vmem:[%s1 + $0x488] sm:$0xff]
  %v191 = vld [vmem:[%s1 + $0x490] sm:$0xff]
  %v192 = vld [vmem:[%s1 + $0x498] sm:$0xff]
  %v193 = vld [vmem:[%s1 + $0x4a0] sm:$0xff]
  %v194 = vld [vmem:[%s1 + $0x4a8] sm:$0xff]
  %v195 = vld [vmem:[%s1 + $0x4b0] sm:$0xff]
  %v196 = vld [vmem:[%s1 + $0x4b8] sm:$0xff]
  %v197 = vld [vmem:[%s1 + $0x4c0] sm:$0xff]
  %v198 = vld [vmem:[%s1 + $0x4c8] sm:$0xff]
  %v199 = vld [vmem:[%s1 + $0x4d0] sm:$0xff]
  %v200 = vld [vmem:[%s1 + $0x4d8] sm:$0xff]
  %v201 = vld [vmem:[%s1 + $0x4e0] sm:$0xff]
  %v202 = vld [vmem:[%s1 + $0x4e8] sm:$0xff]
  %v203 = vld [vmem:[%s1 + $0x4f0] sm:$0xff]
  %v204 = vld [vmem:[%s1 + $0x4f8] sm:$0xff]
  %v205 = vld [vmem:[%s1 + $0x500] sm:$0xff]
  %v206 = vld [vmem:[%s1 + $0x508] sm:$0xff]
  %v207 = vld [vmem:[%s1 + $0x510] sm:$0xff]
  %v208 = vld [vmem:[%s1 + $0x518] sm:$0xff]
  %v209 = vld [vmem:[%s1 + $0x520] sm:$0xff]
  %v210 = vld [vmem:[%s1 + $0x528] sm:$0xff]
  %v211 = vld [vmem:[%s1 + $0x530] sm:$0xff]
  %v212 = vld [vmem:[%s1 + $0x538] sm:$0xff]
  %v213 = vld [vmem:[%s1 + $0x540] sm:$0xff]
  %v214 = vld [vmem:[%s1 + $0x548] sm:$0xff]
  %v215 = vld [vmem:[%s1 + $0x550] sm:$0xff]
  %v216 = vld [vmem:[%s1 + $0x558] sm:$0xff]
  %v217 = vld [vmem:[%s1 + $0x560] sm:$0xff]
  %v218 = vld [vmem:[%s1 + $0x568] sm:$0xff]
  %v219 = vld [vmem:[%s1 + $0x570] sm:$0xff]
  %v220 = vld [vmem:[%s1 + $0x578] sm:$0xff]
  %v221 = vld [vmem:[%s1 + $0x580] sm:$0xff]
  %v222 = vld [vmem:[%s1 + $0x588] sm:$0xff]
  %v223 = vld [vmem:[%s1 + $0x590] sm:$0xff]
  %v224 = vld [vmem:[%s1 + $0x598] sm:$0xff]
  %v225 = vld [vmem:[%s1 + $0x5a0] sm:$0xff]
  %v226 = vld [vmem:[%s1 + $0x5a8] sm:$0xff]
  %v227 = vld [vmem:[%s1 + $0x5b0] sm:$0xff]
  %v228 = vld [vmem:[%s1 + $0x5b8] sm:$0xff]
  %v229 = vld [vmem:[%s1 + $0x5c0] sm:$0xff]
  %v230 = vld [vmem:[%s1 + $0x5c8] sm:$0xff]
  %v231 = vld [vmem:[%s1 + $0x5d0] sm:$0xff]
  %v232 = vld [vmem:[%s1 + $0x5d8] sm:$0xff]
  %v233 = vld [vmem:[%s1 + $0x5e0] sm:$0xff]
  %v234 = vld [vmem:[%s1 + $0x5e8] sm:$0xff]
  %v235 = vld [vmem:[%s1 + $0x5f0] sm:$0xff]
  %v236 = vld [vmem:[%s1 + $0x5f8] sm:$0xff]
  %v237 = vld [vmem:[%s1 + $0x600] sm:$0xff]
  %v238 = vld [vmem:[%s1 + $0x608] sm:$0xff]
  %v239 = vld [vmem:[%s1 + $0x610] sm:$0xff]
  %v240 = vld [vmem:[%s1 + $0x618] sm:$0xff]
  %v241 = vld [vmem:[%s1 + $0x620] sm:$0xff]
  %v242 = vld [vmem:[%s1 + $0x628] sm:$0xff]
  %v243 = vld [vmem:[%s1 + $0x630] sm:$0xff]
  %v244 = vld [vmem:[%s1 + $0x638] sm:$0xff]
  %v245 = vld [vmem:[%s1 + $0x640] sm:$0xff]
  %v246 = vld [vmem:[%s1 + $0x648] sm:$0xff]
  %v247 = vld [vmem:[%s1 + $0x650] sm:$0xff]
  %v248 = vld [vmem:[%s1 + $0x658] sm:$0xff]
  %v249 = vld [vmem:[%s1 + $0x660] sm:$0xff]
  %v250 = vld [vmem:[%s1 + $0x668] sm:$0xff]
  %v251 = vld [vmem:[%s1 + $0x670] sm:$0xff]
  %v252 = vld [vmem:[%s1 + $0x678] sm:$0xff]
  %v253 = vld [vmem:[%s1 + $0x680] sm:$0xff]
  %v254 = vld [vmem:[%s1 + $0x688] sm:$0xff]
  %v255 = vld [vmem:[%s1 + $0x690] sm:$0xff]
  %v256 = vld [vmem:[%s1 + $0x698] sm:$0xff]
  %v257 = vld [vmem:[%s1 + $0x6a0] sm:$0xff]
  %v258 = vld [vmem:[%s1 + $0x6a8] sm:$0xff]
  %v259 = vld [vmem:[%s1 + $0x6b0] sm:$0xff]
  %v260 = vld [vmem:[%s1 + $0x6b8] sm:$0xff]
  %v261 = vld [vmem:[%s1 + $0x6c0] sm:$0xff]
  %v262 = vld [vmem:[%s1 + $0x6c8] sm:$0xff]
  %v263 = vld [vmem:[%s1 + $0x6d0] sm:$0xff]
  %v264 = vld [vmem:[%s1 + $0x6d8] sm:$0xff]
  %v265 = vld [vmem:[%s1 + $0x6e0] sm:$0xff]
  %v266 = vld [vmem:[%s1 + $0x6e8] sm:$0xff]
  %v267 = vld [vmem:[%s1 + $0x6f0] sm:$0xff]
  %v268 = vld [vmem:[%s1 + $0x6f8] sm:$0xff]
  %v269 = vld [vmem:[%s1 + $0x700] sm:$0xff]
  %v270 = vld [vmem:[%s1 + $0x708] sm:$0xff]
  %v271 = vld [vmem:[%s1 + $0x710] sm:$0xff]
  %v272 = vld [vmem:[%s1 + $0x718] sm:$0xff]
  %v273 = vld [vmem:[%s1 + $0x720] sm:$0xff]
  %v274 = vld [vmem:[%s1 + $0x728] sm:$0xff]
  %v275 = vld [vmem:[%s1 + $0x730] sm:$0xff]
  %v276 = vld [vmem:[%s1 + $0x738] sm:$0xff]
  %v277 = vld [vmem:[%s1 + $0x740] sm:$0xff]
  %v278 = vld [vmem:[%s1 + $0x748] sm:$0xff]
  %v279 = vld [vmem:[%s1 + $0x750] sm:$0xff]
  %v280 = vld [vmem:[%s1 + $0x758] sm:$0xff]
  %v281 = vld [vmem:[%s1 + $0x760] sm:$0xff]
  %v282 = vld [vmem:[%s1 + $0x768] sm:$0xff]
  %v283 = vld [vmem:[%s1 + $0x770] sm:$0xff]
  %v284 = vld [vmem:[%s1 + $0x778] sm:$0xff]
  %v285 = vld [vmem:[%s1 + $0x780] sm:$0xff]
  %v286 = vld [vmem:[%s1 + $0x788] sm:$0xff]
  %v287 = vld [vmem:[%s1 + $0x790] sm:$0xff]
  %v288 = vld [vmem:[%s1 + $0x798] sm:$0xff]
  %v289 = vld [vmem:[%s1 + $0x7a0] sm:$0xff]
  %v290 = vld [vmem:[%s1 + $0x7a8] sm:$0xff]
  %v291 = vld [vmem:[%s1 + $0x7b0] sm:$0xff]
  %v292 = vld [vmem:[%s1 + $0x7b8] sm:$0xff]
  %v293 = vld [vmem:[%s1 + $0x7c0] sm:$0xff]
  %v294 = vld [vmem:[%s1 + $0x7c8] sm:$0xff]
  %v295 = vld [vmem:[%s1 + $0x7d0] sm:$0xff]
  %v296 = vld [vmem:[%s1 + $0x7d8] sm:$0xff]
  %v297 = vld [vmem:[%s1 + $0x7e0] sm:$0xff]
  %v298 = vld [vmem:[%s1 + $0x7e8] sm:$0xff]
  %v299 = vld [vmem:[%s1 + $0x7f0] sm:$0xff]
  %v300 = vld [vmem:[%s1 + $0x7f8] sm:$0xff]
  %v333 = vunpack.c.l.b16 %v13
  %v334 = vunpack.c.h.b16 %v13
  %v335 = vunpack.c.l.b16 %v14
  %v336 = vunpack.c.h.b16 %v14
  %v337 = vunpack.c.l.b16 %v15
  %v338 = vunpack.c.h.b16 %v15
  %v339 = vunpack.c.l.b16 %v16
  %v340 = vunpack.c.h.b16 %v16
  %v341 = vunpack.c.l.b16 %v17
  %v342 = vunpack.c.h.b16 %v17
  %v343 = vunpack.c.l.b16 %v18
  %v344 = vunpack.c.h.b16 %v18
  %v345 = vunpack.c.l.b16 %v19
  %v346 = vunpack.c.h.b16 %v19
  %v347 = vunpack.c.l.b16 %v20
  %v348 = vunpack.c.h.b16 %v20
  %v349 = vunpack.c.l.b16 %v21
  %v350 = vunpack.c.h.b16 %v21
  %v351 = vunpack.c.l.b16 %v22
  %v352 = vunpack.c.h.b16 %v22
  %v353 = vunpack.c.l.b16 %v23
  %v354 = vunpack.c.h.b16 %v23
  %v355 = vunpack.c.l.b16 %v24
  %v356 = vunpack.c.h.b16 %v24
  %v357 = vunpack.c.l.b16 %v25
  %v358 = vunpack.c.h.b16 %v25
  %v359 = vunpack.c.l.b16 %v26
  %v360 = vunpack.c.h.b16 %v26
  %v361 = vunpack.c.l.b16 %v27
  %v362 = vunpack.c.h.b16 %v27
  %v363 = vunpack.c.l.b16 %v28
  %v364 = vunpack.c.h.b16 %v28
  %v365 = vunpack.c.l.b16 %v29
  %v366 = vunpack.c.h.b16 %v29
  %v367 = vunpack.c.l.b16 %v30
  %v368 = vunpack.c.h.b16 %v30
  %v369 = vunpack.c.l.b16 %v31
  %v370 = vunpack.c.h.b16 %v31
  %v371 = vunpack.c.l.b16 %v32
  %v372 = vunpack.c.h.b16 %v32
  %v373 = vunpack.c.l.b16 %v33
  %v374 = vunpack.c.h.b16 %v33
  %v375 = vunpack.c.l.b16 %v34
  %v376 = vunpack.c.h.b16 %v34
  %v377 = vunpack.c.l.b16 %v35
  %v378 = vunpack.c.h.b16 %v35
  %v379 = vunpack.c.l.b16 %v36
  %v380 = vunpack.c.h.b16 %v36
  %v381 = vunpack.c.l.b16 %v37
  %v382 = vunpack.c.h.b16 %v37
  %v383 = vunpack.c.l.b16 %v38
  %v384 = vunpack.c.h.b16 %v38
  %v385 = vunpack.c.l.b16 %v39
  %v386 = vunpack.c.h.b16 %v39
  %v387 = vunpack.c.l.b16 %v40
  %v388 = vunpack.c.h.b16 %v40
  %v389 = vunpack.c.l.b16 %v41
  %v390 = vunpack.c.h.b16 %v41
  %v391 = vunpack.c.l.b16 %v42
  %v392 = vunpack.c.h.b16 %v42
  %v393 = vunpack.c.l.b16 %v43
  %v394 = vunpack.c.h.b16 %v43
  %v395 = vunpack.c.l.b16 %v44
  %v396 = vunpack.c.h.b16 %v44
  %v397 = vpack.c.b16 %v349, %v333
  %v398 = vpack.c.b16 %v350, %v334
  %v399 = vpack.c.b16 %v351, %v335
  %v400 = vpack.c.b16 %v352, %v336
  %v401 = vpack.c.b16 %v353, %v337
  %v402 = vpack.c.b16 %v354, %v338
  %v403 = vpack.c.b16 %v355, %v339
  %v404 = vpack.c.b16 %v356, %v340
  %v405 = vpack.c.b16 %v357, %v341
  %v406 = vpack.c.b16 %v358, %v342
  %v407 = vpack.c.b16 %v359, %v343
  %v408 = vpack.c.b16 %v360, %v344
  %v409 = vpack.c.b16 %v361, %v345
  %v410 = vpack.c.b16 %v362, %v346
  %v411 = vpack.c.b16 %v363, %v347
  %v412 = vpack.c.b16 %v364, %v348
  %v413 = vpack.c.b16 %v381, %v365
  %v414 = vpack.c.b16 %v382, %v366
  %v415 = vpack.c.b16 %v383, %v367
  %v416 = vpack.c.b16 %v384, %v368
  %v417 = vpack.c.b16 %v385, %v369
  %v418 = vpack.c.b16 %v386, %v370
  %v419 = vpack.c.b16 %v387, %v371
  %v420 = vpack.c.b16 %v388, %v372
  %v421 = vpack.c.b16 %v389, %v373
  %v422 = vpack.c.b16 %v390, %v374
  %v423 = vpack.c.b16 %v391, %v375
  %v424 = vpack.c.b16 %v392, %v376
  %v425 = vpack.c.b16 %v393, %v377
  %v426 = vpack.c.b16 %v394, %v378
  %v427 = vpack.c.b16 %v395, %v379
  %v428 = vpack.c.b16 %v396, %v380
  %v717 = vunpack.c.l.b16 %v45
  %v718 = vunpack.c.h.b16 %v45
  %v719 = vunpack.c.l.b16 %v46
  %v720 = vunpack.c.h.b16 %v46
  %v721 = vunpack.c.l.b16 %v47
  %v722 = vunpack.c.h.b16 %v47
  %v723 = vunpack.c.l.b16 %v48
  %v724 = vunpack.c.h.b16 %v48
  %v725 = vunpack.c.l.b16 %v49
  %v726 = vunpack.c.h.b16 %v49
  %v727 = vunpack.c.l.b16 %v50
  %v728 = vunpack.c.h.b16 %v50
  %v729 = vunpack.c.l.b16 %v51
  %v730 = vunpack.c.h.b16 %v51
  %v731 = vunpack.c.l.b16 %v52
  %v732 = vunpack.c.h.b16 %v52
  %v733 = vunpack.c.l.b16 %v53
  %v734 = vunpack.c.h.b16 %v53
  %v735 = vunpack.c.l.b16 %v54
  %v736 = vunpack.c.h.b16 %v54
  %v737 = vunpack.c.l.b16 %v55
  %v738 = vunpack.c.h.b16 %v55
  %v739 = vunpack.c.l.b16 %v56
  %v740 = vunpack.c.h.b16 %v56
  %v741 = vunpack.c.l.b16 %v57
  %v742 = vunpack.c.h.b16 %v57
  %v743 = vunpack.c.l.b16 %v58
  %v744 = vunpack.c.h.b16 %v58
  %v745 = vunpack.c.l.b16 %v59
  %v746 = vunpack.c.h.b16 %v59
  %v747 = vunpack.c.l.b16 %v60
  %v748 = vunpack.c.h.b16 %v60
  %v749 = vunpack.c.l.b16 %v61
  %v750 = vunpack.c.h.b16 %v61
  %v751 = vunpack.c.l.b16 %v62
  %v752 = vunpack.c.h.b16 %v62
  %v753 = vunpack.c.l.b16 %v63
  %v754 = vunpack.c.h.b16 %v63
  %v755 = vunpack.c.l.b16 %v64
  %v756 = vunpack.c.h.b16 %v64
  %v757 = vunpack.c.l.b16 %v65
  %v758 = vunpack.c.h.b16 %v65
  %v759 = vunpack.c.l.b16 %v66
  %v760 = vunpack.c.h.b16 %v66
  %v761 = vunpack.c.l.b16 %v67
  %v762 = vunpack.c.h.b16 %v67
  %v763 = vunpack.c.l.b16 %v68
  %v764 = vunpack.c.h.b16 %v68
  %v765 = vunpack.c.l.b16 %v69
  %v766 = vunpack.c.h.b16 %v69
  %v767 = vunpack.c.l.b16 %v70
  %v768 = vunpack.c.h.b16 %v70
  %v769 = vunpack.c.l.b16 %v71
  %v770 = vunpack.c.h.b16 %v71
  %v771 = vunpack.c.l.b16 %v72
  %v772 = vunpack.c.h.b16 %v72
  %v773 = vunpack.c.l.b16 %v73
  %v774 = vunpack.c.h.b16 %v73
  %v775 = vunpack.c.l.b16 %v74
  %v776 = vunpack.c.h.b16 %v74
  %v777 = vunpack.c.l.b16 %v75
  %v778 = vunpack.c.h.b16 %v75
  %v779 = vunpack.c.l.b16 %v76
  %v780 = vunpack.c.h.b16 %v76
  %v781 = vunpack.c.l.b16 %v77
  %v782 = vunpack.c.h.b16 %v77
  %v783 = vunpack.c.l.b16 %v78
  %v784 = vunpack.c.h.b16 %v78
  %v785 = vunpack.c.l.b16 %v79
  %v786 = vunpack.c.h.b16 %v79
  %v787 = vunpack.c.l.b16 %v80
  %v788 = vunpack.c.h.b16 %v80
  %v789 = vunpack.c.l.b16 %v81
  %v790 = vunpack.c.h.b16 %v81
  %v791 = vunpack.c.l.b16 %v82
  %v792 = vunpack.c.h.b16 %v82
  %v793 = vunpack.c.l.b16 %v83
  %v794 = vunpack.c.h.b16 %v83
  %v795 = vunpack.c.l.b16 %v84
  %v796 = vunpack.c.h.b16 %v84
  %v797 = vunpack.c.l.b16 %v85
  %v798 = vunpack.c.h.b16 %v85
  %v799 = vunpack.c.l.b16 %v86
  %v800 = vunpack.c.h.b16 %v86
  %v801 = vunpack.c.l.b16 %v87
  %v802 = vunpack.c.h.b16 %v87
  %v803 = vunpack.c.l.b16 %v88
  %v804 = vunpack.c.h.b16 %v88
  %v805 = vunpack.c.l.b16 %v89
  %v806 = vunpack.c.h.b16 %v89
  %v807 = vunpack.c.l.b16 %v90
  %v808 = vunpack.c.h.b16 %v90
  %v809 = vunpack.c.l.b16 %v91
  %v810 = vunpack.c.h.b16 %v91
  %v811 = vunpack.c.l.b16 %v92
  %v812 = vunpack.c.h.b16 %v92
  %v813 = vunpack.c.l.b16 %v93
  %v814 = vunpack.c.h.b16 %v93
  %v815 = vunpack.c.l.b16 %v94
  %v816 = vunpack.c.h.b16 %v94
  %v817 = vunpack.c.l.b16 %v95
  %v818 = vunpack.c.h.b16 %v95
  %v819 = vunpack.c.l.b16 %v96
  %v820 = vunpack.c.h.b16 %v96
  %v821 = vunpack.c.l.b16 %v97
  %v822 = vunpack.c.h.b16 %v97
  %v823 = vunpack.c.l.b16 %v98
  %v824 = vunpack.c.h.b16 %v98
  %v825 = vunpack.c.l.b16 %v99
  %v826 = vunpack.c.h.b16 %v99
  %v827 = vunpack.c.l.b16 %v100
  %v828 = vunpack.c.h.b16 %v100
  %v829 = vunpack.c.l.b16 %v101
  %v830 = vunpack.c.h.b16 %v101
  %v831 = vunpack.c.l.b16 %v102
  %v832 = vunpack.c.h.b16 %v102
  %v833 = vunpack.c.l.b16 %v103
  %v834 = vunpack.c.h.b16 %v103
  %v835 = vunpack.c.l.b16 %v104
  %v836 = vunpack.c.h.b16 %v104
  %v837 = vunpack.c.l.b16 %v105
  %v838 = vunpack.c.h.b16 %v105
  %v839 = vunpack.c.l.b16 %v106
  %v840 = vunpack.c.h.b16 %v106
  %v841 = vunpack.c.l.b16 %v107
  %v842 = vunpack.c.h.b16 %v107
  %v843 = vunpack.c.l.b16 %v108
  %v844 = vunpack.c.h.b16 %v108
  %v845 = vunpack.c.l.b16 %v109
  %v846 = vunpack.c.h.b16 %v109
  %v847 = vunpack.c.l.b16 %v110
  %v848 = vunpack.c.h.b16 %v110
  %v849 = vunpack.c.l.b16 %v111
  %v850 = vunpack.c.h.b16 %v111
  %v851 = vunpack.c.l.b16 %v112
  %v852 = vunpack.c.h.b16 %v112
  %v853 = vunpack.c.l.b16 %v113
  %v854 = vunpack.c.h.b16 %v113
  %v855 = vunpack.c.l.b16 %v114
  %v856 = vunpack.c.h.b16 %v114
  %v857 = vunpack.c.l.b16 %v115
  %v858 = vunpack.c.h.b16 %v115
  %v859 = vunpack.c.l.b16 %v116
  %v860 = vunpack.c.h.b16 %v116
  %v861 = vunpack.c.l.b16 %v117
  %v862 = vunpack.c.h.b16 %v117
  %v863 = vunpack.c.l.b16 %v118
  %v864 = vunpack.c.h.b16 %v118
  %v865 = vunpack.c.l.b16 %v119
  %v866 = vunpack.c.h.b16 %v119
  %v867 = vunpack.c.l.b16 %v120
  %v868 = vunpack.c.h.b16 %v120
  %v869 = vunpack.c.l.b16 %v121
  %v870 = vunpack.c.h.b16 %v121
  %v871 = vunpack.c.l.b16 %v122
  %v872 = vunpack.c.h.b16 %v122
  %v873 = vunpack.c.l.b16 %v123
  %v874 = vunpack.c.h.b16 %v123
  %v875 = vunpack.c.l.b16 %v124
  %v876 = vunpack.c.h.b16 %v124
  %v877 = vunpack.c.l.b16 %v125
  %v878 = vunpack.c.h.b16 %v125
  %v879 = vunpack.c.l.b16 %v126
  %v880 = vunpack.c.h.b16 %v126
  %v881 = vunpack.c.l.b16 %v127
  %v882 = vunpack.c.h.b16 %v127
  %v883 = vunpack.c.l.b16 %v128
  %v884 = vunpack.c.h.b16 %v128
  %v885 = vunpack.c.l.b16 %v129
  %v886 = vunpack.c.h.b16 %v129
  %v887 = vunpack.c.l.b16 %v130
  %v888 = vunpack.c.h.b16 %v130
  %v889 = vunpack.c.l.b16 %v131
  %v890 = vunpack.c.h.b16 %v131
  %v891 = vunpack.c.l.b16 %v132
  %v892 = vunpack.c.h.b16 %v132
  %v893 = vunpack.c.l.b16 %v133
  %v894 = vunpack.c.h.b16 %v133
  %v895 = vunpack.c.l.b16 %v134
  %v896 = vunpack.c.h.b16 %v134
  %v897 = vunpack.c.l.b16 %v135
  %v898 = vunpack.c.h.b16 %v135
  %v899 = vunpack.c.l.b16 %v136
  %v900 = vunpack.c.h.b16 %v136
  %v901 = vunpack.c.l.b16 %v137
  %v902 = vunpack.c.h.b16 %v137
  %v903 = vunpack.c.l.b16 %v138
  %v904 = vunpack.c.h.b16 %v138
  %v905 = vunpack.c.l.b16 %v139
  %v906 = vunpack.c.h.b16 %v139
  %v907 = vunpack.c.l.b16 %v140
  %v908 = vunpack.c.h.b16 %v140
  %v909 = vunpack.c.l.b16 %v141
  %v910 = vunpack.c.h.b16 %v141
  %v911 = vunpack.c.l.b16 %v142
  %v912 = vunpack.c.h.b16 %v142
  %v913 = vunpack.c.l.b16 %v143
  %v914 = vunpack.c.h.b16 %v143
  %v915 = vunpack.c.l.b16 %v144
  %v916 = vunpack.c.h.b16 %v144
  %v917 = vunpack.c.l.b16 %v145
  %v918 = vunpack.c.h.b16 %v145
  %v919 = vunpack.c.l.b16 %v146
  %v920 = vunpack.c.h.b16 %v146
  %v921 = vunpack.c.l.b16 %v147
  %v922 = vunpack.c.h.b16 %v147
  %v923 = vunpack.c.l.b16 %v148
  %v924 = vunpack.c.h.b16 %v148
  %v925 = vunpack.c.l.b16 %v149
  %v926 = vunpack.c.h.b16 %v149
  %v927 = vunpack.c.l.b16 %v150
  %v928 = vunpack.c.h.b16 %v150
  %v929 = vunpack.c.l.b16 %v151
  %v930 = vunpack.c.h.b16 %v151
  %v931 = vunpack.c.l.b16 %v152
  %v932 = vunpack.c.h.b16 %v152
  %v933 = vunpack.c.l.b16 %v153
  %v934 = vunpack.c.h.b16 %v153
  %v935 = vunpack.c.l.b16 %v154
  %v936 = vunpack.c.h.b16 %v154
  %v937 = vunpack.c.l.b16 %v155
  %v938 = vunpack.c.h.b16 %v155
  %v939 = vunpack.c.l.b16 %v156
  %v940 = vunpack.c.h.b16 %v156
  %v941 = vunpack.c.l.b16 %v157
  %v942 = vunpack.c.h.b16 %v157
  %v943 = vunpack.c.l.b16 %v158
  %v944 = vunpack.c.h.b16 %v158
  %v945 = vunpack.c.l.b16 %v159
  %v946 = vunpack.c.h.b16 %v159
  %v947 = vunpack.c.l.b16 %v160
  %v948 = vunpack.c.h.b16 %v160
  %v949 = vunpack.c.l.b16 %v161
  %v950 = vunpack.c.h.b16 %v161
  %v951 = vunpack.c.l.b16 %v162
  %v952 = vunpack.c.h.b16 %v162
  %v953 = vunpack.c.l.b16 %v163
  %v954 = vunpack.c.h.b16 %v163
  %v955 = vunpack.c.l.b16 %v164
  %v956 = vunpack.c.h.b16 %v164
  %v957 = vunpack.c.l.b16 %v165
  %v958 = vunpack.c.h.b16 %v165
  %v959 = vunpack.c.l.b16 %v166
  %v960 = vunpack.c.h.b16 %v166
  %v961 = vunpack.c.l.b16 %v167
  %v962 = vunpack.c.h.b16 %v167
  %v963 = vunpack.c.l.b16 %v168
  %v964 = vunpack.c.h.b16 %v168
  %v965 = vunpack.c.l.b16 %v169
  %v966 = vunpack.c.h.b16 %v169
  %v967 = vunpack.c.l.b16 %v170
  %v968 = vunpack.c.h.b16 %v170
  %v969 = vunpack.c.l.b16 %v171
  %v970 = vunpack.c.h.b16 %v171
  %v971 = vunpack.c.l.b16 %v172
  %v972 = vunpack.c.h.b16 %v172
  %v973 = vunpack.c.l.b16 %v173
  %v974 = vunpack.c.h.b16 %v173
  %v975 = vunpack.c.l.b16 %v174
  %v976 = vunpack.c.h.b16 %v174
  %v977 = vunpack.c.l.b16 %v175
  %v978 = vunpack.c.h.b16 %v175
  %v979 = vunpack.c.l.b16 %v176
  %v980 = vunpack.c.h.b16 %v176
  %v981 = vunpack.c.l.b16 %v177
  %v982 = vunpack.c.h.b16 %v177
  %v983 = vunpack.c.l.b16 %v178
  %v984 = vunpack.c.h.b16 %v178
  %v985 = vunpack.c.l.b16 %v179
  %v986 = vunpack.c.h.b16 %v179
  %v987 = vunpack.c.l.b16 %v180
  %v988 = vunpack.c.h.b16 %v180
  %v989 = vunpack.c.l.b16 %v181
  %v990 = vunpack.c.h.b16 %v181
  %v991 = vunpack.c.l.b16 %v182
  %v992 = vunpack.c.h.b16 %v182
  %v993 = vunpack.c.l.b16 %v183
  %v994 = vunpack.c.h.b16 %v183
  %v995 = vunpack.c.l.b16 %v184
  %v996 = vunpack.c.h.b16 %v184
  %v997 = vunpack.c.l.b16 %v185
  %v998 = vunpack.c.h.b16 %v185
  %v999 = vunpack.c.l.b16 %v186
  %v1000 = vunpack.c.h.b16 %v186
  %v1001 = vunpack.c.l.b16 %v187
  %v1002 = vunpack.c.h.b16 %v187
  %v1003 = vunpack.c.l.b16 %v188
  %v1004 = vunpack.c.h.b16 %v188
  %v1005 = vunpack.c.l.b16 %v189
  %v1006 = vunpack.c.h.b16 %v189
  %v1007 = vunpack.c.l.b16 %v190
  %v1008 = vunpack.c.h.b16 %v190
  %v1009 = vunpack.c.l.b16 %v191
  %v1010 = vunpack.c.h.b16 %v191
  %v1011 = vunpack.c.l.b16 %v192
  %v1012 = vunpack.c.h.b16 %v192
  %v1013 = vunpack.c.l.b16 %v193
  %v1014 = vunpack.c.h.b16 %v193
  %v1015 = vunpack.c.l.b16 %v194
  %v1016 = vunpack.c.h.b16 %v194
  %v1017 = vunpack.c.l.b16 %v195
  %v1018 = vunpack.c.h.b16 %v195
  %v1019 = vunpack.c.l.b16 %v196
  %v1020 = vunpack.c.h.b16 %v196
  %v1021 = vunpack.c.l.b16 %v197
  %v1022 = vunpack.c.h.b16 %v197
  %v1023 = vunpack.c.l.b16 %v198
  %v1024 = vunpack.c.h.b16 %v198
  %v1025 = vunpack.c.l.b16 %v199
  %v1026 = vunpack.c.h.b16 %v199
  %v1027 = vunpack.c.l.b16 %v200
  %v1028 = vunpack.c.h.b16 %v200
  %v1029 = vunpack.c.l.b16 %v201
  %v1030 = vunpack.c.h.b16 %v201
  %v1031 = vunpack.c.l.b16 %v202
  %v1032 = vunpack.c.h.b16 %v202
  %v1033 = vunpack.c.l.b16 %v203
  %v1034 = vunpack.c.h.b16 %v203
  %v1035 = vunpack.c.l.b16 %v204
  %v1036 = vunpack.c.h.b16 %v204
  %v1037 = vunpack.c.l.b16 %v205
  %v1038 = vunpack.c.h.b16 %v205
  %v1039 = vunpack.c.l.b16 %v206
  %v1040 = vunpack.c.h.b16 %v206
  %v1041 = vunpack.c.l.b16 %v207
  %v1042 = vunpack.c.h.b16 %v207
  %v1043 = vunpack.c.l.b16 %v208
  %v1044 = vunpack.c.h.b16 %v208
  %v1045 = vunpack.c.l.b16 %v209
  %v1046 = vunpack.c.h.b16 %v209
  %v1047 = vunpack.c.l.b16 %v210
  %v1048 = vunpack.c.h.b16 %v210
  %v1049 = vunpack.c.l.b16 %v211
  %v1050 = vunpack.c.h.b16 %v211
  %v1051 = vunpack.c.l.b16 %v212
  %v1052 = vunpack.c.h.b16 %v212
  %v1053 = vunpack.c.l.b16 %v213
  %v1054 = vunpack.c.h.b16 %v213
  %v1055 = vunpack.c.l.b16 %v214
  %v1056 = vunpack.c.h.b16 %v214
  %v1057 = vunpack.c.l.b16 %v215
  %v1058 = vunpack.c.h.b16 %v215
  %v1059 = vunpack.c.l.b16 %v216
  %v1060 = vunpack.c.h.b16 %v216
  %v1061 = vunpack.c.l.b16 %v217
  %v1062 = vunpack.c.h.b16 %v217
  %v1063 = vunpack.c.l.b16 %v218
  %v1064 = vunpack.c.h.b16 %v218
  %v1065 = vunpack.c.l.b16 %v219
  %v1066 = vunpack.c.h.b16 %v219
  %v1067 = vunpack.c.l.b16 %v220
  %v1068 = vunpack.c.h.b16 %v220
  %v1069 = vunpack.c.l.b16 %v221
  %v1070 = vunpack.c.h.b16 %v221
  %v1071 = vunpack.c.l.b16 %v222
  %v1072 = vunpack.c.h.b16 %v222
  %v1073 = vunpack.c.l.b16 %v223
  %v1074 = vunpack.c.h.b16 %v223
  %v1075 = vunpack.c.l.b16 %v224
  %v1076 = vunpack.c.h.b16 %v224
  %v1077 = vunpack.c.l.b16 %v225
  %v1078 = vunpack.c.h.b16 %v225
  %v1079 = vunpack.c.l.b16 %v226
  %v1080 = vunpack.c.h.b16 %v226
  %v1081 = vunpack.c.l.b16 %v227
  %v1082 = vunpack.c.h.b16 %v227
  %v1083 = vunpack.c.l.b16 %v228
  %v1084 = vunpack.c.h.b16 %v228
  %v1085 = vunpack.c.l.b16 %v229
  %v1086 = vunpack.c.h.b16 %v229
  %v1087 = vunpack.c.l.b16 %v230
  %v1088 = vunpack.c.h.b16 %v230
  %v1089 = vunpack.c.l.b16 %v231
  %v1090 = vunpack.c.h.b16 %v231
  %v1091 = vunpack.c.l.b16 %v232
  %v1092 = vunpack.c.h.b16 %v232
  %v1093 = vunpack.c.l.b16 %v233
  %v1094 = vunpack.c.h.b16 %v233
  %v1095 = vunpack.c.l.b16 %v234
  %v1096 = vunpack.c.h.b16 %v234
  %v1097 = vunpack.c.l.b16 %v235
  %v1098 = vunpack.c.h.b16 %v235
  %v1099 = vunpack.c.l.b16 %v236
  %v1100 = vunpack.c.h.b16 %v236
  %v1101 = vunpack.c.l.b16 %v237
  %v1102 = vunpack.c.h.b16 %v237
  %v1103 = vunpack.c.l.b16 %v238
  %v1104 = vunpack.c.h.b16 %v238
  %v1105 = vunpack.c.l.b16 %v239
  %v1106 = vunpack.c.h.b16 %v239
  %v1107 = vunpack.c.l.b16 %v240
  %v1108 = vunpack.c.h.b16 %v240
  %v1109 = vunpack.c.l.b16 %v241
  %v1110 = vunpack.c.h.b16 %v241
  %v1111 = vunpack.c.l.b16 %v242
  %v1112 = vunpack.c.h.b16 %v242
  %v1113 = vunpack.c.l.b16 %v243
  %v1114 = vunpack.c.h.b16 %v243
  %v1115 = vunpack.c.l.b16 %v244
  %v1116 = vunpack.c.h.b16 %v244
  %v1117 = vunpack.c.l.b16 %v245
  %v1118 = vunpack.c.h.b16 %v245
  %v1119 = vunpack.c.l.b16 %v246
  %v1120 = vunpack.c.h.b16 %v246
  %v1121 = vunpack.c.l.b16 %v247
  %v1122 = vunpack.c.h.b16 %v247
  %v1123 = vunpack.c.l.b16 %v248
  %v1124 = vunpack.c.h.b16 %v248
  %v1125 = vunpack.c.l.b16 %v249
  %v1126 = vunpack.c.h.b16 %v249
  %v1127 = vunpack.c.l.b16 %v250
  %v1128 = vunpack.c.h.b16 %v250
  %v1129 = vunpack.c.l.b16 %v251
  %v1130 = vunpack.c.h.b16 %v251
  %v1131 = vunpack.c.l.b16 %v252
  %v1132 = vunpack.c.h.b16 %v252
  %v1133 = vunpack.c.l.b16 %v253
  %v1134 = vunpack.c.h.b16 %v253
  %v1135 = vunpack.c.l.b16 %v254
  %v1136 = vunpack.c.h.b16 %v254
  %v1137 = vunpack.c.l.b16 %v255
  %v1138 = vunpack.c.h.b16 %v255
  %v1139 = vunpack.c.l.b16 %v256
  %v1140 = vunpack.c.h.b16 %v256
  %v1141 = vunpack.c.l.b16 %v257
  %v1142 = vunpack.c.h.b16 %v257
  %v1143 = vunpack.c.l.b16 %v258
  %v1144 = vunpack.c.h.b16 %v258
  %v1145 = vunpack.c.l.b16 %v259
  %v1146 = vunpack.c.h.b16 %v259
  %v1147 = vunpack.c.l.b16 %v260
  %v1148 = vunpack.c.h.b16 %v260
  %v1149 = vunpack.c.l.b16 %v261
  %v1150 = vunpack.c.h.b16 %v261
  %v1151 = vunpack.c.l.b16 %v262
  %v1152 = vunpack.c.h.b16 %v262
  %v1153 = vunpack.c.l.b16 %v263
  %v1154 = vunpack.c.h.b16 %v263
  %v1155 = vunpack.c.l.b16 %v264
  %v1156 = vunpack.c.h.b16 %v264
  %v1157 = vunpack.c.l.b16 %v265
  %v1158 = vunpack.c.h.b16 %v265
  %v1159 = vunpack.c.l.b16 %v266
  %v1160 = vunpack.c.h.b16 %v266
  %v1161 = vunpack.c.l.b16 %v267
  %v1162 = vunpack.c.h.b16 %v267
  %v1163 = vunpack.c.l.b16 %v268
  %v1164 = vunpack.c.h.b16 %v268
  %v1165 = vunpack.c.l.b16 %v269
  %v1166 = vunpack.c.h.b16 %v269
  %v1167 = vunpack.c.l.b16 %v270
  %v1168 = vunpack.c.h.b16 %v270
  %v1169 = vunpack.c.l.b16 %v271
  %v1170 = vunpack.c.h.b16 %v271
  %v1171 = vunpack.c.l.b16 %v272
  %v1172 = vunpack.c.h.b16 %v272
  %v1173 = vunpack.c.l.b16 %v273
  %v1174 = vunpack.c.h.b16 %v273
  %v1175 = vunpack.c.l.b16 %v274
  %v1176 = vunpack.c.h.b16 %v274
  %v1177 = vunpack.c.l.b16 %v275
  %v1178 = vunpack.c.h.b16 %v275
  %v1179 = vunpack.c.l.b16 %v276
  %v1180 = vunpack.c.h.b16 %v276
  %v1181 = vunpack.c.l.b16 %v277
  %v1182 = vunpack.c.h.b16 %v277
  %v1183 = vunpack.c.l.b16 %v278
  %v1184 = vunpack.c.h.b16 %v278
  %v1185 = vunpack.c.l.b16 %v279
  %v1186 = vunpack.c.h.b16 %v279
  %v1187 = vunpack.c.l.b16 %v280
  %v1188 = vunpack.c.h.b16 %v280
  %v1189 = vunpack.c.l.b16 %v281
  %v1190 = vunpack.c.h.b16 %v281
  %v1191 = vunpack.c.l.b16 %v282
  %v1192 = vunpack.c.h.b16 %v282
  %v1193 = vunpack.c.l.b16 %v283
  %v1194 = vunpack.c.h.b16 %v283
  %v1195 = vunpack.c.l.b16 %v284
  %v1196 = vunpack.c.h.b16 %v284
  %v1197 = vunpack.c.l.b16 %v285
  %v1198 = vunpack.c.h.b16 %v285
  %v1199 = vunpack.c.l.b16 %v286
  %v1200 = vunpack.c.h.b16 %v286
  %v1201 = vunpack.c.l.b16 %v287
  %v1202 = vunpack.c.h.b16 %v287
  %v1203 = vunpack.c.l.b16 %v288
  %v1204 = vunpack.c.h.b16 %v288
  %v1205 = vunpack.c.l.b16 %v289
  %v1206 = vunpack.c.h.b16 %v289
  %v1207 = vunpack.c.l.b16 %v290
  %v1208 = vunpack.c.h.b16 %v290
  %v1209 = vunpack.c.l.b16 %v291
  %v1210 = vunpack.c.h.b16 %v291
  %v1211 = vunpack.c.l.b16 %v292
  %v1212 = vunpack.c.h.b16 %v292
  %v1213 = vunpack.c.l.b16 %v293
  %v1214 = vunpack.c.h.b16 %v293
  %v1215 = vunpack.c.l.b16 %v294
  %v1216 = vunpack.c.h.b16 %v294
  %v1217 = vunpack.c.l.b16 %v295
  %v1218 = vunpack.c.h.b16 %v295
  %v1219 = vunpack.c.l.b16 %v296
  %v1220 = vunpack.c.h.b16 %v296
  %v1221 = vunpack.c.l.b16 %v297
  %v1222 = vunpack.c.h.b16 %v297
  %v1223 = vunpack.c.l.b16 %v298
  %v1224 = vunpack.c.h.b16 %v298
  %v1225 = vunpack.c.l.b16 %v299
  %v1226 = vunpack.c.h.b16 %v299
  %v1227 = vunpack.c.l.b16 %v300
  %v1228 = vunpack.c.h.b16 %v300
  %v1229 = vpack.c.b16 %v719, %v717
  %v1230 = vpack.c.b16 %v720, %v718
  %v1231 = vpack.c.b16 %v723, %v721
  %v1232 = vpack.c.b16 %v724, %v722
  %v1233 = vpack.c.b16 %v727, %v725
  %v1234 = vpack.c.b16 %v728, %v726
  %v1235 = vpack.c.b16 %v731, %v729
  %v1236 = vpack.c.b16 %v732, %v730
  %v1237 = vpack.c.b16 %v735, %v733
  %v1238 = vpack.c.b16 %v736, %v734
  %v1239 = vpack.c.b16 %v739, %v737
  %v1240 = vpack.c.b16 %v740, %v738
  %v1241 = vpack.c.b16 %v743, %v741
  %v1242 = vpack.c.b16 %v744, %v742
  %v1243 = vpack.c.b16 %v747, %v745
  %v1244 = vpack.c.b16 %v748, %v746
  %v1245 = vpack.c.b16 %v751, %v749
  %v1246 = vpack.c.b16 %v752, %v750
  %v1247 = vpack.c.b16 %v755, %v753
  %v1248 = vpack.c.b16 %v756, %v754
  %v1249 = vpack.c.b16 %v759, %v757
  %v1250 = vpack.c.b16 %v760, %v758
  %v1251 = vpack.c.b16 %v763, %v761
  %v1252 = vpack.c.b16 %v764, %v762
  %v1253 = vpack.c.b16 %v767, %v765
  %v1254 = vpack.c.b16 %v768, %v766
  %v1255 = vpack.c.b16 %v771, %v769
  %v1256 = vpack.c.b16 %v772, %v770
  %v1257 = vpack.c.b16 %v775, %v773
  %v1258 = vpack.c.b16 %v776, %v774
  %v1259 = vpack.c.b16 %v779, %v777
  %v1260 = vpack.c.b16 %v780, %v778
  %v1261 = vpack.c.b16 %v783, %v781
  %v1262 = vpack.c.b16 %v784, %v782
  %v1263 = vpack.c.b16 %v787, %v785
  %v1264 = vpack.c.b16 %v788, %v786
  %v1265 = vpack.c.b16 %v791, %v789
  %v1266 = vpack.c.b16 %v792, %v790
  %v1267 = vpack.c.b16 %v795, %v793
  %v1268 = vpack.c.b16 %v796, %v794
  %v1269 = vpack.c.b16 %v799, %v797
  %v1270 = vpack.c.b16 %v800, %v798
  %v1271 = vpack.c.b16 %v803, %v801
  %v1272 = vpack.c.b16 %v804, %v802
  %v1273 = vpack.c.b16 %v807, %v805
  %v1274 = vpack.c.b16 %v808, %v806
  %v1275 = vpack.c.b16 %v811, %v809
  %v1276 = vpack.c.b16 %v812, %v810
  %v1277 = vpack.c.b16 %v815, %v813
  %v1278 = vpack.c.b16 %v816, %v814
  %v1279 = vpack.c.b16 %v819, %v817
  %v1280 = vpack.c.b16 %v820, %v818
  %v1281 = vpack.c.b16 %v823, %v821
  %v1282 = vpack.c.b16 %v824, %v822
  %v1283 = vpack.c.b16 %v827, %v825
  %v1284 = vpack.c.b16 %v828, %v826
  %v1285 = vpack.c.b16 %v831, %v829
  %v1286 = vpack.c.b16 %v832, %v830
  %v1287 = vpack.c.b16 %v835, %v833
  %v1288 = vpack.c.b16 %v836, %v834
  %v1289 = vpack.c.b16 %v839, %v837
  %v1290 = vpack.c.b16 %v840, %v838
  %v1291 = vpack.c.b16 %v843, %v841
  %v1292 = vpack.c.b16 %v844, %v842
  %v1293 = vpack.c.b16 %v847, %v845
  %v1294 = vpack.c.b16 %v848, %v846
  %v1295 = vpack.c.b16 %v851, %v849
  %v1296 = vpack.c.b16 %v852, %v850
  %v1297 = vpack.c.b16 %v855, %v853
  %v1298 = vpack.c.b16 %v856, %v854
  %v1299 = vpack.c.b16 %v859, %v857
  %v1300 = vpack.c.b16 %v860, %v858
  %v1301 = vpack.c.b16 %v863, %v861
  %v1302 = vpack.c.b16 %v864, %v862
  %v1303 = vpack.c.b16 %v867, %v865
  %v1304 = vpack.c.b16 %v868, %v866
  %v1305 = vpack.c.b16 %v871, %v869
  %v1306 = vpack.c.b16 %v872, %v870
  %v1307 = vpack.c.b16 %v875, %v873
  %v1308 = vpack.c.b16 %v876, %v874
  %v1309 = vpack.c.b16 %v879, %v877
  %v1310 = vpack.c.b16 %v880, %v878
  %v1311 = vpack.c.b16 %v883, %v881
  %v1312 = vpack.c.b16 %v884, %v882
  %v1313 = vpack.c.b16 %v887, %v885
  %v1314 = vpack.c.b16 %v888, %v886
  %v1315 = vpack.c.b16 %v891, %v889
  %v1316 = vpack.c.b16 %v892, %v890
  %v1317 = vpack.c.b16 %v895, %v893
  %v1318 = vpack.c.b16 %v896, %v894
  %v1319 = vpack.c.b16 %v899, %v897
  %v1320 = vpack.c.b16 %v900, %v898
  %v1321 = vpack.c.b16 %v903, %v901
  %v1322 = vpack.c.b16 %v904, %v902
  %v1323 = vpack.c.b16 %v907, %v905
  %v1324 = vpack.c.b16 %v908, %v906
  %v1325 = vpack.c.b16 %v911, %v909
  %v1326 = vpack.c.b16 %v912, %v910
  %v1327 = vpack.c.b16 %v915, %v913
  %v1328 = vpack.c.b16 %v916, %v914
  %v1329 = vpack.c.b16 %v919, %v917
  %v1330 = vpack.c.b16 %v920, %v918
  %v1331 = vpack.c.b16 %v923, %v921
  %v1332 = vpack.c.b16 %v924, %v922
  %v1333 = vpack.c.b16 %v927, %v925
  %v1334 = vpack.c.b16 %v928, %v926
  %v1335 = vpack.c.b16 %v931, %v929
  %v1336 = vpack.c.b16 %v932, %v930
  %v1337 = vpack.c.b16 %v935, %v933
  %v1338 = vpack.c.b16 %v936, %v934
  %v1339 = vpack.c.b16 %v939, %v937
  %v1340 = vpack.c.b16 %v940, %v938
  %v1341 = vpack.c.b16 %v943, %v941
  %v1342 = vpack.c.b16 %v944, %v942
  %v1343 = vpack.c.b16 %v947, %v945
  %v1344 = vpack.c.b16 %v948, %v946
  %v1345 = vpack.c.b16 %v951, %v949
  %v1346 = vpack.c.b16 %v952, %v950
  %v1347 = vpack.c.b16 %v955, %v953
  %v1348 = vpack.c.b16 %v956, %v954
  %v1349 = vpack.c.b16 %v959, %v957
  %v1350 = vpack.c.b16 %v960, %v958
  %v1351 = vpack.c.b16 %v963, %v961
  %v1352 = vpack.c.b16 %v964, %v962
  %v1353 = vpack.c.b16 %v967, %v965
  %v1354 = vpack.c.b16 %v968, %v966
  %v1355 = vpack.c.b16 %v971, %v969
  %v1356 = vpack.c.b16 %v972, %v970
  %v1357 = vpack.c.b16 %v975, %v973
  %v1358 = vpack.c.b16 %v976, %v974
  %v1359 = vpack.c.b16 %v979, %v977
  %v1360 = vpack.c.b16 %v980, %v978
  %v1361 = vpack.c.b16 %v983, %v981
  %v1362 = vpack.c.b16 %v984, %v982
  %v1363 = vpack.c.b16 %v987, %v985
  %v1364 = vpack.c.b16 %v988, %v986
  %v1365 = vpack.c.b16 %v991, %v989
  %v1366 = vpack.c.b16 %v992, %v990
  %v1367 = vpack.c.b16 %v995, %v993
  %v1368 = vpack.c.b16 %v996, %v994
  %v1369 = vpack.c.b16 %v999, %v997
  %v1370 = vpack.c.b16 %v1000, %v998
  %v1371 = vpack.c.b16 %v1003, %v1001
  %v1372 = vpack.c.b16 %v1004, %v1002
  %v1373 = vpack.c.b16 %v1007, %v1005
  %v1374 = vpack.c.b16 %v1008, %v1006
  %v1375 = vpack.c.b16 %v1011, %v1009
  %v1376 = vpack.c.b16 %v1012, %v1010
  %v1377 = vpack.c.b16 %v1015, %v1013
  %v1378 = vpack.c.b16 %v1016, %v1014
  %v1379 = vpack.c.b16 %v1019, %v1017
  %v1380 = vpack.c.b16 %v1020, %v1018
  %v1381 = vpack.c.b16 %v1023, %v1021
  %v1382 = vpack.c.b16 %v1024, %v1022
  %v1383 = vpack.c.b16 %v1027, %v1025
  %v1384 = vpack.c.b16 %v1028, %v1026
  %v1385 = vpack.c.b16 %v1031, %v1029
  %v1386 = vpack.c.b16 %v1032, %v1030
  %v1387 = vpack.c.b16 %v1035, %v1033
  %v1388 = vpack.c.b16 %v1036, %v1034
  %v1389 = vpack.c.b16 %v1039, %v1037
  %v1390 = vpack.c.b16 %v1040, %v1038
  %v1391 = vpack.c.b16 %v1043, %v1041
  %v1392 = vpack.c.b16 %v1044, %v1042
  %v1393 = vpack.c.b16 %v1047, %v1045
  %v1394 = vpack.c.b16 %v1048, %v1046
  %v1395 = vpack.c.b16 %v1051, %v1049
  %v1396 = vpack.c.b16 %v1052, %v1050
  %v1397 = vpack.c.b16 %v1055, %v1053
  %v1398 = vpack.c.b16 %v1056, %v1054
  %v1399 = vpack.c.b16 %v1059, %v1057
  %v1400 = vpack.c.b16 %v1060, %v1058
  %v1401 = vpack.c.b16 %v1063, %v1061
  %v1402 = vpack.c.b16 %v1064, %v1062
  %v1403 = vpack.c.b16 %v1067, %v1065
  %v1404 = vpack.c.b16 %v1068, %v1066
  %v1405 = vpack.c.b16 %v1071, %v1069
  %v1406 = vpack.c.b16 %v1072, %v1070
  %v1407 = vpack.c.b16 %v1075, %v1073
  %v1408 = vpack.c.b16 %v1076, %v1074
  %v1409 = vpack.c.b16 %v1079, %v1077
  %v1410 = vpack.c.b16 %v1080, %v1078
  %v1411 = vpack.c.b16 %v1083, %v1081
  %v1412 = vpack.c.b16 %v1084, %v1082
  %v1413 = vpack.c.b16 %v1087, %v1085
  %v1414 = vpack.c.b16 %v1088, %v1086
  %v1415 = vpack.c.b16 %v1091, %v1089
  %v1416 = vpack.c.b16 %v1092, %v1090
  %v1417 = vpack.c.b16 %v1095, %v1093
  %v1418 = vpack.c.b16 %v1096, %v1094
  %v1419 = vpack.c.b16 %v1099, %v1097
  %v1420 = vpack.c.b16 %v1100, %v1098
  %v1421 = vpack.c.b16 %v1103, %v1101
  %v1422 = vpack.c.b16 %v1104, %v1102
  %v1423 = vpack.c.b16 %v1107, %v1105
  %v1424 = vpack.c.b16 %v1108, %v1106
  %v1425 = vpack.c.b16 %v1111, %v1109
  %v1426 = vpack.c.b16 %v1112, %v1110
  %v1427 = vpack.c.b16 %v1115, %v1113
  %v1428 = vpack.c.b16 %v1116, %v1114
  %v1429 = vpack.c.b16 %v1119, %v1117
  %v1430 = vpack.c.b16 %v1120, %v1118
  %v1431 = vpack.c.b16 %v1123, %v1121
  %v1432 = vpack.c.b16 %v1124, %v1122
  %v1433 = vpack.c.b16 %v1127, %v1125
  %v1434 = vpack.c.b16 %v1128, %v1126
  %v1435 = vpack.c.b16 %v1131, %v1129
  %v1436 = vpack.c.b16 %v1132, %v1130
  %v1437 = vpack.c.b16 %v1135, %v1133
  %v1438 = vpack.c.b16 %v1136, %v1134
  %v1439 = vpack.c.b16 %v1139, %v1137
  %v1440 = vpack.c.b16 %v1140, %v1138
  %v1441 = vpack.c.b16 %v1143, %v1141
  %v1442 = vpack.c.b16 %v1144, %v1142
  %v1443 = vpack.c.b16 %v1147, %v1145
  %v1444 = vpack.c.b16 %v1148, %v1146
  %v1445 = vpack.c.b16 %v1151, %v1149
  %v1446 = vpack.c.b16 %v1152, %v1150
  %v1447 = vpack.c.b16 %v1155, %v1153
  %v1448 = vpack.c.b16 %v1156, %v1154
  %v1449 = vpack.c.b16 %v1159, %v1157
  %v1450 = vpack.c.b16 %v1160, %v1158
  %v1451 = vpack.c.b16 %v1163, %v1161
  %v1452 = vpack.c.b16 %v1164, %v1162
  %v1453 = vpack.c.b16 %v1167, %v1165
  %v1454 = vpack.c.b16 %v1168, %v1166
  %v1455 = vpack.c.b16 %v1171, %v1169
  %v1456 = vpack.c.b16 %v1172, %v1170
  %v1457 = vpack.c.b16 %v1175, %v1173
  %v1458 = vpack.c.b16 %v1176, %v1174
  %v1459 = vpack.c.b16 %v1179, %v1177
  %v1460 = vpack.c.b16 %v1180, %v1178
  %v1461 = vpack.c.b16 %v1183, %v1181
  %v1462 = vpack.c.b16 %v1184, %v1182
  %v1463 = vpack.c.b16 %v1187, %v1185
  %v1464 = vpack.c.b16 %v1188, %v1186
  %v1465 = vpack.c.b16 %v1191, %v1189
  %v1466 = vpack.c.b16 %v1192, %v1190
  %v1467 = vpack.c.b16 %v1195, %v1193
  %v1468 = vpack.c.b16 %v1196, %v1194
  %v1469 = vpack.c.b16 %v1199, %v1197
  %v1470 = vpack.c.b16 %v1200, %v1198
  %v1471 = vpack.c.b16 %v1203, %v1201
  %v1472 = vpack.c.b16 %v1204, %v1202
  %v1473 = vpack.c.b16 %v1207, %v1205
  %v1474 = vpack.c.b16 %v1208, %v1206
  %v1475 = vpack.c.b16 %v1211, %v1209
  %v1476 = vpack.c.b16 %v1212, %v1210
  %v1477 = vpack.c.b16 %v1215, %v1213
  %v1478 = vpack.c.b16 %v1216, %v1214
  %v1479 = vpack.c.b16 %v1219, %v1217
  %v1480 = vpack.c.b16 %v1220, %v1218
  %v1481 = vpack.c.b16 %v1223, %v1221
  %v1482 = vpack.c.b16 %v1224, %v1222
  %v1483 = vpack.c.b16 %v1227, %v1225
  %v1484 = vpack.c.b16 %v1228, %v1226
  %1741 = vmatpush.bf16.msra.mxu0 %v1243
  %1742 = vmatpush.bf16.msra.mxu0 %v1241
  %1743 = vmatpush.bf16.msra.mxu0 %v1239
  %1744 = vmatpush.bf16.msra.mxu0 %v1237
  %1745 = vmatpush.bf16.msra.mxu0 %v1235
  %1746 = vmatpush.bf16.msra.mxu0 %v1233
  %1747 = vmatpush.bf16.msra.mxu0 %v1231
  %1748 = vmatpush.bf16.msra.mxu0 %v1229
  %1749 = vmatmul.bf16.gmra.mxu0 %v397
  %v1750 = vpop.f32.mrf.mxu0
  %v1751 = vadd.f32 0.0, %v1750
  %v1752 = vpop.f32.mrf.mxu0
  %v1753 = vadd.f32 0.0, %v1752
  %1754 = vmatmul.bf16.gmra.mxu0 %v413
  %v1755 = vpop.f32.mrf.mxu0
  %v1756 = vadd.f32 0.0, %v1755
  %v1757 = vpop.f32.mrf.mxu0
  %v1758 = vadd.f32 0.0, %v1757
  %1759 = vdwg.mxu0
  %1760 = vmatpush.bf16.msra.mxu0 %v1259
  %1761 = vmatpush.bf16.msra.mxu0 %v1257
  %1762 = vmatpush.bf16.msra.mxu0 %v1255
  %1763 = vmatpush.bf16.msra.mxu0 %v1253
  %1764 = vmatpush.bf16.msra.mxu0 %v1251
  %1765 = vmatpush.bf16.msra.mxu0 %v1249
  %1766 = vmatpush.bf16.msra.mxu0 %v1247
  %1767 = vmatpush.bf16.msra.mxu0 %v1245
  %1768 = vmatmul.bf16.gmra.mxu0 %v398
  %v1769 = vpop.f32.mrf.mxu0
  %v1770 = vadd.f32 %v1751, %v1769
  %v1771 = vpop.f32.mrf.mxu0
  %v1772 = vadd.f32 %v1753, %v1771
  %1773 = vmatmul.bf16.gmra.mxu0 %v414
  %v1774 = vpop.f32.mrf.mxu0
  %v1775 = vadd.f32 %v1756, %v1774
  %v1776 = vpop.f32.mrf.mxu0
  %v1777 = vadd.f32 %v1758, %v1776
  %1778 = vdwg.mxu0
  %1779 = vmatpush.bf16.msra.mxu0 %v1275
  %1780 = vmatpush.bf16.msra.mxu0 %v1273
  %1781 = vmatpush.bf16.msra.mxu0 %v1271
  %1782 = vmatpush.bf16.msra.mxu0 %v1269
  %1783 = vmatpush.bf16.msra.mxu0 %v1267
  %1784 = vmatpush.bf16.msra.mxu0 %v1265
  %1785 = vmatpush.bf16.msra.mxu0 %v1263
  %1786 = vmatpush.bf16.msra.mxu0 %v1261
  %1787 = vmatmul.bf16.gmra.mxu0 %v399
  %v1788 = vpop.f32.mrf.mxu0
  %v1789 = vadd.f32 %v1770, %v1788
  %v1790 = vpop.f32.mrf.mxu0
  %v1791 = vadd.f32 %v1772, %v1790
  %1792 = vmatmul.bf16.gmra.mxu0 %v415
  %v1793 = vpop.f32.mrf.mxu0
  %v1794 = vadd.f32 %v1775, %v1793
  %v1795 = vpop.f32.mrf.mxu0
  %v1796 = vadd.f32 %v1777, %v1795
  %1797 = vdwg.mxu0
  %1798 = vmatpush.bf16.msra.mxu0 %v1291
  %1799 = vmatpush.bf16.msra.mxu0 %v1289
  %1800 = vmatpush.bf16.msra.mxu0 %v1287
  %1801 = vmatpush.bf16.msra.mxu0 %v1285
  %1802 = vmatpush.bf16.msra.mxu0 %v1283
  %1803 = vmatpush.bf16.msra.mxu0 %v1281
  %1804 = vmatpush.bf16.msra.mxu0 %v1279
  %1805 = vmatpush.bf16.msra.mxu0 %v1277
  %1806 = vmatmul.bf16.gmra.mxu0 %v400
  %v1807 = vpop.f32.mrf.mxu0
  %v1808 = vadd.f32 %v1789, %v1807
  %v1809 = vpop.f32.mrf.mxu0
  %v1810 = vadd.f32 %v1791, %v1809
  %1811 = vmatmul.bf16.gmra.mxu0 %v416
  %v1812 = vpop.f32.mrf.mxu0
  %v1813 = vadd.f32 %v1794, %v1812
  %v1814 = vpop.f32.mrf.mxu0
  %v1815 = vadd.f32 %v1796, %v1814
  %1816 = vdwg.mxu0
  %1817 = vmatpush.bf16.msra.mxu0 %v1307
  %1818 = vmatpush.bf16.msra.mxu0 %v1305
  %1819 = vmatpush.bf16.msra.mxu0 %v1303
  %1820 = vmatpush.bf16.msra.mxu0 %v1301
  %1821 = vmatpush.bf16.msra.mxu0 %v1299
  %1822 = vmatpush.bf16.msra.mxu0 %v1297
  %1823 = vmatpush.bf16.msra.mxu0 %v1295
  %1824 = vmatpush.bf16.msra.mxu0 %v1293
  %1825 = vmatmul.bf16.gmra.mxu0 %v401
  %v1826 = vpop.f32.mrf.mxu0
  %v1827 = vadd.f32 %v1808, %v1826
  %v1828 = vpop.f32.mrf.mxu0
  %v1829 = vadd.f32 %v1810, %v1828
  %1830 = vmatmul.bf16.gmra.mxu0 %v417
  %v1831 = vpop.f32.mrf.mxu0
  %v1832 = vadd.f32 %v1813, %v1831
  %v1833 = vpop.f32.mrf.mxu0
  %v1834 = vadd.f32 %v1815, %v1833
  %1835 = vdwg.mxu0
  %1836 = vmatpush.bf16.msra.mxu0 %v1323
  %1837 = vmatpush.bf16.msra.mxu0 %v1321
  %1838 = vmatpush.bf16.msra.mxu0 %v1319
  %1839 = vmatpush.bf16.msra.mxu0 %v1317
  %1840 = vmatpush.bf16.msra.mxu0 %v1315
  %1841 = vmatpush.bf16.msra.mxu0 %v1313
  %1842 = vmatpush.bf16.msra.mxu0 %v1311
  %1843 = vmatpush.bf16.msra.mxu0 %v1309
  %1844 = vmatmul.bf16.gmra.mxu0 %v402
  %v1845 = vpop.f32.mrf.mxu0
  %v1846 = vadd.f32 %v1827, %v1845
  %v1847 = vpop.f32.mrf.mxu0
  %v1848 = vadd.f32 %v1829, %v1847
  %1849 = vmatmul.bf16.gmra.mxu0 %v418
  %v1850 = vpop.f32.mrf.mxu0
  %v1851 = vadd.f32 %v1832, %v1850
  %v1852 = vpop.f32.mrf.mxu0
  %v1853 = vadd.f32 %v1834, %v1852
  %1854 = vdwg.mxu0
  %1855 = vmatpush.bf16.msra.mxu0 %v1339
  %1856 = vmatpush.bf16.msra.mxu0 %v1337
  %1857 = vmatpush.bf16.msra.mxu0 %v1335
  %1858 = vmatpush.bf16.msra.mxu0 %v1333
  %1859 = vmatpush.bf16.msra.mxu0 %v1331
  %1860 = vmatpush.bf16.msra.mxu0 %v1329
  %1861 = vmatpush.bf16.msra.mxu0 %v1327
  %1862 = vmatpush.bf16.msra.mxu0 %v1325
  %1863 = vmatmul.bf16.gmra.mxu0 %v403
  %v1864 = vpop.f32.mrf.mxu0
  %v1865 = vadd.f32 %v1846, %v1864
  %v1866 = vpop.f32.mrf.mxu0
  %v1867 = vadd.f32 %v1848, %v1866
  %1868 = vmatmul.bf16.gmra.mxu0 %v419
  %v1869 = vpop.f32.mrf.mxu0
  %v1870 = vadd.f32 %v1851, %v1869
  %v1871 = vpop.f32.mrf.mxu0
  %v1872 = vadd.f32 %v1853, %v1871
  %1873 = vdwg.mxu0
  %1874 = vmatpush.bf16.msra.mxu0 %v1355
  %1875 = vmatpush.bf16.msra.mxu0 %v1353
  %1876 = vmatpush.bf16.msra.mxu0 %v1351
  %1877 = vmatpush.bf16.msra.mxu0 %v1349
  %1878 = vmatpush.bf16.msra.mxu0 %v1347
  %1879 = vmatpush.bf16.msra.mxu0 %v1345
  %1880 = vmatpush.bf16.msra.mxu0 %v1343
  %1881 = vmatpush.bf16.msra.mxu0 %v1341
  %1882 = vmatmul.bf16.gmra.mxu0 %v404
  %v1883 = vpop.f32.mrf.mxu0
  %v1884 = vadd.f32 %v1865, %v1883
  %v1885 = vpop.f32.mrf.mxu0
  %v1886 = vadd.f32 %v1867, %v1885
  %1887 = vmatmul.bf16.gmra.mxu0 %v420
  %v1888 = vpop.f32.mrf.mxu0
  %v1889 = vadd.f32 %v1870, %v1888
  %v1890 = vpop.f32.mrf.mxu0
  %v1891 = vadd.f32 %v1872, %v1890
  %1892 = vdwg.mxu0
  %1893 = vmatpush.bf16.msra.mxu0 %v1371
  %1894 = vmatpush.bf16.msra.mxu0 %v1369
  %1895 = vmatpush.bf16.msra.mxu0 %v1367
  %1896 = vmatpush.bf16.msra.mxu0 %v1365
  %1897 = vmatpush.bf16.msra.mxu0 %v1363
  %1898 = vmatpush.bf16.msra.mxu0 %v1361
  %1899 = vmatpush.bf16.msra.mxu0 %v1359
  %1900 = vmatpush.bf16.msra.mxu0 %v1357
  %1901 = vmatmul.bf16.gmra.mxu0 %v405
  %v1902 = vpop.f32.mrf.mxu0
  %v1903 = vadd.f32 %v1884, %v1902
  %v1904 = vpop.f32.mrf.mxu0
  %v1905 = vadd.f32 %v1886, %v1904
  %1906 = vmatmul.bf16.gmra.mxu0 %v421
  %v1907 = vpop.f32.mrf.mxu0
  %v1908 = vadd.f32 %v1889, %v1907
  %v1909 = vpop.f32.mrf.mxu0
  %v1910 = vadd.f32 %v1891, %v1909
  %1911 = vdwg.mxu0
  %1912 = vmatpush.bf16.msra.mxu0 %v1387
  %1913 = vmatpush.bf16.msra.mxu0 %v1385
  %1914 = vmatpush.bf16.msra.mxu0 %v1383
  %1915 = vmatpush.bf16.msra.mxu0 %v1381
  %1916 = vmatpush.bf16.msra.mxu0 %v1379
  %1917 = vmatpush.bf16.msra.mxu0 %v1377
  %1918 = vmatpush.bf16.msra.mxu0 %v1375
  %1919 = vmatpush.bf16.msra.mxu0 %v1373
  %1920 = vmatmul.bf16.gmra.mxu0 %v406
  %v1921 = vpop.f32.mrf.mxu0
  %v1922 = vadd.f32 %v1903, %v1921
  %v1923 = vpop.f32.mrf.mxu0
  %v1924 = vadd.f32 %v1905, %v1923
  %1925 = vmatmul.bf16.gmra.mxu0 %v422
  %v1926 = vpop.f32.mrf.mxu0
  %v1927 = vadd.f32 %v1908, %v1926
  %v1928 = vpop.f32.mrf.mxu0
  %v1929 = vadd.f32 %v1910, %v1928
  %1930 = vdwg.mxu0
  %1931 = vmatpush.bf16.msra.mxu0 %v1403
  %1932 = vmatpush.bf16.msra.mxu0 %v1401
  %1933 = vmatpush.bf16.msra.mxu0 %v1399
  %1934 = vmatpush.bf16.msra.mxu0 %v1397
  %1935 = vmatpush.bf16.msra.mxu0 %v1395
  %1936 = vmatpush.bf16.msra.mxu0 %v1393
  %1937 = vmatpush.bf16.msra.mxu0 %v1391
  %1938 = vmatpush.bf16.msra.mxu0 %v1389
  %1939 = vmatmul.bf16.gmra.mxu0 %v407
  %v1940 = vpop.f32.mrf.mxu0
  %v1941 = vadd.f32 %v1922, %v1940
  %v1942 = vpop.f32.mrf.mxu0
  %v1943 = vadd.f32 %v1924, %v1942
  %1944 = vmatmul.bf16.gmra.mxu0 %v423
  %v1945 = vpop.f32.mrf.mxu0
  %v1946 = vadd.f32 %v1927, %v1945
  %v1947 = vpop.f32.mrf.mxu0
  %v1948 = vadd.f32 %v1929, %v1947
  %1949 = vdwg.mxu0
  %1950 = vmatpush.bf16.msra.mxu0 %v1419
  %1951 = vmatpush.bf16.msra.mxu0 %v1417
  %1952 = vmatpush.bf16.msra.mxu0 %v1415
  %1953 = vmatpush.bf16.msra.mxu0 %v1413
  %1954 = vmatpush.bf16.msra.mxu0 %v1411
  %1955 = vmatpush.bf16.msra.mxu0 %v1409
  %1956 = vmatpush.bf16.msra.mxu0 %v1407
  %1957 = vmatpush.bf16.msra.mxu0 %v1405
  %1958 = vmatmul.bf16.gmra.mxu0 %v408
  %v1959 = vpop.f32.mrf.mxu0
  %v1960 = vadd.f32 %v1941, %v1959
  %v1961 = vpop.f32.mrf.mxu0
  %v1962 = vadd.f32 %v1943, %v1961
  %1963 = vmatmul.bf16.gmra.mxu0 %v424
  %v1964 = vpop.f32.mrf.mxu0
  %v1965 = vadd.f32 %v1946, %v1964
  %v1966 = vpop.f32.mrf.mxu0
  %v1967 = vadd.f32 %v1948, %v1966
  %1968 = vdwg.mxu0
  %1969 = vmatpush.bf16.msra.mxu0 %v1435
  %1970 = vmatpush.bf16.msra.mxu0 %v1433
  %1971 = vmatpush.bf16.msra.mxu0 %v1431
  %1972 = vmatpush.bf16.msra.mxu0 %v1429
  %1973 = vmatpush.bf16.msra.mxu0 %v1427
  %1974 = vmatpush.bf16.msra.mxu0 %v1425
  %1975 = vmatpush.bf16.msra.mxu0 %v1423
  %1976 = vmatpush.bf16.msra.mxu0 %v1421
  %1977 = vmatmul.bf16.gmra.mxu0 %v409
  %v1978 = vpop.f32.mrf.mxu0
  %v1979 = vadd.f32 %v1960, %v1978
  %v1980 = vpop.f32.mrf.mxu0
  %v1981 = vadd.f32 %v1962, %v1980
  %1982 = vmatmul.bf16.gmra.mxu0 %v425
  %v1983 = vpop.f32.mrf.mxu0
  %v1984 = vadd.f32 %v1965, %v1983
  %v1985 = vpop.f32.mrf.mxu0
  %v1986 = vadd.f32 %v1967, %v1985
  %1987 = vdwg.mxu0
  %1988 = vmatpush.bf16.msra.mxu0 %v1451
  %1989 = vmatpush.bf16.msra.mxu0 %v1449
  %1990 = vmatpush.bf16.msra.mxu0 %v1447
  %1991 = vmatpush.bf16.msra.mxu0 %v1445
  %1992 = vmatpush.bf16.msra.mxu0 %v1443
  %1993 = vmatpush.bf16.msra.mxu0 %v1441
  %1994 = vmatpush.bf16.msra.mxu0 %v1439
  %1995 = vmatpush.bf16.msra.mxu0 %v1437
  %1996 = vmatmul.bf16.gmra.mxu0 %v410
  %v1997 = vpop.f32.mrf.mxu0
  %v1998 = vadd.f32 %v1979, %v1997
  %v1999 = vpop.f32.mrf.mxu0
  %v2000 = vadd.f32 %v1981, %v1999
  %2001 = vmatmul.bf16.gmra.mxu0 %v426
  %v2002 = vpop.f32.mrf.mxu0
  %v2003 = vadd.f32 %v1984, %v2002
  %v2004 = vpop.f32.mrf.mxu0
  %v2005 = vadd.f32 %v1986, %v2004
  %2006 = vdwg.mxu0
  %2007 = vmatpush.bf16.msra.mxu0 %v1467
  %2008 = vmatpush.bf16.msra.mxu0 %v1465
  %2009 = vmatpush.bf16.msra.mxu0 %v1463
  %2010 = vmatpush.bf16.msra.mxu0 %v1461
  %2011 = vmatpush.bf16.msra.mxu0 %v1459
  %2012 = vmatpush.bf16.msra.mxu0 %v1457
  %2013 = vmatpush.bf16.msra.mxu0 %v1455
  %2014 = vmatpush.bf16.msra.mxu0 %v1453
  %2015 = vmatmul.bf16.gmra.mxu0 %v411
  %v2016 = vpop.f32.mrf.mxu0
  %v2017 = vadd.f32 %v1998, %v2016
  %v2018 = vpop.f32.mrf.mxu0
  %v2019 = vadd.f32 %v2000, %v2018
  %2020 = vmatmul.bf16.gmra.mxu0 %v427
  %v2021 = vpop.f32.mrf.mxu0
  %v2022 = vadd.f32 %v2003, %v2021
  %v2023 = vpop.f32.mrf.mxu0
  %v2024 = vadd.f32 %v2005, %v2023
  %2025 = vdwg.mxu0
  %2026 = vmatpush.bf16.msra.mxu0 %v1483
  %2027 = vmatpush.bf16.msra.mxu0 %v1481
  %2028 = vmatpush.bf16.msra.mxu0 %v1479
  %2029 = vmatpush.bf16.msra.mxu0 %v1477
  %2030 = vmatpush.bf16.msra.mxu0 %v1475
  %2031 = vmatpush.bf16.msra.mxu0 %v1473
  %2032 = vmatpush.bf16.msra.mxu0 %v1471
  %2033 = vmatpush.bf16.msra.mxu0 %v1469
  %2034 = vmatmul.bf16.gmra.mxu0 %v412
  %v2035 = vpop.f32.mrf.mxu0
  %v2036 = vadd.f32 %v2017, %v2035
  %v2037 = vpop.f32.mrf.mxu0
  %v2038 = vadd.f32 %v2019, %v2037
  %2039 = vmatmul.bf16.gmra.mxu0 %v428
  %v2040 = vpop.f32.mrf.mxu0
  %v2041 = vadd.f32 %v2022, %v2040
  %v2042 = vpop.f32.mrf.mxu0
  %v2043 = vadd.f32 %v2024, %v2042
  %2044 = vdwg.mxu0
  %2045 = vmatpush.bf16.msra.mxu0 %v1244
  %2046 = vmatpush.bf16.msra.mxu0 %v1242
  %2047 = vmatpush.bf16.msra.mxu0 %v1240
  %2048 = vmatpush.bf16.msra.mxu0 %v1238
  %2049 = vmatpush.bf16.msra.mxu0 %v1236
  %2050 = vmatpush.bf16.msra.mxu0 %v1234
  %2051 = vmatpush.bf16.msra.mxu0 %v1232
  %2052 = vmatpush.bf16.msra.mxu0 %v1230
  %2053 = vmatmul.bf16.gmra.mxu0 %v397
  %v2054 = vpop.f32.mrf.mxu0
  %v2055 = vadd.f32 0.0, %v2054
  %v2056 = vpop.f32.mrf.mxu0
  %v2057 = vadd.f32 0.0, %v2056
  %2058 = vmatmul.bf16.gmra.mxu0 %v413
  %v2059 = vpop.f32.mrf.mxu0
  %v2060 = vadd.f32 0.0, %v2059
  %v2061 = vpop.f32.mrf.mxu0
  %v2062 = vadd.f32 0.0, %v2061
  %2063 = vdwg.mxu0
  %2064 = vmatpush.bf16.msra.mxu0 %v1260
  %2065 = vmatpush.bf16.msra.mxu0 %v1258
  %2066 = vmatpush.bf16.msra.mxu0 %v1256
  %2067 = vmatpush.bf16.msra.mxu0 %v1254
  %2068 = vmatpush.bf16.msra.mxu0 %v1252
  %2069 = vmatpush.bf16.msra.mxu0 %v1250
  %2070 = vmatpush.bf16.msra.mxu0 %v1248
  %2071 = vmatpush.bf16.msra.mxu0 %v1246
  %2072 = vmatmul.bf16.gmra.mxu0 %v398
  %v2073 = vpop.f32.mrf.mxu0
  %v2074 = vadd.f32 %v2055, %v2073
  %v2075 = vpop.f32.mrf.mxu0
  %v2076 = vadd.f32 %v2057, %v2075
  %2077 = vmatmul.bf16.gmra.mxu0 %v414
  %v2078 = vpop.f32.mrf.mxu0
  %v2079 = vadd.f32 %v2060, %v2078
  %v2080 = vpop.f32.mrf.mxu0
  %v2081 = vadd.f32 %v2062, %v2080
  %2082 = vdwg.mxu0
  %2083 = vmatpush.bf16.msra.mxu0 %v1276
  %2084 = vmatpush.bf16.msra.mxu0 %v1274
  %2085 = vmatpush.bf16.msra.mxu0 %v1272
  %2086 = vmatpush.bf16.msra.mxu0 %v1270
  %2087 = vmatpush.bf16.msra.mxu0 %v1268
  %2088 = vmatpush.bf16.msra.mxu0 %v1266
  %2089 = vmatpush.bf16.msra.mxu0 %v1264
  %2090 = vmatpush.bf16.msra.mxu0 %v1262
  %2091 = vmatmul.bf16.gmra.mxu0 %v399
  %v2092 = vpop.f32.mrf.mxu0
  %v2093 = vadd.f32 %v2074, %v2092
  %v2094 = vpop.f32.mrf.mxu0
  %v2095 = vadd.f32 %v2076, %v2094
  %2096 = vmatmul.bf16.gmra.mxu0 %v415
  %v2097 = vpop.f32.mrf.mxu0
  %v2098 = vadd.f32 %v2079, %v2097
  %v2099 = vpop.f32.mrf.mxu0
  %v2100 = vadd.f32 %v2081, %v2099
  %2101 = vdwg.mxu0
  %2102 = vmatpush.bf16.msra.mxu0 %v1292
  %2103 = vmatpush.bf16.msra.mxu0 %v1290
  %2104 = vmatpush.bf16.msra.mxu0 %v1288
  %2105 = vmatpush.bf16.msra.mxu0 %v1286
  %2106 = vmatpush.bf16.msra.mxu0 %v1284
  %2107 = vmatpush.bf16.msra.mxu0 %v1282
  %2108 = vmatpush.bf16.msra.mxu0 %v1280
  %2109 = vmatpush.bf16.msra.mxu0 %v1278
  %2110 = vmatmul.bf16.gmra.mxu0 %v400
  %v2111 = vpop.f32.mrf.mxu0
  %v2112 = vadd.f32 %v2093, %v2111
  %v2113 = vpop.f32.mrf.mxu0
  %v2114 = vadd.f32 %v2095, %v2113
  %2115 = vmatmul.bf16.gmra.mxu0 %v416
  %v2116 = vpop.f32.mrf.mxu0
  %v2117 = vadd.f32 %v2098, %v2116
  %v2118 = vpop.f32.mrf.mxu0
  %v2119 = vadd.f32 %v2100, %v2118
  %2120 = vdwg.mxu0
  %2121 = vmatpush.bf16.msra.mxu0 %v1308
  %2122 = vmatpush.bf16.msra.mxu0 %v1306
  %2123 = vmatpush.bf16.msra.mxu0 %v1304
  %2124 = vmatpush.bf16.msra.mxu0 %v1302
  %2125 = vmatpush.bf16.msra.mxu0 %v1300
  %2126 = vmatpush.bf16.msra.mxu0 %v1298
  %2127 = vmatpush.bf16.msra.mxu0 %v1296
  %2128 = vmatpush.bf16.msra.mxu0 %v1294
  %2129 = vmatmul.bf16.gmra.mxu0 %v401
  %v2130 = vpop.f32.mrf.mxu0
  %v2131 = vadd.f32 %v2112, %v2130
  %v2132 = vpop.f32.mrf.mxu0
  %v2133 = vadd.f32 %v2114, %v2132
  %2134 = vmatmul.bf16.gmra.mxu0 %v417
  %v2135 = vpop.f32.mrf.mxu0
  %v2136 = vadd.f32 %v2117, %v2135
  %v2137 = vpop.f32.mrf.mxu0
  %v2138 = vadd.f32 %v2119, %v2137
  %2139 = vdwg.mxu0
  %2140 = vmatpush.bf16.msra.mxu0 %v1324
  %2141 = vmatpush.bf16.msra.mxu0 %v1322
  %2142 = vmatpush.bf16.msra.mxu0 %v1320
  %2143 = vmatpush.bf16.msra.mxu0 %v1318
  %2144 = vmatpush.bf16.msra.mxu0 %v1316
  %2145 = vmatpush.bf16.msra.mxu0 %v1314
  %2146 = vmatpush.bf16.msra.mxu0 %v1312
  %2147 = vmatpush.bf16.msra.mxu0 %v1310
  %2148 = vmatmul.bf16.gmra.mxu0 %v402
  %v2149 = vpop.f32.mrf.mxu0
  %v2150 = vadd.f32 %v2131, %v2149
  %v2151 = vpop.f32.mrf.mxu0
  %v2152 = vadd.f32 %v2133, %v2151
  %2153 = vmatmul.bf16.gmra.mxu0 %v418
  %v2154 = vpop.f32.mrf.mxu0
  %v2155 = vadd.f32 %v2136, %v2154
  %v2156 = vpop.f32.mrf.mxu0
  %v2157 = vadd.f32 %v2138, %v2156
  %2158 = vdwg.mxu0
  %2159 = vmatpush.bf16.msra.mxu0 %v1340
  %2160 = vmatpush.bf16.msra.mxu0 %v1338
  %2161 = vmatpush.bf16.msra.mxu0 %v1336
  %2162 = vmatpush.bf16.msra.mxu0 %v1334
  %2163 = vmatpush.bf16.msra.mxu0 %v1332
  %2164 = vmatpush.bf16.msra.mxu0 %v1330
  %2165 = vmatpush.bf16.msra.mxu0 %v1328
  %2166 = vmatpush.bf16.msra.mxu0 %v1326
  %2167 = vmatmul.bf16.gmra.mxu0 %v403
  %v2168 = vpop.f32.mrf.mxu0
  %v2169 = vadd.f32 %v2150, %v2168
  %v2170 = vpop.f32.mrf.mxu0
  %v2171 = vadd.f32 %v2152, %v2170
  %2172 = vmatmul.bf16.gmra.mxu0 %v419
  %v2173 = vpop.f32.mrf.mxu0
  %v2174 = vadd.f32 %v2155, %v2173
  %v2175 = vpop.f32.mrf.mxu0
  %v2176 = vadd.f32 %v2157, %v2175
  %2177 = vdwg.mxu0
  %2178 = vmatpush.bf16.msra.mxu0 %v1356
  %2179 = vmatpush.bf16.msra.mxu0 %v1354
  %2180 = vmatpush.bf16.msra.mxu0 %v1352
  %2181 = vmatpush.bf16.msra.mxu0 %v1350
  %2182 = vmatpush.bf16.msra.mxu0 %v1348
  %2183 = vmatpush.bf16.msra.mxu0 %v1346
  %2184 = vmatpush.bf16.msra.mxu0 %v1344
  %2185 = vmatpush.bf16.msra.mxu0 %v1342
  %2186 = vmatmul.bf16.gmra.mxu0 %v404
  %v2187 = vpop.f32.mrf.mxu0
  %v2188 = vadd.f32 %v2169, %v2187
  %v2189 = vpop.f32.mrf.mxu0
  %v2190 = vadd.f32 %v2171, %v2189
  %2191 = vmatmul.bf16.gmra.mxu0 %v420
  %v2192 = vpop.f32.mrf.mxu0
  %v2193 = vadd.f32 %v2174, %v2192
  %v2194 = vpop.f32.mrf.mxu0
  %v2195 = vadd.f32 %v2176, %v2194
  %2196 = vdwg.mxu0
  %2197 = vmatpush.bf16.msra.mxu0 %v1372
  %2198 = vmatpush.bf16.msra.mxu0 %v1370
  %2199 = vmatpush.bf16.msra.mxu0 %v1368
  %2200 = vmatpush.bf16.msra.mxu0 %v1366
  %2201 = vmatpush.bf16.msra.mxu0 %v1364
  %2202 = vmatpush.bf16.msra.mxu0 %v1362
  %2203 = vmatpush.bf16.msra.mxu0 %v1360
  %2204 = vmatpush.bf16.msra.mxu0 %v1358
  %2205 = vmatmul.bf16.gmra.mxu0 %v405
  %v2206 = vpop.f32.mrf.mxu0
  %v2207 = vadd.f32 %v2188, %v2206
  %v2208 = vpop.f32.mrf.mxu0
  %v2209 = vadd.f32 %v2190, %v2208
  %2210 = vmatmul.bf16.gmra.mxu0 %v421
  %v2211 = vpop.f32.mrf.mxu0
  %v2212 = vadd.f32 %v2193, %v2211
  %v2213 = vpop.f32.mrf.mxu0
  %v2214 = vadd.f32 %v2195, %v2213
  %2215 = vdwg.mxu0
  %2216 = vmatpush.bf16.msra.mxu0 %v1388
  %2217 = vmatpush.bf16.msra.mxu0 %v1386
  %2218 = vmatpush.bf16.msra.mxu0 %v1384
  %2219 = vmatpush.bf16.msra.mxu0 %v1382
  %2220 = vmatpush.bf16.msra.mxu0 %v1380
  %2221 = vmatpush.bf16.msra.mxu0 %v1378
  %2222 = vmatpush.bf16.msra.mxu0 %v1376
  %2223 = vmatpush.bf16.msra.mxu0 %v1374
  %2224 = vmatmul.bf16.gmra.mxu0 %v406
  %v2225 = vpop.f32.mrf.mxu0
  %v2226 = vadd.f32 %v2207, %v2225
  %v2227 = vpop.f32.mrf.mxu0
  %v2228 = vadd.f32 %v2209, %v2227
  %2229 = vmatmul.bf16.gmra.mxu0 %v422
  %v2230 = vpop.f32.mrf.mxu0
  %v2231 = vadd.f32 %v2212, %v2230
  %v2232 = vpop.f32.mrf.mxu0
  %v2233 = vadd.f32 %v2214, %v2232
  %2234 = vdwg.mxu0
  %2235 = vmatpush.bf16.msra.mxu0 %v1404
  %2236 = vmatpush.bf16.msra.mxu0 %v1402
  %2237 = vmatpush.bf16.msra.mxu0 %v1400
  %2238 = vmatpush.bf16.msra.mxu0 %v1398
  %2239 = vmatpush.bf16.msra.mxu0 %v1396
  %2240 = vmatpush.bf16.msra.mxu0 %v1394
  %2241 = vmatpush.bf16.msra.mxu0 %v1392
  %2242 = vmatpush.bf16.msra.mxu0 %v1390
  %2243 = vmatmul.bf16.gmra.mxu0 %v407
  %v2244 = vpop.f32.mrf.mxu0
  %v2245 = vadd.f32 %v2226, %v2244
  %v2246 = vpop.f32.mrf.mxu0
  %v2247 = vadd.f32 %v2228, %v2246
  %2248 = vmatmul.bf16.gmra.mxu0 %v423
  %v2249 = vpop.f32.mrf.mxu0
  %v2250 = vadd.f32 %v2231, %v2249
  %v2251 = vpop.f32.mrf.mxu0
  %v2252 = vadd.f32 %v2233, %v2251
  %2253 = vdwg.mxu0
  %2254 = vmatpush.bf16.msra.mxu0 %v1420
  %2255 = vmatpush.bf16.msra.mxu0 %v1418
  %2256 = vmatpush.bf16.msra.mxu0 %v1416
  %2257 = vmatpush.bf16.msra.mxu0 %v1414
  %2258 = vmatpush.bf16.msra.mxu0 %v1412
  %2259 = vmatpush.bf16.msra.mxu0 %v1410
  %2260 = vmatpush.bf16.msra.mxu0 %v1408
  %2261 = vmatpush.bf16.msra.mxu0 %v1406
  %2262 = vmatmul.bf16.gmra.mxu0 %v408
  %v2263 = vpop.f32.mrf.mxu0
  %v2264 = vadd.f32 %v2245, %v2263
  %v2265 = vpop.f32.mrf.mxu0
  %v2266 = vadd.f32 %v2247, %v2265
  %2267 = vmatmul.bf16.gmra.mxu0 %v424
  %v2268 = vpop.f32.mrf.mxu0
  %v2269 = vadd.f32 %v2250, %v2268
  %v2270 = vpop.f32.mrf.mxu0
  %v2271 = vadd.f32 %v2252, %v2270
  %2272 = vdwg.mxu0
  %2273 = vmatpush.bf16.msra.mxu0 %v1436
  %2274 = vmatpush.bf16.msra.mxu0 %v1434
  %2275 = vmatpush.bf16.msra.mxu0 %v1432
  %2276 = vmatpush.bf16.msra.mxu0 %v1430
  %2277 = vmatpush.bf16.msra.mxu0 %v1428
  %2278 = vmatpush.bf16.msra.mxu0 %v1426
  %2279 = vmatpush.bf16.msra.mxu0 %v1424
  %2280 = vmatpush.bf16.msra.mxu0 %v1422
  %2281 = vmatmul.bf16.gmra.mxu0 %v409
  %v2282 = vpop.f32.mrf.mxu0
  %v2283 = vadd.f32 %v2264, %v2282
  %v2284 = vpop.f32.mrf.mxu0
  %v2285 = vadd.f32 %v2266, %v2284
  %2286 = vmatmul.bf16.gmra.mxu0 %v425
  %v2287 = vpop.f32.mrf.mxu0
  %v2288 = vadd.f32 %v2269, %v2287
  %v2289 = vpop.f32.mrf.mxu0
  %v2290 = vadd.f32 %v2271, %v2289
  %2291 = vdwg.mxu0
  %2292 = vmatpush.bf16.msra.mxu0 %v1452
  %2293 = vmatpush.bf16.msra.mxu0 %v1450
  %2294 = vmatpush.bf16.msra.mxu0 %v1448
  %2295 = vmatpush.bf16.msra.mxu0 %v1446
  %2296 = vmatpush.bf16.msra.mxu0 %v1444
  %2297 = vmatpush.bf16.msra.mxu0 %v1442
  %2298 = vmatpush.bf16.msra.mxu0 %v1440
  %2299 = vmatpush.bf16.msra.mxu0 %v1438
  %2300 = vmatmul.bf16.gmra.mxu0 %v410
  %v2301 = vpop.f32.mrf.mxu0
  %v2302 = vadd.f32 %v2283, %v2301
  %v2303 = vpop.f32.mrf.mxu0
  %v2304 = vadd.f32 %v2285, %v2303
  %2305 = vmatmul.bf16.gmra.mxu0 %v426
  %v2306 = vpop.f32.mrf.mxu0
  %v2307 = vadd.f32 %v2288, %v2306
  %v2308 = vpop.f32.mrf.mxu0
  %v2309 = vadd.f32 %v2290, %v2308
  %2310 = vdwg.mxu0
  %2311 = vmatpush.bf16.msra.mxu0 %v1468
  %2312 = vmatpush.bf16.msra.mxu0 %v1466
  %2313 = vmatpush.bf16.msra.mxu0 %v1464
  %2314 = vmatpush.bf16.msra.mxu0 %v1462
  %2315 = vmatpush.bf16.msra.mxu0 %v1460
  %2316 = vmatpush.bf16.msra.mxu0 %v1458
  %2317 = vmatpush.bf16.msra.mxu0 %v1456
  %2318 = vmatpush.bf16.msra.mxu0 %v1454
  %2319 = vmatmul.bf16.gmra.mxu0 %v411
  %v2320 = vpop.f32.mrf.mxu0
  %v2321 = vadd.f32 %v2302, %v2320
  %v2322 = vpop.f32.mrf.mxu0
  %v2323 = vadd.f32 %v2304, %v2322
  %2324 = vmatmul.bf16.gmra.mxu0 %v427
  %v2325 = vpop.f32.mrf.mxu0
  %v2326 = vadd.f32 %v2307, %v2325
  %v2327 = vpop.f32.mrf.mxu0
  %v2328 = vadd.f32 %v2309, %v2327
  %2329 = vdwg.mxu0
  %2330 = vmatpush.bf16.msra.mxu0 %v1484
  %2331 = vmatpush.bf16.msra.mxu0 %v1482
  %2332 = vmatpush.bf16.msra.mxu0 %v1480
  %2333 = vmatpush.bf16.msra.mxu0 %v1478
  %2334 = vmatpush.bf16.msra.mxu0 %v1476
  %2335 = vmatpush.bf16.msra.mxu0 %v1474
  %2336 = vmatpush.bf16.msra.mxu0 %v1472
  %2337 = vmatpush.bf16.msra.mxu0 %v1470
  %2338 = vmatmul.bf16.gmra.mxu0 %v412
  %v2339 = vpop.f32.mrf.mxu0
  %v2340 = vadd.f32 %v2321, %v2339
  %v2341 = vpop.f32.mrf.mxu0
  %v2342 = vadd.f32 %v2323, %v2341
  %2343 = vmatmul.bf16.gmra.mxu0 %v428
  %v2344 = vpop.f32.mrf.mxu0
  %v2345 = vadd.f32 %v2326, %v2344
  %v2346 = vpop.f32.mrf.mxu0
  %v2347 = vadd.f32 %v2328, %v2346
  %2348 = vdwg.mxu0
  %v2349 = vadd.f32 %v2036, %v2038
  %v2350 = vadd.f32 %v2349, %v2041
  %v2351 = vadd.f32 %v2350, %v2043
  %v2352 = vrot.slane %v2351, 4
  %v2353 = vadd.f32 %v2351, %v2352
  %v2354 = vrot.slane %v2353, 2
  %v2355 = vadd.f32 %v2353, %v2354
  %v2356 = vrot.slane %v2355, 1
  %v2357 = vadd.f32 %v2355, %v2356
  %v2358 = vadd.f32 %v2340, %v2342
  %v2359 = vadd.f32 %v2358, %v2345
  %v2360 = vadd.f32 %v2359, %v2347
  %v2361 = vrot.slane %v2360, 4
  %v2362 = vadd.f32 %v2360, %v2361
  %v2363 = vrot.slane %v2362, 2
  %v2364 = vadd.f32 %v2362, %v2363
  %v2365 = vrot.slane %v2364, 1
  %v2366 = vadd.f32 %v2364, %v2365
  %v2369 = vrot.slane %v2366, 7
  %vm2370 = vcmask 1040384
  %v2371 = vsel %vm2370, %v2357, %v2369
  %v2373 = vlaneseq
  %vm2374 = vcmp.ge.s32.totalorder %v2373, 0
  %vm2375 = vcmp.lt.s32.totalorder %v2373, 256
  %vm2376 = vmand %vm2374, %vm2375
  %2377 = vst.msk [vmem:[%s3] ss:$2 sm:$0x3] %vm2376, %v2371
  %v2378 = vmul.f32 %v2036, %v2036
  %v2379 = vmul.f32 %v2340, %v2340
  %v2380 = vmul.f32 %v2038, %v2038
  %v2381 = vmul.f32 %v2342, %v2342
  %v2382 = vmul.f32 %v2041, %v2041
  %v2383 = vmul.f32 %v2345, %v2345
  %v2384 = vmul.f32 %v2043, %v2043
  %v2385 = vmul.f32 %v2347, %v2347
  %v2386 = vadd.f32 %v2378, %v2380
  %v2387 = vadd.f32 %v2386, %v2382
  %v2388 = vadd.f32 %v2387, %v2384
  %v2389 = vrot.slane %v2388, 4
  %v2390 = vadd.f32 %v2388, %v2389
  %v2391 = vrot.slane %v2390, 2
  %v2392 = vadd.f32 %v2390, %v2391
  %v2393 = vrot.slane %v2392, 1
  %v2394 = vadd.f32 %v2392, %v2393
  %v2395 = vadd.f32 %v2379, %v2381
  %v2396 = vadd.f32 %v2395, %v2383
  %v2397 = vadd.f32 %v2396, %v2385
  %v2398 = vrot.slane %v2397, 4
  %v2399 = vadd.f32 %v2397, %v2398
  %v2400 = vrot.slane %v2399, 2
  %v2401 = vadd.f32 %v2399, %v2400
  %v2402 = vrot.slane %v2401, 1
  %v2403 = vadd.f32 %v2401, %v2402
  %v2406 = vrot.slane %v2403, 7
  %v2407 = vsel %vm2370, %v2394, %v2406
  %s2409 = scalar_lea.vmem %s3, 1
  %2410 = vst.msk [vmem:[%s2409] ss:$2 sm:$0x3] %vm2376, %v2407
  %v2411 = vpack.c.bf16 %v2340, %v2036
  %v2412 = vpack.c.bf16 %v2342, %v2038
  %v2413 = vpack.c.bf16 %v2345, %v2041
  %v2414 = vpack.c.bf16 %v2347, %v2043
  %2415 = vst [vmem:[%s2] sm:$0xff] %v2411
  %2416 = vst [vmem:[%s2 + $0x8] sm:$0xff] %v2412
  %2417 = vst [vmem:[%s2 + $0x10] sm:$0xff] %v2413
  %2418 = vst [vmem:[%s2 + $0x18] sm:$0xff] %v2414
  // Predicated region
  $region10: #{discriminator_forward.11} parent=0 // pred_check
    _
  $region11: #{discriminator_forward.11} parent=0 // pred_check_branch
    %2420 = sbr.rel (0) target = $region13
  $region12: #{discriminator_forward.11} parent=0 // pred_region
    _
  $region13: #{discriminator_forward.11} parent=0 // pred_fallthru
    _
  // Predicated region
  $region14: #{discriminator_forward.11} parent=0 // pred_check
    _
  $region15: #{discriminator_forward.11} parent=0 // pred_check_branch
    %2422 = sbr.rel (0) target = $region17
  $region16: #{discriminator_forward.11} parent=0 // pred_region
    _
  $region17: #{discriminator_forward.11} parent=0 // pred_fallthru
    _
  // Predicated region
  $region18: #{discriminator_forward.11} parent=0 // pred_check
    _
  $region19: #{discriminator_forward.11} parent=0 // pred_check_branch
    %2424 = sbr.rel (0) target = $region21
  $region20: #{discriminator_forward.11} parent=0 // pred_region
    _
  $region21: #{discriminator_forward.11} parent=0 // pred_fallthru
    _
  // Predicated region
  $region22: #{discriminator_forward.11} parent=0 // pred_check
    _
  $region23: #{discriminator_forward.11} parent=0 // pred_check_branch
    %2426 = sbr.rel (0) target = $region25
  $region24: #{discriminator_forward.11} parent=0 // pred_region
    _
  $region25: #{discriminator_forward.11} parent=0 // pred_fallthru
    _

// kernel: discriminator_forward.12
$region0: #{discriminator_forward.12}
  #allocation0 [shape = 'u32[]', space=smem, size = 0x4, offset = 0x4, fixed_abs, tag = 'smem constant byte address 0x4 - core index']
  #allocation1 [shape = 'u32[72,128]{1,0:T(1,128)}', space=vmem, size = 0x9000, scoped, tag = 'internal scratch']
  %s0 = inlined_call_operand.vmem [shape: bf16[32,256], index: 0, kind: input, shape index: {}]
  %s1 = inlined_call_operand.vmem [shape: f32[1,256], index: 1, kind: input, shape index: {}]
  %s2 = inlined_call_operand.vmem [shape: f32[1,256], index: 2, kind: input, shape index: {}]
  %s3 = inlined_call_operand.vmem [shape: bf16[32,256], index: 3, kind: output, shape index: {}]
  %s4 = sld [smem:[#allocation0]]
  $region22: #{discriminator_forward.12} parent=0
    _
  %s6 = ssub.s32 1, %s4
  %s7 = scalar_select 0, %s6, %s4
  // Predicated region
  $region2: #{discriminator_forward.12} parent=0 // pred_check
    _
  $region3: #{discriminator_forward.12} parent=0 // pred_check_branch
    %9 = sbr.rel (0) target = $region5
  $region4: #{discriminator_forward.12} parent=0 // pred_region
    _
  $region5: #{discriminator_forward.12} parent=0 // pred_fallthru
    _
  // Predicated region
  $region6: #{discriminator_forward.12} parent=0 // pred_check
    _
  $region7: #{discriminator_forward.12} parent=0 // pred_check_branch
    %11 = sbr.rel (0) target = $region9
  $region8: #{discriminator_forward.12} parent=0 // pred_region
    _
  $region9: #{discriminator_forward.12} parent=0 // pred_fallthru
    _
  // Predicated region
  $region10: #{discriminator_forward.12} parent=0 // pred_check
    _
  $region11: #{discriminator_forward.12} parent=0 // pred_check_branch
    %13 = sbr.rel (0) target = $region13
  $region12: #{discriminator_forward.12} parent=0 // pred_region
    _
  $region13: #{discriminator_forward.12} parent=0 // pred_fallthru
    _
  %v14 = vld [vmem:[%s0] sm:$0xff]
  %v15 = vld [vmem:[%s0 + $0x8] sm:$0xff]
  %v16 = vld [vmem:[%s0 + $0x10] sm:$0xff]
  %v17 = vld [vmem:[%s0 + $0x18] sm:$0xff]
  %v18 = vunpack.c.l.bf16 %v14
  %v19 = vunpack.c.h.bf16 %v14
  %v20 = vunpack.c.l.bf16 %v15
  %v21 = vunpack.c.h.bf16 %v15
  %v22 = vunpack.c.l.bf16 %v16
  %v23 = vunpack.c.h.bf16 %v16
  %v24 = vunpack.c.l.bf16 %v17
  %v25 = vunpack.c.h.bf16 %v17
  %v26 = vld [vmem:[%s1] sm:$0x3]
  %v28 = vperm.slane %v26, 0
  %v29 = vperm.slane %v26, 1
  %v32 = vmul.f32 %v18, %v28
  %v33 = vmul.f32 %v19, %v29
  %v34 = vmul.f32 %v20, %v28
  %v35 = vmul.f32 %v21, %v29
  %v36 = vmul.f32 %v22, %v28
  %v37 = vmul.f32 %v23, %v29
  %v38 = vmul.f32 %v24, %v28
  %v39 = vmul.f32 %v25, %v29
  %v40 = vld [vmem:[%s2] sm:$0x3]
  %v42 = vperm.slane %v40, 0
  %v43 = vperm.slane %v40, 1
  %v46 = vadd.f32 %v32, %v42
  %v47 = vadd.f32 %v33, %v43
  %v48 = vadd.f32 %v34, %v42
  %v49 = vadd.f32 %v35, %v43
  %v50 = vadd.f32 %v36, %v42
  %v51 = vadd.f32 %v37, %v43
  %v52 = vadd.f32 %v38, %v42
  %v53 = vadd.f32 %v39, %v43
  %vm54 = vcmp.gt.f32.partialorder %v46, 0.0
  %vm55 = vcmp.gt.f32.partialorder %v47, 0.0
  %vm56 = vcmp.gt.f32.partialorder %v48, 0.0
  %vm57 = vcmp.gt.f32.partialorder %v49, 0.0
  %vm58 = vcmp.gt.f32.partialorder %v50, 0.0
  %vm59 = vcmp.gt.f32.partialorder %v51, 0.0
  %vm60 = vcmp.gt.f32.partialorder %v52, 0.0
  %vm61 = vcmp.gt.f32.partialorder %v53, 0.0
  %v62 = vmul.f32 %v46, 0.2
  %v63 = vmul.f32 %v47, 0.2
  %v64 = vmul.f32 %v48, 0.2
  %v65 = vmul.f32 %v49, 0.2
  %v66 = vmul.f32 %v50, 0.2
  %v67 = vmul.f32 %v51, 0.2
  %v68 = vmul.f32 %v52, 0.2
  %v69 = vmul.f32 %v53, 0.2
  %v70 = vsel %vm54, %v46, %v62
  %v71 = vsel %vm55, %v47, %v63
  %v72 = vsel %vm56, %v48, %v64
  %v73 = vsel %vm57, %v49, %v65
  %v74 = vsel %vm58, %v50, %v66
  %v75 = vsel %vm59, %v51, %v67
  %v76 = vsel %vm60, %v52, %v68
  %v77 = vsel %vm61, %v53, %v69
  %v78 = vpack.c.bf16 %v71, %v70
  %v79 = vpack.c.bf16 %v73, %v72
  %v80 = vpack.c.bf16 %v75, %v74
  %v81 = vpack.c.bf16 %v77, %v76
  %82 = vst [vmem:[%s3] sm:$0xff] %v78
  %83 = vst [vmem:[%s3 + $0x8] sm:$0xff] %v79
  %84 = vst [vmem:[%s3 + $0x10] sm:$0xff] %v80
  %85 = vst [vmem:[%s3 + $0x18] sm:$0xff] %v81
  // Predicated region
  $region14: #{discriminator_forward.12} parent=0 // pred_check
    _
  $region15: #{discriminator_forward.12} parent=0 // pred_check_branch
    %87 = sbr.rel (0) target = $region17
  $region16: #{discriminator_forward.12} parent=0 // pred_region
    _
  $region17: #{discriminator_forward.12} parent=0 // pred_fallthru
    _
  // Predicated region
  $region18: #{discriminator_forward.12} parent=0 // pred_check
    _
  $region19: #{discriminator_forward.12} parent=0 // pred_check_branch
    %89 = sbr.rel (0) target = $region21
  $region20: #{discriminator_forward.12} parent=0 // pred_region
    _
  $region21: #{discriminator_forward.12} parent=0 // pred_fallthru
    _

// kernel: discriminator_forward.13
$region0: #{discriminator_forward.13}
  #allocation0 [shape = 'u32[]', space=smem, size = 0x4, offset = 0x4, fixed_abs, tag = 'smem constant byte address 0x4 - core index']
  #allocation1 [shape = 'u32[72,128]{1,0:T(1,128)}', space=vmem, size = 0x9000, scoped, tag = 'internal scratch']
  %s0 = inlined_call_operand.vmem [shape: bf16[16,4096], index: 0, kind: input, shape index: {}]
  %s1 = inlined_call_operand.vmem [shape: bf16[4096,128], index: 1, kind: input, shape index: {}]
  %s2 = inlined_call_operand.vmem [shape: f32[16,128], index: 2, kind: output, shape index: {}]
  %s3 = sld [smem:[#allocation0]]
  $region18: #{discriminator_forward.13} parent=0
    _
  %s5 = ssub.s32 1, %s3
  %s6 = scalar_select 0, %s5, %s3
  // Predicated region
  $region2: #{discriminator_forward.13} parent=0 // pred_check
    _
  $region3: #{discriminator_forward.13} parent=0 // pred_check_branch
    %8 = sbr.rel (0) target = $region5
  $region4: #{discriminator_forward.13} parent=0 // pred_region
    _
  $region5: #{discriminator_forward.13} parent=0 // pred_fallthru
    _
  // Predicated region
  $region6: #{discriminator_forward.13} parent=0 // pred_check
    _
  $region7: #{discriminator_forward.13} parent=0 // pred_check_branch
    %10 = sbr.rel (0) target = $region9
  $region8: #{discriminator_forward.13} parent=0 // pred_region
    _
  $region9: #{discriminator_forward.13} parent=0 // pred_fallthru
    _
  %v11 = vld [vmem:[%s0] sm:$0xff]
  %v12 = vld [vmem:[%s0 + $0x8] sm:$0xff]
  %v13 = vld [vmem:[%s0 + $0x10] sm:$0xff]
  %v14 = vld [vmem:[%s0 + $0x18] sm:$0xff]
  %v15 = vld [vmem:[%s0 + $0x20] sm:$0xff]
  %v16 = vld [vmem:[%s0 + $0x28] sm:$0xff]
  %v17 = vld [vmem:[%s0 + $0x30] sm:$0xff]
  %v18 = vld [vmem:[%s0 + $0x38] sm:$0xff]
  %v19 = vld [vmem:[%s0 + $0x40] sm:$0xff]
  %v20 = vld [vmem:[%s0 + $0x48] sm:$0xff]
  %v21 = vld [vmem:[%s0 + $0x50] sm:$0xff]
  %v22 = vld [vmem:[%s0 + $0x58] sm:$0xff]
  %v23 = vld [vmem:[%s0 + $0x60] sm:$0xff]
  %v24 = vld [vmem:[%s0 + $0x68] sm:$0xff]
  %v25 = vld [vmem:[%s0 + $0x70] sm:$0xff]
  %v26 = vld [vmem:[%s0 + $0x78] sm:$0xff]
  %v27 = vld [vmem:[%s0 + $0x80] sm:$0xff]
  %v28 = vld [vmem:[%s0 + $0x88] sm:$0xff]
  %v29 = vld [vmem:[%s0 + $0x90] sm:$0xff]
  %v30 = vld [vmem:[%s0 + $0x98] sm:$0xff]
  %v31 = vld [vmem:[%s0 + $0xa0] sm:$0xff]
  %v32 = vld [vmem:[%s0 + $0xa8] sm:$0xff]
  %v33 = vld [vmem:[%s0 + $0xb0] sm:$0xff]
  %v34 = vld [vmem:[%s0 + $0xb8] sm:$0xff]
  %v35 = vld [vmem:[%s0 + $0xc0] sm:$0xff]
  %v36 = vld [vmem:[%s0 + $0xc8] sm:$0xff]
  %v37 = vld [vmem:[%s0 + $0xd0] sm:$0xff]
  %v38 = vld [vmem:[%s0 + $0xd8] sm:$0xff]
  %v39 = vld [vmem:[%s0 + $0xe0] sm:$0xff]
  %v40 = vld [vmem:[%s0 + $0xe8] sm:$0xff]
  %v41 = vld [vmem:[%s0 + $0xf0] sm:$0xff]
  %v42 = vld [vmem:[%s0 + $0xf8] sm:$0xff]
  %v43 = vld [vmem:[%s1] sm:$0xf]
  %v44 = vld [vmem:[%s1 + $0x4] sm:$0xf]
  %v45 = vld [vmem:[%s1 + $0x8] sm:$0xf]
  %v46 = vld [vmem:[%s1 + $0xc] sm:$0xf]
  %v47 = vld [vmem:[%s1 + $0x10] sm:$0xf]
  %v48 = vld [vmem:[%s1 + $0x14] sm:$0xf]
  %v49 = vld [vmem:[%s1 + $0x18] sm:$0xf]
  %v50 = vld [vmem:[%s1 + $0x1c] sm:$0xf]
  %v51 = vld [vmem:[%s1 + $0x20] sm:$0xf]
  %v52 = vld [vmem:[%s1 + $0x24] sm:$0xf]
  %v53 = vld [vmem:[%s1 + $0x28] sm:$0xf]
  %v54 = vld [vmem:[%s1 + $0x2c] sm:$0xf]
  %v55 = vld [vmem:[%s1 + $0x30] sm:$0xf]
  %v56 = vld [vmem:[%s1 + $0x34] sm:$0xf]
  %v57 = vld [vmem:[%s1 + $0x38] sm:$0xf]
  %v58 = vld [vmem:[%s1 + $0x3c] sm:$0xf]
  %v59 = vld [vmem:[%s1 + $0x40] sm:$0xf]
  %v60 = vld [vmem:[%s1 + $0x44] sm:$0xf]
  %v61 = vld [vmem:[%s1 + $0x48] sm:$0xf]
  %v62 = vld [vmem:[%s1 + $0x4c] sm:$0xf]
  %v63 = vld [vmem:[%s1 + $0x50] sm:$0xf]
  %v64 = vld [vmem:[%s1 + $0x54] sm:$0xf]
  %v65 = vld [vmem:[%s1 + $0x58] sm:$0xf]
  %v66 = vld [vmem:[%s1 + $0x5c] sm:$0xf]
  %v67 = vld [vmem:[%s1 + $0x60] sm:$0xf]
  %v68 = vld [vmem:[%s1 + $0x64] sm:$0xf]
  %v69 = vld [vmem:[%s1 + $0x68] sm:$0xf]
  %v70 = vld [vmem:[%s1 + $0x6c] sm:$0xf]
  %v71 = vld [vmem:[%s1 + $0x70] sm:$0xf]
  %v72 = vld [vmem:[%s1 + $0x74] sm:$0xf]
  %v73 = vld [vmem:[%s1 + $0x78] sm:$0xf]
  %v74 = vld [vmem:[%s1 + $0x7c] sm:$0xf]
  %v75 = vld [vmem:[%s1 + $0x80] sm:$0xf]
  %v76 = vld [vmem:[%s1 + $0x84] sm:$0xf]
  %v77 = vld [vmem:[%s1 + $0x88] sm:$0xf]
  %v78 = vld [vmem:[%s1 + $0x8c] sm:$0xf]
  %v79 = vld [vmem:[%s1 + $0x90] sm:$0xf]
  %v80 = vld [vmem:[%s1 + $0x94] sm:$0xf]
  %v81 = vld [vmem:[%s1 + $0x98] sm:$0xf]
  %v82 = vld [vmem:[%s1 + $0x9c] sm:$0xf]
  %v83 = vld [vmem:[%s1 + $0xa0] sm:$0xf]
  %v84 = vld [vmem:[%s1 + $0xa4] sm:$0xf]
  %v85 = vld [vmem:[%s1 + $0xa8] sm:$0xf]
  %v86 = vld [vmem:[%s1 + $0xac] sm:$0xf]
  %v87 = vld [vmem:[%s1 + $0xb0] sm:$0xf]
  %v88 = vld [vmem:[%s1 + $0xb4] sm:$0xf]
  %v89 = vld [vmem:[%s1 + $0xb8] sm:$0xf]
  %v90 = vld [vmem:[%s1 + $0xbc] sm:$0xf]
  %v91 = vld [vmem:[%s1 + $0xc0] sm:$0xf]
  %v92 = vld [vmem:[%s1 + $0xc4] sm:$0xf]
  %v93 = vld [vmem:[%s1 + $0xc8] sm:$0xf]
  %v94 = vld [vmem:[%s1 + $0xcc] sm:$0xf]
  %v95 = vld [vmem:[%s1 + $0xd0] sm:$0xf]
  %v96 = vld [vmem:[%s1 + $0xd4] sm:$0xf]
  %v97 = vld [vmem:[%s1 + $0xd8] sm:$0xf]
  %v98 = vld [vmem:[%s1 + $0xdc] sm:$0xf]
  %v99 = vld [vmem:[%s1 + $0xe0] sm:$0xf]
  %v100 = vld [vmem:[%s1 + $0xe4] sm:$0xf]
  %v101 = vld [vmem:[%s1 + $0xe8] sm:$0xf]
  %v102 = vld [vmem:[%s1 + $0xec] sm:$0xf]
  %v103 = vld [vmem:[%s1 + $0xf0] sm:$0xf]
  %v104 = vld [vmem:[%s1 + $0xf4] sm:$0xf]
  %v105 = vld [vmem:[%s1 + $0xf8] sm:$0xf]
  %v106 = vld [vmem:[%s1 + $0xfc] sm:$0xf]
  %v107 = vld [vmem:[%s1 + $0x100] sm:$0xf]
  %v108 = vld [vmem:[%s1 + $0x104] sm:$0xf]
  %v109 = vld [vmem:[%s1 + $0x108] sm:$0xf]
  %v110 = vld [vmem:[%s1 + $0x10c] sm:$0xf]
  %v111 = vld [vmem:[%s1 + $0x110] sm:$0xf]
  %v112 = vld [vmem:[%s1 + $0x114] sm:$0xf]
  %v113 = vld [vmem:[%s1 + $0x118] sm:$0xf]
  %v114 = vld [vmem:[%s1 + $0x11c] sm:$0xf]
  %v115 = vld [vmem:[%s1 + $0x120] sm:$0xf]
  %v116 = vld [vmem:[%s1 + $0x124] sm:$0xf]
  %v117 = vld [vmem:[%s1 + $0x128] sm:$0xf]
  %v118 = vld [vmem:[%s1 + $0x12c] sm:$0xf]
  %v119 = vld [vmem:[%s1 + $0x130] sm:$0xf]
  %v120 = vld [vmem:[%s1 + $0x134] sm:$0xf]
  %v121 = vld [vmem:[%s1 + $0x138] sm:$0xf]
  %v122 = vld [vmem:[%s1 + $0x13c] sm:$0xf]
  %v123 = vld [vmem:[%s1 + $0x140] sm:$0xf]
  %v124 = vld [vmem:[%s1 + $0x144] sm:$0xf]
  %v125 = vld [vmem:[%s1 + $0x148] sm:$0xf]
  %v126 = vld [vmem:[%s1 + $0x14c] sm:$0xf]
  %v127 = vld [vmem:[%s1 + $0x150] sm:$0xf]
  %v128 = vld [vmem:[%s1 + $0x154] sm:$0xf]
  %v129 = vld [vmem:[%s1 + $0x158] sm:$0xf]
  %v130 = vld [vmem:[%s1 + $0x15c] sm:$0xf]
  %v131 = vld [vmem:[%s1 + $0x160] sm:$0xf]
  %v132 = vld [vmem:[%s1 + $0x164] sm:$0xf]
  %v133 = vld [vmem:[%s1 + $0x168] sm:$0xf]
  %v134 = vld [vmem:[%s1 + $0x16c] sm:$0xf]
  %v135 = vld [vmem:[%s1 + $0x170] sm:$0xf]
  %v136 = vld [vmem:[%s1 + $0x174] sm:$0xf]
  %v137 = vld [vmem:[%s1 + $0x178] sm:$0xf]
  %v138 = vld [vmem:[%s1 + $0x17c] sm:$0xf]
  %v139 = vld [vmem:[%s1 + $0x180] sm:$0xf]
  %v140 = vld [vmem:[%s1 + $0x184] sm:$0xf]
  %v141 = vld [vmem:[%s1 + $0x188] sm:$0xf]
  %v142 = vld [vmem:[%s1 + $0x18c] sm:$0xf]
  %v143 = vld [vmem:[%s1 + $0x190] sm:$0xf]
  %v144 = vld [vmem:[%s1 + $0x194] sm:$0xf]
  %v145 = vld [vmem:[%s1 + $0x198] sm:$0xf]
  %v146 = vld [vmem:[%s1 + $0x19c] sm:$0xf]
  %v147 = vld [vmem:[%s1 + $0x1a0] sm:$0xf]
  %v148 = vld [vmem:[%s1 + $0x1a4] sm:$0xf]
  %v149 = vld [vmem:[%s1 + $0x1a8] sm:$0xf]
  %v150 = vld [vmem:[%s1 + $0x1ac] sm:$0xf]
  %v151 = vld [vmem:[%s1 + $0x1b0] sm:$0xf]
  %v152 = vld [vmem:[%s1 + $0x1b4] sm:$0xf]
  %v153 = vld [vmem:[%s1 + $0x1b8] sm:$0xf]
  %v154 = vld [vmem:[%s1 + $0x1bc] sm:$0xf]
  %v155 = vld [vmem:[%s1 + $0x1c0] sm:$0xf]
  %v156 = vld [vmem:[%s1 + $0x1c4] sm:$0xf]
  %v157 = vld [vmem:[%s1 + $0x1c8] sm:$0xf]
  %v158 = vld [vmem:[%s1 + $0x1cc] sm:$0xf]
  %v159 = vld [vmem:[%s1 + $0x1d0] sm:$0xf]
  %v160 = vld [vmem:[%s1 + $0x1d4] sm:$0xf]
  %v161 = vld [vmem:[%s1 + $0x1d8] sm:$0xf]
  %v162 = vld [vmem:[%s1 + $0x1dc] sm:$0xf]
  %v163 = vld [vmem:[%s1 + $0x1e0] sm:$0xf]
  %v164 = vld [vmem:[%s1 + $0x1e4] sm:$0xf]
  %v165 = vld [vmem:[%s1 + $0x1e8] sm:$0xf]
  %v166 = vld [vmem:[%s1 + $0x1ec] sm:$0xf]
  %v167 = vld [vmem:[%s1 + $0x1f0] sm:$0xf]
  %v168 = vld [vmem:[%s1 + $0x1f4] sm:$0xf]
  %v169 = vld [vmem:[%s1 + $0x1f8] sm:$0xf]
  %v170 = vld [vmem:[%s1 + $0x1fc] sm:$0xf]
  %v171 = vld [vmem:[%s1 + $0x200] sm:$0xf]
  %v172 = vld [vmem:[%s1 + $0x204] sm:$0xf]
  %v173 = vld [vmem:[%s1 + $0x208] sm:$0xf]
  %v174 = vld [vmem:[%s1 + $0x20c] sm:$0xf]
  %v175 = vld [vmem:[%s1 + $0x210] sm:$0xf]
  %v176 = vld [vmem:[%s1 + $0x214] sm:$0xf]
  %v177 = vld [vmem:[%s1 + $0x218] sm:$0xf]
  %v178 = vld [vmem:[%s1 + $0x21c] sm:$0xf]
  %v179 = vld [vmem:[%s1 + $0x220] sm:$0xf]
  %v180 = vld [vmem:[%s1 + $0x224] sm:$0xf]
  %v181 = vld [vmem:[%s1 + $0x228] sm:$0xf]
  %v182 = vld [vmem:[%s1 + $0x22c] sm:$0xf]
  %v183 = vld [vmem:[%s1 + $0x230] sm:$0xf]
  %v184 = vld [vmem:[%s1 + $0x234] sm:$0xf]
  %v185 = vld [vmem:[%s1 + $0x238] sm:$0xf]
  %v186 = vld [vmem:[%s1 + $0x23c] sm:$0xf]
  %v187 = vld [vmem:[%s1 + $0x240] sm:$0xf]
  %v188 = vld [vmem:[%s1 + $0x244] sm:$0xf]
  %v189 = vld [vmem:[%s1 + $0x248] sm:$0xf]
  %v190 = vld [vmem:[%s1 + $0x24c] sm:$0xf]
  %v191 = vld [vmem:[%s1 + $0x250] sm:$0xf]
  %v192 = vld [vmem:[%s1 + $0x254] sm:$0xf]
  %v193 = vld [vmem:[%s1 + $0x258] sm:$0xf]
  %v194 = vld [vmem:[%s1 + $0x25c] sm:$0xf]
  %v195 = vld [vmem:[%s1 + $0x260] sm:$0xf]
  %v196 = vld [vmem:[%s1 + $0x264] sm:$0xf]
  %v197 = vld [vmem:[%s1 + $0x268] sm:$0xf]
  %v198 = vld [vmem:[%s1 + $0x26c] sm:$0xf]
  %v199 = vld [vmem:[%s1 + $0x270] sm:$0xf]
  %v200 = vld [vmem:[%s1 + $0x274] sm:$0xf]
  %v201 = vld [vmem:[%s1 + $0x278] sm:$0xf]
  %v202 = vld [vmem:[%s1 + $0x27c] sm:$0xf]
  %v203 = vld [vmem:[%s1 + $0x280] sm:$0xf]
  %v204 = vld [vmem:[%s1 + $0x284] sm:$0xf]
  %v205 = vld [vmem:[%s1 + $0x288] sm:$0xf]
  %v206 = vld [vmem:[%s1 + $0x28c] sm:$0xf]
  %v207 = vld [vmem:[%s1 + $0x290] sm:$0xf]
  %v208 = vld [vmem:[%s1 + $0x294] sm:$0xf]
  %v209 = vld [vmem:[%s1 + $0x298] sm:$0xf]
  %v210 = vld [vmem:[%s1 + $0x29c] sm:$0xf]
  %v211 = vld [vmem:[%s1 + $0x2a0] sm:$0xf]
  %v212 = vld [vmem:[%s1 + $0x2a4] sm:$0xf]
  %v213 = vld [vmem:[%s1 + $0x2a8] sm:$0xf]
  %v214 = vld [vmem:[%s1 + $0x2ac] sm:$0xf]
  %v215 = vld [vmem:[%s1 + $0x2b0] sm:$0xf]
  %v216 = vld [vmem:[%s1 + $0x2b4] sm:$0xf]
  %v217 = vld [vmem:[%s1 + $0x2b8] sm:$0xf]
  %v218 = vld [vmem:[%s1 + $0x2bc] sm:$0xf]
  %v219 = vld [vmem:[%s1 + $0x2c0] sm:$0xf]
  %v220 = vld [vmem:[%s1 + $0x2c4] sm:$0xf]
  %v221 = vld [vmem:[%s1 + $0x2c8] sm:$0xf]
  %v222 = vld [vmem:[%s1 + $0x2cc] sm:$0xf]
  %v223 = vld [vmem:[%s1 + $0x2d0] sm:$0xf]
  %v224 = vld [vmem:[%s1 + $0x2d4] sm:$0xf]
  %v225 = vld [vmem:[%s1 + $0x2d8] sm:$0xf]
  %v226 = vld [vmem:[%s1 + $0x2dc] sm:$0xf]
  %v227 = vld [vmem:[%s1 + $0x2e0] sm:$0xf]
  %v228 = vld [vmem:[%s1 + $0x2e4] sm:$0xf]
  %v229 = vld [vmem:[%s1 + $0x2e8] sm:$0xf]
  %v230 = vld [vmem:[%s1 + $0x2ec] sm:$0xf]
  %v231 = vld [vmem:[%s1 + $0x2f0] sm:$0xf]
  %v232 = vld [vmem:[%s1 + $0x2f4] sm:$0xf]
  %v233 = vld [vmem:[%s1 + $0x2f8] sm:$0xf]
  %v234 = vld [vmem:[%s1 + $0x2fc] sm:$0xf]
  %v235 = vld [vmem:[%s1 + $0x300] sm:$0xf]
  %v236 = vld [vmem:[%s1 + $0x304] sm:$0xf]
  %v237 = vld [vmem:[%s1 + $0x308] sm:$0xf]
  %v238 = vld [vmem:[%s1 + $0x30c] sm:$0xf]
  %v239 = vld [vmem:[%s1 + $0x310] sm:$0xf]
  %v240 = vld [vmem:[%s1 + $0x314] sm:$0xf]
  %v241 = vld [vmem:[%s1 + $0x318] sm:$0xf]
  %v242 = vld [vmem:[%s1 + $0x31c] sm:$0xf]
  %v243 = vld [vmem:[%s1 + $0x320] sm:$0xf]
  %v244 = vld [vmem:[%s1 + $0x324] sm:$0xf]
  %v245 = vld [vmem:[%s1 + $0x328] sm:$0xf]
  %v246 = vld [vmem:[%s1 + $0x32c] sm:$0xf]
  %v247 = vld [vmem:[%s1 + $0x330] sm:$0xf]
  %v248 = vld [vmem:[%s1 + $0x334] sm:$0xf]
  %v249 = vld [vmem:[%s1 + $0x338] sm:$0xf]
  %v250 = vld [vmem:[%s1 + $0x33c] sm:$0xf]
  %v251 = vld [vmem:[%s1 + $0x340] sm:$0xf]
  %v252 = vld [vmem:[%s1 + $0x344] sm:$0xf]
  %v253 = vld [vmem:[%s1 + $0x348] sm:$0xf]
  %v254 = vld [vmem:[%s1 + $0x34c] sm:$0xf]
  %v255 = vld [vmem:[%s1 + $0x350] sm:$0xf]
  %v256 = vld [vmem:[%s1 + $0x354] sm:$0xf]
  %v257 = vld [vmem:[%s1 + $0x358] sm:$0xf]
  %v258 = vld [vmem:[%s1 + $0x35c] sm:$0xf]
  %v259 = vld [vmem:[%s1 + $0x360] sm:$0xf]
  %v260 = vld [vmem:[%s1 + $0x364] sm:$0xf]
  %v261 = vld [vmem:[%s1 + $0x368] sm:$0xf]
  %v262 = vld [vmem:[%s1 + $0x36c] sm:$0xf]
  %v263 = vld [vmem:[%s1 + $0x370] sm:$0xf]
  %v264 = vld [vmem:[%s1 + $0x374] sm:$0xf]
  %v265 = vld [vmem:[%s1 + $0x378] sm:$0xf]
  %v266 = vld [vmem:[%s1 + $0x37c] sm:$0xf]
  %v267 = vld [vmem:[%s1 + $0x380] sm:$0xf]
  %v268 = vld [vmem:[%s1 + $0x384] sm:$0xf]
  %v269 = vld [vmem:[%s1 + $0x388] sm:$0xf]
  %v270 = vld [vmem:[%s1 + $0x38c] sm:$0xf]
  %v271 = vld [vmem:[%s1 + $0x390] sm:$0xf]
  %v272 = vld [vmem:[%s1 + $0x394] sm:$0xf]
  %v273 = vld [vmem:[%s1 + $0x398] sm:$0xf]
  %v274 = vld [vmem:[%s1 + $0x39c] sm:$0xf]
  %v275 = vld [vmem:[%s1 + $0x3a0] sm:$0xf]
  %v276 = vld [vmem:[%s1 + $0x3a4] sm:$0xf]
  %v277 = vld [vmem:[%s1 + $0x3a8] sm:$0xf]
  %v278 = vld [vmem:[%s1 + $0x3ac] sm:$0xf]
  %v279 = vld [vmem:[%s1 + $0x3b0] sm:$0xf]
  %v280 = vld [vmem:[%s1 + $0x3b4] sm:$0xf]
  %v281 = vld [vmem:[%s1 + $0x3b8] sm:$0xf]
  %v282 = vld [vmem:[%s1 + $0x3bc] sm:$0xf]
  %v283 = vld [vmem:[%s1 + $0x3c0] sm:$0xf]
  %v284 = vld [vmem:[%s1 + $0x3c4] sm:$0xf]
  %v285 = vld [vmem:[%s1 + $0x3c8] sm:$0xf]
  %v286 = vld [vmem:[%s1 + $0x3cc] sm:$0xf]
  %v287 = vld [vmem:[%s1 + $0x3d0] sm:$0xf]
  %v288 = vld [vmem:[%s1 + $0x3d4] sm:$0xf]
  %v289 = vld [vmem:[%s1 + $0x3d8] sm:$0xf]
  %v290 = vld [vmem:[%s1 + $0x3dc] sm:$0xf]
  %v291 = vld [vmem:[%s1 + $0x3e0] sm:$0xf]
  %v292 = vld [vmem:[%s1 + $0x3e4] sm:$0xf]
  %v293 = vld [vmem:[%s1 + $0x3e8] sm:$0xf]
  %v294 = vld [vmem:[%s1 + $0x3ec] sm:$0xf]
  %v295 = vld [vmem:[%s1 + $0x3f0] sm:$0xf]
  %v296 = vld [vmem:[%s1 + $0x3f4] sm:$0xf]
  %v297 = vld [vmem:[%s1 + $0x3f8] sm:$0xf]
  %v298 = vld [vmem:[%s1 + $0x3fc] sm:$0xf]
  %v299 = vld [vmem:[%s1 + $0x400] sm:$0xf]
  %v300 = vld [vmem:[%s1 + $0x404] sm:$0xf]
  %v301 = vld [vmem:[%s1 + $0x408] sm:$0xf]
  %v302 = vld [vmem:[%s1 + $0x40c] sm:$0xf]
  %v303 = vld [vmem:[%s1 + $0x410] sm:$0xf]
  %v304 = vld [vmem:[%s1 + $0x414] sm:$0xf]
  %v305 = vld [vmem:[%s1 + $0x418] sm:$0xf]
  %v306 = vld [vmem:[%s1 + $0x41c] sm:$0xf]
  %v307 = vld [vmem:[%s1 + $0x420] sm:$0xf]
  %v308 = vld [vmem:[%s1 + $0x424] sm:$0xf]
  %v309 = vld [vmem:[%s1 + $0x428] sm:$0xf]
  %v310 = vld [vmem:[%s1 + $0x42c] sm:$0xf]
  %v311 = vld [vmem:[%s1 + $0x430] sm:$0xf]
  %v312 = vld [vmem:[%s1 + $0x434] sm:$0xf]
  %v313 = vld [vmem:[%s1 + $0x438] sm:$0xf]
  %v314 = vld [vmem:[%s1 + $0x43c] sm:$0xf]
  %v315 = vld [vmem:[%s1 + $0x440] sm:$0xf]
  %v316 = vld [vmem:[%s1 + $0x444] sm:$0xf]
  %v317 = vld [vmem:[%s1 + $0x448] sm:$0xf]
  %v318 = vld [vmem:[%s1 + $0x44c] sm:$0xf]
  %v319 = vld [vmem:[%s1 + $0x450] sm:$0xf]
  %v320 = vld [vmem:[%s1 + $0x454] sm:$0xf]
  %v321 = vld [vmem:[%s1 + $0x458] sm:$0xf]
  %v322 = vld [vmem:[%s1 + $0x45c] sm:$0xf]
  %v323 = vld [vmem:[%s1 + $0x460] sm:$0xf]
  %v324 = vld [vmem:[%s1 + $0x464] sm:$0xf]
  %v325 = vld [vmem:[%s1 + $0x468] sm:$0xf]
  %v326 = vld [vmem:[%s1 + $0x46c] sm:$0xf]
  %v327 = vld [vmem:[%s1 + $0x470] sm:$0xf]
  %v328 = vld [vmem:[%s1 + $0x474] sm:$0xf]
  %v329 = vld [vmem:[%s1 + $0x478] sm:$0xf]
  %v330 = vld [vmem:[%s1 + $0x47c] sm:$0xf]
  %v331 = vld [vmem:[%s1 + $0x480] sm:$0xf]
  %v332 = vld [vmem:[%s1 + $0x484] sm:$0xf]
  %v333 = vld [vmem:[%s1 + $0x488] sm:$0xf]
  %v334 = vld [vmem:[%s1 + $0x48c] sm:$0xf]
  %v335 = vld [vmem:[%s1 + $0x490] sm:$0xf]
  %v336 = vld [vmem:[%s1 + $0x494] sm:$0xf]
  %v337 = vld [vmem:[%s1 + $0x498] sm:$0xf]
  %v338 = vld [vmem:[%s1 + $0x49c] sm:$0xf]
  %v339 = vld [vmem:[%s1 + $0x4a0] sm:$0xf]
  %v340 = vld [vmem:[%s1 + $0x4a4] sm:$0xf]
  %v341 = vld [vmem:[%s1 + $0x4a8] sm:$0xf]
  %v342 = vld [vmem:[%s1 + $0x4ac] sm:$0xf]
  %v343 = vld [vmem:[%s1 + $0x4b0] sm:$0xf]
  %v344 = vld [vmem:[%s1 + $0x4b4] sm:$0xf]
  %v345 = vld [vmem:[%s1 + $0x4b8] sm:$0xf]
  %v346 = vld [vmem:[%s1 + $0x4bc] sm:$0xf]
  %v347 = vld [vmem:[%s1 + $0x4c0] sm:$0xf]
  %v348 = vld [vmem:[%s1 + $0x4c4] sm:$0xf]
  %v349 = vld [vmem:[%s1 + $0x4c8] sm:$0xf]
  %v350 = vld [vmem:[%s1 + $0x4cc] sm:$0xf]
  %v351 = vld [vmem:[%s1 + $0x4d0] sm:$0xf]
  %v352 = vld [vmem:[%s1 + $0x4d4] sm:$0xf]
  %v353 = vld [vmem:[%s1 + $0x4d8] sm:$0xf]
  %v354 = vld [vmem:[%s1 + $0x4dc] sm:$0xf]
  %v355 = vld [vmem:[%s1 + $0x4e0] sm:$0xf]
  %v356 = vld [vmem:[%s1 + $0x4e4] sm:$0xf]
  %v357 = vld [vmem:[%s1 + $0x4e8] sm:$0xf]
  %v358 = vld [vmem:[%s1 + $0x4ec] sm:$0xf]
  %v359 = vld [vmem:[%s1 + $0x4f0] sm:$0xf]
  %v360 = vld [vmem:[%s1 + $0x4f4] sm:$0xf]
  %v361 = vld [vmem:[%s1 + $0x4f8] sm:$0xf]
  %v362 = vld [vmem:[%s1 + $0x4fc] sm:$0xf]
  %v363 = vld [vmem:[%s1 + $0x500] sm:$0xf]
  %v364 = vld [vmem:[%s1 + $0x504] sm:$0xf]
  %v365 = vld [vmem:[%s1 + $0x508] sm:$0xf]
  %v366 = vld [vmem:[%s1 + $0x50c] sm:$0xf]
  %v367 = vld [vmem:[%s1 + $0x510] sm:$0xf]
  %v368 = vld [vmem:[%s1 + $0x514] sm:$0xf]
  %v369 = vld [vmem:[%s1 + $0x518] sm:$0xf]
  %v370 = vld [vmem:[%s1 + $0x51c] sm:$0xf]
  %v371 = vld [vmem:[%s1 + $0x520] sm:$0xf]
  %v372 = vld [vmem:[%s1 + $0x524] sm:$0xf]
  %v373 = vld [vmem:[%s1 + $0x528] sm:$0xf]
  %v374 = vld [vmem:[%s1 + $0x52c] sm:$0xf]
  %v375 = vld [vmem:[%s1 + $0x530] sm:$0xf]
  %v376 = vld [vmem:[%s1 + $0x534] sm:$0xf]
  %v377 = vld [vmem:[%s1 + $0x538] sm:$0xf]
  %v378 = vld [vmem:[%s1 + $0x53c] sm:$0xf]
  %v379 = vld [vmem:[%s1 + $0x540] sm:$0xf]
  %v380 = vld [vmem:[%s1 + $0x544] sm:$0xf]
  %v381 = vld [vmem:[%s1 + $0x548] sm:$0xf]
  %v382 = vld [vmem:[%s1 + $0x54c] sm:$0xf]
  %v383 = vld [vmem:[%s1 + $0x550] sm:$0xf]
  %v384 = vld [vmem:[%s1 + $0x554] sm:$0xf]
  %v385 = vld [vmem:[%s1 + $0x558] sm:$0xf]
  %v386 = vld [vmem:[%s1 + $0x55c] sm:$0xf]
  %v387 = vld [vmem:[%s1 + $0x560] sm:$0xf]
  %v388 = vld [vmem:[%s1 + $0x564] sm:$0xf]
  %v389 = vld [vmem:[%s1 + $0x568] sm:$0xf]
  %v390 = vld [vmem:[%s1 + $0x56c] sm:$0xf]
  %v391 = vld [vmem:[%s1 + $0x570] sm:$0xf]
  %v392 = vld [vmem:[%s1 + $0x574] sm:$0xf]
  %v393 = vld [vmem:[%s1 + $0x578] sm:$0xf]
  %v394 = vld [vmem:[%s1 + $0x57c] sm:$0xf]
  %v395 = vld [vmem:[%s1 + $0x580] sm:$0xf]
  %v396 = vld [vmem:[%s1 + $0x584] sm:$0xf]
  %v397 = vld [vmem:[%s1 + $0x588] sm:$0xf]
  %v398 = vld [vmem:[%s1 + $0x58c] sm:$0xf]
  %v399 = vld [vmem:[%s1 + $0x590] sm:$0xf]
  %v400 = vld [vmem:[%s1 + $0x594] sm:$0xf]
  %v401 = vld [vmem:[%s1 + $0x598] sm:$0xf]
  %v402 = vld [vmem:[%s1 + $0x59c] sm:$0xf]
  %v403 = vld [vmem:[%s1 + $0x5a0] sm:$0xf]
  %v404 = vld [vmem:[%s1 + $0x5a4] sm:$0xf]
  %v405 = vld [vmem:[%s1 + $0x5a8] sm:$0xf]
  %v406 = vld [vmem:[%s1 + $0x5ac] sm:$0xf]
  %v407 = vld [vmem:[%s1 + $0x5b0] sm:$0xf]
  %v408 = vld [vmem:[%s1 + $0x5b4] sm:$0xf]
  %v409 = vld [vmem:[%s1 + $0x5b8] sm:$0xf]
  %v410 = vld [vmem:[%s1 + $0x5bc] sm:$0xf]
  %v411 = vld [vmem:[%s1 + $0x5c0] sm:$0xf]
  %v412 = vld [vmem:[%s1 + $0x5c4] sm:$0xf]
  %v413 = vld [vmem:[%s1 + $0x5c8] sm:$0xf]
  %v414 = vld [vmem:[%s1 + $0x5cc] sm:$0xf]
  %v415 = vld [vmem:[%s1 + $0x5d0] sm:$0xf]
  %v416 = vld [vmem:[%s1 + $0x5d4] sm:$0xf]
  %v417 = vld [vmem:[%s1 + $0x5d8] sm:$0xf]
  %v418 = vld [vmem:[%s1 + $0x5dc] sm:$0xf]
  %v419 = vld [vmem:[%s1 + $0x5e0] sm:$0xf]
  %v420 = vld [vmem:[%s1 + $0x5e4] sm:$0xf]
  %v421 = vld [vmem:[%s1 + $0x5e8] sm:$0xf]
  %v422 = vld [vmem:[%s1 + $0x5ec] sm:$0xf]
  %v423 = vld [vmem:[%s1 + $0x5f0] sm:$0xf]
  %v424 = vld [vmem:[%s1 + $0x5f4] sm:$0xf]
  %v425 = vld [vmem:[%s1 + $0x5f8] sm:$0xf]
  %v426 = vld [vmem:[%s1 + $0x5fc] sm:$0xf]
  %v427 = vld [vmem:[%s1 + $0x600] sm:$0xf]
  %v428 = vld [vmem:[%s1 + $0x604] sm:$0xf]
  %v429 = vld [vmem:[%s1 + $0x608] sm:$0xf]
  %v430 = vld [vmem:[%s1 + $0x60c] sm:$0xf]
  %v431 = vld [vmem:[%s1 + $0x610] sm:$0xf]
  %v432 = vld [vmem:[%s1 + $0x614] sm:$0xf]
  %v433 = vld [vmem:[%s1 + $0x618] sm:$0xf]
  %v434 = vld [vmem:[%s1 + $0x61c] sm:$0xf]
  %v435 = vld [vmem:[%s1 + $0x620] sm:$0xf]
  %v436 = vld [vmem:[%s1 + $0x624] sm:$0xf]
  %v437 = vld [vmem:[%s1 + $0x628] sm:$0xf]
  %v438 = vld [vmem:[%s1 + $0x62c] sm:$0xf]
  %v439 = vld [vmem:[%s1 + $0x630] sm:$0xf]
  %v440 = vld [vmem:[%s1 + $0x634] sm:$0xf]
  %v441 = vld [vmem:[%s1 + $0x638] sm:$0xf]
  %v442 = vld [vmem:[%s1 + $0x63c] sm:$0xf]
  %v443 = vld [vmem:[%s1 + $0x640] sm:$0xf]
  %v444 = vld [vmem:[%s1 + $0x644] sm:$0xf]
  %v445 = vld [vmem:[%s1 + $0x648] sm:$0xf]
  %v446 = vld [vmem:[%s1 + $0x64c] sm:$0xf]
  %v447 = vld [vmem:[%s1 + $0x650] sm:$0xf]
  %v448 = vld [vmem:[%s1 + $0x654] sm:$0xf]
  %v449 = vld [vmem:[%s1 + $0x658] sm:$0xf]
  %v450 = vld [vmem:[%s1 + $0x65c] sm:$0xf]
  %v451 = vld [vmem:[%s1 + $0x660] sm:$0xf]
  %v452 = vld [vmem:[%s1 + $0x664] sm:$0xf]
  %v453 = vld [vmem:[%s1 + $0x668] sm:$0xf]
  %v454 = vld [vmem:[%s1 + $0x66c] sm:$0xf]
  %v455 = vld [vmem:[%s1 + $0x670] sm:$0xf]
  %v456 = vld [vmem:[%s1 + $0x674] sm:$0xf]
  %v457 = vld [vmem:[%s1 + $0x678] sm:$0xf]
  %v458 = vld [vmem:[%s1 + $0x67c] sm:$0xf]
  %v459 = vld [vmem:[%s1 + $0x680] sm:$0xf]
  %v460 = vld [vmem:[%s1 + $0x684] sm:$0xf]
  %v461 = vld [vmem:[%s1 + $0x688] sm:$0xf]
  %v462 = vld [vmem:[%s1 + $0x68c] sm:$0xf]
  %v463 = vld [vmem:[%s1 + $0x690] sm:$0xf]
  %v464 = vld [vmem:[%s1 + $0x694] sm:$0xf]
  %v465 = vld [vmem:[%s1 + $0x698] sm:$0xf]
  %v466 = vld [vmem:[%s1 + $0x69c] sm:$0xf]
  %v467 = vld [vmem:[%s1 + $0x6a0] sm:$0xf]
  %v468 = vld [vmem:[%s1 + $0x6a4] sm:$0xf]
  %v469 = vld [vmem:[%s1 + $0x6a8] sm:$0xf]
  %v470 = vld [vmem:[%s1 + $0x6ac] sm:$0xf]
  %v471 = vld [vmem:[%s1 + $0x6b0] sm:$0xf]
  %v472 = vld [vmem:[%s1 + $0x6b4] sm:$0xf]
  %v473 = vld [vmem:[%s1 + $0x6b8] sm:$0xf]
  %v474 = vld [vmem:[%s1 + $0x6bc] sm:$0xf]
  %v475 = vld [vmem:[%s1 + $0x6c0] sm:$0xf]
  %v476 = vld [vmem:[%s1 + $0x6c4] sm:$0xf]
  %v477 = vld [vmem:[%s1 + $0x6c8] sm:$0xf]
  %v478 = vld [vmem:[%s1 + $0x6cc] sm:$0xf]
  %v479 = vld [vmem:[%s1 + $0x6d0] sm:$0xf]
  %v480 = vld [vmem:[%s1 + $0x6d4] sm:$0xf]
  %v481 = vld [vmem:[%s1 + $0x6d8] sm:$0xf]
  %v482 = vld [vmem:[%s1 + $0x6dc] sm:$0xf]
  %v483 = vld [vmem:[%s1 + $0x6e0] sm:$0xf]
  %v484 = vld [vmem:[%s1 + $0x6e4] sm:$0xf]
  %v485 = vld [vmem:[%s1 + $0x6e8] sm:$0xf]
  %v486 = vld [vmem:[%s1 + $0x6ec] sm:$0xf]
  %v487 = vld [vmem:[%s1 + $0x6f0] sm:$0xf]
  %v488 = vld [vmem:[%s1 + $0x6f4] sm:$0xf]
  %v489 = vld [vmem:[%s1 + $0x6f8] sm:$0xf]
  %v490 = vld [vmem:[%s1 + $0x6fc] sm:$0xf]
  %v491 = vld [vmem:[%s1 + $0x700] sm:$0xf]
  %v492 = vld [vmem:[%s1 + $0x704] sm:$0xf]
  %v493 = vld [vmem:[%s1 + $0x708] sm:$0xf]
  %v494 = vld [vmem:[%s1 + $0x70c] sm:$0xf]
  %v495 = vld [vmem:[%s1 + $0x710] sm:$0xf]
  %v496 = vld [vmem:[%s1 + $0x714] sm:$0xf]
  %v497 = vld [vmem:[%s1 + $0x718] sm:$0xf]
  %v498 = vld [vmem:[%s1 + $0x71c] sm:$0xf]
  %v499 = vld [vmem:[%s1 + $0x720] sm:$0xf]
  %v500 = vld [vmem:[%s1 + $0x724] sm:$0xf]
  %v501 = vld [vmem:[%s1 + $0x728] sm:$0xf]
  %v502 = vld [vmem:[%s1 + $0x72c] sm:$0xf]
  %v503 = vld [vmem:[%s1 + $0x730] sm:$0xf]
  %v504 = vld [vmem:[%s1 + $0x734] sm:$0xf]
  %v505 = vld [vmem:[%s1 + $0x738] sm:$0xf]
  %v506 = vld [vmem:[%s1 + $0x73c] sm:$0xf]
  %v507 = vld [vmem:[%s1 + $0x740] sm:$0xf]
  %v508 = vld [vmem:[%s1 + $0x744] sm:$0xf]
  %v509 = vld [vmem:[%s1 + $0x748] sm:$0xf]
  %v510 = vld [vmem:[%s1 + $0x74c] sm:$0xf]
  %v511 = vld [vmem:[%s1 + $0x750] sm:$0xf]
  %v512 = vld [vmem:[%s1 + $0x754] sm:$0xf]
  %v513 = vld [vmem:[%s1 + $0x758] sm:$0xf]
  %v514 = vld [vmem:[%s1 + $0x75c] sm:$0xf]
  %v515 = vld [vmem:[%s1 + $0x760] sm:$0xf]
  %v516 = vld [vmem:[%s1 + $0x764] sm:$0xf]
  %v517 = vld [vmem:[%s1 + $0x768] sm:$0xf]
  %v518 = vld [vmem:[%s1 + $0x76c] sm:$0xf]
  %v519 = vld [vmem:[%s1 + $0x770] sm:$0xf]
  %v520 = vld [vmem:[%s1 + $0x774] sm:$0xf]
  %v521 = vld [vmem:[%s1 + $0x778] sm:$0xf]
  %v522 = vld [vmem:[%s1 + $0x77c] sm:$0xf]
  %v523 = vld [vmem:[%s1 + $0x780] sm:$0xf]
  %v524 = vld [vmem:[%s1 + $0x784] sm:$0xf]
  %v525 = vld [vmem:[%s1 + $0x788] sm:$0xf]
  %v526 = vld [vmem:[%s1 + $0x78c] sm:$0xf]
  %v527 = vld [vmem:[%s1 + $0x790] sm:$0xf]
  %v528 = vld [vmem:[%s1 + $0x794] sm:$0xf]
  %v529 = vld [vmem:[%s1 + $0x798] sm:$0xf]
  %v530 = vld [vmem:[%s1 + $0x79c] sm:$0xf]
  %v531 = vld [vmem:[%s1 + $0x7a0] sm:$0xf]
  %v532 = vld [vmem:[%s1 + $0x7a4] sm:$0xf]
  %v533 = vld [vmem:[%s1 + $0x7a8] sm:$0xf]
  %v534 = vld [vmem:[%s1 + $0x7ac] sm:$0xf]
  %v535 = vld [vmem:[%s1 + $0x7b0] sm:$0xf]
  %v536 = vld [vmem:[%s1 + $0x7b4] sm:$0xf]
  %v537 = vld [vmem:[%s1 + $0x7b8] sm:$0xf]
  %v538 = vld [vmem:[%s1 + $0x7bc] sm:$0xf]
  %v539 = vld [vmem:[%s1 + $0x7c0] sm:$0xf]
  %v540 = vld [vmem:[%s1 + $0x7c4] sm:$0xf]
  %v541 = vld [vmem:[%s1 + $0x7c8] sm:$0xf]
  %v542 = vld [vmem:[%s1 + $0x7cc] sm:$0xf]
  %v543 = vld [vmem:[%s1 + $0x7d0] sm:$0xf]
  %v544 = vld [vmem:[%s1 + $0x7d4] sm:$0xf]
  %v545 = vld [vmem:[%s1 + $0x7d8] sm:$0xf]
  %v546 = vld [vmem:[%s1 + $0x7dc] sm:$0xf]
  %v547 = vld [vmem:[%s1 + $0x7e0] sm:$0xf]
  %v548 = vld [vmem:[%s1 + $0x7e4] sm:$0xf]
  %v549 = vld [vmem:[%s1 + $0x7e8] sm:$0xf]
  %v550 = vld [vmem:[%s1 + $0x7ec] sm:$0xf]
  %v551 = vld [vmem:[%s1 + $0x7f0] sm:$0xf]
  %v552 = vld [vmem:[%s1 + $0x7f4] sm:$0xf]
  %v553 = vld [vmem:[%s1 + $0x7f8] sm:$0xf]
  %v554 = vld [vmem:[%s1 + $0x7fc] sm:$0xf]
  %v587 = vunpack.c.l.b16 %v11
  %v588 = vunpack.c.h.b16 %v11
  %v589 = vunpack.c.l.b16 %v12
  %v590 = vunpack.c.h.b16 %v12
  %v591 = vunpack.c.l.b16 %v13
  %v592 = vunpack.c.h.b16 %v13
  %v593 = vunpack.c.l.b16 %v14
  %v594 = vunpack.c.h.b16 %v14
  %v595 = vunpack.c.l.b16 %v15
  %v596 = vunpack.c.h.b16 %v15
  %v597 = vunpack.c.l.b16 %v16
  %v598 = vunpack.c.h.b16 %v16
  %v599 = vunpack.c.l.b16 %v17
  %v600 = vunpack.c.h.b16 %v17
  %v601 = vunpack.c.l.b16 %v18
  %v602 = vunpack.c.h.b16 %v18
  %v603 = vunpack.c.l.b16 %v19
  %v604 = vunpack.c.h.b16 %v19
  %v605 = vunpack.c.l.b16 %v20
  %v606 = vunpack.c.h.b16 %v20
  %v607 = vunpack.c.l.b16 %v21
  %v608 = vunpack.c.h.b16 %v21
  %v609 = vunpack.c.l.b16 %v22
  %v610 = vunpack.c.h.b16 %v22
  %v611 = vunpack.c.l.b16 %v23
  %v612 = vunpack.c.h.b16 %v23
  %v613 = vunpack.c.l.b16 %v24
  %v614 = vunpack.c.h.b16 %v24
  %v615 = vunpack.c.l.b16 %v25
  %v616 = vunpack.c.h.b16 %v25
  %v617 = vunpack.c.l.b16 %v26
  %v618 = vunpack.c.h.b16 %v26
  %v619 = vunpack.c.l.b16 %v27
  %v620 = vunpack.c.h.b16 %v27
  %v621 = vunpack.c.l.b16 %v28
  %v622 = vunpack.c.h.b16 %v28
  %v623 = vunpack.c.l.b16 %v29
  %v624 = vunpack.c.h.b16 %v29
  %v625 = vunpack.c.l.b16 %v30
  %v626 = vunpack.c.h.b16 %v30
  %v627 = vunpack.c.l.b16 %v31
  %v628 = vunpack.c.h.b16 %v31
  %v629 = vunpack.c.l.b16 %v32
  %v630 = vunpack.c.h.b16 %v32
  %v631 = vunpack.c.l.b16 %v33
  %v632 = vunpack.c.h.b16 %v33
  %v633 = vunpack.c.l.b16 %v34
  %v634 = vunpack.c.h.b16 %v34
  %v635 = vunpack.c.l.b16 %v35
  %v636 = vunpack.c.h.b16 %v35
  %v637 = vunpack.c.l.b16 %v36
  %v638 = vunpack.c.h.b16 %v36
  %v639 = vunpack.c.l.b16 %v37
  %v640 = vunpack.c.h.b16 %v37
  %v641 = vunpack.c.l.b16 %v38
  %v642 = vunpack.c.h.b16 %v38
  %v643 = vunpack.c.l.b16 %v39
  %v644 = vunpack.c.h.b16 %v39
  %v645 = vunpack.c.l.b16 %v40
  %v646 = vunpack.c.h.b16 %v40
  %v647 = vunpack.c.l.b16 %v41
  %v648 = vunpack.c.h.b16 %v41
  %v649 = vunpack.c.l.b16 %v42
  %v650 = vunpack.c.h.b16 %v42
  %v651 = vpack.c.b16 %v619, %v587
  %v652 = vpack.c.b16 %v620, %v588
  %v653 = vpack.c.b16 %v621, %v589
  %v654 = vpack.c.b16 %v622, %v590
  %v655 = vpack.c.b16 %v623, %v591
  %v656 = vpack.c.b16 %v624, %v592
  %v657 = vpack.c.b16 %v625, %v593
  %v658 = vpack.c.b16 %v626, %v594
  %v659 = vpack.c.b16 %v627, %v595
  %v660 = vpack.c.b16 %v628, %v596
  %v661 = vpack.c.b16 %v629, %v597
  %v662 = vpack.c.b16 %v630, %v598
  %v663 = vpack.c.b16 %v631, %v599
  %v664 = vpack.c.b16 %v632, %v600
  %v665 = vpack.c.b16 %v633, %v601
  %v666 = vpack.c.b16 %v634, %v602
  %v667 = vpack.c.b16 %v635, %v603
  %v668 = vpack.c.b16 %v636, %v604
  %v669 = vpack.c.b16 %v637, %v605
  %v670 = vpack.c.b16 %v638, %v606
  %v671 = vpack.c.b16 %v639, %v607
  %v672 = vpack.c.b16 %v640, %v608
  %v673 = vpack.c.b16 %v641, %v609
  %v674 = vpack.c.b16 %v642, %v610
  %v675 = vpack.c.b16 %v643, %v611
  %v676 = vpack.c.b16 %v644, %v612
  %v677 = vpack.c.b16 %v645, %v613
  %v678 = vpack.c.b16 %v646, %v614
  %v679 = vpack.c.b16 %v647, %v615
  %v680 = vpack.c.b16 %v648, %v616
  %v681 = vpack.c.b16 %v649, %v617
  %v682 = vpack.c.b16 %v650, %v618
  %v1227 = vunpack.c.l.b16 %v43
  %v1228 = vunpack.c.l.b16 %v44
  %v1229 = vunpack.c.l.b16 %v45
  %v1230 = vunpack.c.l.b16 %v46
  %v1231 = vunpack.c.l.b16 %v47
  %v1232 = vunpack.c.l.b16 %v48
  %v1233 = vunpack.c.l.b16 %v49
  %v1234 = vunpack.c.l.b16 %v50
  %v1235 = vunpack.c.l.b16 %v51
  %v1236 = vunpack.c.l.b16 %v52
  %v1237 = vunpack.c.l.b16 %v53
  %v1238 = vunpack.c.l.b16 %v54
  %v1239 = vunpack.c.l.b16 %v55
  %v1240 = vunpack.c.l.b16 %v56
  %v1241 = vunpack.c.l.b16 %v57
  %v1242 = vunpack.c.l.b16 %v58
  %v1243 = vunpack.c.l.b16 %v59
  %v1244 = vunpack.c.l.b16 %v60
  %v1245 = vunpack.c.l.b16 %v61
  %v1246 = vunpack.c.l.b16 %v62
  %v1247 = vunpack.c.l.b16 %v63
  %v1248 = vunpack.c.l.b16 %v64
  %v1249 = vunpack.c.l.b16 %v65
  %v1250 = vunpack.c.l.b16 %v66
  %v1251 = vunpack.c.l.b16 %v67
  %v1252 = vunpack.c.l.b16 %v68
  %v1253 = vunpack.c.l.b16 %v69
  %v1254 = vunpack.c.l.b16 %v70
  %v1255 = vunpack.c.l.b16 %v71
  %v1256 = vunpack.c.l.b16 %v72
  %v1257 = vunpack.c.l.b16 %v73
  %v1258 = vunpack.c.l.b16 %v74
  %v1259 = vunpack.c.l.b16 %v75
  %v1260 = vunpack.c.l.b16 %v76
  %v1261 = vunpack.c.l.b16 %v77
  %v1262 = vunpack.c.l.b16 %v78
  %v1263 = vunpack.c.l.b16 %v79
  %v1264 = vunpack.c.l.b16 %v80
  %v1265 = vunpack.c.l.b16 %v81
  %v1266 = vunpack.c.l.b16 %v82
  %v1267 = vunpack.c.l.b16 %v83
  %v1268 = vunpack.c.l.b16 %v84
  %v1269 = vunpack.c.l.b16 %v85
  %v1270 = vunpack.c.l.b16 %v86
  %v1271 = vunpack.c.l.b16 %v87
  %v1272 = vunpack.c.l.b16 %v88
  %v1273 = vunpack.c.l.b16 %v89
  %v1274 = vunpack.c.l.b16 %v90
  %v1275 = vunpack.c.l.b16 %v91
  %v1276 = vunpack.c.l.b16 %v92
  %v1277 = vunpack.c.l.b16 %v93
  %v1278 = vunpack.c.l.b16 %v94
  %v1279 = vunpack.c.l.b16 %v95
  %v1280 = vunpack.c.l.b16 %v96
  %v1281 = vunpack.c.l.b16 %v97
  %v1282 = vunpack.c.l.b16 %v98
  %v1283 = vunpack.c.l.b16 %v99
  %v1284 = vunpack.c.l.b16 %v100
  %v1285 = vunpack.c.l.b16 %v101
  %v1286 = vunpack.c.l.b16 %v102
  %v1287 = vunpack.c.l.b16 %v103
  %v1288 = vunpack.c.l.b16 %v104
  %v1289 = vunpack.c.l.b16 %v105
  %v1290 = vunpack.c.l.b16 %v106
  %v1291 = vunpack.c.l.b16 %v107
  %v1292 = vunpack.c.l.b16 %v108
  %v1293 = vunpack.c.l.b16 %v109
  %v1294 = vunpack.c.l.b16 %v110
  %v1295 = vunpack.c.l.b16 %v111
  %v1296 = vunpack.c.l.b16 %v112
  %v1297 = vunpack.c.l.b16 %v113
  %v1298 = vunpack.c.l.b16 %v114
  %v1299 = vunpack.c.l.b16 %v115
  %v1300 = vunpack.c.l.b16 %v116
  %v1301 = vunpack.c.l.b16 %v117
  %v1302 = vunpack.c.l.b16 %v118
  %v1303 = vunpack.c.l.b16 %v119
  %v1304 = vunpack.c.l.b16 %v120
  %v1305 = vunpack.c.l.b16 %v121
  %v1306 = vunpack.c.l.b16 %v122
  %v1307 = vunpack.c.l.b16 %v123
  %v1308 = vunpack.c.l.b16 %v124
  %v1309 = vunpack.c.l.b16 %v125
  %v1310 = vunpack.c.l.b16 %v126
  %v1311 = vunpack.c.l.b16 %v127
  %v1312 = vunpack.c.l.b16 %v128
  %v1313 = vunpack.c.l.b16 %v129
  %v1314 = vunpack.c.l.b16 %v130
  %v1315 = vunpack.c.l.b16 %v131
  %v1316 = vunpack.c.l.b16 %v132
  %v1317 = vunpack.c.l.b16 %v133
  %v1318 = vunpack.c.l.b16 %v134
  %v1319 = vunpack.c.l.b16 %v135
  %v1320 = vunpack.c.l.b16 %v136
  %v1321 = vunpack.c.l.b16 %v137
  %v1322 = vunpack.c.l.b16 %v138
  %v1323 = vunpack.c.l.b16 %v139
  %v1324 = vunpack.c.l.b16 %v140
  %v1325 = vunpack.c.l.b16 %v141
  %v1326 = vunpack.c.l.b16 %v142
  %v1327 = vunpack.c.l.b16 %v143
  %v1328 = vunpack.c.l.b16 %v144
  %v1329 = vunpack.c.l.b16 %v145
  %v1330 = vunpack.c.l.b16 %v146
  %v1331 = vunpack.c.l.b16 %v147
  %v1332 = vunpack.c.l.b16 %v148
  %v1333 = vunpack.c.l.b16 %v149
  %v1334 = vunpack.c.l.b16 %v150
  %v1335 = vunpack.c.l.b16 %v151
  %v1336 = vunpack.c.l.b16 %v152
  %v1337 = vunpack.c.l.b16 %v153
  %v1338 = vunpack.c.l.b16 %v154
  %v1339 = vunpack.c.l.b16 %v155
  %v1340 = vunpack.c.l.b16 %v156
  %v1341 = vunpack.c.l.b16 %v157
  %v1342 = vunpack.c.l.b16 %v158
  %v1343 = vunpack.c.l.b16 %v159
  %v1344 = vunpack.c.l.b16 %v160
  %v1345 = vunpack.c.l.b16 %v161
  %v1346 = vunpack.c.l.b16 %v162
  %v1347 = vunpack.c.l.b16 %v163
  %v1348 = vunpack.c.l.b16 %v164
  %v1349 = vunpack.c.l.b16 %v165
  %v1350 = vunpack.c.l.b16 %v166
  %v1351 = vunpack.c.l.b16 %v167
  %v1352 = vunpack.c.l.b16 %v168
  %v1353 = vunpack.c.l.b16 %v169
  %v1354 = vunpack.c.l.b16 %v170
  %v1355 = vunpack.c.l.b16 %v171
  %v1356 = vunpack.c.l.b16 %v172
  %v1357 = vunpack.c.l.b16 %v173
  %v1358 = vunpack.c.l.b16 %v174
  %v1359 = vunpack.c.l.b16 %v175
  %v1360 = vunpack.c.l.b16 %v176
  %v1361 = vunpack.c.l.b16 %v177
  %v1362 = vunpack.c.l.b16 %v178
  %v1363 = vunpack.c.l.b16 %v179
  %v1364 = vunpack.c.l.b16 %v180
  %v1365 = vunpack.c.l.b16 %v181
  %v1366 = vunpack.c.l.b16 %v182
  %v1367 = vunpack.c.l.b16 %v183
  %v1368 = vunpack.c.l.b16 %v184
  %v1369 = vunpack.c.l.b16 %v185
  %v1370 = vunpack.c.l.b16 %v186
  %v1371 = vunpack.c.l.b16 %v187
  %v1372 = vunpack.c.l.b16 %v188
  %v1373 = vunpack.c.l.b16 %v189
  %v1374 = vunpack.c.l.b16 %v190
  %v1375 = vunpack.c.l.b16 %v191
  %v1376 = vunpack.c.l.b16 %v192
  %v1377 = vunpack.c.l.b16 %v193
  %v1378 = vunpack.c.l.b16 %v194
  %v1379 = vunpack.c.l.b16 %v195
  %v1380 = vunpack.c.l.b16 %v196
  %v1381 = vunpack.c.l.b16 %v197
  %v1382 = vunpack.c.l.b16 %v198
  %v1383 = vunpack.c.l.b16 %v199
  %v1384 = vunpack.c.l.b16 %v200
  %v1385 = vunpack.c.l.b16 %v201
  %v1386 = vunpack.c.l.b16 %v202
  %v1387 = vunpack.c.l.b16 %v203
  %v1388 = vunpack.c.l.b16 %v204
  %v1389 = vunpack.c.l.b16 %v205
  %v1390 = vunpack.c.l.b16 %v206
  %v1391 = vunpack.c.l.b16 %v207
  %v1392 = vunpack.c.l.b16 %v208
  %v1393 = vunpack.c.l.b16 %v209
  %v1394 = vunpack.c.l.b16 %v210
  %v1395 = vunpack.c.l.b16 %v211
  %v1396 = vunpack.c.l.b16 %v212
  %v1397 = vunpack.c.l.b16 %v213
  %v1398 = vunpack.c.l.b16 %v214
  %v1399 = vunpack.c.l.b16 %v215
  %v1400 = vunpack.c.l.b16 %v216
  %v1401 = vunpack.c.l.b16 %v217
  %v1402 = vunpack.c.l.b16 %v218
  %v1403 = vunpack.c.l.b16 %v219
  %v1404 = vunpack.c.l.b16 %v220
  %v1405 = vunpack.c.l.b16 %v221
  %v1406 = vunpack.c.l.b16 %v222
  %v1407 = vunpack.c.l.b16 %v223
  %v1408 = vunpack.c.l.b16 %v224
  %v1409 = vunpack.c.l.b16 %v225
  %v1410 = vunpack.c.l.b16 %v226
  %v1411 = vunpack.c.l.b16 %v227
  %v1412 = vunpack.c.l.b16 %v228
  %v1413 = vunpack.c.l.b16 %v229
  %v1414 = vunpack.c.l.b16 %v230
  %v1415 = vunpack.c.l.b16 %v231
  %v1416 = vunpack.c.l.b16 %v232
  %v1417 = vunpack.c.l.b16 %v233
  %v1418 = vunpack.c.l.b16 %v234
  %v1419 = vunpack.c.l.b16 %v235
  %v1420 = vunpack.c.l.b16 %v236
  %v1421 = vunpack.c.l.b16 %v237
  %v1422 = vunpack.c.l.b16 %v238
  %v1423 = vunpack.c.l.b16 %v239
  %v1424 = vunpack.c.l.b16 %v240
  %v1425 = vunpack.c.l.b16 %v241
  %v1426 = vunpack.c.l.b16 %v242
  %v1427 = vunpack.c.l.b16 %v243
  %v1428 = vunpack.c.l.b16 %v244
  %v1429 = vunpack.c.l.b16 %v245
  %v1430 = vunpack.c.l.b16 %v246
  %v1431 = vunpack.c.l.b16 %v247
  %v1432 = vunpack.c.l.b16 %v248
  %v1433 = vunpack.c.l.b16 %v249
  %v1434 = vunpack.c.l.b16 %v250
  %v1435 = vunpack.c.l.b16 %v251
  %v1436 = vunpack.c.l.b16 %v252
  %v1437 = vunpack.c.l.b16 %v253
  %v1438 = vunpack.c.l.b16 %v254
  %v1439 = vunpack.c.l.b16 %v255
  %v1440 = vunpack.c.l.b16 %v256
  %v1441 = vunpack.c.l.b16 %v257
  %v1442 = vunpack.c.l.b16 %v258
  %v1443 = vunpack.c.l.b16 %v259
  %v1444 = vunpack.c.l.b16 %v260
  %v1445 = vunpack.c.l.b16 %v261
  %v1446 = vunpack.c.l.b16 %v262
  %v1447 = vunpack.c.l.b16 %v263
  %v1448 = vunpack.c.l.b16 %v264
  %v1449 = vunpack.c.l.b16 %v265
  %v1450 = vunpack.c.l.b16 %v266
  %v1451 = vunpack.c.l.b16 %v267
  %v1452 = vunpack.c.l.b16 %v268
  %v1453 = vunpack.c.l.b16 %v269
  %v1454 = vunpack.c.l.b16 %v270
  %v1455 = vunpack.c.l.b16 %v271
  %v1456 = vunpack.c.l.b16 %v272
  %v1457 = vunpack.c.l.b16 %v273
  %v1458 = vunpack.c.l.b16 %v274
  %v1459 = vunpack.c.l.b16 %v275
  %v1460 = vunpack.c.l.b16 %v276
  %v1461 = vunpack.c.l.b16 %v277
  %v1462 = vunpack.c.l.b16 %v278
  %v1463 = vunpack.c.l.b16 %v279
  %v1464 = vunpack.c.l.b16 %v280
  %v1465 = vunpack.c.l.b16 %v281
  %v1466 = vunpack.c.l.b16 %v282
  %v1467 = vunpack.c.l.b16 %v283
  %v1468 = vunpack.c.l.b16 %v284
  %v1469 = vunpack.c.l.b16 %v285
  %v1470 = vunpack.c.l.b16 %v286
  %v1471 = vunpack.c.l.b16 %v287
  %v1472 = vunpack.c.l.b16 %v288
  %v1473 = vunpack.c.l.b16 %v289
  %v1474 = vunpack.c.l.b16 %v290
  %v1475 = vunpack.c.l.b16 %v291
  %v1476 = vunpack.c.l.b16 %v292
  %v1477 = vunpack.c.l.b16 %v293
  %v1478 = vunpack.c.l.b16 %v294
  %v1479 = vunpack.c.l.b16 %v295
  %v1480 = vunpack.c.l.b16 %v296
  %v1481 = vunpack.c.l.b16 %v297
  %v1482 = vunpack.c.l.b16 %v298
  %v1483 = vunpack.c.l.b16 %v299
  %v1484 = vunpack.c.l.b16 %v300
  %v1485 = vunpack.c.l.b16 %v301
  %v1486 = vunpack.c.l.b16 %v302
  %v1487 = vunpack.c.l.b16 %v303
  %v1488 = vunpack.c.l.b16 %v304
  %v1489 = vunpack.c.l.b16 %v305
  %v1490 = vunpack.c.l.b16 %v306
  %v1491 = vunpack.c.l.b16 %v307
  %v1492 = vunpack.c.l.b16 %v308
  %v1493 = vunpack.c.l.b16 %v309
  %v1494 = vunpack.c.l.b16 %v310
  %v1495 = vunpack.c.l.b16 %v311
  %v1496 = vunpack.c.l.b16 %v312
  %v1497 = vunpack.c.l.b16 %v313
  %v1498 = vunpack.c.l.b16 %v314
  %v1499 = vunpack.c.l.b16 %v315
  %v1500 = vunpack.c.l.b16 %v316
  %v1501 = vunpack.c.l.b16 %v317
  %v1502 = vunpack.c.l.b16 %v318
  %v1503 = vunpack.c.l.b16 %v319
  %v1504 = vunpack.c.l.b16 %v320
  %v1505 = vunpack.c.l.b16 %v321
  %v1506 = vunpack.c.l.b16 %v322
  %v1507 = vunpack.c.l.b16 %v323
  %v1508 = vunpack.c.l.b16 %v324
  %v1509 = vunpack.c.l.b16 %v325
  %v1510 = vunpack.c.l.b16 %v326
  %v1511 = vunpack.c.l.b16 %v327
  %v1512 = vunpack.c.l.b16 %v328
  %v1513 = vunpack.c.l.b16 %v329
  %v1514 = vunpack.c.l.b16 %v330
  %v1515 = vunpack.c.l.b16 %v331
  %v1516 = vunpack.c.l.b16 %v332
  %v1517 = vunpack.c.l.b16 %v333
  %v1518 = vunpack.c.l.b16 %v334
  %v1519 = vunpack.c.l.b16 %v335
  %v1520 = vunpack.c.l.b16 %v336
  %v1521 = vunpack.c.l.b16 %v337
  %v1522 = vunpack.c.l.b16 %v338
  %v1523 = vunpack.c.l.b16 %v339
  %v1524 = vunpack.c.l.b16 %v340
  %v1525 = vunpack.c.l.b16 %v341
  %v1526 = vunpack.c.l.b16 %v342
  %v1527 = vunpack.c.l.b16 %v343
  %v1528 = vunpack.c.l.b16 %v344
  %v1529 = vunpack.c.l.b16 %v345
  %v1530 = vunpack.c.l.b16 %v346
  %v1531 = vunpack.c.l.b16 %v347
  %v1532 = vunpack.c.l.b16 %v348
  %v1533 = vunpack.c.l.b16 %v349
  %v1534 = vunpack.c.l.b16 %v350
  %v1535 = vunpack.c.l.b16 %v351
  %v1536 = vunpack.c.l.b16 %v352
  %v1537 = vunpack.c.l.b16 %v353
  %v1538 = vunpack.c.l.b16 %v354
  %v1539 = vunpack.c.l.b16 %v355
  %v1540 = vunpack.c.l.b16 %v356
  %v1541 = vunpack.c.l.b16 %v357
  %v1542 = vunpack.c.l.b16 %v358
  %v1543 = vunpack.c.l.b16 %v359
  %v1544 = vunpack.c.l.b16 %v360
  %v1545 = vunpack.c.l.b16 %v361
  %v1546 = vunpack.c.l.b16 %v362
  %v1547 = vunpack.c.l.b16 %v363
  %v1548 = vunpack.c.l.b16 %v364
  %v1549 = vunpack.c.l.b16 %v365
  %v1550 = vunpack.c.l.b16 %v366
  %v1551 = vunpack.c.l.b16 %v367
  %v1552 = vunpack.c.l.b16 %v368
  %v1553 = vunpack.c.l.b16 %v369
  %v1554 = vunpack.c.l.b16 %v370
  %v1555 = vunpack.c.l.b16 %v371
  %v1556 = vunpack.c.l.b16 %v372
  %v1557 = vunpack.c.l.b16 %v373
  %v1558 = vunpack.c.l.b16 %v374
  %v1559 = vunpack.c.l.b16 %v375
  %v1560 = vunpack.c.l.b16 %v376
  %v1561 = vunpack.c.l.b16 %v377
  %v1562 = vunpack.c.l.b16 %v378
  %v1563 = vunpack.c.l.b16 %v379
  %v1564 = vunpack.c.l.b16 %v380
  %v1565 = vunpack.c.l.b16 %v381
  %v1566 = vunpack.c.l.b16 %v382
  %v1567 = vunpack.c.l.b16 %v383
  %v1568 = vunpack.c.l.b16 %v384
  %v1569 = vunpack.c.l.b16 %v385
  %v1570 = vunpack.c.l.b16 %v386
  %v1571 = vunpack.c.l.b16 %v387
  %v1572 = vunpack.c.l.b16 %v388
  %v1573 = vunpack.c.l.b16 %v389
  %v1574 = vunpack.c.l.b16 %v390
  %v1575 = vunpack.c.l.b16 %v391
  %v1576 = vunpack.c.l.b16 %v392
  %v1577 = vunpack.c.l.b16 %v393
  %v1578 = vunpack.c.l.b16 %v394
  %v1579 = vunpack.c.l.b16 %v395
  %v1580 = vunpack.c.l.b16 %v396
  %v1581 = vunpack.c.l.b16 %v397
  %v1582 = vunpack.c.l.b16 %v398
  %v1583 = vunpack.c.l.b16 %v399
  %v1584 = vunpack.c.l.b16 %v400
  %v1585 = vunpack.c.l.b16 %v401
  %v1586 = vunpack.c.l.b16 %v402
  %v1587 = vunpack.c.l.b16 %v403
  %v1588 = vunpack.c.l.b16 %v404
  %v1589 = vunpack.c.l.b16 %v405
  %v1590 = vunpack.c.l.b16 %v406
  %v1591 = vunpack.c.l.b16 %v407
  %v1592 = vunpack.c.l.b16 %v408
  %v1593 = vunpack.c.l.b16 %v409
  %v1594 = vunpack.c.l.b16 %v410
  %v1595 = vunpack.c.l.b16 %v411
  %v1596 = vunpack.c.l.b16 %v412
  %v1597 = vunpack.c.l.b16 %v413
  %v1598 = vunpack.c.l.b16 %v414
  %v1599 = vunpack.c.l.b16 %v415
  %v1600 = vunpack.c.l.b16 %v416
  %v1601 = vunpack.c.l.b16 %v417
  %v1602 = vunpack.c.l.b16 %v418
  %v1603 = vunpack.c.l.b16 %v419
  %v1604 = vunpack.c.l.b16 %v420
  %v1605 = vunpack.c.l.b16 %v421
  %v1606 = vunpack.c.l.b16 %v422
  %v1607 = vunpack.c.l.b16 %v423
  %v1608 = vunpack.c.l.b16 %v424
  %v1609 = vunpack.c.l.b16 %v425
  %v1610 = vunpack.c.l.b16 %v426
  %v1611 = vunpack.c.l.b16 %v427
  %v1612 = vunpack.c.l.b16 %v428
  %v1613 = vunpack.c.l.b16 %v429
  %v1614 = vunpack.c.l.b16 %v430
  %v1615 = vunpack.c.l.b16 %v431
  %v1616 = vunpack.c.l.b16 %v432
  %v1617 = vunpack.c.l.b16 %v433
  %v1618 = vunpack.c.l.b16 %v434
  %v1619 = vunpack.c.l.b16 %v435
  %v1620 = vunpack.c.l.b16 %v436
  %v1621 = vunpack.c.l.b16 %v437
  %v1622 = vunpack.c.l.b16 %v438
  %v1623 = vunpack.c.l.b16 %v439
  %v1624 = vunpack.c.l.b16 %v440
  %v1625 = vunpack.c.l.b16 %v441
  %v1626 = vunpack.c.l.b16 %v442
  %v1627 = vunpack.c.l.b16 %v443
  %v1628 = vunpack.c.l.b16 %v444
  %v1629 = vunpack.c.l.b16 %v445
  %v1630 = vunpack.c.l.b16 %v446
  %v1631 = vunpack.c.l.b16 %v447
  %v1632 = vunpack.c.l.b16 %v448
  %v1633 = vunpack.c.l.b16 %v449
  %v1634 = vunpack.c.l.b16 %v450
  %v1635 = vunpack.c.l.b16 %v451
  %v1636 = vunpack.c.l.b16 %v452
  %v1637 = vunpack.c.l.b16 %v453
  %v1638 = vunpack.c.l.b16 %v454
  %v1639 = vunpack.c.l.b16 %v455
  %v1640 = vunpack.c.l.b16 %v456
  %v1641 = vunpack.c.l.b16 %v457
  %v1642 = vunpack.c.l.b16 %v458
  %v1643 = vunpack.c.l.b16 %v459
  %v1644 = vunpack.c.l.b16 %v460
  %v1645 = vunpack.c.l.b16 %v461
  %v1646 = vunpack.c.l.b16 %v462
  %v1647 = vunpack.c.l.b16 %v463
  %v1648 = vunpack.c.l.b16 %v464
  %v1649 = vunpack.c.l.b16 %v465
  %v1650 = vunpack.c.l.b16 %v466
  %v1651 = vunpack.c.l.b16 %v467
  %v1652 = vunpack.c.l.b16 %v468
  %v1653 = vunpack.c.l.b16 %v469
  %v1654 = vunpack.c.l.b16 %v470
  %v1655 = vunpack.c.l.b16 %v471
  %v1656 = vunpack.c.l.b16 %v472
  %v1657 = vunpack.c.l.b16 %v473
  %v1658 = vunpack.c.l.b16 %v474
  %v1659 = vunpack.c.l.b16 %v475
  %v1660 = vunpack.c.l.b16 %v476
  %v1661 = vunpack.c.l.b16 %v477
  %v1662 = vunpack.c.l.b16 %v478
  %v1663 = vunpack.c.l.b16 %v479
  %v1664 = vunpack.c.l.b16 %v480
  %v1665 = vunpack.c.l.b16 %v481
  %v1666 = vunpack.c.l.b16 %v482
  %v1667 = vunpack.c.l.b16 %v483
  %v1668 = vunpack.c.l.b16 %v484
  %v1669 = vunpack.c.l.b16 %v485
  %v1670 = vunpack.c.l.b16 %v486
  %v1671 = vunpack.c.l.b16 %v487
  %v1672 = vunpack.c.l.b16 %v488
  %v1673 = vunpack.c.l.b16 %v489
  %v1674 = vunpack.c.l.b16 %v490
  %v1675 = vunpack.c.l.b16 %v491
  %v1676 = vunpack.c.l.b16 %v492
  %v1677 = vunpack.c.l.b16 %v493
  %v1678 = vunpack.c.l.b16 %v494
  %v1679 = vunpack.c.l.b16 %v495
  %v1680 = vunpack.c.l.b16 %v496
  %v1681 = vunpack.c.l.b16 %v497
  %v1682 = vunpack.c.l.b16 %v498
  %v1683 = vunpack.c.l.b16 %v499
  %v1684 = vunpack.c.l.b16 %v500
  %v1685 = vunpack.c.l.b16 %v501
  %v1686 = vunpack.c.l.b16 %v502
  %v1687 = vunpack.c.l.b16 %v503
  %v1688 = vunpack.c.l.b16 %v504
  %v1689 = vunpack.c.l.b16 %v505
  %v1690 = vunpack.c.l.b16 %v506
  %v1691 = vunpack.c.l.b16 %v507
  %v1692 = vunpack.c.l.b16 %v508
  %v1693 = vunpack.c.l.b16 %v509
  %v1694 = vunpack.c.l.b16 %v510
  %v1695 = vunpack.c.l.b16 %v511
  %v1696 = vunpack.c.l.b16 %v512
  %v1697 = vunpack.c.l.b16 %v513
  %v1698 = vunpack.c.l.b16 %v514
  %v1699 = vunpack.c.l.b16 %v515
  %v1700 = vunpack.c.l.b16 %v516
  %v1701 = vunpack.c.l.b16 %v517
  %v1702 = vunpack.c.l.b16 %v518
  %v1703 = vunpack.c.l.b16 %v519
  %v1704 = vunpack.c.l.b16 %v520
  %v1705 = vunpack.c.l.b16 %v521
  %v1706 = vunpack.c.l.b16 %v522
  %v1707 = vunpack.c.l.b16 %v523
  %v1708 = vunpack.c.l.b16 %v524
  %v1709 = vunpack.c.l.b16 %v525
  %v1710 = vunpack.c.l.b16 %v526
  %v1711 = vunpack.c.l.b16 %v527
  %v1712 = vunpack.c.l.b16 %v528
  %v1713 = vunpack.c.l.b16 %v529
  %v1714 = vunpack.c.l.b16 %v530
  %v1715 = vunpack.c.l.b16 %v531
  %v1716 = vunpack.c.l.b16 %v532
  %v1717 = vunpack.c.l.b16 %v533
  %v1718 = vunpack.c.l.b16 %v534
  %v1719 = vunpack.c.l.b16 %v535
  %v1720 = vunpack.c.l.b16 %v536
  %v1721 = vunpack.c.l.b16 %v537
  %v1722 = vunpack.c.l.b16 %v538
  %v1723 = vunpack.c.l.b16 %v539
  %v1724 = vunpack.c.l.b16 %v540
  %v1725 = vunpack.c.l.b16 %v541
  %v1726 = vunpack.c.l.b16 %v542
  %v1727 = vunpack.c.l.b16 %v543
  %v1728 = vunpack.c.l.b16 %v544
  %v1729 = vunpack.c.l.b16 %v545
  %v1730 = vunpack.c.l.b16 %v546
  %v1731 = vunpack.c.l.b16 %v547
  %v1732 = vunpack.c.l.b16 %v548
  %v1733 = vunpack.c.l.b16 %v549
  %v1734 = vunpack.c.l.b16 %v550
  %v1735 = vunpack.c.l.b16 %v551
  %v1736 = vunpack.c.l.b16 %v552
  %v1737 = vunpack.c.l.b16 %v553
  %v1738 = vunpack.c.l.b16 %v554
  %v1739 = vpack.c.b16 %v1228, %v1227
  %v1740 = vpack.c.b16 %v1230, %v1229
  %v1741 = vpack.c.b16 %v1232, %v1231
  %v1742 = vpack.c.b16 %v1234, %v1233
  %v1743 = vpack.c.b16 %v1236, %v1235
  %v1744 = vpack.c.b16 %v1238, %v1237
  %v1745 = vpack.c.b16 %v1240, %v1239
  %v1746 = vpack.c.b16 %v1242, %v1241
  %v1747 = vpack.c.b16 %v1244, %v1243
  %v1748 = vpack.c.b16 %v1246, %v1245
  %v1749 = vpack.c.b16 %v1248, %v1247
  %v1750 = vpack.c.b16 %v1250, %v1249
  %v1751 = vpack.c.b16 %v1252, %v1251
  %v1752 = vpack.c.b16 %v1254, %v1253
  %v1753 = vpack.c.b16 %v1256, %v1255
  %v1754 = vpack.c.b16 %v1258, %v1257
  %v1755 = vpack.c.b16 %v1260, %v1259
  %v1756 = vpack.c.b16 %v1262, %v1261
  %v1757 = vpack.c.b16 %v1264, %v1263
  %v1758 = vpack.c.b16 %v1266, %v1265
  %v1759 = vpack.c.b16 %v1268, %v1267
  %v1760 = vpack.c.b16 %v1270, %v1269
  %v1761 = vpack.c.b16 %v1272, %v1271
  %v1762 = vpack.c.b16 %v1274, %v1273
  %v1763 = vpack.c.b16 %v1276, %v1275
  %v1764 = vpack.c.b16 %v1278, %v1277
  %v1765 = vpack.c.b16 %v1280, %v1279
  %v1766 = vpack.c.b16 %v1282, %v1281
  %v1767 = vpack.c.b16 %v1284, %v1283
  %v1768 = vpack.c.b16 %v1286, %v1285
  %v1769 = vpack.c.b16 %v1288, %v1287
  %v1770 = vpack.c.b16 %v1290, %v1289
  %v1771 = vpack.c.b16 %v1292, %v1291
  %v1772 = vpack.c.b16 %v1294, %v1293
  %v1773 = vpack.c.b16 %v1296, %v1295
  %v1774 = vpack.c.b16 %v1298, %v1297
  %v1775 = vpack.c.b16 %v1300, %v1299
  %v1776 = vpack.c.b16 %v1302, %v1301
  %v1777 = vpack.c.b16 %v1304, %v1303
  %v1778 = vpack.c.b16 %v1306, %v1305
  %v1779 = vpack.c.b16 %v1308, %v1307
  %v1780 = vpack.c.b16 %v1310, %v1309
  %v1781 = vpack.c.b16 %v1312, %v1311
  %v1782 = vpack.c.b16 %v1314, %v1313
  %v1783 = vpack.c.b16 %v1316, %v1315
  %v1784 = vpack.c.b16 %v1318, %v1317
  %v1785 = vpack.c.b16 %v1320, %v1319
  %v1786 = vpack.c.b16 %v1322, %v1321
  %v1787 = vpack.c.b16 %v1324, %v1323
  %v1788 = vpack.c.b16 %v1326, %v1325
  %v1789 = vpack.c.b16 %v1328, %v1327
  %v1790 = vpack.c.b16 %v1330, %v1329
  %v1791 = vpack.c.b16 %v1332, %v1331
  %v1792 = vpack.c.b16 %v1334, %v1333
  %v1793 = vpack.c.b16 %v1336, %v1335
  %v1794 = vpack.c.b16 %v1338, %v1337
  %v1795 = vpack.c.b16 %v1340, %v1339
  %v1796 = vpack.c.b16 %v1342, %v1341
  %v1797 = vpack.c.b16 %v1344, %v1343
  %v1798 = vpack.c.b16 %v1346, %v1345
  %v1799 = vpack.c.b16 %v1348, %v1347
  %v1800 = vpack.c.b16 %v1350, %v1349
  %v1801 = vpack.c.b16 %v1352, %v1351
  %v1802 = vpack.c.b16 %v1354, %v1353
  %v1803 = vpack.c.b16 %v1356, %v1355
  %v1804 = vpack.c.b16 %v1358, %v1357
  %v1805 = vpack.c.b16 %v1360, %v1359
  %v1806 = vpack.c.b16 %v1362, %v1361
  %v1807 = vpack.c.b16 %v1364, %v1363
  %v1808 = vpack.c.b16 %v1366, %v1365
  %v1809 = vpack.c.b16 %v1368, %v1367
  %v1810 = vpack.c.b16 %v1370, %v1369
  %v1811 = vpack.c.b16 %v1372, %v1371
  %v1812 = vpack.c.b16 %v1374, %v1373
  %v1813 = vpack.c.b16 %v1376, %v1375
  %v1814 = vpack.c.b16 %v1378, %v1377
  %v1815 = vpack.c.b16 %v1380, %v1379
  %v1816 = vpack.c.b16 %v1382, %v1381
  %v1817 = vpack.c.b16 %v1384, %v1383
  %v1818 = vpack.c.b16 %v1386, %v1385
  %v1819 = vpack.c.b16 %v1388, %v1387
  %v1820 = vpack.c.b16 %v1390, %v1389
  %v1821 = vpack.c.b16 %v1392, %v1391
  %v1822 = vpack.c.b16 %v1394, %v1393
  %v1823 = vpack.c.b16 %v1396, %v1395
  %v1824 = vpack.c.b16 %v1398, %v1397
  %v1825 = vpack.c.b16 %v1400, %v1399
  %v1826 = vpack.c.b16 %v1402, %v1401
  %v1827 = vpack.c.b16 %v1404, %v1403
  %v1828 = vpack.c.b16 %v1406, %v1405
  %v1829 = vpack.c.b16 %v1408, %v1407
  %v1830 = vpack.c.b16 %v1410, %v1409
  %v1831 = vpack.c.b16 %v1412, %v1411
  %v1832 = vpack.c.b16 %v1414, %v1413
  %v1833 = vpack.c.b16 %v1416, %v1415
  %v1834 = vpack.c.b16 %v1418, %v1417
  %v1835 = vpack.c.b16 %v1420, %v1419
  %v1836 = vpack.c.b16 %v1422, %v1421
  %v1837 = vpack.c.b16 %v1424, %v1423
  %v1838 = vpack.c.b16 %v1426, %v1425
  %v1839 = vpack.c.b16 %v1428, %v1427
  %v1840 = vpack.c.b16 %v1430, %v1429
  %v1841 = vpack.c.b16 %v1432, %v1431
  %v1842 = vpack.c.b16 %v1434, %v1433
  %v1843 = vpack.c.b16 %v1436, %v1435
  %v1844 = vpack.c.b16 %v1438, %v1437
  %v1845 = vpack.c.b16 %v1440, %v1439
  %v1846 = vpack.c.b16 %v1442, %v1441
  %v1847 = vpack.c.b16 %v1444, %v1443
  %v1848 = vpack.c.b16 %v1446, %v1445
  %v1849 = vpack.c.b16 %v1448, %v1447
  %v1850 = vpack.c.b16 %v1450, %v1449
  %v1851 = vpack.c.b16 %v1452, %v1451
  %v1852 = vpack.c.b16 %v1454, %v1453
  %v1853 = vpack.c.b16 %v1456, %v1455
  %v1854 = vpack.c.b16 %v1458, %v1457
  %v1855 = vpack.c.b16 %v1460, %v1459
  %v1856 = vpack.c.b16 %v1462, %v1461
  %v1857 = vpack.c.b16 %v1464, %v1463
  %v1858 = vpack.c.b16 %v1466, %v1465
  %v1859 = vpack.c.b16 %v1468, %v1467
  %v1860 = vpack.c.b16 %v1470, %v1469
  %v1861 = vpack.c.b16 %v1472, %v1471
  %v1862 = vpack.c.b16 %v1474, %v1473
  %v1863 = vpack.c.b16 %v1476, %v1475
  %v1864 = vpack.c.b16 %v1478, %v1477
  %v1865 = vpack.c.b16 %v1480, %v1479
  %v1866 = vpack.c.b16 %v1482, %v1481
  %v1867 = vpack.c.b16 %v1484, %v1483
  %v1868 = vpack.c.b16 %v1486, %v1485
  %v1869 = vpack.c.b16 %v1488, %v1487
  %v1870 = vpack.c.b16 %v1490, %v1489
  %v1871 = vpack.c.b16 %v1492, %v1491
  %v1872 = vpack.c.b16 %v1494, %v1493
  %v1873 = vpack.c.b16 %v1496, %v1495
  %v1874 = vpack.c.b16 %v1498, %v1497
  %v1875 = vpack.c.b16 %v1500, %v1499
  %v1876 = vpack.c.b16 %v1502, %v1501
  %v1877 = vpack.c.b16 %v1504, %v1503
  %v1878 = vpack.c.b16 %v1506, %v1505
  %v1879 = vpack.c.b16 %v1508, %v1507
  %v1880 = vpack.c.b16 %v1510, %v1509
  %v1881 = vpack.c.b16 %v1512, %v1511
  %v1882 = vpack.c.b16 %v1514, %v1513
  %v1883 = vpack.c.b16 %v1516, %v1515
  %v1884 = vpack.c.b16 %v1518, %v1517
  %v1885 = vpack.c.b16 %v1520, %v1519
  %v1886 = vpack.c.b16 %v1522, %v1521
  %v1887 = vpack.c.b16 %v1524, %v1523
  %v1888 = vpack.c.b16 %v1526, %v1525
  %v1889 = vpack.c.b16 %v1528, %v1527
  %v1890 = vpack.c.b16 %v1530, %v1529
  %v1891 = vpack.c.b16 %v1532, %v1531
  %v1892 = vpack.c.b16 %v1534, %v1533
  %v1893 = vpack.c.b16 %v1536, %v1535
  %v1894 = vpack.c.b16 %v1538, %v1537
  %v1895 = vpack.c.b16 %v1540, %v1539
  %v1896 = vpack.c.b16 %v1542, %v1541
  %v1897 = vpack.c.b16 %v1544, %v1543
  %v1898 = vpack.c.b16 %v1546, %v1545
  %v1899 = vpack.c.b16 %v1548, %v1547
  %v1900 = vpack.c.b16 %v1550, %v1549
  %v1901 = vpack.c.b16 %v1552, %v1551
  %v1902 = vpack.c.b16 %v1554, %v1553
  %v1903 = vpack.c.b16 %v1556, %v1555
  %v1904 = vpack.c.b16 %v1558, %v1557
  %v1905 = vpack.c.b16 %v1560, %v1559
  %v1906 = vpack.c.b16 %v1562, %v1561
  %v1907 = vpack.c.b16 %v1564, %v1563
  %v1908 = vpack.c.b16 %v1566, %v1565
  %v1909 = vpack.c.b16 %v1568, %v1567
  %v1910 = vpack.c.b16 %v1570, %v1569
  %v1911 = vpack.c.b16 %v1572, %v1571
  %v1912 = vpack.c.b16 %v1574, %v1573
  %v1913 = vpack.c.b16 %v1576, %v1575
  %v1914 = vpack.c.b16 %v1578, %v1577
  %v1915 = vpack.c.b16 %v1580, %v1579
  %v1916 = vpack.c.b16 %v1582, %v1581
  %v1917 = vpack.c.b16 %v1584, %v1583
  %v1918 = vpack.c.b16 %v1586, %v1585
  %v1919 = vpack.c.b16 %v1588, %v1587
  %v1920 = vpack.c.b16 %v1590, %v1589
  %v1921 = vpack.c.b16 %v1592, %v1591
  %v1922 = vpack.c.b16 %v1594, %v1593
  %v1923 = vpack.c.b16 %v1596, %v1595
  %v1924 = vpack.c.b16 %v1598, %v1597
  %v1925 = vpack.c.b16 %v1600, %v1599
  %v1926 = vpack.c.b16 %v1602, %v1601
  %v1927 = vpack.c.b16 %v1604, %v1603
  %v1928 = vpack.c.b16 %v1606, %v1605
  %v1929 = vpack.c.b16 %v1608, %v1607
  %v1930 = vpack.c.b16 %v1610, %v1609
  %v1931 = vpack.c.b16 %v1612, %v1611
  %v1932 = vpack.c.b16 %v1614, %v1613
  %v1933 = vpack.c.b16 %v1616, %v1615
  %v1934 = vpack.c.b16 %v1618, %v1617
  %v1935 = vpack.c.b16 %v1620, %v1619
  %v1936 = vpack.c.b16 %v1622, %v1621
  %v1937 = vpack.c.b16 %v1624, %v1623
  %v1938 = vpack.c.b16 %v1626, %v1625
  %v1939 = vpack.c.b16 %v1628, %v1627
  %v1940 = vpack.c.b16 %v1630, %v1629
  %v1941 = vpack.c.b16 %v1632, %v1631
  %v1942 = vpack.c.b16 %v1634, %v1633
  %v1943 = vpack.c.b16 %v1636, %v1635
  %v1944 = vpack.c.b16 %v1638, %v1637
  %v1945 = vpack.c.b16 %v1640, %v1639
  %v1946 = vpack.c.b16 %v1642, %v1641
  %v1947 = vpack.c.b16 %v1644, %v1643
  %v1948 = vpack.c.b16 %v1646, %v1645
  %v1949 = vpack.c.b16 %v1648, %v1647
  %v1950 = vpack.c.b16 %v1650, %v1649
  %v1951 = vpack.c.b16 %v1652, %v1651
  %v1952 = vpack.c.b16 %v1654, %v1653
  %v1953 = vpack.c.b16 %v1656, %v1655
  %v1954 = vpack.c.b16 %v1658, %v1657
  %v1955 = vpack.c.b16 %v1660, %v1659
  %v1956 = vpack.c.b16 %v1662, %v1661
  %v1957 = vpack.c.b16 %v1664, %v1663
  %v1958 = vpack.c.b16 %v1666, %v1665
  %v1959 = vpack.c.b16 %v1668, %v1667
  %v1960 = vpack.c.b16 %v1670, %v1669
  %v1961 = vpack.c.b16 %v1672, %v1671
  %v1962 = vpack.c.b16 %v1674, %v1673
  %v1963 = vpack.c.b16 %v1676, %v1675
  %v1964 = vpack.c.b16 %v1678, %v1677
  %v1965 = vpack.c.b16 %v1680, %v1679
  %v1966 = vpack.c.b16 %v1682, %v1681
  %v1967 = vpack.c.b16 %v1684, %v1683
  %v1968 = vpack.c.b16 %v1686, %v1685
  %v1969 = vpack.c.b16 %v1688, %v1687
  %v1970 = vpack.c.b16 %v1690, %v1689
  %v1971 = vpack.c.b16 %v1692, %v1691
  %v1972 = vpack.c.b16 %v1694, %v1693
  %v1973 = vpack.c.b16 %v1696, %v1695
  %v1974 = vpack.c.b16 %v1698, %v1697
  %v1975 = vpack.c.b16 %v1700, %v1699
  %v1976 = vpack.c.b16 %v1702, %v1701
  %v1977 = vpack.c.b16 %v1704, %v1703
  %v1978 = vpack.c.b16 %v1706, %v1705
  %v1979 = vpack.c.b16 %v1708, %v1707
  %v1980 = vpack.c.b16 %v1710, %v1709
  %v1981 = vpack.c.b16 %v1712, %v1711
  %v1982 = vpack.c.b16 %v1714, %v1713
  %v1983 = vpack.c.b16 %v1716, %v1715
  %v1984 = vpack.c.b16 %v1718, %v1717
  %v1985 = vpack.c.b16 %v1720, %v1719
  %v1986 = vpack.c.b16 %v1722, %v1721
  %v1987 = vpack.c.b16 %v1724, %v1723
  %v1988 = vpack.c.b16 %v1726, %v1725
  %v1989 = vpack.c.b16 %v1728, %v1727
  %v1990 = vpack.c.b16 %v1730, %v1729
  %v1991 = vpack.c.b16 %v1732, %v1731
  %v1992 = vpack.c.b16 %v1734, %v1733
  %v1993 = vpack.c.b16 %v1736, %v1735
  %v1994 = vpack.c.b16 %v1738, %v1737
  %2251 = vmatpush.bf16.msra.mxu0 %v1746
  %2252 = vmatpush.bf16.msra.mxu0 %v1745
  %2253 = vmatpush.bf16.msra.mxu0 %v1744
  %2254 = vmatpush.bf16.msra.mxu0 %v1743
  %2255 = vmatpush.bf16.msra.mxu0 %v1742
  %2256 = vmatpush.bf16.msra.mxu0 %v1741
  %2257 = vmatpush.bf16.msra.mxu0 %v1740
  %2258 = vmatpush.bf16.msra.mxu0 %v1739
  %2259 = vmatmul.bf16.gmra.mxu0 %v651
  %v2260 = vpop.f32.mrf.mxu0
  %v2261 = vadd.f32 0.0, %v2260
  %v2262 = vpop.f32.mrf.mxu0
  %v2263 = vadd.f32 0.0, %v2262
  %2264 = vdwg.mxu0
  %2265 = vmatpush.bf16.msra.mxu0 %v1754
  %2266 = vmatpush.bf16.msra.mxu0 %v1753
  %2267 = vmatpush.bf16.msra.mxu0 %v1752
  %2268 = vmatpush.bf16.msra.mxu0 %v1751
  %2269 = vmatpush.bf16.msra.mxu0 %v1750
  %2270 = vmatpush.bf16.msra.mxu0 %v1749
  %2271 = vmatpush.bf16.msra.mxu0 %v1748
  %2272 = vmatpush.bf16.msra.mxu0 %v1747
  %2273 = vmatmul.bf16.gmra.mxu0 %v652
  %v2274 = vpop.f32.mrf.mxu0
  %v2275 = vadd.f32 %v2261, %v2274
  %v2276 = vpop.f32.mrf.mxu0
  %v2277 = vadd.f32 %v2263, %v2276
  %2278 = vdwg.mxu0
  %2279 = vmatpush.bf16.msra.mxu0 %v1762
  %2280 = vmatpush.bf16.msra.mxu0 %v1761
  %2281 = vmatpush.bf16.msra.mxu0 %v1760
  %2282 = vmatpush.bf16.msra.mxu0 %v1759
  %2283 = vmatpush.bf16.msra.mxu0 %v1758
  %2284 = vmatpush.bf16.msra.mxu0 %v1757
  %2285 = vmatpush.bf16.msra.mxu0 %v1756
  %2286 = vmatpush.bf16.msra.mxu0 %v1755
  %2287 = vmatmul.bf16.gmra.mxu0 %v653
  %v2288 = vpop.f32.mrf.mxu0
  %v2289 = vadd.f32 %v2275, %v2288
  %v2290 = vpop.f32.mrf.mxu0
  %v2291 = vadd.f32 %v2277, %v2290
  %2292 = vdwg.mxu0
  %2293 = vmatpush.bf16.msra.mxu0 %v1770
  %2294 = vmatpush.bf16.msra.mxu0 %v1769
  %2295 = vmatpush.bf16.msra.mxu0 %v1768
  %2296 = vmatpush.bf16.msra.mxu0 %v1767
  %2297 = vmatpush.bf16.msra.mxu0 %v1766
  %2298 = vmatpush.bf16.msra.mxu0 %v1765
  %2299 = vmatpush.bf16.msra.mxu0 %v1764
  %2300 = vmatpush.bf16.msra.mxu0 %v1763
  %2301 = vmatmul.bf16.gmra.mxu0 %v654
  %v2302 = vpop.f32.mrf.mxu0
  %v2303 = vadd.f32 %v2289, %v2302
  %v2304 = vpop.f32.mrf.mxu0
  %v2305 = vadd.f32 %v2291, %v2304
  %2306 = vdwg.mxu0
  %2307 = vmatpush.bf16.msra.mxu0 %v1778
  %2308 = vmatpush.bf16.msra.mxu0 %v1777
  %2309 = vmatpush.bf16.msra.mxu0 %v1776
  %2310 = vmatpush.bf16.msra.mxu0 %v1775
  %2311 = vmatpush.bf16.msra.mxu0 %v1774
  %2312 = vmatpush.bf16.msra.mxu0 %v1773
  %2313 = vmatpush.bf16.msra.mxu0 %v1772
  %2314 = vmatpush.bf16.msra.mxu0 %v1771
  %2315 = vmatmul.bf16.gmra.mxu0 %v655
  %v2316 = vpop.f32.mrf.mxu0
  %v2317 = vadd.f32 %v2303, %v2316
  %v2318 = vpop.f32.mrf.mxu0
  %v2319 = vadd.f32 %v2305, %v2318
  %2320 = vdwg.mxu0
  %2321 = vmatpush.bf16.msra.mxu0 %v1786
  %2322 = vmatpush.bf16.msra.mxu0 %v1785
  %2323 = vmatpush.bf16.msra.mxu0 %v1784
  %2324 = vmatpush.bf16.msra.mxu0 %v1783
  %2325 = vmatpush.bf16.msra.mxu0 %v1782
  %2326 = vmatpush.bf16.msra.mxu0 %v1781
  %2327 = vmatpush.bf16.msra.mxu0 %v1780
  %2328 = vmatpush.bf16.msra.mxu0 %v1779
  %2329 = vmatmul.bf16.gmra.mxu0 %v656
  %v2330 = vpop.f32.mrf.mxu0
  %v2331 = vadd.f32 %v2317, %v2330
  %v2332 = vpop.f32.mrf.mxu0
  %v2333 = vadd.f32 %v2319, %v2332
  %2334 = vdwg.mxu0
  %2335 = vmatpush.bf16.msra.mxu0 %v1794
  %2336 = vmatpush.bf16.msra.mxu0 %v1793
  %2337 = vmatpush.bf16.msra.mxu0 %v1792
  %2338 = vmatpush.bf16.msra.mxu0 %v1791
  %2339 = vmatpush.bf16.msra.mxu0 %v1790
  %2340 = vmatpush.bf16.msra.mxu0 %v1789
  %2341 = vmatpush.bf16.msra.mxu0 %v1788
  %2342 = vmatpush.bf16.msra.mxu0 %v1787
  %2343 = vmatmul.bf16.gmra.mxu0 %v657
  %v2344 = vpop.f32.mrf.mxu0
  %v2345 = vadd.f32 %v2331, %v2344
  %v2346 = vpop.f32.mrf.mxu0
  %v2347 = vadd.f32 %v2333, %v2346
  %2348 = vdwg.mxu0
  %2349 = vmatpush.bf16.msra.mxu0 %v1802
  %2350 = vmatpush.bf16.msra.mxu0 %v1801
  %2351 = vmatpush.bf16.msra.mxu0 %v1800
  %2352 = vmatpush.bf16.msra.mxu0 %v1799
  %2353 = vmatpush.bf16.msra.mxu0 %v1798
  %2354 = vmatpush.bf16.msra.mxu0 %v1797
  %2355 = vmatpush.bf16.msra.mxu0 %v1796
  %2356 = vmatpush.bf16.msra.mxu0 %v1795
  %2357 = vmatmul.bf16.gmra.mxu0 %v658
  %v2358 = vpop.f32.mrf.mxu0
  %v2359 = vadd.f32 %v2345, %v2358
  %v2360 = vpop.f32.mrf.mxu0
  %v2361 = vadd.f32 %v2347, %v2360
  %2362 = vdwg.mxu0
  %2363 = vmatpush.bf16.msra.mxu0 %v1810
  %2364 = vmatpush.bf16.msra.mxu0 %v1809
  %2365 = vmatpush.bf16.msra.mxu0 %v1808
  %2366 = vmatpush.bf16.msra.mxu0 %v1807
  %2367 = vmatpush.bf16.msra.mxu0 %v1806
  %2368 = vmatpush.bf16.msra.mxu0 %v1805
  %2369 = vmatpush.bf16.msra.mxu0 %v1804
  %2370 = vmatpush.bf16.msra.mxu0 %v1803
  %2371 = vmatmul.bf16.gmra.mxu0 %v659
  %v2372 = vpop.f32.mrf.mxu0
  %v2373 = vadd.f32 %v2359, %v2372
  %v2374 = vpop.f32.mrf.mxu0
  %v2375 = vadd.f32 %v2361, %v2374
  %2376 = vdwg.mxu0
  %2377 = vmatpush.bf16.msra.mxu0 %v1818
  %2378 = vmatpush.bf16.msra.mxu0 %v1817
  %2379 = vmatpush.bf16.msra.mxu0 %v1816
  %2380 = vmatpush.bf16.msra.mxu0 %v1815
  %2381 = vmatpush.bf16.msra.mxu0 %v1814
  %2382 = vmatpush.bf16.msra.mxu0 %v1813
  %2383 = vmatpush.bf16.msra.mxu0 %v1812
  %2384 = vmatpush.bf16.msra.mxu0 %v1811
  %2385 = vmatmul.bf16.gmra.mxu0 %v660
  %v2386 = vpop.f32.mrf.mxu0
  %v2387 = vadd.f32 %v2373, %v2386
  %v2388 = vpop.f32.mrf.mxu0
  %v2389 = vadd.f32 %v2375, %v2388
  %2390 = vdwg.mxu0
  %2391 = vmatpush.bf16.msra.mxu0 %v1826
  %2392 = vmatpush.bf16.msra.mxu0 %v1825
  %2393 = vmatpush.bf16.msra.mxu0 %v1824
  %2394 = vmatpush.bf16.msra.mxu0 %v1823
  %2395 = vmatpush.bf16.msra.mxu0 %v1822
  %2396 = vmatpush.bf16.msra.mxu0 %v1821
  %2397 = vmatpush.bf16.msra.mxu0 %v1820
  %2398 = vmatpush.bf16.msra.mxu0 %v1819
  %2399 = vmatmul.bf16.gmra.mxu0 %v661
  %v2400 = vpop.f32.mrf.mxu0
  %v2401 = vadd.f32 %v2387, %v2400
  %v2402 = vpop.f32.mrf.mxu0
  %v2403 = vadd.f32 %v2389, %v2402
  %2404 = vdwg.mxu0
  %2405 = vmatpush.bf16.msra.mxu0 %v1834
  %2406 = vmatpush.bf16.msra.mxu0 %v1833
  %2407 = vmatpush.bf16.msra.mxu0 %v1832
  %2408 = vmatpush.bf16.msra.mxu0 %v1831
  %2409 = vmatpush.bf16.msra.mxu0 %v1830
  %2410 = vmatpush.bf16.msra.mxu0 %v1829
  %2411 = vmatpush.bf16.msra.mxu0 %v1828
  %2412 = vmatpush.bf16.msra.mxu0 %v1827
  %2413 = vmatmul.bf16.gmra.mxu0 %v662
  %v2414 = vpop.f32.mrf.mxu0
  %v2415 = vadd.f32 %v2401, %v2414
  %v2416 = vpop.f32.mrf.mxu0
  %v2417 = vadd.f32 %v2403, %v2416
  %2418 = vdwg.mxu0
  %2419 = vmatpush.bf16.msra.mxu0 %v1842
  %2420 = vmatpush.bf16.msra.mxu0 %v1841
  %2421 = vmatpush.bf16.msra.mxu0 %v1840
  %2422 = vmatpush.bf16.msra.mxu0 %v1839
  %2423 = vmatpush.bf16.msra.mxu0 %v1838
  %2424 = vmatpush.bf16.msra.mxu0 %v1837
  %2425 = vmatpush.bf16.msra.mxu0 %v1836
  %2426 = vmatpush.bf16.msra.mxu0 %v1835
  %2427 = vmatmul.bf16.gmra.mxu0 %v663
  %v2428 = vpop.f32.mrf.mxu0
  %v2429 = vadd.f32 %v2415, %v2428
  %v2430 = vpop.f32.mrf.mxu0
  %v2431 = vadd.f32 %v2417, %v2430
  %2432 = vdwg.mxu0
  %2433 = vmatpush.bf16.msra.mxu0 %v1850
  %2434 = vmatpush.bf16.msra.mxu0 %v1849
  %2435 = vmatpush.bf16.msra.mxu0 %v1848
  %2436 = vmatpush.bf16.msra.mxu0 %v1847
  %2437 = vmatpush.bf16.msra.mxu0 %v1846
  %2438 = vmatpush.bf16.msra.mxu0 %v1845
  %2439 = vmatpush.bf16.msra.mxu0 %v1844
  %2440 = vmatpush.bf16.msra.mxu0 %v1843
  %2441 = vmatmul.bf16.gmra.mxu0 %v664
  %v2442 = vpop.f32.mrf.mxu0
  %v2443 = vadd.f32 %v2429, %v2442
  %v2444 = vpop.f32.mrf.mxu0
  %v2445 = vadd.f32 %v2431, %v2444
  %2446 = vdwg.mxu0
  %2447 = vmatpush.bf16.msra.mxu0 %v1858
  %2448 = vmatpush.bf16.msra.mxu0 %v1857
  %2449 = vmatpush.bf16.msra.mxu0 %v1856
  %2450 = vmatpush.bf16.msra.mxu0 %v1855
  %2451 = vmatpush.bf16.msra.mxu0 %v1854
  %2452 = vmatpush.bf16.msra.mxu0 %v1853
  %2453 = vmatpush.bf16.msra.mxu0 %v1852
  %2454 = vmatpush.bf16.msra.mxu0 %v1851
  %2455 = vmatmul.bf16.gmra.mxu0 %v665
  %v2456 = vpop.f32.mrf.mxu0
  %v2457 = vadd.f32 %v2443, %v2456
  %v2458 = vpop.f32.mrf.mxu0
  %v2459 = vadd.f32 %v2445, %v2458
  %2460 = vdwg.mxu0
  %2461 = vmatpush.bf16.msra.mxu0 %v1866
  %2462 = vmatpush.bf16.msra.mxu0 %v1865
  %2463 = vmatpush.bf16.msra.mxu0 %v1864
  %2464 = vmatpush.bf16.msra.mxu0 %v1863
  %2465 = vmatpush.bf16.msra.mxu0 %v1862
  %2466 = vmatpush.bf16.msra.mxu0 %v1861
  %2467 = vmatpush.bf16.msra.mxu0 %v1860
  %2468 = vmatpush.bf16.msra.mxu0 %v1859
  %2469 = vmatmul.bf16.gmra.mxu0 %v666
  %v2470 = vpop.f32.mrf.mxu0
  %v2471 = vadd.f32 %v2457, %v2470
  %v2472 = vpop.f32.mrf.mxu0
  %v2473 = vadd.f32 %v2459, %v2472
  %2474 = vdwg.mxu0
  %2475 = vmatpush.bf16.msra.mxu0 %v1874
  %2476 = vmatpush.bf16.msra.mxu0 %v1873
  %2477 = vmatpush.bf16.msra.mxu0 %v1872
  %2478 = vmatpush.bf16.msra.mxu0 %v1871
  %2479 = vmatpush.bf16.msra.mxu0 %v1870
  %2480 = vmatpush.bf16.msra.mxu0 %v1869
  %2481 = vmatpush.bf16.msra.mxu0 %v1868
  %2482 = vmatpush.bf16.msra.mxu0 %v1867
  %2483 = vmatmul.bf16.gmra.mxu0 %v667
  %v2484 = vpop.f32.mrf.mxu0
  %v2485 = vadd.f32 %v2471, %v2484
  %v2486 = vpop.f32.mrf.mxu0
  %v2487 = vadd.f32 %v2473, %v2486
  %2488 = vdwg.mxu0
  %2489 = vmatpush.bf16.msra.mxu0 %v1882
  %2490 = vmatpush.bf16.msra.mxu0 %v1881
  %2491 = vmatpush.bf16.msra.mxu0 %v1880
  %2492 = vmatpush.bf16.msra.mxu0 %v1879
  %2493 = vmatpush.bf16.msra.mxu0 %v1878
  %2494 = vmatpush.bf16.msra.mxu0 %v1877
  %2495 = vmatpush.bf16.msra.mxu0 %v1876
  %2496 = vmatpush.bf16.msra.mxu0 %v1875
  %2497 = vmatmul.bf16.gmra.mxu0 %v668
  %v2498 = vpop.f32.mrf.mxu0
  %v2499 = vadd.f32 %v2485, %v2498
  %v2500 = vpop.f32.mrf.mxu0
  %v2501 = vadd.f32 %v2487, %v2500
  %2502 = vdwg.mxu0
  %2503 = vmatpush.bf16.msra.mxu0 %v1890
  %2504 = vmatpush.bf16.msra.mxu0 %v1889
  %2505 = vmatpush.bf16.msra.mxu0 %v1888
  %2506 = vmatpush.bf16.msra.mxu0 %v1887
  %2507 = vmatpush.bf16.msra.mxu0 %v1886
  %2508 = vmatpush.bf16.msra.mxu0 %v1885
  %2509 = vmatpush.bf16.msra.mxu0 %v1884
  %2510 = vmatpush.bf16.msra.mxu0 %v1883
  %2511 = vmatmul.bf16.gmra.mxu0 %v669
  %v2512 = vpop.f32.mrf.mxu0
  %v2513 = vadd.f32 %v2499, %v2512
  %v2514 = vpop.f32.mrf.mxu0
  %v2515 = vadd.f32 %v2501, %v2514
  %2516 = vdwg.mxu0
  %2517 = vmatpush.bf16.msra.mxu0 %v1898
  %2518 = vmatpush.bf16.msra.mxu0 %v1897
  %2519 = vmatpush.bf16.msra.mxu0 %v1896
  %2520 = vmatpush.bf16.msra.mxu0 %v1895
  %2521 = vmatpush.bf16.msra.mxu0 %v1894
  %2522 = vmatpush.bf16.msra.mxu0 %v1893
  %2523 = vmatpush.bf16.msra.mxu0 %v1892
  %2524 = vmatpush.bf16.msra.mxu0 %v1891
  %2525 = vmatmul.bf16.gmra.mxu0 %v670
  %v2526 = vpop.f32.mrf.mxu0
  %v2527 = vadd.f32 %v2513, %v2526
  %v2528 = vpop.f32.mrf.mxu0
  %v2529 = vadd.f32 %v2515, %v2528
  %2530 = vdwg.mxu0
  %2531 = vmatpush.bf16.msra.mxu0 %v1906
  %2532 = vmatpush.bf16.msra.mxu0 %v1905
  %2533 = vmatpush.bf16.msra.mxu0 %v1904
  %2534 = vmatpush.bf16.msra.mxu0 %v1903
  %2535 = vmatpush.bf16.msra.mxu0 %v1902
  %2536 = vmatpush.bf16.msra.mxu0 %v1901
  %2537 = vmatpush.bf16.msra.mxu0 %v1900
  %2538 = vmatpush.bf16.msra.mxu0 %v1899
  %2539 = vmatmul.bf16.gmra.mxu0 %v671
  %v2540 = vpop.f32.mrf.mxu0
  %v2541 = vadd.f32 %v2527, %v2540
  %v2542 = vpop.f32.mrf.mxu0
  %v2543 = vadd.f32 %v2529, %v2542
  %2544 = vdwg.mxu0
  %2545 = vmatpush.bf16.msra.mxu0 %v1914
  %2546 = vmatpush.bf16.msra.mxu0 %v1913
  %2547 = vmatpush.bf16.msra.mxu0 %v1912
  %2548 = vmatpush.bf16.msra.mxu0 %v1911
  %2549 = vmatpush.bf16.msra.mxu0 %v1910
  %2550 = vmatpush.bf16.msra.mxu0 %v1909
  %2551 = vmatpush.bf16.msra.mxu0 %v1908
  %2552 = vmatpush.bf16.msra.mxu0 %v1907
  %2553 = vmatmul.bf16.gmra.mxu0 %v672
  %v2554 = vpop.f32.mrf.mxu0
  %v2555 = vadd.f32 %v2541, %v2554
  %v2556 = vpop.f32.mrf.mxu0
  %v2557 = vadd.f32 %v2543, %v2556
  %2558 = vdwg.mxu0
  %2559 = vmatpush.bf16.msra.mxu0 %v1922
  %2560 = vmatpush.bf16.msra.mxu0 %v1921
  %2561 = vmatpush.bf16.msra.mxu0 %v1920
  %2562 = vmatpush.bf16.msra.mxu0 %v1919
  %2563 = vmatpush.bf16.msra.mxu0 %v1918
  %2564 = vmatpush.bf16.msra.mxu0 %v1917
  %2565 = vmatpush.bf16.msra.mxu0 %v1916
  %2566 = vmatpush.bf16.msra.mxu0 %v1915
  %2567 = vmatmul.bf16.gmra.mxu0 %v673
  %v2568 = vpop.f32.mrf.mxu0
  %v2569 = vadd.f32 %v2555, %v2568
  %v2570 = vpop.f32.mrf.mxu0
  %v2571 = vadd.f32 %v2557, %v2570
  %2572 = vdwg.mxu0
  %2573 = vmatpush.bf16.msra.mxu0 %v1930
  %2574 = vmatpush.bf16.msra.mxu0 %v1929
  %2575 = vmatpush.bf16.msra.mxu0 %v1928
  %2576 = vmatpush.bf16.msra.mxu0 %v1927
  %2577 = vmatpush.bf16.msra.mxu0 %v1926
  %2578 = vmatpush.bf16.msra.mxu0 %v1925
  %2579 = vmatpush.bf16.msra.mxu0 %v1924
  %2580 = vmatpush.bf16.msra.mxu0 %v1923
  %2581 = vmatmul.bf16.gmra.mxu0 %v674
  %v2582 = vpop.f32.mrf.mxu0
  %v2583 = vadd.f32 %v2569, %v2582
  %v2584 = vpop.f32.mrf.mxu0
  %v2585 = vadd.f32 %v2571, %v2584
  %2586 = vdwg.mxu0
  %2587 = vmatpush.bf16.msra.mxu0 %v1938
  %2588 = vmatpush.bf16.msra.mxu0 %v1937
  %2589 = vmatpush.bf16.msra.mxu0 %v1936
  %2590 = vmatpush.bf16.msra.mxu0 %v1935
  %2591 = vmatpush.bf16.msra.mxu0 %v1934
  %2592 = vmatpush.bf16.msra.mxu0 %v1933
  %2593 = vmatpush.bf16.msra.mxu0 %v1932
  %2594 = vmatpush.bf16.msra.mxu0 %v1931
  %2595 = vmatmul.bf16.gmra.mxu0 %v675
  %v2596 = vpop.f32.mrf.mxu0
  %v2597 = vadd.f32 %v2583, %v2596
  %v2598 = vpop.f32.mrf.mxu0
  %v2599 = vadd.f32 %v2585, %v2598
  %2600 = vdwg.mxu0
  %2601 = vmatpush.bf16.msra.mxu0 %v1946
  %2602 = vmatpush.bf16.msra.mxu0 %v1945
  %2603 = vmatpush.bf16.msra.mxu0 %v1944
  %2604 = vmatpush.bf16.msra.mxu0 %v1943
  %2605 = vmatpush.bf16.msra.mxu0 %v1942
  %2606 = vmatpush.bf16.msra.mxu0 %v1941
  %2607 = vmatpush.bf16.msra.mxu0 %v1940
  %2608 = vmatpush.bf16.msra.mxu0 %v1939
  %2609 = vmatmul.bf16.gmra.mxu0 %v676
  %v2610 = vpop.f32.mrf.mxu0
  %v2611 = vadd.f32 %v2597, %v2610
  %v2612 = vpop.f32.mrf.mxu0
  %v2613 = vadd.f32 %v2599, %v2612
  %2614 = vdwg.mxu0
  %2615 = vmatpush.bf16.msra.mxu0 %v1954
  %2616 = vmatpush.bf16.msra.mxu0 %v1953
  %2617 = vmatpush.bf16.msra.mxu0 %v1952
  %2618 = vmatpush.bf16.msra.mxu0 %v1951
  %2619 = vmatpush.bf16.msra.mxu0 %v1950
  %2620 = vmatpush.bf16.msra.mxu0 %v1949
  %2621 = vmatpush.bf16.msra.mxu0 %v1948
  %2622 = vmatpush.bf16.msra.mxu0 %v1947
  %2623 = vmatmul.bf16.gmra.mxu0 %v677
  %v2624 = vpop.f32.mrf.mxu0
  %v2625 = vadd.f32 %v2611, %v2624
  %v2626 = vpop.f32.mrf.mxu0
  %v2627 = vadd.f32 %v2613, %v2626
  %2628 = vdwg.mxu0
  %2629 = vmatpush.bf16.msra.mxu0 %v1962
  %2630 = vmatpush.bf16.msra.mxu0 %v1961
  %2631 = vmatpush.bf16.msra.mxu0 %v1960
  %2632 = vmatpush.bf16.msra.mxu0 %v1959
  %2633 = vmatpush.bf16.msra.mxu0 %v1958
  %2634 = vmatpush.bf16.msra.mxu0 %v1957
  %2635 = vmatpush.bf16.msra.mxu0 %v1956
  %2636 = vmatpush.bf16.msra.mxu0 %v1955
  %2637 = vmatmul.bf16.gmra.mxu0 %v678
  %v2638 = vpop.f32.mrf.mxu0
  %v2639 = vadd.f32 %v2625, %v2638
  %v2640 = vpop.f32.mrf.mxu0
  %v2641 = vadd.f32 %v2627, %v2640
  %2642 = vdwg.mxu0
  %2643 = vmatpush.bf16.msra.mxu0 %v1970
  %2644 = vmatpush.bf16.msra.mxu0 %v1969
  %2645 = vmatpush.bf16.msra.mxu0 %v1968
  %2646 = vmatpush.bf16.msra.mxu0 %v1967
  %2647 = vmatpush.bf16.msra.mxu0 %v1966
  %2648 = vmatpush.bf16.msra.mxu0 %v1965
  %2649 = vmatpush.bf16.msra.mxu0 %v1964
  %2650 = vmatpush.bf16.msra.mxu0 %v1963
  %2651 = vmatmul.bf16.gmra.mxu0 %v679
  %v2652 = vpop.f32.mrf.mxu0
  %v2653 = vadd.f32 %v2639, %v2652
  %v2654 = vpop.f32.mrf.mxu0
  %v2655 = vadd.f32 %v2641, %v2654
  %2656 = vdwg.mxu0
  %2657 = vmatpush.bf16.msra.mxu0 %v1978
  %2658 = vmatpush.bf16.msra.mxu0 %v1977
  %2659 = vmatpush.bf16.msra.mxu0 %v1976
  %2660 = vmatpush.bf16.msra.mxu0 %v1975
  %2661 = vmatpush.bf16.msra.mxu0 %v1974
  %2662 = vmatpush.bf16.msra.mxu0 %v1973
  %2663 = vmatpush.bf16.msra.mxu0 %v1972
  %2664 = vmatpush.bf16.msra.mxu0 %v1971
  %2665 = vmatmul.bf16.gmra.mxu0 %v680
  %v2666 = vpop.f32.mrf.mxu0
  %v2667 = vadd.f32 %v2653, %v2666
  %v2668 = vpop.f32.mrf.mxu0
  %v2669 = vadd.f32 %v2655, %v2668
  %2670 = vdwg.mxu0
  %2671 = vmatpush.bf16.msra.mxu0 %v1986
  %2672 = vmatpush.bf16.msra.mxu0 %v1985
  %2673 = vmatpush.bf16.msra.mxu0 %v1984
  %2674 = vmatpush.bf16.msra.mxu0 %v1983
  %2675 = vmatpush.bf16.msra.mxu0 %v1982
  %2676 = vmatpush.bf16.msra.mxu0 %v1981
  %2677 = vmatpush.bf16.msra.mxu0 %v1980
  %2678 = vmatpush.bf16.msra.mxu0 %v1979
  %2679 = vmatmul.bf16.gmra.mxu0 %v681
  %v2680 = vpop.f32.mrf.mxu0
  %v2681 = vadd.f32 %v2667, %v2680
  %v2682 = vpop.f32.mrf.mxu0
  %v2683 = vadd.f32 %v2669, %v2682
  %2684 = vdwg.mxu0
  %2685 = vmatpush.bf16.msra.mxu0 %v1994
  %2686 = vmatpush.bf16.msra.mxu0 %v1993
  %2687 = vmatpush.bf16.msra.mxu0 %v1992
  %2688 = vmatpush.bf16.msra.mxu0 %v1991
  %2689 = vmatpush.bf16.msra.mxu0 %v1990
  %2690 = vmatpush.bf16.msra.mxu0 %v1989
  %2691 = vmatpush.bf16.msra.mxu0 %v1988
  %2692 = vmatpush.bf16.msra.mxu0 %v1987
  %2693 = vmatmul.bf16.gmra.mxu0 %v682
  %v2694 = vpop.f32.mrf.mxu0
  %v2695 = vadd.f32 %v2681, %v2694
  %v2696 = vpop.f32.mrf.mxu0
  %v2697 = vadd.f32 %v2683, %v2696
  %2698 = vdwg.mxu0
  %v2699 = vxor.u32 %v2695, 2147483648
  %v2700 = vxor.u32 %v2697, 2147483648
  %v2701 = vmul.f32 %v2699, 1.442695
  %v2702 = vpow.pop %v2701
  %v2703 = vmul.f32 %v2700, 1.442695
  %v2704 = vpow.pop %v2703
  %v2705 = vadd.f32 %v2702, 1.0
  %v2706 = vadd.f32 %v2704, 1.0
  %v2707 = vrcp.pop %v2705
  %v2708 = vmul.f32 %v2705, %v2707
  %v2709 = vsub.f32 1.0, %v2708
  %v2710 = vmul.f32 %v2707, %v2709
  %v2711 = vadd.f32 %v2707, %v2710
  %vm2712 = vweird.f32 %v2705
  %vm2713 = vweird.f32 %v2707
  %vm2714 = vmor %vm2712, %vm2713
  %v2715 = vsel %vm2714, %v2707, %v2711
  %v2716 = vand.u32 2147483647, %v2705
  %vm2717 = vcmp.eq.f32.partialorder %v2716, 8.507059e+37
  %v2718 = vand.u32 %v2705, 2147483648
  %v2719 = vor.u32 1.1754944e-38, %v2718
  %v2720 = vsel %vm2717, %v2719, %v2715
  %v2721 = vmul.f32 1.0, %v2720
  %v2722 = vrcp.pop %v2706
  %v2723 = vmul.f32 %v2706, %v2722
  %v2724 = vsub.f32 1.0, %v2723
  %v2725 = vmul.f32 %v2722, %v2724
  %v2726 = vadd.f32 %v2722, %v2725
  %vm2727 = vweird.f32 %v2706
  %vm2728 = vweird.f32 %v2722
  %vm2729 = vmor %vm2727, %vm2728
  %v2730 = vsel %vm2729, %v2722, %v2726
  %v2731 = vand.u32 2147483647, %v2706
  %vm2732 = vcmp.eq.f32.partialorder %v2731, 8.507059e+37
  %v2733 = vand.u32 %v2706, 2147483648
  %v2734 = vor.u32 1.1754944e-38, %v2733
  %v2735 = vsel %vm2732, %v2734, %v2730
  %v2736 = vmul.f32 1.0, %v2735
  %2737 = vst [vmem:[%s2] sm:$0xff] %v2721
  %2738 = vst [vmem:[%s2 + $0x8] sm:$0xff] %v2736
  // Predicated region
  $region10: #{discriminator_forward.13} parent=0 // pred_check
    _
  $region11: #{discriminator_forward.13} parent=0 // pred_check_branch
    %2740 = sbr.rel (0) target = $region13
  $region12: #{discriminator_forward.13} parent=0 // pred_region
    _
  $region13: #{discriminator_forward.13} parent=0 // pred_fallthru
    _
  // Predicated region
  $region14: #{discriminator_forward.13} parent=0 // pred_check
    _
  $region15: #{discriminator_forward.13} parent=0 // pred_check_branch
    %2742 = sbr.rel (0) target = $region17
  $region16: #{discriminator_forward.13} parent=0 // pred_region
    _
  $region17: #{discriminator_forward.13} parent=0 // pred_fallthru
    _

</llo_original>
